<compile_context>
chip_gen: v5e
topology: v5e:2x2
jax: 0.10.0
libtpu: 0.0.40
codegen_flags: <defaults>
</compile_context>

<pallas_src>
import functools

import jax
import jax.numpy as jnp
from jax.experimental import pallas as pl
from jax.experimental.pallas import tpu as pltpu


_SQRT2_INV = 0.7071067811865476


def _tpu_mem_config():
    """Generation-aware VMEM limits (v5e/v6e: 128 MiB, v7x: 64 MiB per TensorCore)."""
    cap = 64 * 1024 * 1024
    try:
        cap_q = getattr(pltpu.get_tpu_info(), "vmem_capacity_bytes", None)
        if cap_q:
            cap = int(cap_q)
    except Exception:
        pass
    vmem_limit = (cap * 3) // 4          # 96 MiB on 128-MiB chips, 48 MiB on v7x
    mm_budget = (cap * 3) // 8           # 48 MiB tile budget, 24 MiB on v7x
    num_tc = 2 if cap <= 64 * 1024 * 1024 else 1   # 64-MiB VMEM => assume 2-TC v7x
    return vmem_limit, mm_budget, num_tc


_VMEM_LIMIT, _MM_VMEM_BUDGET, _NUM_TC = _tpu_mem_config()


# ------------------------------------------------------------------ in-kernel helpers
def _erf(x):
    # f32 erf, Abramowitz & Stegun 7.1.26 (|err| <= 1.5e-7): exp on the EUP, rest on VPU.
    a1, a2, a3, a4, a5 = 0.254829592, -0.284496736, 1.421413741, -1.453152027, 1.061405429
    p = 0.3275911
    sgn = jnp.where(x >= 0.0, 1.0, -1.0)
    ax = jnp.abs(x)
    t = 1.0 / (1.0 + p * ax)
    poly = ((((a5 * t + a4) * t + a3) * t + a2) * t + a1) * t
    return sgn * (1.0 - poly * jnp.exp(-ax * ax))


def _layernorm_f32(x, g, b, eps):
    mu = jnp.mean(x, axis=-1, keepdims=True)
    xc = x - mu
    var = jnp.mean(xc * xc, axis=-1, keepdims=True)
    return xc * jax.lax.rsqrt(var + eps) * g + b


# ------------------------------------- fused matmul (+preLN, +bias, +postLN, +act, +residual)
def _mm_kernel(*refs, act, pre_eps, post_eps, has_res):
    x_ref, w_ref, b_ref = refs[0], refs[1], refs[2]
    pos = 3
    x = x_ref[...].astype(jnp.float32)
    if pre_eps is not None:                      # fused pre-LayerNorm (LN -> matmul), f32
        g_ref, be_ref = refs[pos], refs[pos + 1]
        pos += 2
        x = _layernorm_f32(x, g_ref[...], be_ref[...], pre_eps)
    # bf16 MXU operands, f32 accumulate.
    acc = jnp.dot(x.astype(jnp.bfloat16), w_ref[...],
                  preferred_element_type=jnp.float32)
    acc = acc + b_ref[...]
    if post_eps is not None:                     # fused post-LayerNorm (matmul -> LN), f32
        g_ref, be_ref = refs[pos], refs[pos + 1]
        pos += 2
        acc = _layernorm_f32(acc, g_ref[...], be_ref[...], post_eps)
    if act == "relu":
        acc = jnp.maximum(acc, 0.0)
    elif act == "gelu":                          # exact-erf GELU (nn.GELU default), fused
        acc = 0.5 * acc * (1.0 + _erf(acc * _SQRT2_INV))
    if has_res:                                  # fused residual add (shares out BlockSpec)
        acc = acc + refs[pos][...].astype(jnp.float32)
        pos += 1
    o_ref = refs[pos]
    o_ref[...] = acc.astype(o_ref.dtype)


def _choose_tiles(M, K, N, force_full_n=False):
    """VMEM-budget-aware (tm, tn); big tiles on single-TC chips, >=4 steps on v7x."""
    xb, wb, ob = 4, 2, 4   # f32 activations, bf16 weights, f32 output/residual

    def fits(tm, tn):
        # x / w / out (and residual) tiles are double-buffered by the pipeline.
        return 2 * (tm * K * xb + K * tn * wb + 2 * tm * tn * ob) + 64 * max(K, N) \
            <= _MM_VMEM_BUDGET

    tn = N
    if not force_full_n and not fits(8, N):
        for cand in (2048, 1024, 512, 256, 128):
            if N % cand == 0 and fits(8, cand):
                tn = cand
                break

    tm = M
    if not fits(M, tn):
        for cand in (2048, 1024, 512, 256, 128, 64, 32, 16, 8):
            if cand <= M and M % cand == 0 and fits(cand, tn):
                tm = cand
                break

    # v7x megacore: make sure each TensorCore gets >=2 pipelined steps.  Single-TC chips
    # (v5e/v6e) keep one large tile (a forced split there is pure per-step overhead).
    if _NUM_TC > 1:
        while ((M // tm) * (N // tn) < 2 * _NUM_TC and tm % 2 == 0
               and tm // 2 >= 8 and M % (tm // 2) == 0):
            tm //= 2
    return tm, tn


def matmul_bias_act(x, w, b=None, act="none", pre_ln=None, post_ln=None, residual=None):
    """out = [residual +] act( post_LN( pre_LN(x) @ w + b ) ); LNs over the last dim."""
    M, K = x.shape
    K2, N = w.shape
    assert K == K2
    w = w.astype(jnp.bfloat16)                   # no-op if already bf16
    if b is None:
        b = jnp.zeros((N,), jnp.float32)
    force_full_n = (pre_ln is not None) or (post_ln is not None)
    tm, tn = _choose_tiles(M, K, N, force_full_n=force_full_n)
    gm, gn = M // tm, N // tn

    # Grid order: keep the bigger operand resident across the inner axis.
    # M-outer re-streams the (K,N) weight gm times; N-outer re-streams the (M,K) act gn times.
    m_outer = gm * K * N * 2 <= gn * M * K * 4
    if m_outer:
        grid = (gm, gn)
        x_map = lambda i, j: (i, 0)
        w_map = lambda i, j: (0, j)
        n_map = lambda i, j: (0, j)
        k_map = lambda i, j: (0, 0)
        o_map = lambda i, j: (i, j)
    else:
        grid = (gn, gm)
        x_map = lambda j, i: (i, 0)
        w_map = lambda j, i: (0, j)
        n_map = lambda j, i: (0, j)
        k_map = lambda j, i: (0, 0)
        o_map = lambda j, i: (i, j)

    in_specs = [pl.BlockSpec((tm, K), x_map),
                pl.BlockSpec((K, tn), w_map),
                pl.BlockSpec((1, tn), n_map)]
    args = [x, w, b.reshape(1, N).astype(jnp.float32)]

    pre_eps = post_eps = None
    if pre_ln is not None:
        g, be, pre_eps = pre_ln
        in_specs += [pl.BlockSpec((1, K), k_map), pl.BlockSpec((1, K), k_map)]
        args += [g.reshape(1, K).astype(jnp.float32), be.reshape(1, K).astype(jnp.float32)]
    if post_ln is not None:
        g, be, post_eps = post_ln
        in_specs += [pl.BlockSpec((1, tn), n_map), pl.BlockSpec((1, tn), n_map)]
        args += [g.reshape(1, N).astype(jnp.float32), be.reshape(1, N).astype(jnp.float32)]
    has_res = residual is not None
    if has_res:
        in_specs += [pl.BlockSpec((tm, tn), o_map)]
        args += [residual]

    return pl.pallas_call(
        functools.partial(_mm_kernel, act=act, pre_eps=pre_eps, post_eps=post_eps,
                          has_res=has_res),
        out_shape=jax.ShapeDtypeStruct((M, N), x.dtype),
        grid_spec=pltpu.PrefetchScalarGridSpec(
            num_scalar_prefetch=0,
            grid=grid,
            in_specs=in_specs,
            out_specs=pl.BlockSpec((tm, tn), o_map)),
        compiler_params=pltpu.CompilerParams(
            dimension_semantics=("parallel", "parallel"),
            vmem_limit_bytes=_VMEM_LIMIT),
    )(*args)


# ------------------------------------------------ attention straight from the qkv activation
# Per grid step: one batch element.  Consumes the (S, 3E) qkv strip directly (no HBM head
# transposes) and writes the (S, E) context directly consumable by the proj matmul.
# Softmax scale is folded into the q columns of the qkv weight on the host.
def _attn_kernel(qkv_ref, o_ref, *, nH, Dh, E):
    qkv = qkv_ref[...]                           # (S, 3E) f32
    outs = []
    for h in range(nH):                          # static unroll over heads
        q = qkv[:, h * Dh:(h + 1) * Dh].astype(jnp.bfloat16)
        k = qkv[:, E + h * Dh:E + (h + 1) * Dh].astype(jnp.bfloat16)
        v = qkv[:, 2 * E + h * Dh:2 * E + (h + 1) * Dh].astype(jnp.bfloat16)
        # scores: contract the lane (Dh) dims of q and k -> no in-kernel transpose.
        s = jax.lax.dot_general(q, k, (((1,), (1,)), ((), ())),
                                preferred_element_type=jnp.float32)        # (S, S)
        s = s - jnp.max(s, axis=-1, keepdims=True)
        p = jnp.exp(s)
        p = p * pl.reciprocal(jnp.sum(p, axis=-1, keepdims=True), approx=True)
        o = jnp.dot(p.astype(jnp.bfloat16), v, preferred_element_type=jnp.float32)
        outs.append(o)                           # (S, Dh)
    o_ref[...] = jnp.concatenate(outs, axis=-1).astype(o_ref.dtype)


def attention(qkv, *, B, S, nH, Dh):
    E = nH * Dh
    return pl.pallas_call(
        functools.partial(_attn_kernel, nH=nH, Dh=Dh, E=E),
        out_shape=jax.ShapeDtypeStruct((B * S, E), qkv.dtype),
        grid_spec=pltpu.PrefetchScalarGridSpec(
            num_scalar_prefetch=0,
            grid=(B,),
            in_specs=[pl.BlockSpec((S, 3 * E), lambda b: (b, 0))],
            out_specs=pl.BlockSpec((S, E), lambda b: (b, 0))),
        compiler_params=pltpu.CompilerParams(
            dimension_semantics=("parallel",),
            vmem_limit_bytes=_VMEM_LIMIT),
    )(qkv)


# ------------------------------------------- neck 3x3 conv (whole-plane resident) + LN2d
# The padded plane is row-major flattened to (Hpad*Hpad, C).  For tap (kh,kw) the lhs is a
# contiguous (L, C) slice starting at kh*Hpad+kw with L=(Hp-1)*Hpad+Hp, and ALL 9 taps put
# output pixel (h,w) at local row h*Hpad+w, so a single f32 (L, C) accumulator works; the
# "gap" rows are never stored.  LayerNorm2d (over channels) is fused on the valid rows.
def _neck_conv3_kernel(x_ref, w_ref, g_ref, b_ref, o_ref, *, Hp, eps):
    Hpad = Hp + 2
    L = (Hp - 1) * Hpad + Hp
    x = x_ref[0]                                 # (Hpad*Hpad, C) f32
    C = x.shape[-1]
    acc = jnp.zeros((L, C), jnp.float32)
    for kh in range(3):
        for kw in range(3):
            start = kh * Hpad + kw
            lhs = x[start:start + L, :].astype(jnp.bfloat16)
            acc = acc + jnp.dot(lhs, w_ref[kh * 3 + kw],
                                preferred_element_type=jnp.float32)
    g = g_ref[...]
    b = b_ref[...]
    for h in range(Hp):                          # extract + LN only the valid rows
        row = _layernorm_f32(acc[h * Hpad:h * Hpad + Hp, :], g, b, eps)
        o_ref[0, h] = row.astype(o_ref.dtype)


def neck_conv3x3_ln(xpad_flat, w9, gamma, beta, *, Hp, eps=1e-6):
    # xpad_flat: (B, (Hp+2)*(Hp+2), C) zero-padded, row-major flattened NHWC plane.
    B, HH, C = xpad_flat.shape
    return pl.pallas_call(
        functools.partial(_neck_conv3_kernel, Hp=Hp, eps=eps),
        out_shape=jax.ShapeDtypeStruct((B, Hp, Hp, C), xpad_flat.dtype),
        grid_spec=pltpu.PrefetchScalarGridSpec(
            num_scalar_prefetch=0,
            grid=(B,),
            in_specs=[pl.BlockSpec((1, HH, C), lambda b: (b, 0, 0)),
                      pl.BlockSpec((9, C, C), lambda b: (0, 0, 0)),
                      pl.BlockSpec((1, C), lambda b: (0, 0)),
                      pl.BlockSpec((1, C), lambda b: (0, 0))],
            out_specs=pl.BlockSpec((1, Hp, Hp, C), lambda b: (b, 0, 0, 0))),
        compiler_params=pltpu.CompilerParams(
            dimension_semantics=("parallel",),
            vmem_limit_bytes=_VMEM_LIMIT),
    )(xpad_flat, w9,
      gamma.reshape(1, C).astype(jnp.float32), beta.reshape(1, C).astype(jnp.float32))


# ------------------------------------------------------------------------------- model
class Cfg:
    img_size = 64      # small-scale stand-in for 256
    patch = 16
    embed = 64         # small-scale stand-in for 768
    depth = 2
    num_heads = 2
    mlp_ratio = 4.0
    out_chans = 128
    num_classes = 4
    up4_pad = 32       # up4 output channels padded to 32 -> matmul N = 4*32 = 128 (lane-dense)


def init_params(key, cfg):
    ks = iter(jax.random.split(key, 128))

    def nrm(shape, std=0.02):
        return std * jax.random.normal(next(ks), shape, jnp.float32)

    def bf(w):
        return w.astype(jnp.bfloat16)

    P, E, C = cfg.patch, cfg.embed, cfg.out_chans
    Hp = cfg.img_size // P
    p = {}

    # PatchEmbed: Conv2d(3, E, kernel=16, stride=16)  (torch weight (E,3,P,P))
    w = nrm((E, 3, P, P))
    p["patch_w"] = bf(jnp.transpose(w, (2, 3, 1, 0)).reshape(P * P * 3, E))
    p["patch_b"] = nrm((E,))
    p["pos_embed"] = nrm((1, Hp, Hp, E))

    blocks = []
    hid = int(cfg.mlp_ratio * E)
    scale = (E // cfg.num_heads) ** -0.5
    for _ in range(cfg.depth):
        b = {}
        b["ln1_g"] = jnp.ones((E,), jnp.float32)
        b["ln1_b"] = jnp.zeros((E,), jnp.float32)
        qkv_w = nrm((3 * E, E)).T                 # torch Linear (out,in) -> (in,out)
        qkv_b = nrm((3 * E,))
        # fold the softmax scale into the q columns (mathematically identical forward)
        qkv_w = qkv_w.at[:, :E].multiply(scale)
        qkv_b = qkv_b.at[:E].multiply(scale)
        b["qkv_w"] = bf(qkv_w)
        b["qkv_b"] = qkv_b
        b["proj_w"] = bf(nrm((E, E)).T)
        b["proj_b"] = nrm((E,))
        b["ln2_g"] = jnp.ones((E,), jnp.float32)
        b["ln2_b"] = jnp.zeros((E,), jnp.float32)
        b["fc1_w"] = bf(nrm((hid, E)).T)
        b["fc1_b"] = nrm((hid,))
        b["fc2_w"] = bf(nrm((E, hid)).T)
        b["fc2_b"] = nrm((E,))
        blocks.append(b)
    p["blocks"] = blocks

    # Neck: Conv2d(E,C,1,bias=False) -> LayerNorm2d -> Conv2d(C,C,3,pad=1,bias=False) -> LN2d
    w = nrm((C, E, 1, 1))
    p["neck_w1"] = bf(jnp.transpose(w, (2, 3, 1, 0)).reshape(E, C))
    p["neck_ln1_g"] = jnp.ones((C,), jnp.float32)
    p["neck_ln1_b"] = jnp.zeros((C,), jnp.float32)
    w = nrm((C, C, 3, 3))
    p["neck_w2"] = bf(jnp.transpose(w, (2, 3, 1, 0)).reshape(9, C, C))   # (kh*3+kw, Cin, Cout)
    p["neck_ln2_g"] = jnp.ones((C,), jnp.float32)
    p["neck_ln2_b"] = jnp.zeros((C,), jnp.float32)

    # Decoder: ConvTranspose2d weights are (Cin, Cout, 2, 2) in torch; per-pixel matmul with
    # output columns ordered (di, dj, cout); bias tiled over (di, dj).
    def up(cin, cout):
        w_ = nrm((cin, cout, 2, 2))
        b_ = nrm((cout,))
        return bf(jnp.transpose(w_, (0, 2, 3, 1)).reshape(cin, 4 * cout)), jnp.tile(b_, 4)

    p["up1_w"], p["up1_b"] = up(C, 128)
    p["up2_w"], p["up2_b"] = up(128, 256)
    p["up3_w"], p["up3_b"] = up(256, 128)

    # up4: zero-pad output channels to up4_pad so the matmul N dim is a lane-dense 128.
    ncls, cp = cfg.num_classes, cfg.up4_pad
    w_ = nrm((128, ncls, 2, 2))
    b_ = nrm((ncls,))
    w_p = jnp.zeros((128, cp, 2, 2), jnp.float32).at[:, :ncls].set(w_)
    b_p = jnp.zeros((cp,), jnp.float32).at[:ncls].set(b_)
    p["up4_w"] = bf(jnp.transpose(w_p, (0, 2, 3, 1)).reshape(128, 4 * cp))
    p["up4_b"] = jnp.tile(b_p, 4)
    return p


def decoder_forward(params, x, cfg):
    # ConvTranspose2d(k=2,s=2) is purely per-pixel: keep activations in hierarchical
    # space-to-depth layout between layers; only two de-interleave reshuffles remain
    # (after up2, and at the very end merged with the channel un-pad + NHWC->NCHW permute).
    B, Hp, Wp, C = x.shape
    nc, cp = cfg.num_classes, cfg.up4_pad

    t = matmul_bias_act(x.reshape(B * Hp * Wp, C), params["up1_w"], params["up1_b"], act="relu")
    t = t.reshape(-1, 128)                                     # rows (b, h, w, d1h, d1w)
    t = matmul_bias_act(t, params["up2_w"], params["up2_b"], act="relu")
    t = t.reshape(B, Hp, Wp, 2, 2, 2, 2, 256)
    t = jnp.transpose(t, (0, 1, 3, 5, 2, 4, 6, 7)).reshape(B, 4 * Hp, 4 * Wp, 256)  # NHWC

    t = matmul_bias_act(t.reshape(-1, 256), params["up3_w"], params["up3_b"], act="relu")
    t = t.reshape(-1, 128)                                     # rows (b, h2, w2, d3h, d3w)
    t = matmul_bias_act(t, params["up4_w"], params["up4_b"], act="relu")   # lane-dense N=128
    # channel un-pad + final de-interleave + NHWC->NCHW in a single slice/transpose expression
    t = t.reshape(B, 4 * Hp, 4 * Wp, 2, 2, 2, 2, cp)[..., :nc]
    t = jnp.transpose(t, (0, 7, 1, 3, 5, 2, 4, 6))
    return t.reshape(B, nc, 16 * Hp, 16 * Wp)                  # NCHW


def forward(params, x_nchw, cfg):
    B = x_nchw.shape[0]
    P, E, C = cfg.patch, cfg.embed, cfg.out_chans
    x = jnp.transpose(x_nchw, (0, 2, 3, 1))                    # NCHW -> NHWC
    Hp = x.shape[1] // P
    S = Hp * Hp
    nH = cfg.num_heads
    Dh = E // nH

    # PatchEmbed as a matmul over (patch_h, patch_w, channel) features
    xp = x.reshape(B, Hp, P, Hp, P, 3).transpose(0, 1, 3, 2, 4, 5).reshape(B * S, P * P * 3)
    tok = matmul_bias_act(xp, params["patch_w"], params["patch_b"])       # (B*S, E)
    xf = (tok.reshape(B, Hp, Hp, E) + params["pos_embed"]).reshape(B * S, E)

    for blk in params["blocks"]:
        # attention: LN1 fused into qkv, heads split inside the attention kernel,
        # residual fused into the proj matmul epilogue
        qkv = matmul_bias_act(xf, blk["qkv_w"], blk["qkv_b"],
                              pre_ln=(blk["ln1_g"], blk["ln1_b"], 1e-6))  # (B*S, 3E)
        o = attention(qkv, B=B, S=S, nH=nH, Dh=Dh)                        # (B*S, E)
        xf = matmul_bias_act(o, blk["proj_w"], blk["proj_b"], residual=xf)
        # MLP: LN2 + fc1 + exact GELU fused; residual fused into fc2 epilogue
        h = matmul_bias_act(xf, blk["fc1_w"], blk["fc1_b"], act="gelu",
                            pre_ln=(blk["ln2_g"], blk["ln2_b"], 1e-6))
        xf = matmul_bias_act(h, blk["fc2_w"], blk["fc2_b"], residual=xf)

    # Neck: 1x1 conv + LayerNorm2d fused; 3x3 conv (whole-plane, 9-tap) + LayerNorm2d fused
    nk = matmul_bias_act(xf, params["neck_w1"], None,
                         post_ln=(params["neck_ln1_g"], params["neck_ln1_b"], 1e-6))
    xsp = nk.reshape(B, Hp, Hp, C)
    Hpad = Hp + 2
    xpad = jnp.pad(xsp, ((0, 0), (1, 1), (1, 1), (0, 0))).reshape(B, Hpad * Hpad, C)
    x = neck_conv3x3_ln(xpad, params["neck_w2"], params["neck_ln2_g"], params["neck_ln2_b"],
                        Hp=Hp, eps=1e-6)                                   # (B, Hp, Hp, C)

    return decoder_forward(params, x, cfg)


if __name__ == "__main__":
    cfg = Cfg()
    key = jax.random.PRNGKey(0)
    kp, kx = jax.random.split(key)
    params = init_params(kp, cfg)
    x = jax.random.normal(kx, (2, 3, cfg.img_size, cfg.img_size), jnp.float32)

    fwd = jax.jit(lambda p, xx: forward(p, xx, cfg))
    out = fwd(params, x)
    jax.block_until_ready(out)

    assert out.shape == (2, cfg.num_classes, cfg.img_size, cfg.img_size), out.shape
    assert out.dtype == jnp.float32
    assert bool(jnp.all(jnp.isfinite(out)))
    print("KERNEL_OK")
</pallas_src>

<mosaic_0001>
module attributes {stable_mosaic.version = 11 : i64} {
  func.func @_mm_kernel(%arg0: i32, %arg1: i32, %arg2: memref<8x768xf32, #tpu.memory_space<vmem>>, %arg3: memref<768x64xbf16, #tpu.memory_space<vmem>>, %arg4: memref<1x64xf32, #tpu.memory_space<vmem>>, %arg5: memref<8x64xf32, #tpu.memory_space<vmem>>) attributes {dimension_semantics = [#tpu.dimension_semantics<parallel>, #tpu.dimension_semantics<parallel>], iteration_bounds = array<i64: 1, 4>, scalar_prefetch = 0 : i64, scratch_operands = 0 : i64, tpu.core_type = #tpu.core_type<tc>, window_params = [{transform_indices = @transform_0, window_bounds = array<i64: 8, 768>}, {transform_indices = @transform_1, window_bounds = array<i64: 768, 64>}, {transform_indices = @transform_2, window_bounds = array<i64: 1, 64>}, {transform_indices = @transform_3, window_bounds = array<i64: 8, 64>}]} {
    %c0 = arith.constant 0 : index
    %c0_0 = arith.constant 0 : index
    %0 = vector.load %arg2[%c0, %c0_0] : memref<8x768xf32, #tpu.memory_space<vmem>>, vector<8x768xf32>
    %1 = arith.truncf %0 : vector<8x768xf32> to vector<8x768xbf16>
    %c0_1 = arith.constant 0 : index
    %c0_2 = arith.constant 0 : index
    %2 = vector.load %arg3[%c0_1, %c0_2] : memref<768x64xbf16, #tpu.memory_space<vmem>>, vector<768x64xbf16>
    %cst = arith.constant dense<0.000000e+00> : vector<8x64xf32>
    %3 = tpu.matmul %1, %2, %cst {dimension_numbers = #tpu.dot_dimension_numbers<[1], [0], [0], [1], [0, 0, 1, 1], [], []>} : vector<8x768xbf16>, vector<768x64xbf16>, vector<8x64xf32> -> vector<8x64xf32>
    %c0_3 = arith.constant 0 : index
    %c0_4 = arith.constant 0 : index
    %4 = vector.load %arg4[%c0_3, %c0_4] : memref<1x64xf32, #tpu.memory_space<vmem>>, vector<1x64xf32>
    %5 = vector.broadcast %4 : vector<1x64xf32> to vector<8x64xf32>
    %6 = arith.addf %3, %5 : vector<8x64xf32>
    %c0_5 = arith.constant 0 : index
    %c0_6 = arith.constant 0 : index
    %7 = vector.load %arg5[%c0_5, %c0_6] : memref<8x64xf32, #tpu.memory_space<vmem>>, vector<8x64xf32>
    tpu.vector_store %arg5[%c0_5, %c0_6], %6 {strides = array<i32>} : memref<8x64xf32, #tpu.memory_space<vmem>>, vector<8x64xf32>,
    return
  }
  func.func @transform_0(%arg0: i32, %arg1: i32) -> (i32, i32) {
    %c0_i32 = arith.constant 0 : i32
    %c0_i32_0 = arith.constant 0 : i32
    return %arg1, %c0_i32 : i32, i32
  }
  func.func @transform_1(%arg0: i32, %arg1: i32) -> (i32, i32) {
    %c0_i32 = arith.constant 0 : i32
    %c0_i32_0 = arith.constant 0 : i32
    return %c0_i32, %arg0 : i32, i32
  }
  func.func @transform_2(%arg0: i32, %arg1: i32) -> (i32, i32) {
    %c0_i32 = arith.constant 0 : i32
    %c0_i32_0 = arith.constant 0 : i32
    return %c0_i32, %arg0 : i32, i32
  }
  func.func @transform_3(%arg0: i32, %arg1: i32) -> (i32, i32) {
    %c0_i32 = arith.constant 0 : i32
    return %arg1, %arg0 : i32, i32
  }
}

module attributes {stable_mosaic.version = 11 : i64} {
  func.func @_mm_kernel(%arg0: i32, %arg1: i32, %arg2: memref<8x64xf32, #tpu.memory_space<vmem>>, %arg3: memref<64x192xbf16, #tpu.memory_space<vmem>>, %arg4: memref<1x192xf32, #tpu.memory_space<vmem>>, %arg5: memref<1x64xf32, #tpu.memory_space<vmem>>, %arg6: memref<1x64xf32, #tpu.memory_space<vmem>>, %arg7: memref<8x192xf32, #tpu.memory_space<vmem>>) attributes {dimension_semantics = [#tpu.dimension_semantics<parallel>, #tpu.dimension_semantics<parallel>], iteration_bounds = array<i64: 1, 4>, scalar_prefetch = 0 : i64, scratch_operands = 0 : i64, tpu.core_type = #tpu.core_type<tc>, window_params = [{transform_indices = @transform_0, window_bounds = array<i64: 8, 64>}, {transform_indices = @transform_1, window_bounds = array<i64: 64, 192>}, {transform_indices = @transform_2, window_bounds = array<i64: 1, 192>}, {pipeline_mode = #tpu.pipeline_mode<synchronous>, transform_indices = @transform_3, window_bounds = array<i64: 1, 64>}, {pipeline_mode = #tpu.pipeline_mode<synchronous>, transform_indices = @transform_4, window_bounds = array<i64: 1, 64>}, {transform_indices = @transform_5, window_bounds = array<i64: 8, 192>}]} {
    %c0 = arith.constant 0 : index
    %c0_0 = arith.constant 0 : index
    %0 = vector.load %arg2[%c0, %c0_0] : memref<8x64xf32, #tpu.memory_space<vmem>>, vector<8x64xf32>
    %c0_1 = arith.constant 0 : index
    %c0_2 = arith.constant 0 : index
    %1 = vector.load %arg5[%c0_1, %c0_2] : memref<1x64xf32, #tpu.memory_space<vmem>>, vector<1x64xf32>
    %c0_3 = arith.constant 0 : index
    %c0_4 = arith.constant 0 : index
    %2 = vector.load %arg6[%c0_3, %c0_4] : memref<1x64xf32, #tpu.memory_space<vmem>>, vector<1x64xf32>
    %cst = arith.constant dense<0.000000e+00> : vector<8xf32>
    %3 = vector.multi_reduction <add>, %0, %cst [1] : vector<8x64xf32> to vector<8xf32>
    %4 = vector.shape_cast %3 : vector<8xf32> to vector<8x1xf32>
    %cst_5 = arith.constant 6.400000e+01 : f32
    %5 = vector.broadcast %cst_5 : f32 to vector<8x1xf32>
    %6 = arith.divf %4, %5 : vector<8x1xf32>
    %7 = vector.broadcast %6 : vector<8x1xf32> to vector<8x64xf32>
    %8 = arith.subf %0, %7 : vector<8x64xf32>
    %9 = arith.mulf %8, %8 : vector<8x64xf32>
    %cst_6 = arith.constant dense<0.000000e+00> : vector<8xf32>
    %10 = vector.multi_reduction <add>, %9, %cst_6 [1] : vector<8x64xf32> to vector<8xf32>
    %11 = vector.shape_cast %10 : vector<8xf32> to vector<8x1xf32>
    %cst_7 = arith.constant 6.400000e+01 : f32
    %12 = vector.broadcast %cst_7 : f32 to vector<8x1xf32>
    %13 = arith.divf %11, %12 : vector<8x1xf32>
    %cst_8 = arith.constant 9.99999997E-7 : f32
    %14 = vector.broadcast %cst_8 : f32 to vector<8x1xf32>
    %15 = arith.addf %13, %14 : vector<8x1xf32>
    %16 = math.rsqrt %15 : vector<8x1xf32>
    %17 = vector.broadcast %16 : vector<8x1xf32> to vector<8x64xf32>
    %18 = arith.mulf %8, %17 : vector<8x64xf32>
    %19 = vector.broadcast %1 : vector<1x64xf32> to vector<8x64xf32>
    %20 = arith.mulf %18, %19 : vector<8x64xf32>
    %21 = vector.broadcast %2 : vector<1x64xf32> to vector<8x64xf32>
    %22 = arith.addf %20, %21 : vector<8x64xf32>
    %23 = arith.truncf %22 : vector<8x64xf32> to vector<8x64xbf16>
    %c0_9 = arith.constant 0 : index
    %c0_10 = arith.constant 0 : index
    %24 = vector.load %arg3[%c0_9, %c0_10] : memref<64x192xbf16, #tpu.memory_space<vmem>>, vector<64x192xbf16>
    %cst_11 = arith.constant dense<0.000000e+00> : vector<8x192xf32>
    %25 = tpu.matmul %23, %24, %cst_11 {dimension_numbers = #tpu.dot_dimension_numbers<[1], [0], [0], [1], [0, 0, 1, 1], [], []>} : vector<8x64xbf16>, vector<64x192xbf16>, vector<8x192xf32> -> vector<8x192xf32>
    %c0_12 = arith.constant 0 : index
    %c0_13 = arith.constant 0 : index
    %26 = vector.load %arg4[%c0_12, %c0_13] : memref<1x192xf32, #tpu.memory_space<vmem>>, vector<1x192xf32>
    %27 = vector.broadcast %26 : vector<1x192xf32> to vector<8x192xf32>
    %28 = arith.addf %25, %27 : vector<8x192xf32>
    %c0_14 = arith.constant 0 : index
    %c0_15 = arith.constant 0 : index
    %29 = vector.load %arg7[%c0_14, %c0_15] : memref<8x192xf32, #tpu.memory_space<vmem>>, vector<8x192xf32>
    tpu.vector_store %arg7[%c0_14, %c0_15], %28 {strides = array<i32>} : memref<8x192xf32, #tpu.memory_space<vmem>>, vector<8x192xf32>,
    return
  }
  func.func @transform_0(%arg0: i32, %arg1: i32) -> (i32, i32) {
    %c0_i32 = arith.constant 0 : i32
    %c0_i32_0 = arith.constant 0 : i32
    return %arg1, %c0_i32 : i32, i32
  }
  func.func @transform_1(%arg0: i32, %arg1: i32) -> (i32, i32) {
    %c0_i32 = arith.constant 0 : i32
    %c0_i32_0 = arith.constant 0 : i32
    return %c0_i32, %arg0 : i32, i32
  }
  func.func @transform_2(%arg0: i32, %arg1: i32) -> (i32, i32) {
    %c0_i32 = arith.constant 0 : i32
    %c0_i32_0 = arith.constant 0 : i32
    return %c0_i32, %arg0 : i32, i32
  }
  func.func @transform_3(%arg0: i32, %arg1: i32) -> (i32, i32) {
    %c0_i32 = arith.constant 0 : i32
    %c0_i32_0 = arith.constant 0 : i32
    %c0_i32_1 = arith.constant 0 : i32
    return %c0_i32, %c0_i32_0 : i32, i32
  }
  func.func @transform_4(%arg0: i32, %arg1: i32) -> (i32, i32) {
    %c0_i32 = arith.constant 0 : i32
    %c0_i32_0 = arith.constant 0 : i32
    %c0_i32_1 = arith.constant 0 : i32
    return %c0_i32, %c0_i32_0 : i32, i32
  }
  func.func @transform_5(%arg0: i32, %arg1: i32) -> (i32, i32) {
    %c0_i32 = arith.constant 0 : i32
    return %arg1, %arg0 : i32, i32
  }
}

module attributes {stable_mosaic.version = 11 : i64} {
  func.func @_mm_kernel(%arg0: i32, %arg1: i32, %arg2: memref<8x64xf32, #tpu.memory_space<vmem>>, %arg3: memref<64x64xbf16, #tpu.memory_space<vmem>>, %arg4: memref<1x64xf32, #tpu.memory_space<vmem>>, %arg5: memref<8x64xf32, #tpu.memory_space<vmem>>, %arg6: memref<8x64xf32, #tpu.memory_space<vmem>>) attributes {dimension_semantics = [#tpu.dimension_semantics<parallel>, #tpu.dimension_semantics<parallel>], iteration_bounds = array<i64: 1, 4>, scalar_prefetch = 0 : i64, scratch_operands = 0 : i64, tpu.core_type = #tpu.core_type<tc>, window_params = [{transform_indices = @transform_0, window_bounds = array<i64: 8, 64>}, {transform_indices = @transform_1, window_bounds = array<i64: 64, 64>}, {transform_indices = @transform_2, window_bounds = array<i64: 1, 64>}, {transform_indices = @transform_3, window_bounds = array<i64: 8, 64>}, {transform_indices = @transform_4, window_bounds = array<i64: 8, 64>}]} {
    %c0 = arith.constant 0 : index
    %c0_0 = arith.constant 0 : index
    %0 = vector.load %arg2[%c0, %c0_0] : memref<8x64xf32, #tpu.memory_space<vmem>>, vector<8x64xf32>
    %1 = arith.truncf %0 : vector<8x64xf32> to vector<8x64xbf16>
    %c0_1 = arith.constant 0 : index
    %c0_2 = arith.constant 0 : index
    %2 = vector.load %arg3[%c0_1, %c0_2] : memref<64x64xbf16, #tpu.memory_space<vmem>>, vector<64x64xbf16>
    %cst = arith.constant dense<0.000000e+00> : vector<8x64xf32>
    %3 = tpu.matmul %1, %2, %cst {dimension_numbers = #tpu.dot_dimension_numbers<[1], [0], [0], [1], [0, 0, 1, 1], [], []>} : vector<8x64xbf16>, vector<64x64xbf16>, vector<8x64xf32> -> vector<8x64xf32>
    %c0_3 = arith.constant 0 : index
    %c0_4 = arith.constant 0 : index
    %4 = vector.load %arg4[%c0_3, %c0_4] : memref<1x64xf32, #tpu.memory_space<vmem>>, vector<1x64xf32>
    %5 = vector.broadcast %4 : vector<1x64xf32> to vector<8x64xf32>
    %6 = arith.addf %3, %5 : vector<8x64xf32>
    %c0_5 = arith.constant 0 : index
    %c0_6 = arith.constant 0 : index
    %7 = vector.load %arg5[%c0_5, %c0_6] : memref<8x64xf32, #tpu.memory_space<vmem>>, vector<8x64xf32>
    %8 = arith.addf %6, %7 : vector<8x64xf32>
    %c0_7 = arith.constant 0 : index
    %c0_8 = arith.constant 0 : index
    %9 = vector.load %arg6[%c0_7, %c0_8] : memref<8x64xf32, #tpu.memory_space<vmem>>, vector<8x64xf32>
    tpu.vector_store %arg6[%c0_7, %c0_8], %8 {strides = array<i32>} : memref<8x64xf32, #tpu.memory_space<vmem>>, vector<8x64xf32>,
    return
  }
  func.func @transform_0(%arg0: i32, %arg1: i32) -> (i32, i32) {
    %c0_i32 = arith.constant 0 : i32
    %c0_i32_0 = arith.constant 0 : i32
    return %arg1, %c0_i32 : i32, i32
  }
  func.func @transform_1(%arg0: i32, %arg1: i32) -> (i32, i32) {
    %c0_i32 = arith.constant 0 : i32
    %c0_i32_0 = arith.constant 0 : i32
    return %c0_i32, %arg0 : i32, i32
  }
  func.func @transform_2(%arg0: i32, %arg1: i32) -> (i32, i32) {
    %c0_i32 = arith.constant 0 : i32
    %c0_i32_0 = arith.constant 0 : i32
    return %c0_i32, %arg0 : i32, i32
  }
  func.func @transform_3(%arg0: i32, %arg1: i32) -> (i32, i32) {
    %c0_i32 = arith.constant 0 : i32
    return %arg1, %arg0 : i32, i32
  }
  func.func @transform_4(%arg0: i32, %arg1: i32) -> (i32, i32) {
    %c0_i32 = arith.constant 0 : i32
    return %arg1, %arg0 : i32, i32
  }
}

module attributes {stable_mosaic.version = 11 : i64} {
  func.func @_attn_kernel(%arg0: i32, %arg1: memref<16x192xf32, #tpu.memory_space<vmem>>, %arg2: memref<16x64xf32, #tpu.memory_space<vmem>>) attributes {dimension_semantics = [#tpu.dimension_semantics<parallel>], iteration_bounds = array<i64: 2>, scalar_prefetch = 0 : i64, scratch_operands = 0 : i64, tpu.core_type = #tpu.core_type<tc>, window_params = [{transform_indices = @transform_0, window_bounds = array<i64: 16, 192>}, {transform_indices = @transform_1, window_bounds = array<i64: 16, 64>}]} {
    %c0 = arith.constant 0 : index
    %c0_0 = arith.constant 0 : index
    %0 = vector.load %arg1[%c0, %c0_0] : memref<16x192xf32, #tpu.memory_space<vmem>>, vector<16x192xf32>
    %1 = vector.extract_strided_slice %0 {offsets = [0, 0], sizes = [16, 32], strides = [1, 1]} : vector<16x192xf32> to vector<16x32xf32>
    %2 = arith.truncf %1 : vector<16x32xf32> to vector<16x32xbf16>
    %3 = vector.extract_strided_slice %0 {offsets = [0, 64], sizes = [16, 32], strides = [1, 1]} : vector<16x192xf32> to vector<16x32xf32>
    %4 = arith.truncf %3 : vector<16x32xf32> to vector<16x32xbf16>
    %5 = vector.extract_strided_slice %0 {offsets = [0, 128], sizes = [16, 32], strides = [1, 1]} : vector<16x192xf32> to vector<16x32xf32>
    %6 = arith.truncf %5 : vector<16x32xf32> to vector<16x32xbf16>
    %cst = arith.constant dense<0.000000e+00> : vector<16x16xf32>
    %7 = tpu.matmul %2, %4, %cst {dimension_numbers = #tpu.dot_dimension_numbers<[1], [1], [0], [0], [0, 0, 1, 0], [], []>} : vector<16x32xbf16>, vector<16x32xbf16>, vector<16x16xf32> -> vector<16x16xf32>
    %cst_1 = arith.constant dense<0xFF800000> : vector<16xf32>
    %8 = vector.multi_reduction <maximumf>, %7, %cst_1 [1] : vector<16x16xf32> to vector<16xf32>
    %9 = vector.shape_cast %8 : vector<16xf32> to vector<16x1xf32>
    %10 = vector.broadcast %9 : vector<16x1xf32> to vector<16x16xf32>
    %11 = arith.subf %7, %10 : vector<16x16xf32>
    %12 = math.exp %11 : vector<16x16xf32>
    %cst_2 = arith.constant dense<0.000000e+00> : vector<16xf32>
    %13 = vector.multi_reduction <add>, %12, %cst_2 [1] : vector<16x16xf32> to vector<16xf32>
    %14 = vector.shape_cast %13 : vector<16xf32> to vector<16x1xf32>
    %15 = tpu.reciprocal %14 {approx = true} : vector<16x1xf32> -> vector<16x1xf32>
    %16 = vector.broadcast %15 : vector<16x1xf32> to vector<16x16xf32>
    %17 = arith.mulf %12, %16 : vector<16x16xf32>
    %18 = arith.truncf %17 : vector<16x16xf32> to vector<16x16xbf16>
    %cst_3 = arith.constant dense<0.000000e+00> : vector<16x32xf32>
    %19 = tpu.matmul %18, %6, %cst_3 {dimension_numbers = #tpu.dot_dimension_numbers<[1], [0], [0], [1], [0, 0, 1, 1], [], []>} : vector<16x16xbf16>, vector<16x32xbf16>, vector<16x32xf32> -> vector<16x32xf32>
    %20 = vector.extract_strided_slice %0 {offsets = [0, 32], sizes = [16, 32], strides = [1, 1]} : vector<16x192xf32> to vector<16x32xf32>
    %21 = arith.truncf %20 : vector<16x32xf32> to vector<16x32xbf16>
    %22 = vector.extract_strided_slice %0 {offsets = [0, 96], sizes = [16, 32], strides = [1, 1]} : vector<16x192xf32> to vector<16x32xf32>
    %23 = arith.truncf %22 : vector<16x32xf32> to vector<16x32xbf16>
    %24 = vector.extract_strided_slice %0 {offsets = [0, 160], sizes = [16, 32], strides = [1, 1]} : vector<16x192xf32> to vector<16x32xf32>
    %25 = arith.truncf %24 : vector<16x32xf32> to vector<16x32xbf16>
    %cst_4 = arith.constant dense<0.000000e+00> : vector<16x16xf32>
    %26 = tpu.matmul %21, %23, %cst_4 {dimension_numbers = #tpu.dot_dimension_numbers<[1], [1], [0], [0], [0, 0, 1, 0], [], []>} : vector<16x32xbf16>, vector<16x32xbf16>, vector<16x16xf32> -> vector<16x16xf32>
    %cst_5 = arith.constant dense<0xFF800000> : vector<16xf32>
    %27 = vector.multi_reduction <maximumf>, %26, %cst_5 [1] : vector<16x16xf32> to vector<16xf32>
    %28 = vector.shape_cast %27 : vector<16xf32> to vector<16x1xf32>
    %29 = vector.broadcast %28 : vector<16x1xf32> to vector<16x16xf32>
    %30 = arith.subf %26, %29 : vector<16x16xf32>
    %31 = math.exp %30 : vector<16x16xf32>
    %cst_6 = arith.constant dense<0.000000e+00> : vector<16xf32>
    %32 = vector.multi_reduction <add>, %31, %cst_6 [1] : vector<16x16xf32> to vector<16xf32>
    %33 = vector.shape_cast %32 : vector<16xf32> to vector<16x1xf32>
    %34 = tpu.reciprocal %33 {approx = true} : vector<16x1xf32> -> vector<16x1xf32>
    %35 = vector.broadcast %34 : vector<16x1xf32> to vector<16x16xf32>
    %36 = arith.mulf %31, %35 : vector<16x16xf32>
    %37 = arith.truncf %36 : vector<16x16xf32> to vector<16x16xbf16>
    %cst_7 = arith.constant dense<0.000000e+00> : vector<16x32xf32>
    %38 = tpu.matmul %37, %25, %cst_7 {dimension_numbers = #tpu.dot_dimension_numbers<[1], [0], [0], [1], [0, 0, 1, 1], [], []>} : vector<16x16xbf16>, vector<16x32xbf16>, vector<16x32xf32> -> vector<16x32xf32>
    %39 = tpu.concatenate %19, %38 in 1 : vector<16x32xf32>, vector<16x32xf32> -> vector<16x64xf32>
    %c0_8 = arith.constant 0 : index
    %c0_9 = arith.constant 0 : index
    %40 = vector.load %arg2[%c0_8, %c0_9] : memref<16x64xf32, #tpu.memory_space<vmem>>, vector<16x64xf32>
    tpu.vector_store %arg2[%c0_8, %c0_9], %39 {strides = array<i32>} : memref<16x64xf32, #tpu.memory_space<vmem>>, vector<16x64xf32>,
    return
  }
  func.func @transform_0(%arg0: i32) -> (i32, i32) {
    %c0_i32 = arith.constant 0 : i32
    %c0_i32_0 = arith.constant 0 : i32
    return %arg0, %c0_i32 : i32, i32
  }
  func.func @transform_1(%arg0: i32) -> (i32, i32) {
    %c0_i32 = arith.constant 0 : i32
    %c0_i32_0 = arith.constant 0 : i32
    return %arg0, %c0_i32 : i32, i32
  }
}

module attributes {stable_mosaic.version = 11 : i64} {
  func.func @_mm_kernel(%arg0: i32, %arg1: i32, %arg2: memref<8x64xf32, #tpu.memory_space<vmem>>, %arg3: memref<64x256xbf16, #tpu.memory_space<vmem>>, %arg4: memref<1x256xf32, #tpu.memory_space<vmem>>, %arg5: memref<1x64xf32, #tpu.memory_space<vmem>>, %arg6: memref<1x64xf32, #tpu.memory_space<vmem>>, %arg7: memref<8x256xf32, #tpu.memory_space<vmem>>) attributes {dimension_semantics = [#tpu.dimension_semantics<parallel>, #tpu.dimension_semantics<parallel>], iteration_bounds = array<i64: 1, 4>, scalar_prefetch = 0 : i64, scratch_operands = 0 : i64, tpu.core_type = #tpu.core_type<tc>, window_params = [{transform_indices = @transform_0, window_bounds = array<i64: 8, 64>}, {transform_indices = @transform_1, window_bounds = array<i64: 64, 256>}, {transform_indices = @transform_2, window_bounds = array<i64: 1, 256>}, {pipeline_mode = #tpu.pipeline_mode<synchronous>, transform_indices = @transform_3, window_bounds = array<i64: 1, 64>}, {pipeline_mode = #tpu.pipeline_mode<synchronous>, transform_indices = @transform_4, window_bounds = array<i64: 1, 64>}, {transform_indices = @transform_5, window_bounds = array<i64: 8, 256>}]} {
    %c0 = arith.constant 0 : index
    %c0_0 = arith.constant 0 : index
    %0 = vector.load %arg2[%c0, %c0_0] : memref<8x64xf32, #tpu.memory_space<vmem>>, vector<8x64xf32>
    %c0_1 = arith.constant 0 : index
    %c0_2 = arith.constant 0 : index
    %1 = vector.load %arg5[%c0_1, %c0_2] : memref<1x64xf32, #tpu.memory_space<vmem>>, vector<1x64xf32>
    %c0_3 = arith.constant 0 : index
    %c0_4 = arith.constant 0 : index
    %2 = vector.load %arg6[%c0_3, %c0_4] : memref<1x64xf32, #tpu.memory_space<vmem>>, vector<1x64xf32>
    %cst = arith.constant dense<0.000000e+00> : vector<8xf32>
    %3 = vector.multi_reduction <add>, %0, %cst [1] : vector<8x64xf32> to vector<8xf32>
    %4 = vector.shape_cast %3 : vector<8xf32> to vector<8x1xf32>
    %cst_5 = arith.constant 6.400000e+01 : f32
    %5 = vector.broadcast %cst_5 : f32 to vector<8x1xf32>
    %6 = arith.divf %4, %5 : vector<8x1xf32>
    %7 = vector.broadcast %6 : vector<8x1xf32> to vector<8x64xf32>
    %8 = arith.subf %0, %7 : vector<8x64xf32>
    %9 = arith.mulf %8, %8 : vector<8x64xf32>
    %cst_6 = arith.constant dense<0.000000e+00> : vector<8xf32>
    %10 = vector.multi_reduction <add>, %9, %cst_6 [1] : vector<8x64xf32> to vector<8xf32>
    %11 = vector.shape_cast %10 : vector<8xf32> to vector<8x1xf32>
    %cst_7 = arith.constant 6.400000e+01 : f32
    %12 = vector.broadcast %cst_7 : f32 to vector<8x1xf32>
    %13 = arith.divf %11, %12 : vector<8x1xf32>
    %cst_8 = arith.constant 9.99999997E-7 : f32
    %14 = vector.broadcast %cst_8 : f32 to vector<8x1xf32>
    %15 = arith.addf %13, %14 : vector<8x1xf32>
    %16 = math.rsqrt %15 : vector<8x1xf32>
    %17 = vector.broadcast %16 : vector<8x1xf32> to vector<8x64xf32>
    %18 = arith.mulf %8, %17 : vector<8x64xf32>
    %19 = vector.broadcast %1 : vector<1x64xf32> to vector<8x64xf32>
    %20 = arith.mulf %18, %19 : vector<8x64xf32>
    %21 = vector.broadcast %2 : vector<1x64xf32> to vector<8x64xf32>
    %22 = arith.addf %20, %21 : vector<8x64xf32>
    %23 = arith.truncf %22 : vector<8x64xf32> to vector<8x64xbf16>
    %c0_9 = arith.constant 0 : index
    %c0_10 = arith.constant 0 : index
    %24 = vector.load %arg3[%c0_9, %c0_10] : memref<64x256xbf16, #tpu.memory_space<vmem>>, vector<64x256xbf16>
    %cst_11 = arith.constant dense<0.000000e+00> : vector<8x256xf32>
    %25 = tpu.matmul %23, %24, %cst_11 {dimension_numbers = #tpu.dot_dimension_numbers<[1], [0], [0], [1], [0, 0, 1, 1], [], []>} : vector<8x64xbf16>, vector<64x256xbf16>, vector<8x256xf32> -> vector<8x256xf32>
    %c0_12 = arith.constant 0 : index
    %c0_13 = arith.constant 0 : index
    %26 = vector.load %arg4[%c0_12, %c0_13] : memref<1x256xf32, #tpu.memory_space<vmem>>, vector<1x256xf32>
    %27 = vector.broadcast %26 : vector<1x256xf32> to vector<8x256xf32>
    %28 = arith.addf %25, %27 : vector<8x256xf32>
    %cst_14 = arith.constant 5.000000e-01 : f32
    %29 = vector.broadcast %cst_14 : f32 to vector<8x256xf32>
    %30 = arith.mulf %29, %28 : vector<8x256xf32>
    %cst_15 = arith.constant 0.707106769 : f32
    %31 = vector.broadcast %cst_15 : f32 to vector<8x256xf32>
    %32 = arith.mulf %28, %31 : vector<8x256xf32>
    %cst_16 = arith.constant 0.000000e+00 : f32
    %33 = vector.broadcast %cst_16 : f32 to vector<8x256xf32>
    %34 = arith.cmpf oge, %32, %33 : vector<8x256xf32>
    %cst_17 = arith.constant 1.000000e+00 : f32
    %cst_18 = arith.constant -1.000000e+00 : f32
    %35 = vector.broadcast %cst_17 : f32 to vector<8x256xf32>
    %36 = vector.broadcast %cst_18 : f32 to vector<8x256xf32>
    %37 = arith.select %34, %35, %36 : vector<8x256xi1>, vector<8x256xf32>
    %38 = math.absf %32 : vector<8x256xf32>
    %cst_19 = arith.constant 0.327591091 : f32
    %39 = vector.broadcast %cst_19 : f32 to vector<8x256xf32>
    %40 = arith.mulf %39, %38 : vector<8x256xf32>
    %cst_20 = arith.constant 1.000000e+00 : f32
    %41 = vector.broadcast %cst_20 : f32 to vector<8x256xf32>
    %42 = arith.addf %41, %40 : vector<8x256xf32>
    %cst_21 = arith.constant 1.000000e+00 : f32
    %43 = vector.broadcast %cst_21 : f32 to vector<8x256xf32>
    %44 = arith.divf %43, %42 : vector<8x256xf32>
    %cst_22 = arith.constant 1.06140542 : f32
    %45 = vector.broadcast %cst_22 : f32 to vector<8x256xf32>
    %46 = arith.mulf %45, %44 : vector<8x256xf32>
    %cst_23 = arith.constant -1.45315206 : f32
    %47 = vector.broadcast %cst_23 : f32 to vector<8x256xf32>
    %48 = arith.addf %46, %47 : vector<8x256xf32>
    %49 = arith.mulf %48, %44 : vector<8x256xf32>
    %cst_24 = arith.constant 1.42141378 : f32
    %50 = vector.broadcast %cst_24 : f32 to vector<8x256xf32>
    %51 = arith.addf %49, %50 : vector<8x256xf32>
    %52 = arith.mulf %51, %44 : vector<8x256xf32>
    %cst_25 = arith.constant -0.284496725 : f32
    %53 = vector.broadcast %cst_25 : f32 to vector<8x256xf32>
    %54 = arith.addf %52, %53 : vector<8x256xf32>
    %55 = arith.mulf %54, %44 : vector<8x256xf32>
    %cst_26 = arith.constant 0.254829586 : f32
    %56 = vector.broadcast %cst_26 : f32 to vector<8x256xf32>
    %57 = arith.addf %55, %56 : vector<8x256xf32>
    %58 = arith.mulf %57, %44 : vector<8x256xf32>
    %cst_27 = arith.constant 0.000000e+00 : f32
    %59 = vector.broadcast %cst_27 : f32 to vector<8x256xf32>
    %60 = arith.subf %59, %38 : vector<8x256xf32>
    %61 = arith.mulf %60, %38 : vector<8x256xf32>
    %62 = math.exp %61 : vector<8x256xf32>
    %63 = arith.mulf %58, %62 : vector<8x256xf32>
    %cst_28 = arith.constant 1.000000e+00 : f32
    %64 = vector.broadcast %cst_28 : f32 to vector<8x256xf32>
    %65 = arith.subf %64, %63 : vector<8x256xf32>
    %66 = arith.mulf %37, %65 : vector<8x256xf32>
    %cst_29 = arith.constant 1.000000e+00 : f32
    %67 = vector.broadcast %cst_29 : f32 to vector<8x256xf32>
    %68 = arith.addf %67, %66 : vector<8x256xf32>
    %69 = arith.mulf %30, %68 : vector<8x256xf32>
    %c0_30 = arith.constant 0 : index
    %c0_31 = arith.constant 0 : index
    %70 = vector.load %arg7[%c0_30, %c0_31] : memref<8x256xf32, #tpu.memory_space<vmem>>, vector<8x256xf32>
    tpu.vector_store %arg7[%c0_30, %c0_31], %69 {strides = array<i32>} : memref<8x256xf32, #tpu.memory_space<vmem>>, vector<8x256xf32>,
    return
  }
  func.func @transform_0(%arg0: i32, %arg1: i32) -> (i32, i32) {
    %c0_i32 = arith.constant 0 : i32
    %c0_i32_0 = arith.constant 0 : i32
    return %arg1, %c0_i32 : i32, i32
  }
  func.func @transform_1(%arg0: i32, %arg1: i32) -> (i32, i32) {
    %c0_i32 = arith.constant 0 : i32
    %c0_i32_0 = arith.constant 0 : i32
    return %c0_i32, %arg0 : i32, i32
  }
  func.func @transform_2(%arg0: i32, %arg1: i32) -> (i32, i32) {
    %c0_i32 = arith.constant 0 : i32
    %c0_i32_0 = arith.constant 0 : i32
    return %c0_i32, %arg0 : i32, i32
  }
  func.func @transform_3(%arg0: i32, %arg1: i32) -> (i32, i32) {
    %c0_i32 = arith.constant 0 : i32
    %c0_i32_0 = arith.constant 0 : i32
    %c0_i32_1 = arith.constant 0 : i32
    return %c0_i32, %c0_i32_0 : i32, i32
  }
  func.func @transform_4(%arg0: i32, %arg1: i32) -> (i32, i32) {
    %c0_i32 = arith.constant 0 : i32
    %c0_i32_0 = arith.constant 0 : i32
    %c0_i32_1 = arith.constant 0 : i32
    return %c0_i32, %c0_i32_0 : i32, i32
  }
  func.func @transform_5(%arg0: i32, %arg1: i32) -> (i32, i32) {
    %c0_i32 = arith.constant 0 : i32
    return %arg1, %arg0 : i32, i32
  }
}

module attributes {stable_mosaic.version = 11 : i64} {
  func.func @_mm_kernel(%arg0: i32, %arg1: i32, %arg2: memref<8x256xf32, #tpu.memory_space<vmem>>, %arg3: memref<256x64xbf16, #tpu.memory_space<vmem>>, %arg4: memref<1x64xf32, #tpu.memory_space<vmem>>, %arg5: memref<8x64xf32, #tpu.memory_space<vmem>>, %arg6: memref<8x64xf32, #tpu.memory_space<vmem>>) attributes {dimension_semantics = [#tpu.dimension_semantics<parallel>, #tpu.dimension_semantics<parallel>], iteration_bounds = array<i64: 1, 4>, scalar_prefetch = 0 : i64, scratch_operands = 0 : i64, tpu.core_type = #tpu.core_type<tc>, window_params = [{transform_indices = @transform_0, window_bounds = array<i64: 8, 256>}, {transform_indices = @transform_1, window_bounds = array<i64: 256, 64>}, {transform_indices = @transform_2, window_bounds = array<i64: 1, 64>}, {transform_indices = @transform_3, window_bounds = array<i64: 8, 64>}, {transform_indices = @transform_4, window_bounds = array<i64: 8, 64>}]} {
    %c0 = arith.constant 0 : index
    %c0_0 = arith.constant 0 : index
    %0 = vector.load %arg2[%c0, %c0_0] : memref<8x256xf32, #tpu.memory_space<vmem>>, vector<8x256xf32>
    %1 = arith.truncf %0 : vector<8x256xf32> to vector<8x256xbf16>
    %c0_1 = arith.constant 0 : index
    %c0_2 = arith.constant 0 : index
    %2 = vector.load %arg3[%c0_1, %c0_2] : memref<256x64xbf16, #tpu.memory_space<vmem>>, vector<256x64xbf16>
    %cst = arith.constant dense<0.000000e+00> : vector<8x64xf32>
    %3 = tpu.matmul %1, %2, %cst {dimension_numbers = #tpu.dot_dimension_numbers<[1], [0], [0], [1], [0, 0, 1, 1], [], []>} : vector<8x256xbf16>, vector<256x64xbf16>, vector<8x64xf32> -> vector<8x64xf32>
    %c0_3 = arith.constant 0 : index
    %c0_4 = arith.constant 0 : index
    %4 = vector.load %arg4[%c0_3, %c0_4] : memref<1x64xf32, #tpu.memory_space<vmem>>, vector<1x64xf32>
    %5 = vector.broadcast %4 : vector<1x64xf32> to vector<8x64xf32>
    %6 = arith.addf %3, %5 : vector<8x64xf32>
    %c0_5 = arith.constant 0 : index
    %c0_6 = arith.constant 0 : index
    %7 = vector.load %arg5[%c0_5, %c0_6] : memref<8x64xf32, #tpu.memory_space<vmem>>, vector<8x64xf32>
    %8 = arith.addf %6, %7 : vector<8x64xf32>
    %c0_7 = arith.constant 0 : index
    %c0_8 = arith.constant 0 : index
    %9 = vector.load %arg6[%c0_7, %c0_8] : memref<8x64xf32, #tpu.memory_space<vmem>>, vector<8x64xf32>
    tpu.vector_store %arg6[%c0_7, %c0_8], %8 {strides = array<i32>} : memref<8x64xf32, #tpu.memory_space<vmem>>, vector<8x64xf32>,
    return
  }
  func.func @transform_0(%arg0: i32, %arg1: i32) -> (i32, i32) {
    %c0_i32 = arith.constant 0 : i32
    %c0_i32_0 = arith.constant 0 : i32
    return %arg1, %c0_i32 : i32, i32
  }
  func.func @transform_1(%arg0: i32, %arg1: i32) -> (i32, i32) {
    %c0_i32 = arith.constant 0 : i32
    %c0_i32_0 = arith.constant 0 : i32
    return %c0_i32, %arg0 : i32, i32
  }
  func.func @transform_2(%arg0: i32, %arg1: i32) -> (i32, i32) {
    %c0_i32 = arith.constant 0 : i32
    %c0_i32_0 = arith.constant 0 : i32
    return %c0_i32, %arg0 : i32, i32
  }
  func.func @transform_3(%arg0: i32, %arg1: i32) -> (i32, i32) {
    %c0_i32 = arith.constant 0 : i32
    return %arg1, %arg0 : i32, i32
  }
  func.func @transform_4(%arg0: i32, %arg1: i32) -> (i32, i32) {
    %c0_i32 = arith.constant 0 : i32
    return %arg1, %arg0 : i32, i32
  }
}

module attributes {stable_mosaic.version = 11 : i64} {
  func.func @_mm_kernel(%arg0: i32, %arg1: i32, %arg2: memref<8x64xf32, #tpu.memory_space<vmem>>, %arg3: memref<64x128xbf16, #tpu.memory_space<vmem>>, %arg4: memref<1x128xf32, #tpu.memory_space<vmem>>, %arg5: memref<1x128xf32, #tpu.memory_space<vmem>>, %arg6: memref<1x128xf32, #tpu.memory_space<vmem>>, %arg7: memref<8x128xf32, #tpu.memory_space<vmem>>) attributes {dimension_semantics = [#tpu.dimension_semantics<parallel>, #tpu.dimension_semantics<parallel>], iteration_bounds = array<i64: 1, 4>, scalar_prefetch = 0 : i64, scratch_operands = 0 : i64, tpu.core_type = #tpu.core_type<tc>, window_params = [{transform_indices = @transform_0, window_bounds = array<i64: 8, 64>}, {transform_indices = @transform_1, window_bounds = array<i64: 64, 128>}, {transform_indices = @transform_2, window_bounds = array<i64: 1, 128>}, {transform_indices = @transform_3, window_bounds = array<i64: 1, 128>}, {transform_indices = @transform_4, window_bounds = array<i64: 1, 128>}, {transform_indices = @transform_5, window_bounds = array<i64: 8, 128>}]} {
    %c0 = arith.constant 0 : index
    %c0_0 = arith.constant 0 : index
    %0 = vector.load %arg2[%c0, %c0_0] : memref<8x64xf32, #tpu.memory_space<vmem>>, vector<8x64xf32>
    %1 = arith.truncf %0 : vector<8x64xf32> to vector<8x64xbf16>
    %c0_1 = arith.constant 0 : index
    %c0_2 = arith.constant 0 : index
    %2 = vector.load %arg3[%c0_1, %c0_2] : memref<64x128xbf16, #tpu.memory_space<vmem>>, vector<64x128xbf16>
    %cst = arith.constant dense<0.000000e+00> : vector<8x128xf32>
    %3 = tpu.matmul %1, %2, %cst {dimension_numbers = #tpu.dot_dimension_numbers<[1], [0], [0], [1], [0, 0, 1, 1], [], []>} : vector<8x64xbf16>, vector<64x128xbf16>, vector<8x128xf32> -> vector<8x128xf32>
    %c0_3 = arith.constant 0 : index
    %c0_4 = arith.constant 0 : index
    %4 = vector.load %arg4[%c0_3, %c0_4] : memref<1x128xf32, #tpu.memory_space<vmem>>, vector<1x128xf32>
    %5 = vector.broadcast %4 : vector<1x128xf32> to vector<8x128xf32>
    %6 = arith.addf %3, %5 : vector<8x128xf32>
    %c0_5 = arith.constant 0 : index
    %c0_6 = arith.constant 0 : index
    %7 = vector.load %arg5[%c0_5, %c0_6] : memref<1x128xf32, #tpu.memory_space<vmem>>, vector<1x128xf32>
    %c0_7 = arith.constant 0 : index
    %c0_8 = arith.constant 0 : index
    %8 = vector.load %arg6[%c0_7, %c0_8] : memref<1x128xf32, #tpu.memory_space<vmem>>, vector<1x128xf32>
    %cst_9 = arith.constant dense<0.000000e+00> : vector<8xf32>
    %9 = vector.multi_reduction <add>, %6, %cst_9 [1] : vector<8x128xf32> to vector<8xf32>
    %10 = vector.shape_cast %9 : vector<8xf32> to vector<8x1xf32>
    %cst_10 = arith.constant 1.280000e+02 : f32
    %11 = vector.broadcast %cst_10 : f32 to vector<8x1xf32>
    %12 = arith.divf %10, %11 : vector<8x1xf32>
    %13 = vector.broadcast %12 : vector<8x1xf32> to vector<8x128xf32>
    %14 = arith.subf %6, %13 : vector<8x128xf32>
    %15 = arith.mulf %14, %14 : vector<8x128xf32>
    %cst_11 = arith.constant dense<0.000000e+00> : vector<8xf32>
    %16 = vector.multi_reduction <add>, %15, %cst_11 [1] : vector<8x128xf32> to vector<8xf32>
    %17 = vector.shape_cast %16 : vector<8xf32> to vector<8x1xf32>
    %cst_12 = arith.constant 1.280000e+02 : f32
    %18 = vector.broadcast %cst_12 : f32 to vector<8x1xf32>
    %19 = arith.divf %17, %18 : vector<8x1xf32>
    %cst_13 = arith.constant 9.99999997E-7 : f32
    %20 = vector.broadcast %cst_13 : f32 to vector<8x1xf32>
    %21 = arith.addf %19, %20 : vector<8x1xf32>
    %22 = math.rsqrt %21 : vector<8x1xf32>
    %23 = vector.broadcast %22 : vector<8x1xf32> to vector<8x128xf32>
    %24 = arith.mulf %14, %23 : vector<8x128xf32>
    %25 = vector.broadcast %7 : vector<1x128xf32> to vector<8x128xf32>
    %26 = arith.mulf %24, %25 : vector<8x128xf32>
    %27 = vector.broadcast %8 : vector<1x128xf32> to vector<8x128xf32>
    %28 = arith.addf %26, %27 : vector<8x128xf32>
    %c0_14 = arith.constant 0 : index
    %c0_15 = arith.constant 0 : index
    %29 = vector.load %arg7[%c0_14, %c0_15] : memref<8x128xf32, #tpu.memory_space<vmem>>, vector<8x128xf32>
    tpu.vector_store %arg7[%c0_14, %c0_15], %28 {strides = array<i32>} : memref<8x128xf32, #tpu.memory_space<vmem>>, vector<8x128xf32>,
    return
  }
  func.func @transform_0(%arg0: i32, %arg1: i32) -> (i32, i32) {
    %c0_i32 = arith.constant 0 : i32
    %c0_i32_0 = arith.constant 0 : i32
    return %arg1, %c0_i32 : i32, i32
  }
  func.func @transform_1(%arg0: i32, %arg1: i32) -> (i32, i32) {
    %c0_i32 = arith.constant 0 : i32
    %c0_i32_0 = arith.constant 0 : i32
    return %c0_i32, %arg0 : i32, i32
  }
  func.func @transform_2(%arg0: i32, %arg1: i32) -> (i32, i32) {
    %c0_i32 = arith.constant 0 : i32
    %c0_i32_0 = arith.constant 0 : i32
    return %c0_i32, %arg0 : i32, i32
  }
  func.func @transform_3(%arg0: i32, %arg1: i32) -> (i32, i32) {
    %c0_i32 = arith.constant 0 : i32
    %c0_i32_0 = arith.constant 0 : i32
    return %c0_i32, %arg0 : i32, i32
  }
  func.func @transform_4(%arg0: i32, %arg1: i32) -> (i32, i32) {
    %c0_i32 = arith.constant 0 : i32
    %c0_i32_0 = arith.constant 0 : i32
    return %c0_i32, %arg0 : i32, i32
  }
  func.func @transform_5(%arg0: i32, %arg1: i32) -> (i32, i32) {
    %c0_i32 = arith.constant 0 : i32
    return %arg1, %arg0 : i32, i32
  }
}

module attributes {stable_mosaic.version = 11 : i64} {
  func.func @_neck_conv3_kernel(%arg0: i32, %arg1: memref<1x36x128xf32, #tpu.memory_space<vmem>>, %arg2: memref<9x128x128xbf16, #tpu.memory_space<vmem>>, %arg3: memref<1x128xf32, #tpu.memory_space<vmem>>, %arg4: memref<1x128xf32, #tpu.memory_space<vmem>>, %arg5: memref<1x4x4x128xf32, #tpu.memory_space<vmem>>) attributes {dimension_semantics = [#tpu.dimension_semantics<parallel>], iteration_bounds = array<i64: 2>, scalar_prefetch = 0 : i64, scratch_operands = 0 : i64, tpu.core_type = #tpu.core_type<tc>, window_params = [{transform_indices = @transform_0, window_bounds = array<i64: 1, 36, 128>}, {pipeline_mode = #tpu.pipeline_mode<synchronous>, transform_indices = @transform_1, window_bounds = array<i64: 9, 128, 128>}, {pipeline_mode = #tpu.pipeline_mode<synchronous>, transform_indices = @transform_2, window_bounds = array<i64: 1, 128>}, {pipeline_mode = #tpu.pipeline_mode<synchronous>, transform_indices = @transform_3, window_bounds = array<i64: 1, 128>}, {transform_indices = @transform_4, window_bounds = array<i64: 1, 4, 4, 128>}]} {
    %c0 = arith.constant 0 : index
    %c0_0 = arith.constant 0 : index
    %c0_1 = arith.constant 0 : index
    %0 = vector.load %arg1[%c0, %c0_0, %c0_1] : memref<1x36x128xf32, #tpu.memory_space<vmem>>, vector<1x36x128xf32>
    %1 = vector.shape_cast %0 : vector<1x36x128xf32> to vector<36x128xf32>
    %cst = arith.constant 0.000000e+00 : f32
    %2 = vector.broadcast %cst : f32 to vector<22x128xf32>
    %3 = vector.extract_strided_slice %1 {offsets = [0, 0], sizes = [22, 128], strides = [1, 1]} : vector<36x128xf32> to vector<22x128xf32>
    %4 = arith.truncf %3 : vector<22x128xf32> to vector<22x128xbf16>
    %c0_2 = arith.constant 0 : index
    %c0_3 = arith.constant 0 : index
    %c0_4 = arith.constant 0 : index
    %5 = vector.load %arg2[%c0_2, %c0_3, %c0_4] : memref<9x128x128xbf16, #tpu.memory_space<vmem>>, vector<1x128x128xbf16>
    %6 = vector.shape_cast %5 : vector<1x128x128xbf16> to vector<128x128xbf16>
    %cst_5 = arith.constant dense<0.000000e+00> : vector<22x128xf32>
    %7 = tpu.matmul %4, %6, %cst_5 {dimension_numbers = #tpu.dot_dimension_numbers<[1], [0], [0], [1], [0, 0, 1, 1], [], []>} : vector<22x128xbf16>, vector<128x128xbf16>, vector<22x128xf32> -> vector<22x128xf32>
    %8 = arith.addf %2, %7 : vector<22x128xf32>
    %9 = vector.extract_strided_slice %1 {offsets = [1, 0], sizes = [22, 128], strides = [1, 1]} : vector<36x128xf32> to vector<22x128xf32>
    %10 = arith.truncf %9 : vector<22x128xf32> to vector<22x128xbf16>
    %c1 = arith.constant 1 : index
    %c0_6 = arith.constant 0 : index
    %c0_7 = arith.constant 0 : index
    %11 = vector.load %arg2[%c1, %c0_6, %c0_7] : memref<9x128x128xbf16, #tpu.memory_space<vmem>>, vector<1x128x128xbf16>
    %12 = vector.shape_cast %11 : vector<1x128x128xbf16> to vector<128x128xbf16>
    %cst_8 = arith.constant dense<0.000000e+00> : vector<22x128xf32>
    %13 = tpu.matmul %10, %12, %cst_8 {dimension_numbers = #tpu.dot_dimension_numbers<[1], [0], [0], [1], [0, 0, 1, 1], [], []>} : vector<22x128xbf16>, vector<128x128xbf16>, vector<22x128xf32> -> vector<22x128xf32>
    %14 = arith.addf %8, %13 : vector<22x128xf32>
    %15 = vector.extract_strided_slice %1 {offsets = [2, 0], sizes = [22, 128], strides = [1, 1]} : vector<36x128xf32> to vector<22x128xf32>
    %16 = arith.truncf %15 : vector<22x128xf32> to vector<22x128xbf16>
    %c2 = arith.constant 2 : index
    %c0_9 = arith.constant 0 : index
    %c0_10 = arith.constant 0 : index
    %17 = vector.load %arg2[%c2, %c0_9, %c0_10] : memref<9x128x128xbf16, #tpu.memory_space<vmem>>, vector<1x128x128xbf16>
    %18 = vector.shape_cast %17 : vector<1x128x128xbf16> to vector<128x128xbf16>
    %cst_11 = arith.constant dense<0.000000e+00> : vector<22x128xf32>
    %19 = tpu.matmul %16, %18, %cst_11 {dimension_numbers = #tpu.dot_dimension_numbers<[1], [0], [0], [1], [0, 0, 1, 1], [], []>} : vector<22x128xbf16>, vector<128x128xbf16>, vector<22x128xf32> -> vector<22x128xf32>
    %20 = arith.addf %14, %19 : vector<22x128xf32>
    %21 = vector.extract_strided_slice %1 {offsets = [6, 0], sizes = [22, 128], strides = [1, 1]} : vector<36x128xf32> to vector<22x128xf32>
    %22 = arith.truncf %21 : vector<22x128xf32> to vector<22x128xbf16>
    %c3 = arith.constant 3 : index
    %c0_12 = arith.constant 0 : index
    %c0_13 = arith.constant 0 : index
    %23 = vector.load %arg2[%c3, %c0_12, %c0_13] : memref<9x128x128xbf16, #tpu.memory_space<vmem>>, vector<1x128x128xbf16>
    %24 = vector.shape_cast %23 : vector<1x128x128xbf16> to vector<128x128xbf16>
    %cst_14 = arith.constant dense<0.000000e+00> : vector<22x128xf32>
    %25 = tpu.matmul %22, %24, %cst_14 {dimension_numbers = #tpu.dot_dimension_numbers<[1], [0], [0], [1], [0, 0, 1, 1], [], []>} : vector<22x128xbf16>, vector<128x128xbf16>, vector<22x128xf32> -> vector<22x128xf32>
    %26 = arith.addf %20, %25 : vector<22x128xf32>
    %27 = vector.extract_strided_slice %1 {offsets = [7, 0], sizes = [22, 128], strides = [1, 1]} : vector<36x128xf32> to vector<22x128xf32>
    %28 = arith.truncf %27 : vector<22x128xf32> to vector<22x128xbf16>
    %c4 = arith.constant 4 : index
    %c0_15 = arith.constant 0 : index
    %c0_16 = arith.constant 0 : index
    %29 = vector.load %arg2[%c4, %c0_15, %c0_16] : memref<9x128x128xbf16, #tpu.memory_space<vmem>>, vector<1x128x128xbf16>
    %30 = vector.shape_cast %29 : vector<1x128x128xbf16> to vector<128x128xbf16>
    %cst_17 = arith.constant dense<0.000000e+00> : vector<22x128xf32>
    %31 = tpu.matmul %28, %30, %cst_17 {dimension_numbers = #tpu.dot_dimension_numbers<[1], [0], [0], [1], [0, 0, 1, 1], [], []>} : vector<22x128xbf16>, vector<128x128xbf16>, vector<22x128xf32> -> vector<22x128xf32>
    %32 = arith.addf %26, %31 : vector<22x128xf32>
    %33 = vector.extract_strided_slice %1 {offsets = [8, 0], sizes = [22, 128], strides = [1, 1]} : vector<36x128xf32> to vector<22x128xf32>
    %34 = arith.truncf %33 : vector<22x128xf32> to vector<22x128xbf16>
    %c5 = arith.constant 5 : index
    %c0_18 = arith.constant 0 : index
    %c0_19 = arith.constant 0 : index
    %35 = vector.load %arg2[%c5, %c0_18, %c0_19] : memref<9x128x128xbf16, #tpu.memory_space<vmem>>, vector<1x128x128xbf16>
    %36 = vector.shape_cast %35 : vector<1x128x128xbf16> to vector<128x128xbf16>
    %cst_20 = arith.constant dense<0.000000e+00> : vector<22x128xf32>
    %37 = tpu.matmul %34, %36, %cst_20 {dimension_numbers = #tpu.dot_dimension_numbers<[1], [0], [0], [1], [0, 0, 1, 1], [], []>} : vector<22x128xbf16>, vector<128x128xbf16>, vector<22x128xf32> -> vector<22x128xf32>
    %38 = arith.addf %32, %37 : vector<22x128xf32>
    %39 = vector.extract_strided_slice %1 {offsets = [12, 0], sizes = [22, 128], strides = [1, 1]} : vector<36x128xf32> to vector<22x128xf32>
    %40 = arith.truncf %39 : vector<22x128xf32> to vector<22x128xbf16>
    %c6 = arith.constant 6 : index
    %c0_21 = arith.constant 0 : index
    %c0_22 = arith.constant 0 : index
    %41 = vector.load %arg2[%c6, %c0_21, %c0_22] : memref<9x128x128xbf16, #tpu.memory_space<vmem>>, vector<1x128x128xbf16>
    %42 = vector.shape_cast %41 : vector<1x128x128xbf16> to vector<128x128xbf16>
    %cst_23 = arith.constant dense<0.000000e+00> : vector<22x128xf32>
    %43 = tpu.matmul %40, %42, %cst_23 {dimension_numbers = #tpu.dot_dimension_numbers<[1], [0], [0], [1], [0, 0, 1, 1], [], []>} : vector<22x128xbf16>, vector<128x128xbf16>, vector<22x128xf32> -> vector<22x128xf32>
    %44 = arith.addf %38, %43 : vector<22x128xf32>
    %45 = vector.extract_strided_slice %1 {offsets = [13, 0], sizes = [22, 128], strides = [1, 1]} : vector<36x128xf32> to vector<22x128xf32>
    %46 = arith.truncf %45 : vector<22x128xf32> to vector<22x128xbf16>
    %c7 = arith.constant 7 : index
    %c0_24 = arith.constant 0 : index
    %c0_25 = arith.constant 0 : index
    %47 = vector.load %arg2[%c7, %c0_24, %c0_25] : memref<9x128x128xbf16, #tpu.memory_space<vmem>>, vector<1x128x128xbf16>
    %48 = vector.shape_cast %47 : vector<1x128x128xbf16> to vector<128x128xbf16>
    %cst_26 = arith.constant dense<0.000000e+00> : vector<22x128xf32>
    %49 = tpu.matmul %46, %48, %cst_26 {dimension_numbers = #tpu.dot_dimension_numbers<[1], [0], [0], [1], [0, 0, 1, 1], [], []>} : vector<22x128xbf16>, vector<128x128xbf16>, vector<22x128xf32> -> vector<22x128xf32>
    %50 = arith.addf %44, %49 : vector<22x128xf32>
    %51 = vector.extract_strided_slice %1 {offsets = [14, 0], sizes = [22, 128], strides = [1, 1]} : vector<36x128xf32> to vector<22x128xf32>
    %52 = arith.truncf %51 : vector<22x128xf32> to vector<22x128xbf16>
    %c8 = arith.constant 8 : index
    %c0_27 = arith.constant 0 : index
    %c0_28 = arith.constant 0 : index
    %53 = vector.load %arg2[%c8, %c0_27, %c0_28] : memref<9x128x128xbf16, #tpu.memory_space<vmem>>, vector<1x128x128xbf16>
    %54 = vector.shape_cast %53 : vector<1x128x128xbf16> to vector<128x128xbf16>
    %cst_29 = arith.constant dense<0.000000e+00> : vector<22x128xf32>
    %55 = tpu.matmul %52, %54, %cst_29 {dimension_numbers = #tpu.dot_dimension_numbers<[1], [0], [0], [1], [0, 0, 1, 1], [], []>} : vector<22x128xbf16>, vector<128x128xbf16>, vector<22x128xf32> -> vector<22x128xf32>
    %56 = arith.addf %50, %55 : vector<22x128xf32>
    %c0_30 = arith.constant 0 : index
    %c0_31 = arith.constant 0 : index
    %57 = vector.load %arg3[%c0_30, %c0_31] : memref<1x128xf32, #tpu.memory_space<vmem>>, vector<1x128xf32>
    %c0_32 = arith.constant 0 : index
    %c0_33 = arith.constant 0 : index
    %58 = vector.load %arg4[%c0_32, %c0_33] : memref<1x128xf32, #tpu.memory_space<vmem>>, vector<1x128xf32>
    %59 = vector.extract_strided_slice %56 {offsets = [0, 0], sizes = [4, 128], strides = [1, 1]} : vector<22x128xf32> to vector<4x128xf32>
    %cst_34 = arith.constant dense<0.000000e+00> : vector<4xf32>
    %60 = vector.multi_reduction <add>, %59, %cst_34 [1] : vector<4x128xf32> to vector<4xf32>
    %61 = vector.shape_cast %60 : vector<4xf32> to vector<4x1xf32>
    %cst_35 = arith.constant 1.280000e+02 : f32
    %62 = vector.broadcast %cst_35 : f32 to vector<4x1xf32>
    %63 = arith.divf %61, %62 : vector<4x1xf32>
    %64 = vector.broadcast %63 : vector<4x1xf32> to vector<4x128xf32>
    %65 = arith.subf %59, %64 : vector<4x128xf32>
    %66 = arith.mulf %65, %65 : vector<4x128xf32>
    %cst_36 = arith.constant dense<0.000000e+00> : vector<4xf32>
    %67 = vector.multi_reduction <add>, %66, %cst_36 [1] : vector<4x128xf32> to vector<4xf32>
    %68 = vector.shape_cast %67 : vector<4xf32> to vector<4x1xf32>
    %cst_37 = arith.constant 1.280000e+02 : f32
    %69 = vector.broadcast %cst_37 : f32 to vector<4x1xf32>
    %70 = arith.divf %68, %69 : vector<4x1xf32>
    %cst_38 = arith.constant 9.99999997E-7 : f32
    %71 = vector.broadcast %cst_38 : f32 to vector<4x1xf32>
    %72 = arith.addf %70, %71 : vector<4x1xf32>
    %73 = math.rsqrt %72 : vector<4x1xf32>
    %74 = vector.broadcast %73 : vector<4x1xf32> to vector<4x128xf32>
    %75 = arith.mulf %65, %74 : vector<4x128xf32>
    %76 = vector.broadcast %57 : vector<1x128xf32> to vector<4x128xf32>
    %77 = arith.mulf %75, %76 : vector<4x128xf32>
    %78 = vector.broadcast %58 : vector<1x128xf32> to vector<4x128xf32>
    %79 = arith.addf %77, %78 : vector<4x128xf32>
    %c0_39 = arith.constant 0 : index
    %c0_40 = arith.constant 0 : index
    %c0_41 = arith.constant 0 : index
    %c0_42 = arith.constant 0 : index
    %80 = vector.load %arg5[%c0_39, %c0_40, %c0_41, %c0_42] : memref<1x4x4x128xf32, #tpu.memory_space<vmem>>, vector<1x1x4x128xf32>
    %81 = vector.shape_cast %80 : vector<1x1x4x128xf32> to vector<4x128xf32>
    %82 = vector.shape_cast %79 : vector<4x128xf32> to vector<1x1x4x128xf32>
    tpu.vector_store %arg5[%c0_39, %c0_40, %c0_41, %c0_42], %82 {strides = array<i32>} : memref<1x4x4x128xf32, #tpu.memory_space<vmem>>, vector<1x1x4x128xf32>,
    %83 = vector.extract_strided_slice %56 {offsets = [6, 0], sizes = [4, 128], strides = [1, 1]} : vector<22x128xf32> to vector<4x128xf32>
    %cst_43 = arith.constant dense<0.000000e+00> : vector<4xf32>
    %84 = vector.multi_reduction <add>, %83, %cst_43 [1] : vector<4x128xf32> to vector<4xf32>
    %85 = vector.shape_cast %84 : vector<4xf32> to vector<4x1xf32>
    %cst_44 = arith.constant 1.280000e+02 : f32
    %86 = vector.broadcast %cst_44 : f32 to vector<4x1xf32>
    %87 = arith.divf %85, %86 : vector<4x1xf32>
    %88 = vector.broadcast %87 : vector<4x1xf32> to vector<4x128xf32>
    %89 = arith.subf %83, %88 : vector<4x128xf32>
    %90 = arith.mulf %89, %89 : vector<4x128xf32>
    %cst_45 = arith.constant dense<0.000000e+00> : vector<4xf32>
    %91 = vector.multi_reduction <add>, %90, %cst_45 [1] : vector<4x128xf32> to vector<4xf32>
    %92 = vector.shape_cast %91 : vector<4xf32> to vector<4x1xf32>
    %cst_46 = arith.constant 1.280000e+02 : f32
    %93 = vector.broadcast %cst_46 : f32 to vector<4x1xf32>
    %94 = arith.divf %92, %93 : vector<4x1xf32>
    %cst_47 = arith.constant 9.99999997E-7 : f32
    %95 = vector.broadcast %cst_47 : f32 to vector<4x1xf32>
    %96 = arith.addf %94, %95 : vector<4x1xf32>
    %97 = math.rsqrt %96 : vector<4x1xf32>
    %98 = vector.broadcast %97 : vector<4x1xf32> to vector<4x128xf32>
    %99 = arith.mulf %89, %98 : vector<4x128xf32>
    %100 = vector.broadcast %57 : vector<1x128xf32> to vector<4x128xf32>
    %101 = arith.mulf %99, %100 : vector<4x128xf32>
    %102 = vector.broadcast %58 : vector<1x128xf32> to vector<4x128xf32>
    %103 = arith.addf %101, %102 : vector<4x128xf32>
    %c0_48 = arith.constant 0 : index
    %c1_49 = arith.constant 1 : index
    %c0_50 = arith.constant 0 : index
    %c0_51 = arith.constant 0 : index
    %104 = vector.load %arg5[%c0_48, %c1_49, %c0_50, %c0_51] : memref<1x4x4x128xf32, #tpu.memory_space<vmem>>, vector<1x1x4x128xf32>
    %105 = vector.shape_cast %104 : vector<1x1x4x128xf32> to vector<4x128xf32>
    %106 = vector.shape_cast %103 : vector<4x128xf32> to vector<1x1x4x128xf32>
    tpu.vector_store %arg5[%c0_48, %c1_49, %c0_50, %c0_51], %106 {strides = array<i32>} : memref<1x4x4x128xf32, #tpu.memory_space<vmem>>, vector<1x1x4x128xf32>,
    %107 = vector.extract_strided_slice %56 {offsets = [12, 0], sizes = [4, 128], strides = [1, 1]} : vector<22x128xf32> to vector<4x128xf32>
    %cst_52 = arith.constant dense<0.000000e+00> : vector<4xf32>
    %108 = vector.multi_reduction <add>, %107, %cst_52 [1] : vector<4x128xf32> to vector<4xf32>
    %109 = vector.shape_cast %108 : vector<4xf32> to vector<4x1xf32>
    %cst_53 = arith.constant 1.280000e+02 : f32
    %110 = vector.broadcast %cst_53 : f32 to vector<4x1xf32>
    %111 = arith.divf %109, %110 : vector<4x1xf32>
    %112 = vector.broadcast %111 : vector<4x1xf32> to vector<4x128xf32>
    %113 = arith.subf %107, %112 : vector<4x128xf32>
    %114 = arith.mulf %113, %113 : vector<4x128xf32>
    %cst_54 = arith.constant dense<0.000000e+00> : vector<4xf32>
    %115 = vector.multi_reduction <add>, %114, %cst_54 [1] : vector<4x128xf32> to vector<4xf32>
    %116 = vector.shape_cast %115 : vector<4xf32> to vector<4x1xf32>
    %cst_55 = arith.constant 1.280000e+02 : f32
    %117 = vector.broadcast %cst_55 : f32 to vector<4x1xf32>
    %118 = arith.divf %116, %117 : vector<4x1xf32>
    %cst_56 = arith.constant 9.99999997E-7 : f32
    %119 = vector.broadcast %cst_56 : f32 to vector<4x1xf32>
    %120 = arith.addf %118, %119 : vector<4x1xf32>
    %121 = math.rsqrt %120 : vector<4x1xf32>
    %122 = vector.broadcast %121 : vector<4x1xf32> to vector<4x128xf32>
    %123 = arith.mulf %113, %122 : vector<4x128xf32>
    %124 = vector.broadcast %57 : vector<1x128xf32> to vector<4x128xf32>
    %125 = arith.mulf %123, %124 : vector<4x128xf32>
    %126 = vector.broadcast %58 : vector<1x128xf32> to vector<4x128xf32>
    %127 = arith.addf %125, %126 : vector<4x128xf32>
    %c0_57 = arith.constant 0 : index
    %c2_58 = arith.constant 2 : index
    %c0_59 = arith.constant 0 : index
    %c0_60 = arith.constant 0 : index
    %128 = vector.load %arg5[%c0_57, %c2_58, %c0_59, %c0_60] : memref<1x4x4x128xf32, #tpu.memory_space<vmem>>, vector<1x1x4x128xf32>
    %129 = vector.shape_cast %128 : vector<1x1x4x128xf32> to vector<4x128xf32>
    %130 = vector.shape_cast %127 : vector<4x128xf32> to vector<1x1x4x128xf32>
    tpu.vector_store %arg5[%c0_57, %c2_58, %c0_59, %c0_60], %130 {strides = array<i32>} : memref<1x4x4x128xf32, #tpu.memory_space<vmem>>, vector<1x1x4x128xf32>,
    %131 = vector.extract_strided_slice %56 {offsets = [18, 0], sizes = [4, 128], strides = [1, 1]} : vector<22x128xf32> to vector<4x128xf32>
    %cst_61 = arith.constant dense<0.000000e+00> : vector<4xf32>
    %132 = vector.multi_reduction <add>, %131, %cst_61 [1] : vector<4x128xf32> to vector<4xf32>
    %133 = vector.shape_cast %132 : vector<4xf32> to vector<4x1xf32>
    %cst_62 = arith.constant 1.280000e+02 : f32
    %134 = vector.broadcast %cst_62 : f32 to vector<4x1xf32>
    %135 = arith.divf %133, %134 : vector<4x1xf32>
    %136 = vector.broadcast %135 : vector<4x1xf32> to vector<4x128xf32>
    %137 = arith.subf %131, %136 : vector<4x128xf32>
    %138 = arith.mulf %137, %137 : vector<4x128xf32>
    %cst_63 = arith.constant dense<0.000000e+00> : vector<4xf32>
    %139 = vector.multi_reduction <add>, %138, %cst_63 [1] : vector<4x128xf32> to vector<4xf32>
    %140 = vector.shape_cast %139 : vector<4xf32> to vector<4x1xf32>
    %cst_64 = arith.constant 1.280000e+02 : f32
    %141 = vector.broadcast %cst_64 : f32 to vector<4x1xf32>
    %142 = arith.divf %140, %141 : vector<4x1xf32>
    %cst_65 = arith.constant 9.99999997E-7 : f32
    %143 = vector.broadcast %cst_65 : f32 to vector<4x1xf32>
    %144 = arith.addf %142, %143 : vector<4x1xf32>
    %145 = math.rsqrt %144 : vector<4x1xf32>
    %146 = vector.broadcast %145 : vector<4x1xf32> to vector<4x128xf32>
    %147 = arith.mulf %137, %146 : vector<4x128xf32>
    %148 = vector.broadcast %57 : vector<1x128xf32> to vector<4x128xf32>
    %149 = arith.mulf %147, %148 : vector<4x128xf32>
    %150 = vector.broadcast %58 : vector<1x128xf32> to vector<4x128xf32>
    %151 = arith.addf %149, %150 : vector<4x128xf32>
    %c0_66 = arith.constant 0 : index
    %c3_67 = arith.constant 3 : index
    %c0_68 = arith.constant 0 : index
    %c0_69 = arith.constant 0 : index
    %152 = vector.load %arg5[%c0_66, %c3_67, %c0_68, %c0_69] : memref<1x4x4x128xf32, #tpu.memory_space<vmem>>, vector<1x1x4x128xf32>
    %153 = vector.shape_cast %152 : vector<1x1x4x128xf32> to vector<4x128xf32>
    %154 = vector.shape_cast %151 : vector<4x128xf32> to vector<1x1x4x128xf32>
    tpu.vector_store %arg5[%c0_66, %c3_67, %c0_68, %c0_69], %154 {strides = array<i32>} : memref<1x4x4x128xf32, #tpu.memory_space<vmem>>, vector<1x1x4x128xf32>,
    return
  }
  func.func @transform_0(%arg0: i32) -> (i32, i32, i32) {
    %c0_i32 = arith.constant 0 : i32
    %c0_i32_0 = arith.constant 0 : i32
    %c0_i32_1 = arith.constant 0 : i32
    return %arg0, %c0_i32, %c0_i32_0 : i32, i32, i32
  }
  func.func @transform_1(%arg0: i32) -> (i32, i32, i32) {
    %c0_i32 = arith.constant 0 : i32
    %c0_i32_0 = arith.constant 0 : i32
    %c0_i32_1 = arith.constant 0 : i32
    %c0_i32_2 = arith.constant 0 : i32
    return %c0_i32, %c0_i32_0, %c0_i32_1 : i32, i32, i32
  }
  func.func @transform_2(%arg0: i32) -> (i32, i32) {
    %c0_i32 = arith.constant 0 : i32
    %c0_i32_0 = arith.constant 0 : i32
    %c0_i32_1 = arith.constant 0 : i32
    return %c0_i32, %c0_i32_0 : i32, i32
  }
  func.func @transform_3(%arg0: i32) -> (i32, i32) {
    %c0_i32 = arith.constant 0 : i32
    %c0_i32_0 = arith.constant 0 : i32
    %c0_i32_1 = arith.constant 0 : i32
    return %c0_i32, %c0_i32_0 : i32, i32
  }
  func.func @transform_4(%arg0: i32) -> (i32, i32, i32, i32) {
    %c0_i32 = arith.constant 0 : i32
    %c0_i32_0 = arith.constant 0 : i32
    %c0_i32_1 = arith.constant 0 : i32
    %c0_i32_2 = arith.constant 0 : i32
    return %arg0, %c0_i32, %c0_i32_0, %c0_i32_1 : i32, i32, i32, i32
  }
}

module attributes {stable_mosaic.version = 11 : i64} {
  func.func @_mm_kernel(%arg0: i32, %arg1: i32, %arg2: memref<8x128xf32, #tpu.memory_space<vmem>>, %arg3: memref<128x512xbf16, #tpu.memory_space<vmem>>, %arg4: memref<1x512xf32, #tpu.memory_space<vmem>>, %arg5: memref<8x512xf32, #tpu.memory_space<vmem>>) attributes {dimension_semantics = [#tpu.dimension_semantics<parallel>, #tpu.dimension_semantics<parallel>], iteration_bounds = array<i64: 1, 4>, scalar_prefetch = 0 : i64, scratch_operands = 0 : i64, tpu.core_type = #tpu.core_type<tc>, window_params = [{transform_indices = @transform_0, window_bounds = array<i64: 8, 128>}, {transform_indices = @transform_1, window_bounds = array<i64: 128, 512>}, {transform_indices = @transform_2, window_bounds = array<i64: 1, 512>}, {transform_indices = @transform_3, window_bounds = array<i64: 8, 512>}]} {
    %c0 = arith.constant 0 : index
    %c0_0 = arith.constant 0 : index
    %0 = vector.load %arg2[%c0, %c0_0] : memref<8x128xf32, #tpu.memory_space<vmem>>, vector<8x128xf32>
    %1 = arith.truncf %0 : vector<8x128xf32> to vector<8x128xbf16>
    %c0_1 = arith.constant 0 : index
    %c0_2 = arith.constant 0 : index
    %2 = vector.load %arg3[%c0_1, %c0_2] : memref<128x512xbf16, #tpu.memory_space<vmem>>, vector<128x512xbf16>
    %cst = arith.constant dense<0.000000e+00> : vector<8x512xf32>
    %3 = tpu.matmul %1, %2, %cst {dimension_numbers = #tpu.dot_dimension_numbers<[1], [0], [0], [1], [0, 0, 1, 1], [], []>} : vector<8x128xbf16>, vector<128x512xbf16>, vector<8x512xf32> -> vector<8x512xf32>
    %c0_3 = arith.constant 0 : index
    %c0_4 = arith.constant 0 : index
    %4 = vector.load %arg4[%c0_3, %c0_4] : memref<1x512xf32, #tpu.memory_space<vmem>>, vector<1x512xf32>
    %5 = vector.broadcast %4 : vector<1x512xf32> to vector<8x512xf32>
    %6 = arith.addf %3, %5 : vector<8x512xf32>
    %cst_5 = arith.constant 0.000000e+00 : f32
    %7 = vector.broadcast %cst_5 : f32 to vector<8x512xf32>
    %8 = arith.maximumf %6, %7 : vector<8x512xf32>
    %c0_6 = arith.constant 0 : index
    %c0_7 = arith.constant 0 : index
    %9 = vector.load %arg5[%c0_6, %c0_7] : memref<8x512xf32, #tpu.memory_space<vmem>>, vector<8x512xf32>
    tpu.vector_store %arg5[%c0_6, %c0_7], %8 {strides = array<i32>} : memref<8x512xf32, #tpu.memory_space<vmem>>, vector<8x512xf32>,
    return
  }
  func.func @transform_0(%arg0: i32, %arg1: i32) -> (i32, i32) {
    %c0_i32 = arith.constant 0 : i32
    %c0_i32_0 = arith.constant 0 : i32
    return %arg1, %c0_i32 : i32, i32
  }
  func.func @transform_1(%arg0: i32, %arg1: i32) -> (i32, i32) {
    %c0_i32 = arith.constant 0 : i32
    %c0_i32_0 = arith.constant 0 : i32
    return %c0_i32, %arg0 : i32, i32
  }
  func.func @transform_2(%arg0: i32, %arg1: i32) -> (i32, i32) {
    %c0_i32 = arith.constant 0 : i32
    %c0_i32_0 = arith.constant 0 : i32
    return %c0_i32, %arg0 : i32, i32
  }
  func.func @transform_3(%arg0: i32, %arg1: i32) -> (i32, i32) {
    %c0_i32 = arith.constant 0 : i32
    return %arg1, %arg0 : i32, i32
  }
}

module attributes {stable_mosaic.version = 11 : i64} {
  func.func @_mm_kernel(%arg0: i32, %arg1: i32, %arg2: memref<32x128xf32, #tpu.memory_space<vmem>>, %arg3: memref<128x1024xbf16, #tpu.memory_space<vmem>>, %arg4: memref<1x1024xf32, #tpu.memory_space<vmem>>, %arg5: memref<32x1024xf32, #tpu.memory_space<vmem>>) attributes {dimension_semantics = [#tpu.dimension_semantics<parallel>, #tpu.dimension_semantics<parallel>], iteration_bounds = array<i64: 1, 4>, scalar_prefetch = 0 : i64, scratch_operands = 0 : i64, tpu.core_type = #tpu.core_type<tc>, window_params = [{transform_indices = @transform_0, window_bounds = array<i64: 32, 128>}, {transform_indices = @transform_1, window_bounds = array<i64: 128, 1024>}, {transform_indices = @transform_2, window_bounds = array<i64: 1, 1024>}, {transform_indices = @transform_3, window_bounds = array<i64: 32, 1024>}]} {
    %c0 = arith.constant 0 : index
    %c0_0 = arith.constant 0 : index
    %0 = vector.load %arg2[%c0, %c0_0] : memref<32x128xf32, #tpu.memory_space<vmem>>, vector<32x128xf32>
    %1 = arith.truncf %0 : vector<32x128xf32> to vector<32x128xbf16>
    %c0_1 = arith.constant 0 : index
    %c0_2 = arith.constant 0 : index
    %2 = vector.load %arg3[%c0_1, %c0_2] : memref<128x1024xbf16, #tpu.memory_space<vmem>>, vector<128x1024xbf16>
    %cst = arith.constant dense<0.000000e+00> : vector<32x1024xf32>
    %3 = tpu.matmul %1, %2, %cst {dimension_numbers = #tpu.dot_dimension_numbers<[1], [0], [0], [1], [0, 0, 1, 1], [], []>} : vector<32x128xbf16>, vector<128x1024xbf16>, vector<32x1024xf32> -> vector<32x1024xf32>
    %c0_3 = arith.constant 0 : index
    %c0_4 = arith.constant 0 : index
    %4 = vector.load %arg4[%c0_3, %c0_4] : memref<1x1024xf32, #tpu.memory_space<vmem>>, vector<1x1024xf32>
    %5 = vector.broadcast %4 : vector<1x1024xf32> to vector<32x1024xf32>
    %6 = arith.addf %3, %5 : vector<32x1024xf32>
    %cst_5 = arith.constant 0.000000e+00 : f32
    %7 = vector.broadcast %cst_5 : f32 to vector<32x1024xf32>
    %8 = arith.maximumf %6, %7 : vector<32x1024xf32>
    %c0_6 = arith.constant 0 : index
    %c0_7 = arith.constant 0 : index
    %9 = vector.load %arg5[%c0_6, %c0_7] : memref<32x1024xf32, #tpu.memory_space<vmem>>, vector<32x1024xf32>
    tpu.vector_store %arg5[%c0_6, %c0_7], %8 {strides = array<i32>} : memref<32x1024xf32, #tpu.memory_space<vmem>>, vector<32x1024xf32>,
    return
  }
  func.func @transform_0(%arg0: i32, %arg1: i32) -> (i32, i32) {
    %c0_i32 = arith.constant 0 : i32
    %c0_i32_0 = arith.constant 0 : i32
    return %arg1, %c0_i32 : i32, i32
  }
  func.func @transform_1(%arg0: i32, %arg1: i32) -> (i32, i32) {
    %c0_i32 = arith.constant 0 : i32
    %c0_i32_0 = arith.constant 0 : i32
    return %c0_i32, %arg0 : i32, i32
  }
  func.func @transform_2(%arg0: i32, %arg1: i32) -> (i32, i32) {
    %c0_i32 = arith.constant 0 : i32
    %c0_i32_0 = arith.constant 0 : i32
    return %c0_i32, %arg0 : i32, i32
  }
  func.func @transform_3(%arg0: i32, %arg1: i32) -> (i32, i32) {
    %c0_i32 = arith.constant 0 : i32
    return %arg1, %arg0 : i32, i32
  }
}

module attributes {stable_mosaic.version = 11 : i64} {
  func.func @_mm_kernel(%arg0: i32, %arg1: i32, %arg2: memref<128x256xf32, #tpu.memory_space<vmem>>, %arg3: memref<256x512xbf16, #tpu.memory_space<vmem>>, %arg4: memref<1x512xf32, #tpu.memory_space<vmem>>, %arg5: memref<128x512xf32, #tpu.memory_space<vmem>>) attributes {dimension_semantics = [#tpu.dimension_semantics<parallel>, #tpu.dimension_semantics<parallel>], iteration_bounds = array<i64: 1, 4>, scalar_prefetch = 0 : i64, scratch_operands = 0 : i64, tpu.core_type = #tpu.core_type<tc>, window_params = [{transform_indices = @transform_0, window_bounds = array<i64: 128, 256>}, {transform_indices = @transform_1, window_bounds = array<i64: 256, 512>}, {transform_indices = @transform_2, window_bounds = array<i64: 1, 512>}, {transform_indices = @transform_3, window_bounds = array<i64: 128, 512>}]} {
    %c0 = arith.constant 0 : index
    %c0_0 = arith.constant 0 : index
    %0 = vector.load %arg2[%c0, %c0_0] : memref<128x256xf32, #tpu.memory_space<vmem>>, vector<128x256xf32>
    %1 = arith.truncf %0 : vector<128x256xf32> to vector<128x256xbf16>
    %c0_1 = arith.constant 0 : index
    %c0_2 = arith.constant 0 : index
    %2 = vector.load %arg3[%c0_1, %c0_2] : memref<256x512xbf16, #tpu.memory_space<vmem>>, vector<256x512xbf16>
    %cst = arith.constant dense<0.000000e+00> : vector<128x512xf32>
    %3 = tpu.matmul %1, %2, %cst {dimension_numbers = #tpu.dot_dimension_numbers<[1], [0], [0], [1], [0, 0, 1, 1], [], []>} : vector<128x256xbf16>, vector<256x512xbf16>, vector<128x512xf32> -> vector<128x512xf32>
    %c0_3 = arith.constant 0 : index
    %c0_4 = arith.constant 0 : index
    %4 = vector.load %arg4[%c0_3, %c0_4] : memref<1x512xf32, #tpu.memory_space<vmem>>, vector<1x512xf32>
    %5 = vector.broadcast %4 : vector<1x512xf32> to vector<128x512xf32>
    %6 = arith.addf %3, %5 : vector<128x512xf32>
    %cst_5 = arith.constant 0.000000e+00 : f32
    %7 = vector.broadcast %cst_5 : f32 to vector<128x512xf32>
    %8 = arith.maximumf %6, %7 : vector<128x512xf32>
    %c0_6 = arith.constant 0 : index
    %c0_7 = arith.constant 0 : index
    %9 = vector.load %arg5[%c0_6, %c0_7] : memref<128x512xf32, #tpu.memory_space<vmem>>, vector<128x512xf32>
    tpu.vector_store %arg5[%c0_6, %c0_7], %8 {strides = array<i32>} : memref<128x512xf32, #tpu.memory_space<vmem>>, vector<128x512xf32>,
    return
  }
  func.func @transform_0(%arg0: i32, %arg1: i32) -> (i32, i32) {
    %c0_i32 = arith.constant 0 : i32
    %c0_i32_0 = arith.constant 0 : i32
    return %arg1, %c0_i32 : i32, i32
  }
  func.func @transform_1(%arg0: i32, %arg1: i32) -> (i32, i32) {
    %c0_i32 = arith.constant 0 : i32
    %c0_i32_0 = arith.constant 0 : i32
    return %c0_i32, %arg0 : i32, i32
  }
  func.func @transform_2(%arg0: i32, %arg1: i32) -> (i32, i32) {
    %c0_i32 = arith.constant 0 : i32
    %c0_i32_0 = arith.constant 0 : i32
    return %c0_i32, %arg0 : i32, i32
  }
  func.func @transform_3(%arg0: i32, %arg1: i32) -> (i32, i32) {
    %c0_i32 = arith.constant 0 : i32
    return %arg1, %arg0 : i32, i32
  }
}

module attributes {stable_mosaic.version = 11 : i64} {
  func.func @_mm_kernel(%arg0: i32, %arg1: i32, %arg2: memref<512x128xf32, #tpu.memory_space<vmem>>, %arg3: memref<128x128xbf16, #tpu.memory_space<vmem>>, %arg4: memref<1x128xf32, #tpu.memory_space<vmem>>, %arg5: memref<512x128xf32, #tpu.memory_space<vmem>>) attributes {dimension_semantics = [#tpu.dimension_semantics<parallel>, #tpu.dimension_semantics<parallel>], iteration_bounds = array<i64: 4, 1>, scalar_prefetch = 0 : i64, scratch_operands = 0 : i64, tpu.core_type = #tpu.core_type<tc>, window_params = [{transform_indices = @transform_0, window_bounds = array<i64: 512, 128>}, {transform_indices = @transform_1, window_bounds = array<i64: 128, 128>}, {transform_indices = @transform_2, window_bounds = array<i64: 1, 128>}, {transform_indices = @transform_3, window_bounds = array<i64: 512, 128>}]} {
    %c0 = arith.constant 0 : index
    %c0_0 = arith.constant 0 : index
    %0 = vector.load %arg2[%c0, %c0_0] : memref<512x128xf32, #tpu.memory_space<vmem>>, vector<512x128xf32>
    %1 = arith.truncf %0 : vector<512x128xf32> to vector<512x128xbf16>
    %c0_1 = arith.constant 0 : index
    %c0_2 = arith.constant 0 : index
    %2 = vector.load %arg3[%c0_1, %c0_2] : memref<128x128xbf16, #tpu.memory_space<vmem>>, vector<128x128xbf16>
    %cst = arith.constant dense<0.000000e+00> : vector<512x128xf32>
    %3 = tpu.matmul %1, %2, %cst {dimension_numbers = #tpu.dot_dimension_numbers<[1], [0], [0], [1], [0, 0, 1, 1], [], []>} : vector<512x128xbf16>, vector<128x128xbf16>, vector<512x128xf32> -> vector<512x128xf32>
    %c0_3 = arith.constant 0 : index
    %c0_4 = arith.constant 0 : index
    %4 = vector.load %arg4[%c0_3, %c0_4] : memref<1x128xf32, #tpu.memory_space<vmem>>, vector<1x128xf32>
    %5 = vector.broadcast %4 : vector<1x128xf32> to vector<512x128xf32>
    %6 = arith.addf %3, %5 : vector<512x128xf32>
    %cst_5 = arith.constant 0.000000e+00 : f32
    %7 = vector.broadcast %cst_5 : f32 to vector<512x128xf32>
    %8 = arith.maximumf %6, %7 : vector<512x128xf32>
    %c0_6 = arith.constant 0 : index
    %c0_7 = arith.constant 0 : index
    %9 = vector.load %arg5[%c0_6, %c0_7] : memref<512x128xf32, #tpu.memory_space<vmem>>, vector<512x128xf32>
    tpu.vector_store %arg5[%c0_6, %c0_7], %8 {strides = array<i32>} : memref<512x128xf32, #tpu.memory_space<vmem>>, vector<512x128xf32>,
    return
  }
  func.func @transform_0(%arg0: i32, %arg1: i32) -> (i32, i32) {
    %c0_i32 = arith.constant 0 : i32
    %c0_i32_0 = arith.constant 0 : i32
    return %arg0, %c0_i32 : i32, i32
  }
  func.func @transform_1(%arg0: i32, %arg1: i32) -> (i32, i32) {
    %c0_i32 = arith.constant 0 : i32
    %c0_i32_0 = arith.constant 0 : i32
    return %c0_i32, %arg1 : i32, i32
  }
  func.func @transform_2(%arg0: i32, %arg1: i32) -> (i32, i32) {
    %c0_i32 = arith.constant 0 : i32
    %c0_i32_0 = arith.constant 0 : i32
    return %c0_i32, %arg1 : i32, i32
  }
  func.func @transform_3(%arg0: i32, %arg1: i32) -> (i32, i32) {
    %c0_i32 = arith.constant 0 : i32
    return %arg0, %arg1 : i32, i32
  }
}

</mosaic_0001>

<llo_original>
// kernel: _lambda_.17
$region0: #{_lambda_.17}
  #allocation0 [shape = 'u32[]', space=smem, size = 0x4, offset = 0x4, fixed_abs, tag = 'smem constant byte address 0x4 - core index']
  #allocation1 [shape = 'u32[72,128]{1,0:T(1,128)}', space=vmem, size = 0x9000, scoped, tag = 'internal scratch']
  %s0 = inlined_call_operand.vmem [shape: f32[32,768], index: 0, kind: input, shape index: {}]
  %s1 = inlined_call_operand.vmem [shape: bf16[768,64], index: 1, kind: input, shape index: {}]
  %s2 = inlined_call_operand.vmem [shape: f32[1,64], index: 2, kind: input, shape index: {}]
  %s3 = inlined_call_operand.vmem [shape: f32[32,64], index: 3, kind: output, shape index: {}]
  %s4 = sld [smem:[#allocation0]]
  $region45: #{_lambda_.17} parent=0
    _
  %s6 = ssub.s32 1, %s4
  %s7 = scalar_select 0, %s6, %s4
  loop: start=0, step=1, limit=6
  $region2: #{_lambda_.17} parent=0 // loop_pre_header
    _
  $region3: #{_lambda_.17} parent=0 // loop_header
    %s9 = sphi 0, %s13
    %p10 = scmp.ge.s32.totalorder %s9, 6
    %s16 = sphi 0, %s28
    %s17 = sphi 0, %s24
    %s18 = sphi 0, %s16
    %s19 = sphi 0, %s17
    %s20 = sphi 0, %s18
    %s21 = sphi 0, %s19
    %s31 = sphi 0, %s33
    %s34 = sphi 0, %s31
    %s35 = sphi 0, %s34
    %s51 = sphi 0, %s35
    %s57 = sphi 0, %s59
    %s60 = sphi 0, %s57
    %s61 = sphi 0, %s60
    %s77 = sphi 0, %s61
    %s83 = sphi 0, %s85
    %s86 = sphi 0, %s83
    %s87 = sphi 0, %s86
    %s103 = sphi 0, %s87
    %s111 = sphi 0, %s113
    %s114 = sphi 0, %s111
    %s115 = sphi 0, %s114
    %s131 = sphi 0, %s115
  $region4: #{_lambda_.17} parent=0 // loop_header_branch
    %12 = sbr.rel (%p10) target = $region8
  $region5: #{_lambda_.17} parent=0 // loop_body
    %s14 = ssub.s32 %s9, 1
    %s15 = ssub.s32 %s9, 2
    %s22 = sadd.s32 1, %s17
    %p23 = scmp.ge.s32.totalorder %s22, 4
    %s24 = scalar_select %p23, 0, %s22
    %s25 = sadd.s32 1, %s16
    %s26 = scalar_select %p23, %s25, %s16
    %p27 = scmp.ge.s32.totalorder %s26, 1
    %s28 = scalar_select %p27, 0, %s26
    %s29 = ssub.s32 %s17, %s24
    %p30 = scmp.eq.s32.totalorder %s29, 0
    %s32 = sadd.s32 %s31, 1
    %s33 = scalar_select %p30, %s31, %s32
    %p36 = pneg %p30
    %p37 = scmp.eq.s32.totalorder %s9, 3
    %p38 = por %p36, %p37
    %p39 = scmp.ne.s32.totalorder %s31, %s34
    %p40 = scmp.eq.s32.totalorder %s9, 0
    %p41 = por %p39, %p40
    %p42 = scmp.ne.s32.totalorder %s31, %s34
    %p43 = scmp.eq.s32.totalorder %s14, 3
    %p44 = por %p42, %p43
    %p45 = scmp.ne.s32.totalorder %s34, %s35
    %p46 = scmp.eq.s32.totalorder %s14, 0
    %p47 = por %p45, %p46
    %p48 = scmp.ne.s32.totalorder %s34, %s35
    %p49 = scmp.eq.s32.totalorder %s15, 3
    %p50 = por %p48, %p49
    %p52 = scmp.ne.s32.totalorder %s35, %s51
    %p53 = scmp.eq.s32.totalorder %s15, 0
    %p54 = por %p52, %p53
    %s55 = ssub.s32 %s16, %s28
    %p56 = scmp.eq.s32.totalorder %s55, 0
    %s58 = sadd.s32 %s57, 1
    %s59 = scalar_select %p56, %s57, %s58
    %p62 = pneg %p56
    %p63 = scmp.eq.s32.totalorder %s9, 3
    %p64 = por %p62, %p63
    %p65 = scmp.ne.s32.totalorder %s57, %s60
    %p66 = scmp.eq.s32.totalorder %s9, 0
    %p67 = por %p65, %p66
    %p68 = scmp.ne.s32.totalorder %s57, %s60
    %p69 = scmp.eq.s32.totalorder %s14, 3
    %p70 = por %p68, %p69
    %p71 = scmp.ne.s32.totalorder %s60, %s61
    %p72 = scmp.eq.s32.totalorder %s14, 0
    %p73 = por %p71, %p72
    %p74 = scmp.ne.s32.totalorder %s60, %s61
    %p75 = scmp.eq.s32.totalorder %s15, 3
    %p76 = por %p74, %p75
    %p78 = scmp.ne.s32.totalorder %s61, %s77
    %p79 = scmp.eq.s32.totalorder %s15, 0
    %p80 = por %p78, %p79
    %s81 = ssub.s32 %s16, %s28
    %p82 = scmp.eq.s32.totalorder %s81, 0
    %s84 = sadd.s32 %s83, 1
    %s85 = scalar_select %p82, %s83, %s84
    %p88 = pneg %p82
    %p89 = scmp.eq.s32.totalorder %s9, 3
    %p90 = por %p88, %p89
    %p91 = scmp.ne.s32.totalorder %s83, %s86
    %p92 = scmp.eq.s32.totalorder %s9, 0
    %p93 = por %p91, %p92
    %p94 = scmp.ne.s32.totalorder %s83, %s86
    %p95 = scmp.eq.s32.totalorder %s14, 3
    %p96 = por %p94, %p95
    %p97 = scmp.ne.s32.totalorder %s86, %s87
    %p98 = scmp.eq.s32.totalorder %s14, 0
    %p99 = por %p97, %p98
    %p100 = scmp.ne.s32.totalorder %s86, %s87
    %p101 = scmp.eq.s32.totalorder %s15, 3
    %p102 = por %p100, %p101
    %p104 = scmp.ne.s32.totalorder %s87, %s103
    %p105 = scmp.eq.s32.totalorder %s15, 0
    %p106 = por %p104, %p105
    %s107 = ssub.s32 %s17, %s24
    %s108 = ssub.s32 %s16, %s28
    %s109 = sor.u32 %s107, %s108
    %p110 = scmp.eq.s32.totalorder %s109, 0
    %s112 = sadd.s32 %s111, 1
    %s113 = scalar_select %p110, %s111, %s112
    %p116 = pneg %p110
    %p117 = scmp.eq.s32.totalorder %s9, 3
    %p118 = por %p116, %p117
    %p119 = scmp.ne.s32.totalorder %s111, %s114
    %p120 = scmp.eq.s32.totalorder %s9, 0
    %p121 = por %p119, %p120
    %p122 = scmp.ne.s32.totalorder %s111, %s114
    %p123 = scmp.eq.s32.totalorder %s14, 3
    %p124 = por %p122, %p123
    %p125 = scmp.ne.s32.totalorder %s114, %s115
    %p126 = scmp.eq.s32.totalorder %s14, 0
    %p127 = por %p125, %p126
    %p128 = scmp.ne.s32.totalorder %s114, %s115
    %p129 = scmp.eq.s32.totalorder %s15, 3
    %p130 = por %p128, %p129
    %p132 = scmp.ne.s32.totalorder %s115, %s131
    %p133 = scmp.eq.s32.totalorder %s15, 0
    %p134 = por %p132, %p133
    %p135 = scmp.le.s32.totalorder 1, %s9
    %p136 = scmp.lt.s32.totalorder %s9, 5
    %p137 = pnand %p135, %p136
    %p138 = pneg %p137
    // Predicated region
    $region9: #{_lambda_.17} parent=5 // pred_check
      _
    $region10: #{_lambda_.17} parent=5 // pred_check_branch
      %140 = sbr.rel (%p137) target = $region12
    $region11: #{_lambda_.17} parent=5 // pred_region
      %s141 = ssub.s32 %s9, 1
      // Predicated region
      $region13: #{_lambda_.17} parent=11 // pred_check
        %p142 = pneg %p73
      $region14: #{_lambda_.17} parent=11 // pred_check_branch
        %144 = sbr.rel (%p142) target = $region16
      $region15: #{_lambda_.17} parent=11 // pred_region
        %p145 = scmp.lt.s32.totalorder %s18, 0
        %s146 = scalar_select %p145, %s18, 0
        %s147 = smul.addr %s146, 4
        %s148 = scalar_lea.vmem %s1, %s147
      $region16: #{_lambda_.17} parent=11 // pred_fallthru
        _
      // Predicated region
      $region17: #{_lambda_.17} parent=11 // pred_check
        %p149 = pneg %p99
      $region18: #{_lambda_.17} parent=11 // pred_check_branch
        %151 = sbr.rel (%p149) target = $region20
      $region19: #{_lambda_.17} parent=11 // pred_region
        %p152 = scmp.lt.s32.totalorder %s18, 0
        %s153 = scalar_select %p152, %s18, 0
        %s154 = scalar_lea.vmem %s2, %s153
      $region20: #{_lambda_.17} parent=11 // pred_fallthru
        _
    $region12: #{_lambda_.17} parent=5 // pred_fallthru
      _
    %p155 = scmp.lt.s32.totalorder %s9, 4
    // Predicated region
    $region21: #{_lambda_.17} parent=5 // pred_check
      %p156 = pneg %p155
    $region22: #{_lambda_.17} parent=5 // pred_check_branch
      %158 = sbr.rel (%p156) target = $region24
    $region23: #{_lambda_.17} parent=5 // pred_region
      // Predicated region
      $region25: #{_lambda_.17} parent=23 // pred_check
        %p159 = pneg %p41
      $region26: #{_lambda_.17} parent=23 // pred_check_branch
        %161 = sbr.rel (%p159) target = $region28
      $region27: #{_lambda_.17} parent=23 // pred_region
        %p162 = scmp.lt.s32.totalorder %s17, 3
        %s163 = scalar_select %p162, %s17, 3
        %s164 = smul.addr %s163, 6
        %s165 = smul.addr %s164, 8
        %s166 = scalar_lea.vmem %s0, %s165
      $region28: #{_lambda_.17} parent=23 // pred_fallthru
        _
    $region24: #{_lambda_.17} parent=5 // pred_fallthru
      _
    %p167 = scmp.le.s32.totalorder 1, %s9
    %p168 = scmp.lt.s32.totalorder %s9, 5
    %p169 = pnand %p167, %p168
    %p170 = pneg %p169
    // Predicated region
    $region29: #{_lambda_.17} parent=5 // pred_check
      _
    $region30: #{_lambda_.17} parent=5 // pred_check_branch
      %172 = sbr.rel (%p169) target = $region32
    $region31: #{_lambda_.17} parent=5 // pred_region
      %s173 = ssub.s32 %s9, 1
      %p174 = scmp.lt.s32.totalorder %s19, 3
      %s175 = scalar_select %p174, %s19, 3
      %s176 = smul.addr %s175, 6
      %s177 = smul.addr %s176, 8
      %s178 = scalar_lea.vmem %s0, %s177
      %p179 = pneg %p47
      %p180 = pneg %p44
      %p181 = scmp.lt.s32.totalorder %s18, 0
      %s182 = scalar_select %p181, %s18, 0
      %s183 = smul.addr %s182, 4
      %s184 = scalar_lea.vmem %s1, %s183
      %p185 = pneg %p73
      %p186 = pneg %p70
      %p187 = scmp.lt.s32.totalorder %s18, 0
      %s188 = scalar_select %p187, %s18, 0
      %s189 = scalar_lea.vmem %s2, %s188
      %p190 = pneg %p99
      %p191 = pneg %p96
      %p192 = pneg %p127
      %p193 = pneg %p124
      %p194 = scmp.lt.s32.totalorder %s19, 3
      %s195 = scalar_select %p194, %s19, 3
      %p196 = scmp.lt.s32.totalorder %s18, 0
      %s197 = scalar_select %p196, %s18, 0
      %s198 = sadd.s32 %s197, %s195
      %s199 = smul.addr %s198, 8
      %s200 = scalar_lea.vmem %s3, %s199
      %p201 = scmp.lt.s32.totalorder %s19, 3
      %s202 = scalar_select %p201, %s19, 3
      %s203 = smul.addr %s202, 6
      %s204 = smul.addr %s203, 8
      %s205 = scalar_lea.vmem %s0, %s204
      %p206 = scmp.lt.s32.totalorder %s18, 0
      %s207 = scalar_select %p206, %s18, 0
      %s208 = smul.addr %s207, 4
      %s209 = scalar_lea.vmem %s1, %s208
      %p210 = scmp.lt.s32.totalorder %s18, 0
      %s211 = scalar_select %p210, %s18, 0
      %s212 = scalar_lea.vmem %s2, %s211
      %p213 = scmp.lt.s32.totalorder %s19, 3
      %s214 = scalar_select %p213, %s19, 3
      %p215 = scmp.lt.s32.totalorder %s18, 0
      %s216 = scalar_select %p215, %s18, 0
      %s217 = sadd.s32 %s216, %s214
      %s218 = smul.addr %s217, 8
      %s219 = scalar_lea.vmem %s3, %s218
      %v220 = vld [vmem:[%s205] sm:$0xff]
      %v221 = vld [vmem:[%s205 + $0x8] sm:$0xff]
      %v222 = vld [vmem:[%s205 + $0x10] sm:$0xff]
      %v223 = vld [vmem:[%s205 + $0x18] sm:$0xff]
      %v224 = vld [vmem:[%s205 + $0x20] sm:$0xff]
      %v225 = vld [vmem:[%s205 + $0x28] sm:$0xff]
      %v226 = vpack.c.bf16 %v220, %v220
      %v227 = vpack.c.bf16 %v221, %v221
      %v228 = vpack.c.bf16 %v222, %v222
      %v229 = vpack.c.bf16 %v223, %v223
      %v230 = vpack.c.bf16 %v224, %v224
      %v231 = vpack.c.bf16 %v225, %v225
      %v232 = vld [vmem:[%s209] sm:$0xf]
      %v233 = vld [vmem:[%s209 + $0x4] sm:$0xf]
      %v234 = vld [vmem:[%s209 + $0x8] sm:$0xf]
      %v235 = vld [vmem:[%s209 + $0xc] sm:$0xf]
      %v236 = vld [vmem:[%s209 + $0x10] sm:$0xf]
      %v237 = vld [vmem:[%s209 + $0x14] sm:$0xf]
      %v238 = vld [vmem:[%s209 + $0x18] sm:$0xf]
      %v239 = vld [vmem:[%s209 + $0x1c] sm:$0xf]
      %v240 = vld [vmem:[%s209 + $0x20] sm:$0xf]
      %v241 = vld [vmem:[%s209 + $0x24] sm:$0xf]
      %v242 = vld [vmem:[%s209 + $0x28] sm:$0xf]
      %v243 = vld [vmem:[%s209 + $0x2c] sm:$0xf]
      %v244 = vld [vmem:[%s209 + $0x30] sm:$0xf]
      %v245 = vld [vmem:[%s209 + $0x34] sm:$0xf]
      %v246 = vld [vmem:[%s209 + $0x38] sm:$0xf]
      %v247 = vld [vmem:[%s209 + $0x3c] sm:$0xf]
      %v248 = vld [vmem:[%s209 + $0x40] sm:$0xf]
      %v249 = vld [vmem:[%s209 + $0x44] sm:$0xf]
      %v250 = vld [vmem:[%s209 + $0x48] sm:$0xf]
      %v251 = vld [vmem:[%s209 + $0x4c] sm:$0xf]
      %v252 = vld [vmem:[%s209 + $0x50] sm:$0xf]
      %v253 = vld [vmem:[%s209 + $0x54] sm:$0xf]
      %v254 = vld [vmem:[%s209 + $0x58] sm:$0xf]
      %v255 = vld [vmem:[%s209 + $0x5c] sm:$0xf]
      %v256 = vld [vmem:[%s209 + $0x60] sm:$0xf]
      %v257 = vld [vmem:[%s209 + $0x64] sm:$0xf]
      %v258 = vld [vmem:[%s209 + $0x68] sm:$0xf]
      %v259 = vld [vmem:[%s209 + $0x6c] sm:$0xf]
      %v260 = vld [vmem:[%s209 + $0x70] sm:$0xf]
      %v261 = vld [vmem:[%s209 + $0x74] sm:$0xf]
      %v262 = vld [vmem:[%s209 + $0x78] sm:$0xf]
      %v263 = vld [vmem:[%s209 + $0x7c] sm:$0xf]
      %v264 = vld [vmem:[%s209 + $0x80] sm:$0xf]
      %v265 = vld [vmem:[%s209 + $0x84] sm:$0xf]
      %v266 = vld [vmem:[%s209 + $0x88] sm:$0xf]
      %v267 = vld [vmem:[%s209 + $0x8c] sm:$0xf]
      %v268 = vld [vmem:[%s209 + $0x90] sm:$0xf]
      %v269 = vld [vmem:[%s209 + $0x94] sm:$0xf]
      %v270 = vld [vmem:[%s209 + $0x98] sm:$0xf]
      %v271 = vld [vmem:[%s209 + $0x9c] sm:$0xf]
      %v272 = vld [vmem:[%s209 + $0xa0] sm:$0xf]
      %v273 = vld [vmem:[%s209 + $0xa4] sm:$0xf]
      %v274 = vld [vmem:[%s209 + $0xa8] sm:$0xf]
      %v275 = vld [vmem:[%s209 + $0xac] sm:$0xf]
      %v276 = vld [vmem:[%s209 + $0xb0] sm:$0xf]
      %v277 = vld [vmem:[%s209 + $0xb4] sm:$0xf]
      %v278 = vld [vmem:[%s209 + $0xb8] sm:$0xf]
      %v279 = vld [vmem:[%s209 + $0xbc] sm:$0xf]
      %v280 = vld [vmem:[%s209 + $0xc0] sm:$0xf]
      %v281 = vld [vmem:[%s209 + $0xc4] sm:$0xf]
      %v282 = vld [vmem:[%s209 + $0xc8] sm:$0xf]
      %v283 = vld [vmem:[%s209 + $0xcc] sm:$0xf]
      %v284 = vld [vmem:[%s209 + $0xd0] sm:$0xf]
      %v285 = vld [vmem:[%s209 + $0xd4] sm:$0xf]
      %v286 = vld [vmem:[%s209 + $0xd8] sm:$0xf]
      %v287 = vld [vmem:[%s209 + $0xdc] sm:$0xf]
      %v288 = vld [vmem:[%s209 + $0xe0] sm:$0xf]
      %v289 = vld [vmem:[%s209 + $0xe4] sm:$0xf]
      %v290 = vld [vmem:[%s209 + $0xe8] sm:$0xf]
      %v291 = vld [vmem:[%s209 + $0xec] sm:$0xf]
      %v292 = vld [vmem:[%s209 + $0xf0] sm:$0xf]
      %v293 = vld [vmem:[%s209 + $0xf4] sm:$0xf]
      %v294 = vld [vmem:[%s209 + $0xf8] sm:$0xf]
      %v295 = vld [vmem:[%s209 + $0xfc] sm:$0xf]
      %v296 = vld [vmem:[%s209 + $0x100] sm:$0xf]
      %v297 = vld [vmem:[%s209 + $0x104] sm:$0xf]
      %v298 = vld [vmem:[%s209 + $0x108] sm:$0xf]
      %v299 = vld [vmem:[%s209 + $0x10c] sm:$0xf]
      %v300 = vld [vmem:[%s209 + $0x110] sm:$0xf]
      %v301 = vld [vmem:[%s209 + $0x114] sm:$0xf]
      %v302 = vld [vmem:[%s209 + $0x118] sm:$0xf]
      %v303 = vld [vmem:[%s209 + $0x11c] sm:$0xf]
      %v304 = vld [vmem:[%s209 + $0x120] sm:$0xf]
      %v305 = vld [vmem:[%s209 + $0x124] sm:$0xf]
      %v306 = vld [vmem:[%s209 + $0x128] sm:$0xf]
      %v307 = vld [vmem:[%s209 + $0x12c] sm:$0xf]
      %v308 = vld [vmem:[%s209 + $0x130] sm:$0xf]
      %v309 = vld [vmem:[%s209 + $0x134] sm:$0xf]
      %v310 = vld [vmem:[%s209 + $0x138] sm:$0xf]
      %v311 = vld [vmem:[%s209 + $0x13c] sm:$0xf]
      %v312 = vld [vmem:[%s209 + $0x140] sm:$0xf]
      %v313 = vld [vmem:[%s209 + $0x144] sm:$0xf]
      %v314 = vld [vmem:[%s209 + $0x148] sm:$0xf]
      %v315 = vld [vmem:[%s209 + $0x14c] sm:$0xf]
      %v316 = vld [vmem:[%s209 + $0x150] sm:$0xf]
      %v317 = vld [vmem:[%s209 + $0x154] sm:$0xf]
      %v318 = vld [vmem:[%s209 + $0x158] sm:$0xf]
      %v319 = vld [vmem:[%s209 + $0x15c] sm:$0xf]
      %v320 = vld [vmem:[%s209 + $0x160] sm:$0xf]
      %v321 = vld [vmem:[%s209 + $0x164] sm:$0xf]
      %v322 = vld [vmem:[%s209 + $0x168] sm:$0xf]
      %v323 = vld [vmem:[%s209 + $0x16c] sm:$0xf]
      %v324 = vld [vmem:[%s209 + $0x170] sm:$0xf]
      %v325 = vld [vmem:[%s209 + $0x174] sm:$0xf]
      %v326 = vld [vmem:[%s209 + $0x178] sm:$0xf]
      %v327 = vld [vmem:[%s209 + $0x17c] sm:$0xf]
      %v328 = vld [vmem:[%s212] sm:$0x1]
      %v330 = vperm.slane %v328, 0
      %v428 = vunpack.c.l.b16 %v232
      %v429 = vunpack.c.l.b16 %v233
      %v430 = vunpack.c.l.b16 %v234
      %v431 = vunpack.c.l.b16 %v235
      %v432 = vunpack.c.l.b16 %v236
      %v433 = vunpack.c.l.b16 %v237
      %v434 = vunpack.c.l.b16 %v238
      %v435 = vunpack.c.l.b16 %v239
      %v436 = vunpack.c.l.b16 %v240
      %v437 = vunpack.c.l.b16 %v241
      %v438 = vunpack.c.l.b16 %v242
      %v439 = vunpack.c.l.b16 %v243
      %v440 = vunpack.c.l.b16 %v244
      %v441 = vunpack.c.l.b16 %v245
      %v442 = vunpack.c.l.b16 %v246
      %v443 = vunpack.c.l.b16 %v247
      %v444 = vunpack.c.l.b16 %v248
      %v445 = vunpack.c.l.b16 %v249
      %v446 = vunpack.c.l.b16 %v250
      %v447 = vunpack.c.l.b16 %v251
      %v448 = vunpack.c.l.b16 %v252
      %v449 = vunpack.c.l.b16 %v253
      %v450 = vunpack.c.l.b16 %v254
      %v451 = vunpack.c.l.b16 %v255
      %v452 = vunpack.c.l.b16 %v256
      %v453 = vunpack.c.l.b16 %v257
      %v454 = vunpack.c.l.b16 %v258
      %v455 = vunpack.c.l.b16 %v259
      %v456 = vunpack.c.l.b16 %v260
      %v457 = vunpack.c.l.b16 %v261
      %v458 = vunpack.c.l.b16 %v262
      %v459 = vunpack.c.l.b16 %v263
      %v460 = vunpack.c.l.b16 %v264
      %v461 = vunpack.c.l.b16 %v265
      %v462 = vunpack.c.l.b16 %v266
      %v463 = vunpack.c.l.b16 %v267
      %v464 = vunpack.c.l.b16 %v268
      %v465 = vunpack.c.l.b16 %v269
      %v466 = vunpack.c.l.b16 %v270
      %v467 = vunpack.c.l.b16 %v271
      %v468 = vunpack.c.l.b16 %v272
      %v469 = vunpack.c.l.b16 %v273
      %v470 = vunpack.c.l.b16 %v274
      %v471 = vunpack.c.l.b16 %v275
      %v472 = vunpack.c.l.b16 %v276
      %v473 = vunpack.c.l.b16 %v277
      %v474 = vunpack.c.l.b16 %v278
      %v475 = vunpack.c.l.b16 %v279
      %v476 = vunpack.c.l.b16 %v280
      %v477 = vunpack.c.l.b16 %v281
      %v478 = vunpack.c.l.b16 %v282
      %v479 = vunpack.c.l.b16 %v283
      %v480 = vunpack.c.l.b16 %v284
      %v481 = vunpack.c.l.b16 %v285
      %v482 = vunpack.c.l.b16 %v286
      %v483 = vunpack.c.l.b16 %v287
      %v484 = vunpack.c.l.b16 %v288
      %v485 = vunpack.c.l.b16 %v289
      %v486 = vunpack.c.l.b16 %v290
      %v487 = vunpack.c.l.b16 %v291
      %v488 = vunpack.c.l.b16 %v292
      %v489 = vunpack.c.l.b16 %v293
      %v490 = vunpack.c.l.b16 %v294
      %v491 = vunpack.c.l.b16 %v295
      %v492 = vunpack.c.l.b16 %v296
      %v493 = vunpack.c.l.b16 %v297
      %v494 = vunpack.c.l.b16 %v298
      %v495 = vunpack.c.l.b16 %v299
      %v496 = vunpack.c.l.b16 %v300
      %v497 = vunpack.c.l.b16 %v301
      %v498 = vunpack.c.l.b16 %v302
      %v499 = vunpack.c.l.b16 %v303
      %v500 = vunpack.c.l.b16 %v304
      %v501 = vunpack.c.l.b16 %v305
      %v502 = vunpack.c.l.b16 %v306
      %v503 = vunpack.c.l.b16 %v307
      %v504 = vunpack.c.l.b16 %v308
      %v505 = vunpack.c.l.b16 %v309
      %v506 = vunpack.c.l.b16 %v310
      %v507 = vunpack.c.l.b16 %v311
      %v508 = vunpack.c.l.b16 %v312
      %v509 = vunpack.c.l.b16 %v313
      %v510 = vunpack.c.l.b16 %v314
      %v511 = vunpack.c.l.b16 %v315
      %v512 = vunpack.c.l.b16 %v316
      %v513 = vunpack.c.l.b16 %v317
      %v514 = vunpack.c.l.b16 %v318
      %v515 = vunpack.c.l.b16 %v319
      %v516 = vunpack.c.l.b16 %v320
      %v517 = vunpack.c.l.b16 %v321
      %v518 = vunpack.c.l.b16 %v322
      %v519 = vunpack.c.l.b16 %v323
      %v520 = vunpack.c.l.b16 %v324
      %v521 = vunpack.c.l.b16 %v325
      %v522 = vunpack.c.l.b16 %v326
      %v523 = vunpack.c.l.b16 %v327
      %v524 = vpack.c.b16 %v429, %v428
      %v525 = vpack.c.b16 %v431, %v430
      %v526 = vpack.c.b16 %v433, %v432
      %v527 = vpack.c.b16 %v435, %v434
      %v528 = vpack.c.b16 %v437, %v436
      %v529 = vpack.c.b16 %v439, %v438
      %v530 = vpack.c.b16 %v441, %v440
      %v531 = vpack.c.b16 %v443, %v442
      %v532 = vpack.c.b16 %v445, %v444
      %v533 = vpack.c.b16 %v447, %v446
      %v534 = vpack.c.b16 %v449, %v448
      %v535 = vpack.c.b16 %v451, %v450
      %v536 = vpack.c.b16 %v453, %v452
      %v537 = vpack.c.b16 %v455, %v454
      %v538 = vpack.c.b16 %v457, %v456
      %v539 = vpack.c.b16 %v459, %v458
      %v540 = vpack.c.b16 %v461, %v460
      %v541 = vpack.c.b16 %v463, %v462
      %v542 = vpack.c.b16 %v465, %v464
      %v543 = vpack.c.b16 %v467, %v466
      %v544 = vpack.c.b16 %v469, %v468
      %v545 = vpack.c.b16 %v471, %v470
      %v546 = vpack.c.b16 %v473, %v472
      %v547 = vpack.c.b16 %v475, %v474
      %v548 = vpack.c.b16 %v477, %v476
      %v549 = vpack.c.b16 %v479, %v478
      %v550 = vpack.c.b16 %v481, %v480
      %v551 = vpack.c.b16 %v483, %v482
      %v552 = vpack.c.b16 %v485, %v484
      %v553 = vpack.c.b16 %v487, %v486
      %v554 = vpack.c.b16 %v489, %v488
      %v555 = vpack.c.b16 %v491, %v490
      %v556 = vpack.c.b16 %v493, %v492
      %v557 = vpack.c.b16 %v495, %v494
      %v558 = vpack.c.b16 %v497, %v496
      %v559 = vpack.c.b16 %v499, %v498
      %v560 = vpack.c.b16 %v501, %v500
      %v561 = vpack.c.b16 %v503, %v502
      %v562 = vpack.c.b16 %v505, %v504
      %v563 = vpack.c.b16 %v507, %v506
      %v564 = vpack.c.b16 %v509, %v508
      %v565 = vpack.c.b16 %v511, %v510
      %v566 = vpack.c.b16 %v513, %v512
      %v567 = vpack.c.b16 %v515, %v514
      %v568 = vpack.c.b16 %v517, %v516
      %v569 = vpack.c.b16 %v519, %v518
      %v570 = vpack.c.b16 %v521, %v520
      %v571 = vpack.c.b16 %v523, %v522
      %620 = vmatpush.bf16.msra.mxu0 %v531
      %621 = vmatpush.bf16.msra.mxu0 %v530
      %622 = vmatpush.bf16.msra.mxu0 %v529
      %623 = vmatpush.bf16.msra.mxu0 %v528
      %624 = vmatpush.bf16.msra.mxu0 %v527
      %625 = vmatpush.bf16.msra.mxu0 %v526
      %626 = vmatpush.bf16.msra.mxu0 %v525
      %627 = vmatpush.bf16.msra.mxu0 %v524
      %628 = vmatmul.bf16.gmra.mxu0 %v226
      %v629 = vpop.f32.mrf.mxu0
      %v630 = vadd.f32 %v330, %v629
      %v631 = vpop.f32.mrf.mxu0
      %632 = vdwg.mxu0
      %633 = vmatpush.bf16.msra.mxu0 %v539
      %634 = vmatpush.bf16.msra.mxu0 %v538
      %635 = vmatpush.bf16.msra.mxu0 %v537
      %636 = vmatpush.bf16.msra.mxu0 %v536
      %637 = vmatpush.bf16.msra.mxu0 %v535
      %638 = vmatpush.bf16.msra.mxu0 %v534
      %639 = vmatpush.bf16.msra.mxu0 %v533
      %640 = vmatpush.bf16.msra.mxu0 %v532
      %641 = vmatmul.bf16.gmra.mxu0 %v227
      %v642 = vpop.f32.mrf.mxu0
      %v643 = vadd.f32 %v630, %v642
      %v644 = vpop.f32.mrf.mxu0
      %645 = vdwg.mxu0
      %646 = vmatpush.bf16.msra.mxu0 %v547
      %647 = vmatpush.bf16.msra.mxu0 %v546
      %648 = vmatpush.bf16.msra.mxu0 %v545
      %649 = vmatpush.bf16.msra.mxu0 %v544
      %650 = vmatpush.bf16.msra.mxu0 %v543
      %651 = vmatpush.bf16.msra.mxu0 %v542
      %652 = vmatpush.bf16.msra.mxu0 %v541
      %653 = vmatpush.bf16.msra.mxu0 %v540
      %654 = vmatmul.bf16.gmra.mxu0 %v228
      %v655 = vpop.f32.mrf.mxu0
      %v656 = vadd.f32 %v643, %v655
      %v657 = vpop.f32.mrf.mxu0
      %658 = vdwg.mxu0
      %659 = vmatpush.bf16.msra.mxu0 %v555
      %660 = vmatpush.bf16.msra.mxu0 %v554
      %661 = vmatpush.bf16.msra.mxu0 %v553
      %662 = vmatpush.bf16.msra.mxu0 %v552
      %663 = vmatpush.bf16.msra.mxu0 %v551
      %664 = vmatpush.bf16.msra.mxu0 %v550
      %665 = vmatpush.bf16.msra.mxu0 %v549
      %666 = vmatpush.bf16.msra.mxu0 %v548
      %667 = vmatmul.bf16.gmra.mxu0 %v229
      %v668 = vpop.f32.mrf.mxu0
      %v669 = vadd.f32 %v656, %v668
      %v670 = vpop.f32.mrf.mxu0
      %671 = vdwg.mxu0
      %672 = vmatpush.bf16.msra.mxu0 %v563
      %673 = vmatpush.bf16.msra.mxu0 %v562
      %674 = vmatpush.bf16.msra.mxu0 %v561
      %675 = vmatpush.bf16.msra.mxu0 %v560
      %676 = vmatpush.bf16.msra.mxu0 %v559
      %677 = vmatpush.bf16.msra.mxu0 %v558
      %678 = vmatpush.bf16.msra.mxu0 %v557
      %679 = vmatpush.bf16.msra.mxu0 %v556
      %680 = vmatmul.bf16.gmra.mxu0 %v230
      %v681 = vpop.f32.mrf.mxu0
      %v682 = vadd.f32 %v669, %v681
      %v683 = vpop.f32.mrf.mxu0
      %684 = vdwg.mxu0
      %685 = vmatpush.bf16.msra.mxu0 %v571
      %686 = vmatpush.bf16.msra.mxu0 %v570
      %687 = vmatpush.bf16.msra.mxu0 %v569
      %688 = vmatpush.bf16.msra.mxu0 %v568
      %689 = vmatpush.bf16.msra.mxu0 %v567
      %690 = vmatpush.bf16.msra.mxu0 %v566
      %691 = vmatpush.bf16.msra.mxu0 %v565
      %692 = vmatpush.bf16.msra.mxu0 %v564
      %693 = vmatmul.bf16.gmra.mxu0 %v231
      %v694 = vpop.f32.mrf.mxu0
      %v695 = vadd.f32 %v682, %v694
      %v696 = vpop.f32.mrf.mxu0
      %697 = vdwg.mxu0
      %vm698 = vcmask 523264
      %699 = vst.msk [vmem:[%s219] sm:$0xff] %vm698, %v695
      %p700 = scmp.lt.s32.totalorder %s19, 3
      %s701 = scalar_select %p700, %s19, 3
      %p702 = scmp.lt.s32.totalorder %s18, 0
      %s703 = scalar_select %p702, %s18, 0
      %s704 = sadd.s32 %s703, %s701
      %s705 = smul.addr %s704, 8
      %s706 = scalar_lea.vmem %s3, %s705
      // Predicated region
      $region33: #{_lambda_.17} parent=31 // pred_check
        %p707 = pneg %p124
      $region34: #{_lambda_.17} parent=31 // pred_check_branch
        %709 = sbr.rel (%p707) target = $region36
      $region35: #{_lambda_.17} parent=31 // pred_region
        _
      $region36: #{_lambda_.17} parent=31 // pred_fallthru
        _
    $region32: #{_lambda_.17} parent=5 // pred_fallthru
      _
    %p710 = scmp.le.s32.totalorder 2, %s9
    // Predicated region
    $region37: #{_lambda_.17} parent=5 // pred_check
      %p711 = pneg %p710
    $region38: #{_lambda_.17} parent=5 // pred_check_branch
      %713 = sbr.rel (%p711) target = $region40
    $region39: #{_lambda_.17} parent=5 // pred_region
      %s714 = ssub.s32 %s9, 2
      // Predicated region
      $region41: #{_lambda_.17} parent=39 // pred_check
        %p715 = pneg %p130
      $region42: #{_lambda_.17} parent=39 // pred_check_branch
        %717 = sbr.rel (%p715) target = $region44
      $region43: #{_lambda_.17} parent=39 // pred_region
        %p718 = scmp.lt.s32.totalorder %s21, 3
        %s719 = scalar_select %p718, %s21, 3
        %p720 = scmp.lt.s32.totalorder %s20, 0
        %s721 = scalar_select %p720, %s20, 0
        %s722 = sadd.s32 %s721, %s719
        %s723 = smul.addr %s722, 8
        %s724 = scalar_lea.vmem %s3, %s723
      $region44: #{_lambda_.17} parent=39 // pred_fallthru
        _
    $region40: #{_lambda_.17} parent=5 // pred_fallthru
      _
  $region6: #{_lambda_.17} parent=0 // loop_footer
    %s13 = sadd.s32 1, %s9
  $region7: #{_lambda_.17} parent=0 // loop_footer_branch
    %8 = sbr.rel target = $region3
  $region8: #{_lambda_.17} parent=0 // loop_exit
    _

// kernel: _lambda_.18
$region0: #{_lambda_.18}
  #allocation0 [shape = 'u32[]', space=smem, size = 0x4, offset = 0x4, fixed_abs, tag = 'smem constant byte address 0x4 - core index']
  #allocation1 [shape = 'u32[72,128]{1,0:T(1,128)}', space=vmem, size = 0x9000, scoped, tag = 'internal scratch']
  %s0 = inlined_call_operand.vmem [shape: f32[32,64], index: 0, kind: input, shape index: {}]
  %s1 = inlined_call_operand.vmem [shape: bf16[64,192], index: 1, kind: input, shape index: {}]
  %s2 = inlined_call_operand.vmem [shape: f32[1,192], index: 2, kind: input, shape index: {}]
  %s3 = inlined_call_operand.vmem [shape: f32[1,64], index: 3, kind: input, shape index: {}]
  %s4 = inlined_call_operand.vmem [shape: f32[1,64], index: 4, kind: input, shape index: {}]
  %s5 = inlined_call_operand.vmem [shape: f32[32,192], index: 5, kind: output, shape index: {}]
  %s6 = sld [smem:[#allocation0]]
  $region53: #{_lambda_.18} parent=0
    _
  %s8 = ssub.s32 1, %s6
  %s9 = scalar_select 0, %s8, %s6
  loop: start=0, step=1, limit=6
  $region2: #{_lambda_.18} parent=0 // loop_pre_header
    _
  $region3: #{_lambda_.18} parent=0 // loop_header
    %s11 = sphi 0, %s15
    %p12 = scmp.ge.s32.totalorder %s11, 6
    %s18 = sphi 0, %s30
    %s19 = sphi 0, %s26
    %s20 = sphi 0, %s18
    %s21 = sphi 0, %s19
    %s22 = sphi 0, %s20
    %s23 = sphi 0, %s21
    %s33 = sphi 0, %s35
    %s36 = sphi 0, %s33
    %s37 = sphi 0, %s36
    %s53 = sphi 0, %s37
    %s59 = sphi 0, %s61
    %s62 = sphi 0, %s59
    %s63 = sphi 0, %s62
    %s79 = sphi 0, %s63
    %s85 = sphi 0, %s87
    %s88 = sphi 0, %s85
    %s89 = sphi 0, %s88
    %s105 = sphi 0, %s89
    %s109 = sphi 0, %s109
    %s111 = sphi 0, %s109
    %s112 = sphi 0, %s111
    %s126 = sphi 0, %s112
    %s130 = sphi 0, %s130
    %s132 = sphi 0, %s130
    %s133 = sphi 0, %s132
    %s147 = sphi 0, %s133
    %s155 = sphi 0, %s157
    %s158 = sphi 0, %s155
    %s159 = sphi 0, %s158
    %s175 = sphi 0, %s159
  $region4: #{_lambda_.18} parent=0 // loop_header_branch
    %14 = sbr.rel (%p12) target = $region8
  $region5: #{_lambda_.18} parent=0 // loop_body
    %s16 = ssub.s32 %s11, 1
    %s17 = ssub.s32 %s11, 2
    %s24 = sadd.s32 1, %s19
    %p25 = scmp.ge.s32.totalorder %s24, 4
    %s26 = scalar_select %p25, 0, %s24
    %s27 = sadd.s32 1, %s18
    %s28 = scalar_select %p25, %s27, %s18
    %p29 = scmp.ge.s32.totalorder %s28, 1
    %s30 = scalar_select %p29, 0, %s28
    %s31 = ssub.s32 %s19, %s26
    %p32 = scmp.eq.s32.totalorder %s31, 0
    %s34 = sadd.s32 %s33, 1
    %s35 = scalar_select %p32, %s33, %s34
    %p38 = pneg %p32
    %p39 = scmp.eq.s32.totalorder %s11, 3
    %p40 = por %p38, %p39
    %p41 = scmp.ne.s32.totalorder %s33, %s36
    %p42 = scmp.eq.s32.totalorder %s11, 0
    %p43 = por %p41, %p42
    %p44 = scmp.ne.s32.totalorder %s33, %s36
    %p45 = scmp.eq.s32.totalorder %s16, 3
    %p46 = por %p44, %p45
    %p47 = scmp.ne.s32.totalorder %s36, %s37
    %p48 = scmp.eq.s32.totalorder %s16, 0
    %p49 = por %p47, %p48
    %p50 = scmp.ne.s32.totalorder %s36, %s37
    %p51 = scmp.eq.s32.totalorder %s17, 3
    %p52 = por %p50, %p51
    %p54 = scmp.ne.s32.totalorder %s37, %s53
    %p55 = scmp.eq.s32.totalorder %s17, 0
    %p56 = por %p54, %p55
    %s57 = ssub.s32 %s18, %s30
    %p58 = scmp.eq.s32.totalorder %s57, 0
    %s60 = sadd.s32 %s59, 1
    %s61 = scalar_select %p58, %s59, %s60
    %p64 = pneg %p58
    %p65 = scmp.eq.s32.totalorder %s11, 3
    %p66 = por %p64, %p65
    %p67 = scmp.ne.s32.totalorder %s59, %s62
    %p68 = scmp.eq.s32.totalorder %s11, 0
    %p69 = por %p67, %p68
    %p70 = scmp.ne.s32.totalorder %s59, %s62
    %p71 = scmp.eq.s32.totalorder %s16, 3
    %p72 = por %p70, %p71
    %p73 = scmp.ne.s32.totalorder %s62, %s63
    %p74 = scmp.eq.s32.totalorder %s16, 0
    %p75 = por %p73, %p74
    %p76 = scmp.ne.s32.totalorder %s62, %s63
    %p77 = scmp.eq.s32.totalorder %s17, 3
    %p78 = por %p76, %p77
    %p80 = scmp.ne.s32.totalorder %s63, %s79
    %p81 = scmp.eq.s32.totalorder %s17, 0
    %p82 = por %p80, %p81
    %s83 = ssub.s32 %s18, %s30
    %p84 = scmp.eq.s32.totalorder %s83, 0
    %s86 = sadd.s32 %s85, 1
    %s87 = scalar_select %p84, %s85, %s86
    %p90 = pneg %p84
    %p91 = scmp.eq.s32.totalorder %s11, 3
    %p92 = por %p90, %p91
    %p93 = scmp.ne.s32.totalorder %s85, %s88
    %p94 = scmp.eq.s32.totalorder %s11, 0
    %p95 = por %p93, %p94
    %p96 = scmp.ne.s32.totalorder %s85, %s88
    %p97 = scmp.eq.s32.totalorder %s16, 3
    %p98 = por %p96, %p97
    %p99 = scmp.ne.s32.totalorder %s88, %s89
    %p100 = scmp.eq.s32.totalorder %s16, 0
    %p101 = por %p99, %p100
    %p102 = scmp.ne.s32.totalorder %s88, %s89
    %p103 = scmp.eq.s32.totalorder %s17, 3
    %p104 = por %p102, %p103
    %p106 = scmp.ne.s32.totalorder %s89, %s105
    %p107 = scmp.eq.s32.totalorder %s17, 0
    %p108 = por %p106, %p107
    %s110 = sadd.s32 %s109, 1
    %p113 = scmp.eq.s32.totalorder %s11, 3
    %p114 = scmp.ne.s32.totalorder %s109, %s111
    %p115 = scmp.eq.s32.totalorder %s11, 0
    %p116 = por %p114, %p115
    %p117 = scmp.ne.s32.totalorder %s109, %s111
    %p118 = scmp.eq.s32.totalorder %s16, 3
    %p119 = por %p117, %p118
    %p120 = scmp.ne.s32.totalorder %s111, %s112
    %p121 = scmp.eq.s32.totalorder %s16, 0
    %p122 = por %p120, %p121
    %p123 = scmp.ne.s32.totalorder %s111, %s112
    %p124 = scmp.eq.s32.totalorder %s17, 3
    %p125 = por %p123, %p124
    %p127 = scmp.ne.s32.totalorder %s112, %s126
    %p128 = scmp.eq.s32.totalorder %s17, 0
    %p129 = por %p127, %p128
    %s131 = sadd.s32 %s130, 1
    %p134 = scmp.eq.s32.totalorder %s11, 3
    %p135 = scmp.ne.s32.totalorder %s130, %s132
    %p136 = scmp.eq.s32.totalorder %s11, 0
    %p137 = por %p135, %p136
    %p138 = scmp.ne.s32.totalorder %s130, %s132
    %p139 = scmp.eq.s32.totalorder %s16, 3
    %p140 = por %p138, %p139
    %p141 = scmp.ne.s32.totalorder %s132, %s133
    %p142 = scmp.eq.s32.totalorder %s16, 0
    %p143 = por %p141, %p142
    %p144 = scmp.ne.s32.totalorder %s132, %s133
    %p145 = scmp.eq.s32.totalorder %s17, 3
    %p146 = por %p144, %p145
    %p148 = scmp.ne.s32.totalorder %s133, %s147
    %p149 = scmp.eq.s32.totalorder %s17, 0
    %p150 = por %p148, %p149
    %s151 = ssub.s32 %s19, %s26
    %s152 = ssub.s32 %s18, %s30
    %s153 = sor.u32 %s151, %s152
    %p154 = scmp.eq.s32.totalorder %s153, 0
    %s156 = sadd.s32 %s155, 1
    %s157 = scalar_select %p154, %s155, %s156
    %p160 = pneg %p154
    %p161 = scmp.eq.s32.totalorder %s11, 3
    %p162 = por %p160, %p161
    %p163 = scmp.ne.s32.totalorder %s155, %s158
    %p164 = scmp.eq.s32.totalorder %s11, 0
    %p165 = por %p163, %p164
    %p166 = scmp.ne.s32.totalorder %s155, %s158
    %p167 = scmp.eq.s32.totalorder %s16, 3
    %p168 = por %p166, %p167
    %p169 = scmp.ne.s32.totalorder %s158, %s159
    %p170 = scmp.eq.s32.totalorder %s16, 0
    %p171 = por %p169, %p170
    %p172 = scmp.ne.s32.totalorder %s158, %s159
    %p173 = scmp.eq.s32.totalorder %s17, 3
    %p174 = por %p172, %p173
    %p176 = scmp.ne.s32.totalorder %s159, %s175
    %p177 = scmp.eq.s32.totalorder %s17, 0
    %p178 = por %p176, %p177
    %p179 = scmp.le.s32.totalorder 1, %s11
    %p180 = scmp.lt.s32.totalorder %s11, 5
    %p181 = pnand %p179, %p180
    %p182 = pneg %p181
    // Predicated region
    $region9: #{_lambda_.18} parent=5 // pred_check
      _
    $region10: #{_lambda_.18} parent=5 // pred_check_branch
      %184 = sbr.rel (%p181) target = $region12
    $region11: #{_lambda_.18} parent=5 // pred_region
      %s185 = ssub.s32 %s11, 1
      // Predicated region
      $region13: #{_lambda_.18} parent=11 // pred_check
        %p186 = pneg %p75
      $region14: #{_lambda_.18} parent=11 // pred_check_branch
        %188 = sbr.rel (%p186) target = $region16
      $region15: #{_lambda_.18} parent=11 // pred_region
        %s189 = smul.u32 2, %s20
        %p190 = scmp.lt.s32.totalorder %s189, 1
        %s191 = scalar_select %p190, %s189, 1
        %s192 = smul.addr %s191, 4
        %s193 = scalar_lea.vmem %s1, %s192
        %s194 = smul.u32 2, %s20
      $region16: #{_lambda_.18} parent=11 // pred_fallthru
        _
      // Predicated region
      $region17: #{_lambda_.18} parent=11 // pred_check
        %p195 = pneg %p101
      $region18: #{_lambda_.18} parent=11 // pred_check_branch
        %197 = sbr.rel (%p195) target = $region20
      $region19: #{_lambda_.18} parent=11 // pred_region
        %s198 = smul.u32 2, %s20
        %p199 = scmp.lt.s32.totalorder %s198, 1
        %s200 = scalar_select %p199, %s198, 1
        %s201 = scalar_lea.vmem %s2, %s200
        %s202 = smul.u32 2, %s20
      $region20: #{_lambda_.18} parent=11 // pred_fallthru
        _
      // Predicated region
      $region21: #{_lambda_.18} parent=11 // pred_check
        %p203 = pneg %p122
      $region22: #{_lambda_.18} parent=11 // pred_check_branch
        %205 = sbr.rel (%p203) target = $region24
      $region23: #{_lambda_.18} parent=11 // pred_region
        _
      $region24: #{_lambda_.18} parent=11 // pred_fallthru
        _
      // Predicated region
      $region25: #{_lambda_.18} parent=11 // pred_check
        %p206 = pneg %p143
      $region26: #{_lambda_.18} parent=11 // pred_check_branch
        %208 = sbr.rel (%p206) target = $region28
      $region27: #{_lambda_.18} parent=11 // pred_region
        _
      $region28: #{_lambda_.18} parent=11 // pred_fallthru
        _
    $region12: #{_lambda_.18} parent=5 // pred_fallthru
      _
    %p209 = scmp.lt.s32.totalorder %s11, 4
    // Predicated region
    $region29: #{_lambda_.18} parent=5 // pred_check
      %p210 = pneg %p209
    $region30: #{_lambda_.18} parent=5 // pred_check_branch
      %212 = sbr.rel (%p210) target = $region32
    $region31: #{_lambda_.18} parent=5 // pred_region
      // Predicated region
      $region33: #{_lambda_.18} parent=31 // pred_check
        %p213 = pneg %p43
      $region34: #{_lambda_.18} parent=31 // pred_check_branch
        %215 = sbr.rel (%p213) target = $region36
      $region35: #{_lambda_.18} parent=31 // pred_region
        %p216 = scmp.lt.s32.totalorder %s19, 3
        %s217 = scalar_select %p216, %s19, 3
        %s218 = smul.addr %s217, 8
        %s219 = scalar_lea.vmem %s0, %s218
      $region36: #{_lambda_.18} parent=31 // pred_fallthru
        _
    $region32: #{_lambda_.18} parent=5 // pred_fallthru
      _
    %p220 = scmp.le.s32.totalorder 1, %s11
    %p221 = scmp.lt.s32.totalorder %s11, 5
    %p222 = pnand %p220, %p221
    %p223 = pneg %p222
    // Predicated region
    $region37: #{_lambda_.18} parent=5 // pred_check
      _
    $region38: #{_lambda_.18} parent=5 // pred_check_branch
      %225 = sbr.rel (%p222) target = $region40
    $region39: #{_lambda_.18} parent=5 // pred_region
      %s226 = ssub.s32 %s11, 1
      %p227 = scmp.lt.s32.totalorder %s21, 3
      %s228 = scalar_select %p227, %s21, 3
      %s229 = smul.addr %s228, 8
      %s230 = scalar_lea.vmem %s0, %s229
      %p231 = pneg %p49
      %p232 = pneg %p46
      %s233 = smul.u32 2, %s20
      %p234 = scmp.lt.s32.totalorder %s233, 1
      %s235 = scalar_select %p234, %s233, 1
      %s236 = smul.addr %s235, 4
      %s237 = scalar_lea.vmem %s1, %s236
      %p238 = pneg %p75
      %p239 = pneg %p72
      %s240 = smul.u32 2, %s20
      %p241 = scmp.lt.s32.totalorder %s240, 1
      %s242 = scalar_select %p241, %s240, 1
      %s243 = scalar_lea.vmem %s2, %s242
      %p244 = pneg %p101
      %p245 = pneg %p98
      %p246 = pneg %p122
      %p247 = pneg %p119
      %p248 = pneg %p143
      %p249 = pneg %p140
      %p250 = pneg %p171
      %p251 = pneg %p168
      %s252 = smul.u32 2, %s20
      %p253 = scmp.lt.s32.totalorder %s21, 3
      %s254 = scalar_select %p253, %s21, 3
      %p255 = scmp.lt.s32.totalorder %s252, 1
      %s256 = scalar_select %p255, %s252, 1
      %s257 = smul.addr %s254, 2
      %s258 = sadd.s32 %s256, %s257
      %s259 = smul.addr %s258, 8
      %s260 = scalar_lea.vmem %s5, %s259
      %p261 = scmp.lt.s32.totalorder %s21, 3
      %s262 = scalar_select %p261, %s21, 3
      %s263 = smul.addr %s262, 8
      %s264 = scalar_lea.vmem %s0, %s263
      %s265 = smul.u32 2, %s20
      %p266 = scmp.lt.s32.totalorder %s265, 1
      %s267 = scalar_select %p266, %s265, 1
      %s268 = smul.addr %s267, 4
      %s269 = scalar_lea.vmem %s1, %s268
      %s270 = smul.u32 2, %s20
      %s271 = smul.u32 2, %s20
      %p272 = scmp.lt.s32.totalorder %s271, 1
      %s273 = scalar_select %p272, %s271, 1
      %s274 = scalar_lea.vmem %s2, %s273
      %s275 = smul.u32 2, %s20
      %s276 = smul.u32 2, %s20
      %p277 = scmp.lt.s32.totalorder %s21, 3
      %s278 = scalar_select %p277, %s21, 3
      %p279 = scmp.lt.s32.totalorder %s276, 1
      %s280 = scalar_select %p279, %s276, 1
      %s281 = smul.addr %s278, 2
      %s282 = sadd.s32 %s280, %s281
      %s283 = smul.addr %s282, 8
      %s284 = scalar_lea.vmem %s5, %s283
      %s285 = smul.u32 2, %s20
      %v287 = vld [vmem:[%s264] sm:$0xff]
      %v288 = vld [vmem:[%s3] sm:$0x1]
      %v289 = vld [vmem:[%s4] sm:$0x1]
      %vm290 = vcmask 523264
      %v291 = vsel %vm290, %v287, 0.0
      %292 = vadd.xlane.f32.xlu0 %v291
      %v293 = vpop.xlane.xlu0 %292
      %v294 = vrcp.pop 64.0
      %v295 = vmul.f32 64.0, %v294
      %v296 = vsub.f32 1.0, %v295
      %v297 = vmul.f32 %v294, %v296
      %v298 = vadd.f32 %v294, %v297
      %vm299 = vweird.f32 %v294
      %v300 = vsel %vm299, %v294, %v298
      %v301 = vmul.f32 %v293, %v300
      %v302 = vsub.f32 %v287, %v301
      %v303 = vmul.f32 %v302, %v302
      %v304 = vsel %vm290, %v303, 0.0
      %305 = vadd.xlane.f32.xlu0 %v304
      %v306 = vpop.xlane.xlu0 %305
      %v307 = vmul.f32 %v306, %v300
      %v308 = vadd.f32 %v307, 1e-06
      %v309 = vrsqrt.pop %v308
      %v310 = vmul.f32 %v309, %v308
      %v311 = vmul.f32 %v310, %v309
      %v312 = vmul.f32 0.5, %v311
      %v313 = vsub.f32 1.5, %v312
      %v314 = vmul.f32 %v309, %v313
      %vm315 = vweird.f32 %v308
      %vm316 = vweird.f32 %v309
      %vm317 = vmor %vm315, %vm316
      %v318 = vsel %vm317, %v309, %v314
      %v319 = vmul.f32 %v302, %v318
      %v321 = vperm.slane %v288, 0
      %v323 = vmul.f32 %v319, %v321
      %v325 = vperm.slane %v289, 0
      %v327 = vadd.f32 %v323, %v325
      %v328 = vpack.c.bf16 %v327, %v327
      %v329 = vld [vmem:[%s269] sm:$0xff]
      %v330 = vld [vmem:[%s269 + $0x8] sm:$0xff]
      %v331 = vld [vmem:[%s269 + $0x10] sm:$0xff]
      %v332 = vld [vmem:[%s269 + $0x18] sm:$0xff]
      %v333 = vld [vmem:[%s269 + $0x20] sm:$0xff]
      %v334 = vld [vmem:[%s269 + $0x28] sm:$0xff]
      %v335 = vld [vmem:[%s269 + $0x30] sm:$0xff]
      %v336 = vld [vmem:[%s269 + $0x38] sm:$0xff]
      %v337 = vld [vmem:[%s274] sm:$0x3]
      %v339 = vperm.slane %v337, 0
      %v340 = vperm.slane %v337, 1
      %v351 = vunpack.c.l.b16 %v329
      %v352 = vunpack.c.h.b16 %v329
      %v353 = vunpack.c.l.b16 %v330
      %v354 = vunpack.c.h.b16 %v330
      %v355 = vunpack.c.l.b16 %v331
      %v356 = vunpack.c.h.b16 %v331
      %v357 = vunpack.c.l.b16 %v332
      %v358 = vunpack.c.h.b16 %v332
      %v359 = vunpack.c.l.b16 %v333
      %v360 = vunpack.c.h.b16 %v333
      %v361 = vunpack.c.l.b16 %v334
      %v362 = vunpack.c.h.b16 %v334
      %v363 = vunpack.c.l.b16 %v335
      %v364 = vunpack.c.h.b16 %v335
      %v365 = vunpack.c.l.b16 %v336
      %v366 = vunpack.c.h.b16 %v336
      %v367 = vpack.c.b16 %v353, %v351
      %v368 = vpack.c.b16 %v354, %v352
      %v369 = vpack.c.b16 %v357, %v355
      %v370 = vpack.c.b16 %v358, %v356
      %v371 = vpack.c.b16 %v361, %v359
      %v372 = vpack.c.b16 %v362, %v360
      %v373 = vpack.c.b16 %v365, %v363
      %v374 = vpack.c.b16 %v366, %v364
      %v384 = vsel %vm290, %v328, 0
      %386 = vmatpush.bf16.msra.mxu0 0
      %387 = vmatpush.bf16.msra.mxu0 0
      %388 = vmatpush.bf16.msra.mxu0 0
      %389 = vmatpush.bf16.msra.mxu0 0
      %390 = vmatpush.bf16.msra.mxu0 %v373
      %391 = vmatpush.bf16.msra.mxu0 %v371
      %392 = vmatpush.bf16.msra.mxu0 %v369
      %393 = vmatpush.bf16.msra.mxu0 %v367
      %394 = vmatmul.bf16.gmra.mxu0 %v384
      %v395 = vpop.f32.mrf.mxu0
      %v396 = vadd.f32 %v339, %v395
      %v397 = vpop.f32.mrf.mxu0
      %398 = vdwg.mxu0
      %399 = vmatpush.bf16.msra.mxu0 0
      %400 = vmatpush.bf16.msra.mxu0 0
      %401 = vmatpush.bf16.msra.mxu0 0
      %402 = vmatpush.bf16.msra.mxu0 0
      %403 = vmatpush.bf16.msra.mxu0 %v374
      %404 = vmatpush.bf16.msra.mxu0 %v372
      %405 = vmatpush.bf16.msra.mxu0 %v370
      %406 = vmatpush.bf16.msra.mxu0 %v368
      %407 = vmatmul.bf16.gmra.mxu0 %v384
      %v408 = vpop.f32.mrf.mxu0
      %v409 = vadd.f32 %v340, %v408
      %v410 = vpop.f32.mrf.mxu0
      %411 = vdwg.mxu0
      %412 = vst [vmem:[%s284] sm:$0xff] %v396
      %413 = vst.msk [vmem:[%s284 + $0x8] sm:$0xff] %vm290, %v409
      %s414 = smul.u32 2, %s20
      %p415 = scmp.lt.s32.totalorder %s21, 3
      %s416 = scalar_select %p415, %s21, 3
      %p417 = scmp.lt.s32.totalorder %s414, 1
      %s418 = scalar_select %p417, %s414, 1
      %s419 = smul.addr %s416, 2
      %s420 = sadd.s32 %s418, %s419
      %s421 = smul.addr %s420, 8
      %s422 = scalar_lea.vmem %s5, %s421
      // Predicated region
      $region41: #{_lambda_.18} parent=39 // pred_check
        %p423 = pneg %p168
      $region42: #{_lambda_.18} parent=39 // pred_check_branch
        %425 = sbr.rel (%p423) target = $region44
      $region43: #{_lambda_.18} parent=39 // pred_region
        %s426 = smul.u32 2, %s20
      $region44: #{_lambda_.18} parent=39 // pred_fallthru
        _
    $region40: #{_lambda_.18} parent=5 // pred_fallthru
      _
    %p427 = scmp.le.s32.totalorder 2, %s11
    // Predicated region
    $region45: #{_lambda_.18} parent=5 // pred_check
      %p428 = pneg %p427
    $region46: #{_lambda_.18} parent=5 // pred_check_branch
      %430 = sbr.rel (%p428) target = $region48
    $region47: #{_lambda_.18} parent=5 // pred_region
      %s431 = ssub.s32 %s11, 2
      // Predicated region
      $region49: #{_lambda_.18} parent=47 // pred_check
        %p432 = pneg %p174
      $region50: #{_lambda_.18} parent=47 // pred_check_branch
        %434 = sbr.rel (%p432) target = $region52
      $region51: #{_lambda_.18} parent=47 // pred_region
        %s435 = smul.u32 2, %s22
        %p436 = scmp.lt.s32.totalorder %s23, 3
        %s437 = scalar_select %p436, %s23, 3
        %p438 = scmp.lt.s32.totalorder %s435, 1
        %s439 = scalar_select %p438, %s435, 1
        %s440 = smul.addr %s437, 2
        %s441 = sadd.s32 %s439, %s440
        %s442 = smul.addr %s441, 8
        %s443 = scalar_lea.vmem %s5, %s442
      $region52: #{_lambda_.18} parent=47 // pred_fallthru
        _
    $region48: #{_lambda_.18} parent=5 // pred_fallthru
      _
  $region6: #{_lambda_.18} parent=0 // loop_footer
    %s15 = sadd.s32 1, %s11
  $region7: #{_lambda_.18} parent=0 // loop_footer_branch
    %10 = sbr.rel target = $region3
  $region8: #{_lambda_.18} parent=0 // loop_exit
    _

// kernel: _lambda_.20
$region0: #{_lambda_.20}
  #allocation0 [shape = 'u32[]', space=smem, size = 0x4, offset = 0x4, fixed_abs, tag = 'smem constant byte address 0x4 - core index']
  #allocation1 [shape = 'u32[72,128]{1,0:T(1,128)}', space=vmem, size = 0x9000, scoped, tag = 'internal scratch']
  %s0 = inlined_call_operand.vmem [shape: f32[32,64], index: 0, kind: input, shape index: {}]
  %s1 = inlined_call_operand.vmem [shape: bf16[64,64], index: 1, kind: input, shape index: {}]
  %s2 = inlined_call_operand.vmem [shape: f32[1,64], index: 2, kind: input, shape index: {}]
  %s3 = inlined_call_operand.vmem [shape: f32[32,64], index: 3, kind: input, shape index: {}]
  %s4 = inlined_call_operand.vmem [shape: f32[32,64], index: 4, kind: output, shape index: {}]
  %s5 = sld [smem:[#allocation0]]
  $region49: #{_lambda_.20} parent=0
    _
  %s7 = ssub.s32 1, %s5
  %s8 = scalar_select 0, %s7, %s5
  loop: start=0, step=1, limit=6
  $region2: #{_lambda_.20} parent=0 // loop_pre_header
    _
  $region3: #{_lambda_.20} parent=0 // loop_header
    %s10 = sphi 0, %s14
    %p11 = scmp.ge.s32.totalorder %s10, 6
    %s17 = sphi 0, %s29
    %s18 = sphi 0, %s25
    %s19 = sphi 0, %s17
    %s20 = sphi 0, %s18
    %s21 = sphi 0, %s19
    %s22 = sphi 0, %s20
    %s32 = sphi 0, %s34
    %s35 = sphi 0, %s32
    %s36 = sphi 0, %s35
    %s52 = sphi 0, %s36
    %s58 = sphi 0, %s60
    %s61 = sphi 0, %s58
    %s62 = sphi 0, %s61
    %s78 = sphi 0, %s62
    %s84 = sphi 0, %s86
    %s87 = sphi 0, %s84
    %s88 = sphi 0, %s87
    %s104 = sphi 0, %s88
    %s112 = sphi 0, %s114
    %s115 = sphi 0, %s112
    %s116 = sphi 0, %s115
    %s132 = sphi 0, %s116
    %s140 = sphi 0, %s142
    %s143 = sphi 0, %s140
    %s144 = sphi 0, %s143
    %s160 = sphi 0, %s144
  $region4: #{_lambda_.20} parent=0 // loop_header_branch
    %13 = sbr.rel (%p11) target = $region8
  $region5: #{_lambda_.20} parent=0 // loop_body
    %s15 = ssub.s32 %s10, 1
    %s16 = ssub.s32 %s10, 2
    %s23 = sadd.s32 1, %s18
    %p24 = scmp.ge.s32.totalorder %s23, 4
    %s25 = scalar_select %p24, 0, %s23
    %s26 = sadd.s32 1, %s17
    %s27 = scalar_select %p24, %s26, %s17
    %p28 = scmp.ge.s32.totalorder %s27, 1
    %s29 = scalar_select %p28, 0, %s27
    %s30 = ssub.s32 %s18, %s25
    %p31 = scmp.eq.s32.totalorder %s30, 0
    %s33 = sadd.s32 %s32, 1
    %s34 = scalar_select %p31, %s32, %s33
    %p37 = pneg %p31
    %p38 = scmp.eq.s32.totalorder %s10, 3
    %p39 = por %p37, %p38
    %p40 = scmp.ne.s32.totalorder %s32, %s35
    %p41 = scmp.eq.s32.totalorder %s10, 0
    %p42 = por %p40, %p41
    %p43 = scmp.ne.s32.totalorder %s32, %s35
    %p44 = scmp.eq.s32.totalorder %s15, 3
    %p45 = por %p43, %p44
    %p46 = scmp.ne.s32.totalorder %s35, %s36
    %p47 = scmp.eq.s32.totalorder %s15, 0
    %p48 = por %p46, %p47
    %p49 = scmp.ne.s32.totalorder %s35, %s36
    %p50 = scmp.eq.s32.totalorder %s16, 3
    %p51 = por %p49, %p50
    %p53 = scmp.ne.s32.totalorder %s36, %s52
    %p54 = scmp.eq.s32.totalorder %s16, 0
    %p55 = por %p53, %p54
    %s56 = ssub.s32 %s17, %s29
    %p57 = scmp.eq.s32.totalorder %s56, 0
    %s59 = sadd.s32 %s58, 1
    %s60 = scalar_select %p57, %s58, %s59
    %p63 = pneg %p57
    %p64 = scmp.eq.s32.totalorder %s10, 3
    %p65 = por %p63, %p64
    %p66 = scmp.ne.s32.totalorder %s58, %s61
    %p67 = scmp.eq.s32.totalorder %s10, 0
    %p68 = por %p66, %p67
    %p69 = scmp.ne.s32.totalorder %s58, %s61
    %p70 = scmp.eq.s32.totalorder %s15, 3
    %p71 = por %p69, %p70
    %p72 = scmp.ne.s32.totalorder %s61, %s62
    %p73 = scmp.eq.s32.totalorder %s15, 0
    %p74 = por %p72, %p73
    %p75 = scmp.ne.s32.totalorder %s61, %s62
    %p76 = scmp.eq.s32.totalorder %s16, 3
    %p77 = por %p75, %p76
    %p79 = scmp.ne.s32.totalorder %s62, %s78
    %p80 = scmp.eq.s32.totalorder %s16, 0
    %p81 = por %p79, %p80
    %s82 = ssub.s32 %s17, %s29
    %p83 = scmp.eq.s32.totalorder %s82, 0
    %s85 = sadd.s32 %s84, 1
    %s86 = scalar_select %p83, %s84, %s85
    %p89 = pneg %p83
    %p90 = scmp.eq.s32.totalorder %s10, 3
    %p91 = por %p89, %p90
    %p92 = scmp.ne.s32.totalorder %s84, %s87
    %p93 = scmp.eq.s32.totalorder %s10, 0
    %p94 = por %p92, %p93
    %p95 = scmp.ne.s32.totalorder %s84, %s87
    %p96 = scmp.eq.s32.totalorder %s15, 3
    %p97 = por %p95, %p96
    %p98 = scmp.ne.s32.totalorder %s87, %s88
    %p99 = scmp.eq.s32.totalorder %s15, 0
    %p100 = por %p98, %p99
    %p101 = scmp.ne.s32.totalorder %s87, %s88
    %p102 = scmp.eq.s32.totalorder %s16, 3
    %p103 = por %p101, %p102
    %p105 = scmp.ne.s32.totalorder %s88, %s104
    %p106 = scmp.eq.s32.totalorder %s16, 0
    %p107 = por %p105, %p106
    %s108 = ssub.s32 %s18, %s25
    %s109 = ssub.s32 %s17, %s29
    %s110 = sor.u32 %s108, %s109
    %p111 = scmp.eq.s32.totalorder %s110, 0
    %s113 = sadd.s32 %s112, 1
    %s114 = scalar_select %p111, %s112, %s113
    %p117 = pneg %p111
    %p118 = scmp.eq.s32.totalorder %s10, 3
    %p119 = por %p117, %p118
    %p120 = scmp.ne.s32.totalorder %s112, %s115
    %p121 = scmp.eq.s32.totalorder %s10, 0
    %p122 = por %p120, %p121
    %p123 = scmp.ne.s32.totalorder %s112, %s115
    %p124 = scmp.eq.s32.totalorder %s15, 3
    %p125 = por %p123, %p124
    %p126 = scmp.ne.s32.totalorder %s115, %s116
    %p127 = scmp.eq.s32.totalorder %s15, 0
    %p128 = por %p126, %p127
    %p129 = scmp.ne.s32.totalorder %s115, %s116
    %p130 = scmp.eq.s32.totalorder %s16, 3
    %p131 = por %p129, %p130
    %p133 = scmp.ne.s32.totalorder %s116, %s132
    %p134 = scmp.eq.s32.totalorder %s16, 0
    %p135 = por %p133, %p134
    %s136 = ssub.s32 %s18, %s25
    %s137 = ssub.s32 %s17, %s29
    %s138 = sor.u32 %s136, %s137
    %p139 = scmp.eq.s32.totalorder %s138, 0
    %s141 = sadd.s32 %s140, 1
    %s142 = scalar_select %p139, %s140, %s141
    %p145 = pneg %p139
    %p146 = scmp.eq.s32.totalorder %s10, 3
    %p147 = por %p145, %p146
    %p148 = scmp.ne.s32.totalorder %s140, %s143
    %p149 = scmp.eq.s32.totalorder %s10, 0
    %p150 = por %p148, %p149
    %p151 = scmp.ne.s32.totalorder %s140, %s143
    %p152 = scmp.eq.s32.totalorder %s15, 3
    %p153 = por %p151, %p152
    %p154 = scmp.ne.s32.totalorder %s143, %s144
    %p155 = scmp.eq.s32.totalorder %s15, 0
    %p156 = por %p154, %p155
    %p157 = scmp.ne.s32.totalorder %s143, %s144
    %p158 = scmp.eq.s32.totalorder %s16, 3
    %p159 = por %p157, %p158
    %p161 = scmp.ne.s32.totalorder %s144, %s160
    %p162 = scmp.eq.s32.totalorder %s16, 0
    %p163 = por %p161, %p162
    %p164 = scmp.le.s32.totalorder 1, %s10
    %p165 = scmp.lt.s32.totalorder %s10, 5
    %p166 = pnand %p164, %p165
    %p167 = pneg %p166
    // Predicated region
    $region9: #{_lambda_.20} parent=5 // pred_check
      _
    $region10: #{_lambda_.20} parent=5 // pred_check_branch
      %169 = sbr.rel (%p166) target = $region12
    $region11: #{_lambda_.20} parent=5 // pred_region
      %s170 = ssub.s32 %s10, 1
      // Predicated region
      $region13: #{_lambda_.20} parent=11 // pred_check
        %p171 = pneg %p74
      $region14: #{_lambda_.20} parent=11 // pred_check_branch
        %173 = sbr.rel (%p171) target = $region16
      $region15: #{_lambda_.20} parent=11 // pred_region
        %p174 = scmp.lt.s32.totalorder %s19, 0
        %s175 = scalar_select %p174, %s19, 0
        %s176 = smul.addr %s175, 4
        %s177 = scalar_lea.vmem %s1, %s176
      $region16: #{_lambda_.20} parent=11 // pred_fallthru
        _
      // Predicated region
      $region17: #{_lambda_.20} parent=11 // pred_check
        %p178 = pneg %p100
      $region18: #{_lambda_.20} parent=11 // pred_check_branch
        %180 = sbr.rel (%p178) target = $region20
      $region19: #{_lambda_.20} parent=11 // pred_region
        %p181 = scmp.lt.s32.totalorder %s19, 0
        %s182 = scalar_select %p181, %s19, 0
        %s183 = scalar_lea.vmem %s2, %s182
      $region20: #{_lambda_.20} parent=11 // pred_fallthru
        _
    $region12: #{_lambda_.20} parent=5 // pred_fallthru
      _
    %p184 = scmp.lt.s32.totalorder %s10, 4
    // Predicated region
    $region21: #{_lambda_.20} parent=5 // pred_check
      %p185 = pneg %p184
    $region22: #{_lambda_.20} parent=5 // pred_check_branch
      %187 = sbr.rel (%p185) target = $region24
    $region23: #{_lambda_.20} parent=5 // pred_region
      // Predicated region
      $region25: #{_lambda_.20} parent=23 // pred_check
        %p188 = pneg %p42
      $region26: #{_lambda_.20} parent=23 // pred_check_branch
        %190 = sbr.rel (%p188) target = $region28
      $region27: #{_lambda_.20} parent=23 // pred_region
        %p191 = scmp.lt.s32.totalorder %s18, 3
        %s192 = scalar_select %p191, %s18, 3
        %s193 = smul.addr %s192, 8
        %s194 = scalar_lea.vmem %s0, %s193
      $region28: #{_lambda_.20} parent=23 // pred_fallthru
        _
      // Predicated region
      $region29: #{_lambda_.20} parent=23 // pred_check
        %p195 = pneg %p122
      $region30: #{_lambda_.20} parent=23 // pred_check_branch
        %197 = sbr.rel (%p195) target = $region32
      $region31: #{_lambda_.20} parent=23 // pred_region
        %p198 = scmp.lt.s32.totalorder %s18, 3
        %s199 = scalar_select %p198, %s18, 3
        %p200 = scmp.lt.s32.totalorder %s17, 0
        %s201 = scalar_select %p200, %s17, 0
        %s202 = sadd.s32 %s201, %s199
        %s203 = smul.addr %s202, 8
        %s204 = scalar_lea.vmem %s3, %s203
      $region32: #{_lambda_.20} parent=23 // pred_fallthru
        _
    $region24: #{_lambda_.20} parent=5 // pred_fallthru
      _
    %p205 = scmp.le.s32.totalorder 1, %s10
    %p206 = scmp.lt.s32.totalorder %s10, 5
    %p207 = pnand %p205, %p206
    %p208 = pneg %p207
    // Predicated region
    $region33: #{_lambda_.20} parent=5 // pred_check
      _
    $region34: #{_lambda_.20} parent=5 // pred_check_branch
      %210 = sbr.rel (%p207) target = $region36
    $region35: #{_lambda_.20} parent=5 // pred_region
      %s211 = ssub.s32 %s10, 1
      %p212 = scmp.lt.s32.totalorder %s20, 3
      %s213 = scalar_select %p212, %s20, 3
      %s214 = smul.addr %s213, 8
      %s215 = scalar_lea.vmem %s0, %s214
      %p216 = pneg %p48
      %p217 = pneg %p45
      %p218 = scmp.lt.s32.totalorder %s19, 0
      %s219 = scalar_select %p218, %s19, 0
      %s220 = smul.addr %s219, 4
      %s221 = scalar_lea.vmem %s1, %s220
      %p222 = pneg %p74
      %p223 = pneg %p71
      %p224 = scmp.lt.s32.totalorder %s19, 0
      %s225 = scalar_select %p224, %s19, 0
      %s226 = scalar_lea.vmem %s2, %s225
      %p227 = pneg %p100
      %p228 = pneg %p97
      %p229 = scmp.lt.s32.totalorder %s20, 3
      %s230 = scalar_select %p229, %s20, 3
      %p231 = scmp.lt.s32.totalorder %s19, 0
      %s232 = scalar_select %p231, %s19, 0
      %s233 = sadd.s32 %s232, %s230
      %s234 = smul.addr %s233, 8
      %s235 = scalar_lea.vmem %s3, %s234
      %p236 = pneg %p128
      %p237 = pneg %p125
      %p238 = pneg %p156
      %p239 = pneg %p153
      %p240 = scmp.lt.s32.totalorder %s20, 3
      %s241 = scalar_select %p240, %s20, 3
      %p242 = scmp.lt.s32.totalorder %s19, 0
      %s243 = scalar_select %p242, %s19, 0
      %s244 = sadd.s32 %s243, %s241
      %s245 = smul.addr %s244, 8
      %s246 = scalar_lea.vmem %s4, %s245
      %p247 = scmp.lt.s32.totalorder %s20, 3
      %s248 = scalar_select %p247, %s20, 3
      %s249 = smul.addr %s248, 8
      %s250 = scalar_lea.vmem %s0, %s249
      %p251 = scmp.lt.s32.totalorder %s19, 0
      %s252 = scalar_select %p251, %s19, 0
      %s253 = smul.addr %s252, 4
      %s254 = scalar_lea.vmem %s1, %s253
      %p255 = scmp.lt.s32.totalorder %s19, 0
      %s256 = scalar_select %p255, %s19, 0
      %s257 = scalar_lea.vmem %s2, %s256
      %p258 = scmp.lt.s32.totalorder %s20, 3
      %s259 = scalar_select %p258, %s20, 3
      %p260 = scmp.lt.s32.totalorder %s19, 0
      %s261 = scalar_select %p260, %s19, 0
      %s262 = sadd.s32 %s261, %s259
      %s263 = smul.addr %s262, 8
      %s264 = scalar_lea.vmem %s3, %s263
      %p265 = scmp.lt.s32.totalorder %s20, 3
      %s266 = scalar_select %p265, %s20, 3
      %p267 = scmp.lt.s32.totalorder %s19, 0
      %s268 = scalar_select %p267, %s19, 0
      %s269 = sadd.s32 %s268, %s266
      %s270 = smul.addr %s269, 8
      %s271 = scalar_lea.vmem %s4, %s270
      %v273 = vld [vmem:[%s250] sm:$0xff]
      %v274 = vpack.c.bf16 %v273, %v273
      %v275 = vld [vmem:[%s254] sm:$0xf]
      %v276 = vld [vmem:[%s254 + $0x4] sm:$0xf]
      %v277 = vld [vmem:[%s254 + $0x8] sm:$0xf]
      %v278 = vld [vmem:[%s254 + $0xc] sm:$0xf]
      %v279 = vld [vmem:[%s254 + $0x10] sm:$0xf]
      %v280 = vld [vmem:[%s254 + $0x14] sm:$0xf]
      %v281 = vld [vmem:[%s254 + $0x18] sm:$0xf]
      %v282 = vld [vmem:[%s254 + $0x1c] sm:$0xf]
      %v283 = vld [vmem:[%s257] sm:$0x1]
      %v285 = vperm.slane %v283, 0
      %v295 = vunpack.c.l.b16 %v275
      %v296 = vunpack.c.l.b16 %v276
      %v297 = vunpack.c.l.b16 %v277
      %v298 = vunpack.c.l.b16 %v278
      %v299 = vunpack.c.l.b16 %v279
      %v300 = vunpack.c.l.b16 %v280
      %v301 = vunpack.c.l.b16 %v281
      %v302 = vunpack.c.l.b16 %v282
      %v303 = vpack.c.b16 %v296, %v295
      %v304 = vpack.c.b16 %v298, %v297
      %v305 = vpack.c.b16 %v300, %v299
      %v306 = vpack.c.b16 %v302, %v301
      %vm311 = vcmask 523264
      %v313 = vsel %vm311, %v274, 0
      %315 = vmatpush.bf16.msra.mxu0 0
      %316 = vmatpush.bf16.msra.mxu0 0
      %317 = vmatpush.bf16.msra.mxu0 0
      %318 = vmatpush.bf16.msra.mxu0 0
      %319 = vmatpush.bf16.msra.mxu0 %v306
      %320 = vmatpush.bf16.msra.mxu0 %v305
      %321 = vmatpush.bf16.msra.mxu0 %v304
      %322 = vmatpush.bf16.msra.mxu0 %v303
      %323 = vmatmul.bf16.gmra.mxu0 %v313
      %v324 = vpop.f32.mrf.mxu0
      %v325 = vadd.f32 %v285, %v324
      %v326 = vpop.f32.mrf.mxu0
      %327 = vdwg.mxu0
      %v328 = vld [vmem:[%s264] sm:$0xff]
      %v329 = vadd.f32 %v325, %v328
      %330 = vst.msk [vmem:[%s271] sm:$0xff] %vm311, %v329
      %p331 = scmp.lt.s32.totalorder %s20, 3
      %s332 = scalar_select %p331, %s20, 3
      %p333 = scmp.lt.s32.totalorder %s19, 0
      %s334 = scalar_select %p333, %s19, 0
      %s335 = sadd.s32 %s334, %s332
      %s336 = smul.addr %s335, 8
      %s337 = scalar_lea.vmem %s4, %s336
      // Predicated region
      $region37: #{_lambda_.20} parent=35 // pred_check
        %p338 = pneg %p153
      $region38: #{_lambda_.20} parent=35 // pred_check_branch
        %340 = sbr.rel (%p338) target = $region40
      $region39: #{_lambda_.20} parent=35 // pred_region
        _
      $region40: #{_lambda_.20} parent=35 // pred_fallthru
        _
    $region36: #{_lambda_.20} parent=5 // pred_fallthru
      _
    %p341 = scmp.le.s32.totalorder 2, %s10
    // Predicated region
    $region41: #{_lambda_.20} parent=5 // pred_check
      %p342 = pneg %p341
    $region42: #{_lambda_.20} parent=5 // pred_check_branch
      %344 = sbr.rel (%p342) target = $region44
    $region43: #{_lambda_.20} parent=5 // pred_region
      %s345 = ssub.s32 %s10, 2
      // Predicated region
      $region45: #{_lambda_.20} parent=43 // pred_check
        %p346 = pneg %p159
      $region46: #{_lambda_.20} parent=43 // pred_check_branch
        %348 = sbr.rel (%p346) target = $region48
      $region47: #{_lambda_.20} parent=43 // pred_region
        %p349 = scmp.lt.s32.totalorder %s22, 3
        %s350 = scalar_select %p349, %s22, 3
        %p351 = scmp.lt.s32.totalorder %s21, 0
        %s352 = scalar_select %p351, %s21, 0
        %s353 = sadd.s32 %s352, %s350
        %s354 = smul.addr %s353, 8
        %s355 = scalar_lea.vmem %s4, %s354
      $region48: #{_lambda_.20} parent=43 // pred_fallthru
        _
    $region44: #{_lambda_.20} parent=5 // pred_fallthru
      _
  $region6: #{_lambda_.20} parent=0 // loop_footer
    %s14 = sadd.s32 1, %s10
  $region7: #{_lambda_.20} parent=0 // loop_footer_branch
    %9 = sbr.rel target = $region3
  $region8: #{_lambda_.20} parent=0 // loop_exit
    _

// kernel: _lambda_.19
$region0: #{_lambda_.19}
  #allocation0 [shape = 'u32[]', space=smem, size = 0x4, offset = 0x4, fixed_abs, tag = 'smem constant byte address 0x4 - core index']
  #allocation1 [shape = 'u32[72,128]{1,0:T(1,128)}', space=vmem, size = 0x9000, scoped, tag = 'internal scratch']
  %s0 = inlined_call_operand.vmem [shape: f32[32,192], index: 0, kind: input, shape index: {}]
  %s1 = inlined_call_operand.vmem [shape: f32[32,64], index: 1, kind: output, shape index: {}]
  %s2 = sld [smem:[#allocation0]]
  $region37: #{_lambda_.19} parent=0
    _
  %s4 = ssub.s32 1, %s2
  %s5 = scalar_select 0, %s4, %s2
  loop: start=0, step=1, limit=4
  $region2: #{_lambda_.19} parent=0 // loop_pre_header
    _
  $region3: #{_lambda_.19} parent=0 // loop_header
    %s7 = sphi 0, %s11
    %p8 = scmp.ge.s32.totalorder %s7, 4
    %s17 = sphi 0, %s19
    %s20 = sphi 0, %s17
    %s21 = sphi 0, %s20
    %s37 = sphi 0, %s21
    %s43 = sphi 0, %s45
    %s46 = sphi 0, %s43
    %s47 = sphi 0, %s46
    %s63 = sphi 0, %s47
  $region4: #{_lambda_.19} parent=0 // loop_header_branch
    %10 = sbr.rel (%p8) target = $region8
  $region5: #{_lambda_.19} parent=0 // loop_body
    %s12 = ssub.s32 %s7, 1
    %s13 = ssub.s32 %s7, 2
    %s14 = sadd.s32 %s7, 1
    %s15 = ssub.s32 %s7, %s14
    %p16 = scmp.eq.s32.totalorder %s15, 0
    %s18 = sadd.s32 %s17, 1
    %s19 = scalar_select %p16, %s17, %s18
    %p22 = pneg %p16
    %p23 = scmp.eq.s32.totalorder %s7, 1
    %p24 = por %p22, %p23
    %p25 = scmp.ne.s32.totalorder %s17, %s20
    %p26 = scmp.eq.s32.totalorder %s7, 0
    %p27 = por %p25, %p26
    %p28 = scmp.ne.s32.totalorder %s17, %s20
    %p29 = scmp.eq.s32.totalorder %s12, 1
    %p30 = por %p28, %p29
    %p31 = scmp.ne.s32.totalorder %s20, %s21
    %p32 = scmp.eq.s32.totalorder %s12, 0
    %p33 = por %p31, %p32
    %p34 = scmp.ne.s32.totalorder %s20, %s21
    %p35 = scmp.eq.s32.totalorder %s13, 1
    %p36 = por %p34, %p35
    %p38 = scmp.ne.s32.totalorder %s21, %s37
    %p39 = scmp.eq.s32.totalorder %s13, 0
    %p40 = por %p38, %p39
    %s41 = ssub.s32 %s7, %s14
    %p42 = scmp.eq.s32.totalorder %s41, 0
    %s44 = sadd.s32 %s43, 1
    %s45 = scalar_select %p42, %s43, %s44
    %p48 = pneg %p42
    %p49 = scmp.eq.s32.totalorder %s7, 1
    %p50 = por %p48, %p49
    %p51 = scmp.ne.s32.totalorder %s43, %s46
    %p52 = scmp.eq.s32.totalorder %s7, 0
    %p53 = por %p51, %p52
    %p54 = scmp.ne.s32.totalorder %s43, %s46
    %p55 = scmp.eq.s32.totalorder %s12, 1
    %p56 = por %p54, %p55
    %p57 = scmp.ne.s32.totalorder %s46, %s47
    %p58 = scmp.eq.s32.totalorder %s12, 0
    %p59 = por %p57, %p58
    %p60 = scmp.ne.s32.totalorder %s46, %s47
    %p61 = scmp.eq.s32.totalorder %s13, 1
    %p62 = por %p60, %p61
    %p64 = scmp.ne.s32.totalorder %s47, %s63
    %p65 = scmp.eq.s32.totalorder %s13, 0
    %p66 = por %p64, %p65
    %p67 = scmp.le.s32.totalorder 1, %s7
    %p68 = scmp.lt.s32.totalorder %s7, 3
    %p69 = pnand %p67, %p68
    %p70 = pneg %p69
    // Predicated region
    $region9: #{_lambda_.19} parent=5 // pred_check
      _
    $region10: #{_lambda_.19} parent=5 // pred_check_branch
      %72 = sbr.rel (%p69) target = $region12
    $region11: #{_lambda_.19} parent=5 // pred_region
      %s73 = ssub.s32 %s7, 1
    $region12: #{_lambda_.19} parent=5 // pred_fallthru
      _
    %p74 = scmp.lt.s32.totalorder %s7, 2
    // Predicated region
    $region13: #{_lambda_.19} parent=5 // pred_check
      %p75 = pneg %p74
    $region14: #{_lambda_.19} parent=5 // pred_check_branch
      %77 = sbr.rel (%p75) target = $region16
    $region15: #{_lambda_.19} parent=5 // pred_region
      // Predicated region
      $region17: #{_lambda_.19} parent=15 // pred_check
        %p78 = pneg %p27
      $region18: #{_lambda_.19} parent=15 // pred_check_branch
        %80 = sbr.rel (%p78) target = $region20
      $region19: #{_lambda_.19} parent=15 // pred_region
        %s81 = smul.u32 2, %s7
        %p82 = scmp.lt.s32.totalorder %s81, 3
        %s83 = scalar_select %p82, %s81, 3
        %s84 = smul.addr %s83, 2
        %s85 = smul.addr %s84, 8
        %s86 = scalar_lea.vmem %s0, %s85
        %s87 = smul.u32 2, %s7
      $region20: #{_lambda_.19} parent=15 // pred_fallthru
        _
    $region16: #{_lambda_.19} parent=5 // pred_fallthru
      _
    %p88 = scmp.le.s32.totalorder 1, %s7
    %p89 = scmp.lt.s32.totalorder %s7, 3
    %p90 = pnand %p88, %p89
    %p91 = pneg %p90
    // Predicated region
    $region21: #{_lambda_.19} parent=5 // pred_check
      _
    $region22: #{_lambda_.19} parent=5 // pred_check_branch
      %93 = sbr.rel (%p90) target = $region24
    $region23: #{_lambda_.19} parent=5 // pred_region
      %s94 = ssub.s32 %s7, 1
      %s95 = smul.u32 2, %s12
      %p96 = scmp.lt.s32.totalorder %s95, 3
      %s97 = scalar_select %p96, %s95, 3
      %s98 = smul.addr %s97, 2
      %s99 = smul.addr %s98, 8
      %s100 = scalar_lea.vmem %s0, %s99
      %p101 = pneg %p33
      %p102 = pneg %p30
      %p103 = pneg %p59
      %p104 = pneg %p56
      %s105 = smul.u32 2, %s12
      %p106 = scmp.lt.s32.totalorder %s105, 3
      %s107 = scalar_select %p106, %s105, 3
      %s108 = smul.addr %s107, 8
      %s109 = scalar_lea.vmem %s1, %s108
      %s110 = smul.u32 2, %s12
      %p111 = scmp.lt.s32.totalorder %s110, 3
      %s112 = scalar_select %p111, %s110, 3
      %s113 = smul.addr %s112, 2
      %s114 = smul.addr %s113, 8
      %s115 = scalar_lea.vmem %s0, %s114
      %s116 = smul.u32 2, %s12
      %s117 = smul.u32 2, %s12
      %p118 = scmp.lt.s32.totalorder %s117, 3
      %s119 = scalar_select %p118, %s117, 3
      %s120 = smul.addr %s119, 8
      %s121 = scalar_lea.vmem %s1, %s120
      %s122 = smul.u32 2, %s12
      %v124 = vld [vmem:[%s115] sm:$0xff]
      %v125 = vld [vmem:[%s115 + $0x8] sm:$0xff]
      %v126 = vld [vmem:[%s115 + $0x10] sm:$0xff]
      %v127 = vld [vmem:[%s115 + $0x18] sm:$0xff]
      %v128 = vpack.c.bf16 %v126, %v124
      %v129 = vpack.c.bf16 %v127, %v125
      %131 = vrot.lane.b32.xlu0 %v128, 64
      %v132 = vpop.permute.xlu0 %131
      %vm133 = vcmask 261120
      %v135 = vsel %vm133, %v128, 0
      %v138 = vsel %vm133, %v132, 0
      %140 = vmatpush.bf16.xpose.msra.mxu0 0
      %141 = vmatpush.bf16.xpose.msra.mxu0 0
      %142 = vmatpush.bf16.xpose.msra.mxu0 0
      %143 = vmatpush.bf16.xpose.msra.mxu0 0
      %144 = vmatpush.bf16.xpose.msra.mxu0 0
      %145 = vmatpush.bf16.xpose.msra.mxu0 0
      %146 = vmatpush.bf16.xpose.msra.mxu0 0
      %147 = vmatpush.bf16.xpose.msra.mxu0 %v138
      %148 = vmatmul.bf16.gmra.mxu0 %v135
      %v149 = vpop.f32.mrf.mxu0
      %v150 = vadd.f32 0.0, %v149
      %v151 = vpop.f32.mrf.mxu0
      %v152 = vadd.f32 0.0, %v151
      %153 = vdwg.mxu0
      %vm154 = vcmask 130048
      %v155 = vsel %vm154, %v150, -inf
      %156 = vmax.xlane.f32.xlu0 %v155
      %v157 = vpop.xlane.xlu0 %156
      %v158 = vsel %vm154, %v152, -inf
      %159 = vmax.xlane.f32.xlu0 %v158
      %v160 = vpop.xlane.xlu0 %159
      %v161 = vsub.f32 %v150, %v157
      %v162 = vsub.f32 %v152, %v160
      %v163 = vmul.f32 %v161, 1.442695
      %v164 = vpow.pop %v163
      %v165 = vmul.f32 %v162, 1.442695
      %v166 = vpow.pop %v165
      %v167 = vsel %vm154, %v164, 0.0
      %168 = vadd.xlane.f32.xlu0 %v167
      %v169 = vpop.xlane.xlu0 %168
      %v170 = vsel %vm154, %v166, 0.0
      %171 = vadd.xlane.f32.xlu0 %v170
      %v172 = vpop.xlane.xlu0 %171
      %v173 = vrcp.pop %v169
      %v174 = vrcp.pop %v172
      %v175 = vmul.f32 %v164, %v173
      %v176 = vmul.f32 %v166, %v174
      %v177 = vpack.c.bf16 %v176, %v175
      %v179 = vsel %vm154, %v177, 0
      %181 = vmatpush.bf16.msra.mxu0 0
      %182 = vmatpush.bf16.msra.mxu0 0
      %183 = vmatpush.bf16.msra.mxu0 0
      %184 = vmatpush.bf16.msra.mxu0 0
      %185 = vmatpush.bf16.msra.mxu0 0
      %186 = vmatpush.bf16.msra.mxu0 0
      %187 = vmatpush.bf16.msra.mxu0 0
      %188 = vmatpush.bf16.msra.mxu0 %v129
      %189 = vmatmul.bf16.gmra.mxu0 %v179
      %v190 = vpop.f32.mrf.mxu0
      %v191 = vadd.f32 0.0, %v190
      %v192 = vpop.f32.mrf.mxu0
      %v193 = vadd.f32 0.0, %v192
      %194 = vdwg.mxu0
      %195 = vrot.lane.b32.xlu0 %v128, 96
      %v196 = vpop.permute.xlu0 %195
      %197 = vrot.lane.b32.xlu0 %v128, 32
      %v198 = vpop.permute.xlu0 %197
      %v200 = vsel %vm133, %v196, 0
      %v203 = vsel %vm133, %v198, 0
      %205 = vmatpush.bf16.xpose.msra.mxu0 0
      %206 = vmatpush.bf16.xpose.msra.mxu0 0
      %207 = vmatpush.bf16.xpose.msra.mxu0 0
      %208 = vmatpush.bf16.xpose.msra.mxu0 0
      %209 = vmatpush.bf16.xpose.msra.mxu0 0
      %210 = vmatpush.bf16.xpose.msra.mxu0 0
      %211 = vmatpush.bf16.xpose.msra.mxu0 0
      %212 = vmatpush.bf16.xpose.msra.mxu0 %v203
      %213 = vmatmul.bf16.gmra.mxu0 %v200
      %v214 = vpop.f32.mrf.mxu0
      %v215 = vadd.f32 0.0, %v214
      %v216 = vpop.f32.mrf.mxu0
      %v217 = vadd.f32 0.0, %v216
      %218 = vdwg.mxu0
      %v219 = vsel %vm154, %v215, -inf
      %220 = vmax.xlane.f32.xlu0 %v219
      %v221 = vpop.xlane.xlu0 %220
      %v222 = vsel %vm154, %v217, -inf
      %223 = vmax.xlane.f32.xlu0 %v222
      %v224 = vpop.xlane.xlu0 %223
      %v225 = vsub.f32 %v215, %v221
      %v226 = vsub.f32 %v217, %v224
      %v227 = vmul.f32 %v225, 1.442695
      %v228 = vpow.pop %v227
      %v229 = vmul.f32 %v226, 1.442695
      %v230 = vpow.pop %v229
      %v231 = vsel %vm154, %v228, 0.0
      %232 = vadd.xlane.f32.xlu0 %v231
      %v233 = vpop.xlane.xlu0 %232
      %v234 = vsel %vm154, %v230, 0.0
      %235 = vadd.xlane.f32.xlu0 %v234
      %v236 = vpop.xlane.xlu0 %235
      %v237 = vrcp.pop %v233
      %v238 = vrcp.pop %v236
      %v239 = vmul.f32 %v228, %v237
      %v240 = vmul.f32 %v230, %v238
      %v241 = vpack.c.bf16 %v240, %v239
      %243 = vrot.lane.b32.xlu0 %v129, 96
      %v244 = vpop.permute.xlu0 %243
      %v247 = vsel %vm154, %v241, 0
      %249 = vmatpush.bf16.msra.mxu0 0
      %250 = vmatpush.bf16.msra.mxu0 0
      %251 = vmatpush.bf16.msra.mxu0 0
      %252 = vmatpush.bf16.msra.mxu0 0
      %253 = vmatpush.bf16.msra.mxu0 0
      %254 = vmatpush.bf16.msra.mxu0 0
      %255 = vmatpush.bf16.msra.mxu0 0
      %256 = vmatpush.bf16.msra.mxu0 %v244
      %257 = vmatmul.bf16.gmra.mxu0 %v247
      %v258 = vpop.f32.mrf.mxu0
      %v259 = vadd.f32 0.0, %v258
      %v260 = vpop.f32.mrf.mxu0
      %v261 = vadd.f32 0.0, %v260
      %262 = vdwg.mxu0
      %265 = vrot.lane.b32.xlu0 %v259, 32
      %v266 = vpop.permute.xlu0 %265
      %267 = vrot.lane.b32.xlu0 %v261, 32
      %v268 = vpop.permute.xlu0 %267
      %v271 = vsel %vm133, %v191, %v266
      %v272 = vsel %vm133, %v193, %v268
      %vm273 = vcmask 523264
      %274 = vst.msk [vmem:[%s121] sm:$0xff] %vm273, %v271
      %275 = vst.msk [vmem:[%s121 + $0x8] sm:$0xff] %vm273, %v272
      %s276 = smul.u32 2, %s12
      %p277 = scmp.lt.s32.totalorder %s276, 3
      %s278 = scalar_select %p277, %s276, 3
      %s279 = smul.addr %s278, 8
      %s280 = scalar_lea.vmem %s1, %s279
      // Predicated region
      $region25: #{_lambda_.19} parent=23 // pred_check
        %p281 = pneg %p56
      $region26: #{_lambda_.19} parent=23 // pred_check_branch
        %283 = sbr.rel (%p281) target = $region28
      $region27: #{_lambda_.19} parent=23 // pred_region
        %s284 = smul.u32 2, %s12
      $region28: #{_lambda_.19} parent=23 // pred_fallthru
        _
    $region24: #{_lambda_.19} parent=5 // pred_fallthru
      _
    %p285 = scmp.le.s32.totalorder 2, %s7
    // Predicated region
    $region29: #{_lambda_.19} parent=5 // pred_check
      %p286 = pneg %p285
    $region30: #{_lambda_.19} parent=5 // pred_check_branch
      %288 = sbr.rel (%p286) target = $region32
    $region31: #{_lambda_.19} parent=5 // pred_region
      %s289 = ssub.s32 %s7, 2
      // Predicated region
      $region33: #{_lambda_.19} parent=31 // pred_check
        %p290 = pneg %p62
      $region34: #{_lambda_.19} parent=31 // pred_check_branch
        %292 = sbr.rel (%p290) target = $region36
      $region35: #{_lambda_.19} parent=31 // pred_region
        %s293 = smul.u32 2, %s13
        %p294 = scmp.lt.s32.totalorder %s293, 3
        %s295 = scalar_select %p294, %s293, 3
        %s296 = smul.addr %s295, 8
        %s297 = scalar_lea.vmem %s1, %s296
      $region36: #{_lambda_.19} parent=31 // pred_fallthru
        _
    $region32: #{_lambda_.19} parent=5 // pred_fallthru
      _
  $region6: #{_lambda_.19} parent=0 // loop_footer
    %s11 = sadd.s32 1, %s7
  $region7: #{_lambda_.19} parent=0 // loop_footer_branch
    %6 = sbr.rel target = $region3
  $region8: #{_lambda_.19} parent=0 // loop_exit
    _

// kernel: _lambda_.22
$region0: #{_lambda_.22}
  #allocation0 [shape = 'u32[]', space=smem, size = 0x4, offset = 0x4, fixed_abs, tag = 'smem constant byte address 0x4 - core index']
  #allocation1 [shape = 'u32[72,128]{1,0:T(1,128)}', space=vmem, size = 0x9000, scoped, tag = 'internal scratch']
  %s0 = inlined_call_operand.vmem [shape: f32[32,256], index: 0, kind: input, shape index: {}]
  %s1 = inlined_call_operand.vmem [shape: bf16[256,64], index: 1, kind: input, shape index: {}]
  %s2 = inlined_call_operand.vmem [shape: f32[1,64], index: 2, kind: input, shape index: {}]
  %s3 = inlined_call_operand.vmem [shape: f32[32,64], index: 3, kind: input, shape index: {}]
  %s4 = inlined_call_operand.vmem [shape: f32[32,64], index: 4, kind: output, shape index: {}]
  %s5 = sld [smem:[#allocation0]]
  $region49: #{_lambda_.22} parent=0
    _
  %s7 = ssub.s32 1, %s5
  %s8 = scalar_select 0, %s7, %s5
  loop: start=0, step=1, limit=6
  $region2: #{_lambda_.22} parent=0 // loop_pre_header
    _
  $region3: #{_lambda_.22} parent=0 // loop_header
    %s10 = sphi 0, %s14
    %p11 = scmp.ge.s32.totalorder %s10, 6
    %s17 = sphi 0, %s29
    %s18 = sphi 0, %s25
    %s19 = sphi 0, %s17
    %s20 = sphi 0, %s18
    %s21 = sphi 0, %s19
    %s22 = sphi 0, %s20
    %s32 = sphi 0, %s34
    %s35 = sphi 0, %s32
    %s36 = sphi 0, %s35
    %s52 = sphi 0, %s36
    %s58 = sphi 0, %s60
    %s61 = sphi 0, %s58
    %s62 = sphi 0, %s61
    %s78 = sphi 0, %s62
    %s84 = sphi 0, %s86
    %s87 = sphi 0, %s84
    %s88 = sphi 0, %s87
    %s104 = sphi 0, %s88
    %s112 = sphi 0, %s114
    %s115 = sphi 0, %s112
    %s116 = sphi 0, %s115
    %s132 = sphi 0, %s116
    %s140 = sphi 0, %s142
    %s143 = sphi 0, %s140
    %s144 = sphi 0, %s143
    %s160 = sphi 0, %s144
  $region4: #{_lambda_.22} parent=0 // loop_header_branch
    %13 = sbr.rel (%p11) target = $region8
  $region5: #{_lambda_.22} parent=0 // loop_body
    %s15 = ssub.s32 %s10, 1
    %s16 = ssub.s32 %s10, 2
    %s23 = sadd.s32 1, %s18
    %p24 = scmp.ge.s32.totalorder %s23, 4
    %s25 = scalar_select %p24, 0, %s23
    %s26 = sadd.s32 1, %s17
    %s27 = scalar_select %p24, %s26, %s17
    %p28 = scmp.ge.s32.totalorder %s27, 1
    %s29 = scalar_select %p28, 0, %s27
    %s30 = ssub.s32 %s18, %s25
    %p31 = scmp.eq.s32.totalorder %s30, 0
    %s33 = sadd.s32 %s32, 1
    %s34 = scalar_select %p31, %s32, %s33
    %p37 = pneg %p31
    %p38 = scmp.eq.s32.totalorder %s10, 3
    %p39 = por %p37, %p38
    %p40 = scmp.ne.s32.totalorder %s32, %s35
    %p41 = scmp.eq.s32.totalorder %s10, 0
    %p42 = por %p40, %p41
    %p43 = scmp.ne.s32.totalorder %s32, %s35
    %p44 = scmp.eq.s32.totalorder %s15, 3
    %p45 = por %p43, %p44
    %p46 = scmp.ne.s32.totalorder %s35, %s36
    %p47 = scmp.eq.s32.totalorder %s15, 0
    %p48 = por %p46, %p47
    %p49 = scmp.ne.s32.totalorder %s35, %s36
    %p50 = scmp.eq.s32.totalorder %s16, 3
    %p51 = por %p49, %p50
    %p53 = scmp.ne.s32.totalorder %s36, %s52
    %p54 = scmp.eq.s32.totalorder %s16, 0
    %p55 = por %p53, %p54
    %s56 = ssub.s32 %s17, %s29
    %p57 = scmp.eq.s32.totalorder %s56, 0
    %s59 = sadd.s32 %s58, 1
    %s60 = scalar_select %p57, %s58, %s59
    %p63 = pneg %p57
    %p64 = scmp.eq.s32.totalorder %s10, 3
    %p65 = por %p63, %p64
    %p66 = scmp.ne.s32.totalorder %s58, %s61
    %p67 = scmp.eq.s32.totalorder %s10, 0
    %p68 = por %p66, %p67
    %p69 = scmp.ne.s32.totalorder %s58, %s61
    %p70 = scmp.eq.s32.totalorder %s15, 3
    %p71 = por %p69, %p70
    %p72 = scmp.ne.s32.totalorder %s61, %s62
    %p73 = scmp.eq.s32.totalorder %s15, 0
    %p74 = por %p72, %p73
    %p75 = scmp.ne.s32.totalorder %s61, %s62
    %p76 = scmp.eq.s32.totalorder %s16, 3
    %p77 = por %p75, %p76
    %p79 = scmp.ne.s32.totalorder %s62, %s78
    %p80 = scmp.eq.s32.totalorder %s16, 0
    %p81 = por %p79, %p80
    %s82 = ssub.s32 %s17, %s29
    %p83 = scmp.eq.s32.totalorder %s82, 0
    %s85 = sadd.s32 %s84, 1
    %s86 = scalar_select %p83, %s84, %s85
    %p89 = pneg %p83
    %p90 = scmp.eq.s32.totalorder %s10, 3
    %p91 = por %p89, %p90
    %p92 = scmp.ne.s32.totalorder %s84, %s87
    %p93 = scmp.eq.s32.totalorder %s10, 0
    %p94 = por %p92, %p93
    %p95 = scmp.ne.s32.totalorder %s84, %s87
    %p96 = scmp.eq.s32.totalorder %s15, 3
    %p97 = por %p95, %p96
    %p98 = scmp.ne.s32.totalorder %s87, %s88
    %p99 = scmp.eq.s32.totalorder %s15, 0
    %p100 = por %p98, %p99
    %p101 = scmp.ne.s32.totalorder %s87, %s88
    %p102 = scmp.eq.s32.totalorder %s16, 3
    %p103 = por %p101, %p102
    %p105 = scmp.ne.s32.totalorder %s88, %s104
    %p106 = scmp.eq.s32.totalorder %s16, 0
    %p107 = por %p105, %p106
    %s108 = ssub.s32 %s18, %s25
    %s109 = ssub.s32 %s17, %s29
    %s110 = sor.u32 %s108, %s109
    %p111 = scmp.eq.s32.totalorder %s110, 0
    %s113 = sadd.s32 %s112, 1
    %s114 = scalar_select %p111, %s112, %s113
    %p117 = pneg %p111
    %p118 = scmp.eq.s32.totalorder %s10, 3
    %p119 = por %p117, %p118
    %p120 = scmp.ne.s32.totalorder %s112, %s115
    %p121 = scmp.eq.s32.totalorder %s10, 0
    %p122 = por %p120, %p121
    %p123 = scmp.ne.s32.totalorder %s112, %s115
    %p124 = scmp.eq.s32.totalorder %s15, 3
    %p125 = por %p123, %p124
    %p126 = scmp.ne.s32.totalorder %s115, %s116
    %p127 = scmp.eq.s32.totalorder %s15, 0
    %p128 = por %p126, %p127
    %p129 = scmp.ne.s32.totalorder %s115, %s116
    %p130 = scmp.eq.s32.totalorder %s16, 3
    %p131 = por %p129, %p130
    %p133 = scmp.ne.s32.totalorder %s116, %s132
    %p134 = scmp.eq.s32.totalorder %s16, 0
    %p135 = por %p133, %p134
    %s136 = ssub.s32 %s18, %s25
    %s137 = ssub.s32 %s17, %s29
    %s138 = sor.u32 %s136, %s137
    %p139 = scmp.eq.s32.totalorder %s138, 0
    %s141 = sadd.s32 %s140, 1
    %s142 = scalar_select %p139, %s140, %s141
    %p145 = pneg %p139
    %p146 = scmp.eq.s32.totalorder %s10, 3
    %p147 = por %p145, %p146
    %p148 = scmp.ne.s32.totalorder %s140, %s143
    %p149 = scmp.eq.s32.totalorder %s10, 0
    %p150 = por %p148, %p149
    %p151 = scmp.ne.s32.totalorder %s140, %s143
    %p152 = scmp.eq.s32.totalorder %s15, 3
    %p153 = por %p151, %p152
    %p154 = scmp.ne.s32.totalorder %s143, %s144
    %p155 = scmp.eq.s32.totalorder %s15, 0
    %p156 = por %p154, %p155
    %p157 = scmp.ne.s32.totalorder %s143, %s144
    %p158 = scmp.eq.s32.totalorder %s16, 3
    %p159 = por %p157, %p158
    %p161 = scmp.ne.s32.totalorder %s144, %s160
    %p162 = scmp.eq.s32.totalorder %s16, 0
    %p163 = por %p161, %p162
    %p164 = scmp.le.s32.totalorder 1, %s10
    %p165 = scmp.lt.s32.totalorder %s10, 5
    %p166 = pnand %p164, %p165
    %p167 = pneg %p166
    // Predicated region
    $region9: #{_lambda_.22} parent=5 // pred_check
      _
    $region10: #{_lambda_.22} parent=5 // pred_check_branch
      %169 = sbr.rel (%p166) target = $region12
    $region11: #{_lambda_.22} parent=5 // pred_region
      %s170 = ssub.s32 %s10, 1
      // Predicated region
      $region13: #{_lambda_.22} parent=11 // pred_check
        %p171 = pneg %p74
      $region14: #{_lambda_.22} parent=11 // pred_check_branch
        %173 = sbr.rel (%p171) target = $region16
      $region15: #{_lambda_.22} parent=11 // pred_region
        %p174 = scmp.lt.s32.totalorder %s19, 0
        %s175 = scalar_select %p174, %s19, 0
        %s176 = smul.addr %s175, 4
        %s177 = scalar_lea.vmem %s1, %s176
      $region16: #{_lambda_.22} parent=11 // pred_fallthru
        _
      // Predicated region
      $region17: #{_lambda_.22} parent=11 // pred_check
        %p178 = pneg %p100
      $region18: #{_lambda_.22} parent=11 // pred_check_branch
        %180 = sbr.rel (%p178) target = $region20
      $region19: #{_lambda_.22} parent=11 // pred_region
        %p181 = scmp.lt.s32.totalorder %s19, 0
        %s182 = scalar_select %p181, %s19, 0
        %s183 = scalar_lea.vmem %s2, %s182
      $region20: #{_lambda_.22} parent=11 // pred_fallthru
        _
    $region12: #{_lambda_.22} parent=5 // pred_fallthru
      _
    %p184 = scmp.lt.s32.totalorder %s10, 4
    // Predicated region
    $region21: #{_lambda_.22} parent=5 // pred_check
      %p185 = pneg %p184
    $region22: #{_lambda_.22} parent=5 // pred_check_branch
      %187 = sbr.rel (%p185) target = $region24
    $region23: #{_lambda_.22} parent=5 // pred_region
      // Predicated region
      $region25: #{_lambda_.22} parent=23 // pred_check
        %p188 = pneg %p42
      $region26: #{_lambda_.22} parent=23 // pred_check_branch
        %190 = sbr.rel (%p188) target = $region28
      $region27: #{_lambda_.22} parent=23 // pred_region
        %p191 = scmp.lt.s32.totalorder %s18, 3
        %s192 = scalar_select %p191, %s18, 3
        %s193 = smul.addr %s192, 2
        %s194 = smul.addr %s193, 8
        %s195 = scalar_lea.vmem %s0, %s194
      $region28: #{_lambda_.22} parent=23 // pred_fallthru
        _
      // Predicated region
      $region29: #{_lambda_.22} parent=23 // pred_check
        %p196 = pneg %p122
      $region30: #{_lambda_.22} parent=23 // pred_check_branch
        %198 = sbr.rel (%p196) target = $region32
      $region31: #{_lambda_.22} parent=23 // pred_region
        %p199 = scmp.lt.s32.totalorder %s18, 3
        %s200 = scalar_select %p199, %s18, 3
        %p201 = scmp.lt.s32.totalorder %s17, 0
        %s202 = scalar_select %p201, %s17, 0
        %s203 = sadd.s32 %s202, %s200
        %s204 = smul.addr %s203, 8
        %s205 = scalar_lea.vmem %s3, %s204
      $region32: #{_lambda_.22} parent=23 // pred_fallthru
        _
    $region24: #{_lambda_.22} parent=5 // pred_fallthru
      _
    %p206 = scmp.le.s32.totalorder 1, %s10
    %p207 = scmp.lt.s32.totalorder %s10, 5
    %p208 = pnand %p206, %p207
    %p209 = pneg %p208
    // Predicated region
    $region33: #{_lambda_.22} parent=5 // pred_check
      _
    $region34: #{_lambda_.22} parent=5 // pred_check_branch
      %211 = sbr.rel (%p208) target = $region36
    $region35: #{_lambda_.22} parent=5 // pred_region
      %s212 = ssub.s32 %s10, 1
      %p213 = scmp.lt.s32.totalorder %s20, 3
      %s214 = scalar_select %p213, %s20, 3
      %s215 = smul.addr %s214, 2
      %s216 = smul.addr %s215, 8
      %s217 = scalar_lea.vmem %s0, %s216
      %p218 = pneg %p48
      %p219 = pneg %p45
      %p220 = scmp.lt.s32.totalorder %s19, 0
      %s221 = scalar_select %p220, %s19, 0
      %s222 = smul.addr %s221, 4
      %s223 = scalar_lea.vmem %s1, %s222
      %p224 = pneg %p74
      %p225 = pneg %p71
      %p226 = scmp.lt.s32.totalorder %s19, 0
      %s227 = scalar_select %p226, %s19, 0
      %s228 = scalar_lea.vmem %s2, %s227
      %p229 = pneg %p100
      %p230 = pneg %p97
      %p231 = scmp.lt.s32.totalorder %s20, 3
      %s232 = scalar_select %p231, %s20, 3
      %p233 = scmp.lt.s32.totalorder %s19, 0
      %s234 = scalar_select %p233, %s19, 0
      %s235 = sadd.s32 %s234, %s232
      %s236 = smul.addr %s235, 8
      %s237 = scalar_lea.vmem %s3, %s236
      %p238 = pneg %p128
      %p239 = pneg %p125
      %p240 = pneg %p156
      %p241 = pneg %p153
      %p242 = scmp.lt.s32.totalorder %s20, 3
      %s243 = scalar_select %p242, %s20, 3
      %p244 = scmp.lt.s32.totalorder %s19, 0
      %s245 = scalar_select %p244, %s19, 0
      %s246 = sadd.s32 %s245, %s243
      %s247 = smul.addr %s246, 8
      %s248 = scalar_lea.vmem %s4, %s247
      %p249 = scmp.lt.s32.totalorder %s20, 3
      %s250 = scalar_select %p249, %s20, 3
      %s251 = smul.addr %s250, 2
      %s252 = smul.addr %s251, 8
      %s253 = scalar_lea.vmem %s0, %s252
      %p254 = scmp.lt.s32.totalorder %s19, 0
      %s255 = scalar_select %p254, %s19, 0
      %s256 = smul.addr %s255, 4
      %s257 = scalar_lea.vmem %s1, %s256
      %p258 = scmp.lt.s32.totalorder %s19, 0
      %s259 = scalar_select %p258, %s19, 0
      %s260 = scalar_lea.vmem %s2, %s259
      %p261 = scmp.lt.s32.totalorder %s20, 3
      %s262 = scalar_select %p261, %s20, 3
      %p263 = scmp.lt.s32.totalorder %s19, 0
      %s264 = scalar_select %p263, %s19, 0
      %s265 = sadd.s32 %s264, %s262
      %s266 = smul.addr %s265, 8
      %s267 = scalar_lea.vmem %s3, %s266
      %p268 = scmp.lt.s32.totalorder %s20, 3
      %s269 = scalar_select %p268, %s20, 3
      %p270 = scmp.lt.s32.totalorder %s19, 0
      %s271 = scalar_select %p270, %s19, 0
      %s272 = sadd.s32 %s271, %s269
      %s273 = smul.addr %s272, 8
      %s274 = scalar_lea.vmem %s4, %s273
      %v275 = vld [vmem:[%s253] sm:$0xff]
      %v276 = vld [vmem:[%s253 + $0x8] sm:$0xff]
      %v277 = vpack.c.bf16 %v275, %v275
      %v278 = vpack.c.bf16 %v276, %v276
      %v279 = vld [vmem:[%s257] sm:$0xf]
      %v280 = vld [vmem:[%s257 + $0x4] sm:$0xf]
      %v281 = vld [vmem:[%s257 + $0x8] sm:$0xf]
      %v282 = vld [vmem:[%s257 + $0xc] sm:$0xf]
      %v283 = vld [vmem:[%s257 + $0x10] sm:$0xf]
      %v284 = vld [vmem:[%s257 + $0x14] sm:$0xf]
      %v285 = vld [vmem:[%s257 + $0x18] sm:$0xf]
      %v286 = vld [vmem:[%s257 + $0x1c] sm:$0xf]
      %v287 = vld [vmem:[%s257 + $0x20] sm:$0xf]
      %v288 = vld [vmem:[%s257 + $0x24] sm:$0xf]
      %v289 = vld [vmem:[%s257 + $0x28] sm:$0xf]
      %v290 = vld [vmem:[%s257 + $0x2c] sm:$0xf]
      %v291 = vld [vmem:[%s257 + $0x30] sm:$0xf]
      %v292 = vld [vmem:[%s257 + $0x34] sm:$0xf]
      %v293 = vld [vmem:[%s257 + $0x38] sm:$0xf]
      %v294 = vld [vmem:[%s257 + $0x3c] sm:$0xf]
      %v295 = vld [vmem:[%s257 + $0x40] sm:$0xf]
      %v296 = vld [vmem:[%s257 + $0x44] sm:$0xf]
      %v297 = vld [vmem:[%s257 + $0x48] sm:$0xf]
      %v298 = vld [vmem:[%s257 + $0x4c] sm:$0xf]
      %v299 = vld [vmem:[%s257 + $0x50] sm:$0xf]
      %v300 = vld [vmem:[%s257 + $0x54] sm:$0xf]
      %v301 = vld [vmem:[%s257 + $0x58] sm:$0xf]
      %v302 = vld [vmem:[%s257 + $0x5c] sm:$0xf]
      %v303 = vld [vmem:[%s257 + $0x60] sm:$0xf]
      %v304 = vld [vmem:[%s257 + $0x64] sm:$0xf]
      %v305 = vld [vmem:[%s257 + $0x68] sm:$0xf]
      %v306 = vld [vmem:[%s257 + $0x6c] sm:$0xf]
      %v307 = vld [vmem:[%s257 + $0x70] sm:$0xf]
      %v308 = vld [vmem:[%s257 + $0x74] sm:$0xf]
      %v309 = vld [vmem:[%s257 + $0x78] sm:$0xf]
      %v310 = vld [vmem:[%s257 + $0x7c] sm:$0xf]
      %v311 = vld [vmem:[%s260] sm:$0x1]
      %v313 = vperm.slane %v311, 0
      %v347 = vunpack.c.l.b16 %v279
      %v348 = vunpack.c.l.b16 %v280
      %v349 = vunpack.c.l.b16 %v281
      %v350 = vunpack.c.l.b16 %v282
      %v351 = vunpack.c.l.b16 %v283
      %v352 = vunpack.c.l.b16 %v284
      %v353 = vunpack.c.l.b16 %v285
      %v354 = vunpack.c.l.b16 %v286
      %v355 = vunpack.c.l.b16 %v287
      %v356 = vunpack.c.l.b16 %v288
      %v357 = vunpack.c.l.b16 %v289
      %v358 = vunpack.c.l.b16 %v290
      %v359 = vunpack.c.l.b16 %v291
      %v360 = vunpack.c.l.b16 %v292
      %v361 = vunpack.c.l.b16 %v293
      %v362 = vunpack.c.l.b16 %v294
      %v363 = vunpack.c.l.b16 %v295
      %v364 = vunpack.c.l.b16 %v296
      %v365 = vunpack.c.l.b16 %v297
      %v366 = vunpack.c.l.b16 %v298
      %v367 = vunpack.c.l.b16 %v299
      %v368 = vunpack.c.l.b16 %v300
      %v369 = vunpack.c.l.b16 %v301
      %v370 = vunpack.c.l.b16 %v302
      %v371 = vunpack.c.l.b16 %v303
      %v372 = vunpack.c.l.b16 %v304
      %v373 = vunpack.c.l.b16 %v305
      %v374 = vunpack.c.l.b16 %v306
      %v375 = vunpack.c.l.b16 %v307
      %v376 = vunpack.c.l.b16 %v308
      %v377 = vunpack.c.l.b16 %v309
      %v378 = vunpack.c.l.b16 %v310
      %v379 = vpack.c.b16 %v348, %v347
      %v380 = vpack.c.b16 %v350, %v349
      %v381 = vpack.c.b16 %v352, %v351
      %v382 = vpack.c.b16 %v354, %v353
      %v383 = vpack.c.b16 %v356, %v355
      %v384 = vpack.c.b16 %v358, %v357
      %v385 = vpack.c.b16 %v360, %v359
      %v386 = vpack.c.b16 %v362, %v361
      %v387 = vpack.c.b16 %v364, %v363
      %v388 = vpack.c.b16 %v366, %v365
      %v389 = vpack.c.b16 %v368, %v367
      %v390 = vpack.c.b16 %v370, %v369
      %v391 = vpack.c.b16 %v372, %v371
      %v392 = vpack.c.b16 %v374, %v373
      %v393 = vpack.c.b16 %v376, %v375
      %v394 = vpack.c.b16 %v378, %v377
      %411 = vmatpush.bf16.msra.mxu0 %v386
      %412 = vmatpush.bf16.msra.mxu0 %v385
      %413 = vmatpush.bf16.msra.mxu0 %v384
      %414 = vmatpush.bf16.msra.mxu0 %v383
      %415 = vmatpush.bf16.msra.mxu0 %v382
      %416 = vmatpush.bf16.msra.mxu0 %v381
      %417 = vmatpush.bf16.msra.mxu0 %v380
      %418 = vmatpush.bf16.msra.mxu0 %v379
      %419 = vmatmul.bf16.gmra.mxu0 %v277
      %v420 = vpop.f32.mrf.mxu0
      %v421 = vadd.f32 %v313, %v420
      %v422 = vpop.f32.mrf.mxu0
      %423 = vdwg.mxu0
      %424 = vmatpush.bf16.msra.mxu0 %v394
      %425 = vmatpush.bf16.msra.mxu0 %v393
      %426 = vmatpush.bf16.msra.mxu0 %v392
      %427 = vmatpush.bf16.msra.mxu0 %v391
      %428 = vmatpush.bf16.msra.mxu0 %v390
      %429 = vmatpush.bf16.msra.mxu0 %v389
      %430 = vmatpush.bf16.msra.mxu0 %v388
      %431 = vmatpush.bf16.msra.mxu0 %v387
      %432 = vmatmul.bf16.gmra.mxu0 %v278
      %v433 = vpop.f32.mrf.mxu0
      %v434 = vadd.f32 %v421, %v433
      %v435 = vpop.f32.mrf.mxu0
      %436 = vdwg.mxu0
      %v437 = vld [vmem:[%s267] sm:$0xff]
      %v438 = vadd.f32 %v434, %v437
      %vm439 = vcmask 523264
      %440 = vst.msk [vmem:[%s274] sm:$0xff] %vm439, %v438
      %p441 = scmp.lt.s32.totalorder %s20, 3
      %s442 = scalar_select %p441, %s20, 3
      %p443 = scmp.lt.s32.totalorder %s19, 0
      %s444 = scalar_select %p443, %s19, 0
      %s445 = sadd.s32 %s444, %s442
      %s446 = smul.addr %s445, 8
      %s447 = scalar_lea.vmem %s4, %s446
      // Predicated region
      $region37: #{_lambda_.22} parent=35 // pred_check
        %p448 = pneg %p153
      $region38: #{_lambda_.22} parent=35 // pred_check_branch
        %450 = sbr.rel (%p448) target = $region40
      $region39: #{_lambda_.22} parent=35 // pred_region
        _
      $region40: #{_lambda_.22} parent=35 // pred_fallthru
        _
    $region36: #{_lambda_.22} parent=5 // pred_fallthru
      _
    %p451 = scmp.le.s32.totalorder 2, %s10
    // Predicated region
    $region41: #{_lambda_.22} parent=5 // pred_check
      %p452 = pneg %p451
    $region42: #{_lambda_.22} parent=5 // pred_check_branch
      %454 = sbr.rel (%p452) target = $region44
    $region43: #{_lambda_.22} parent=5 // pred_region
      %s455 = ssub.s32 %s10, 2
      // Predicated region
      $region45: #{_lambda_.22} parent=43 // pred_check
        %p456 = pneg %p159
      $region46: #{_lambda_.22} parent=43 // pred_check_branch
        %458 = sbr.rel (%p456) target = $region48
      $region47: #{_lambda_.22} parent=43 // pred_region
        %p459 = scmp.lt.s32.totalorder %s22, 3
        %s460 = scalar_select %p459, %s22, 3
        %p461 = scmp.lt.s32.totalorder %s21, 0
        %s462 = scalar_select %p461, %s21, 0
        %s463 = sadd.s32 %s462, %s460
        %s464 = smul.addr %s463, 8
        %s465 = scalar_lea.vmem %s4, %s464
      $region48: #{_lambda_.22} parent=43 // pred_fallthru
        _
    $region44: #{_lambda_.22} parent=5 // pred_fallthru
      _
  $region6: #{_lambda_.22} parent=0 // loop_footer
    %s14 = sadd.s32 1, %s10
  $region7: #{_lambda_.22} parent=0 // loop_footer_branch
    %9 = sbr.rel target = $region3
  $region8: #{_lambda_.22} parent=0 // loop_exit
    _

// kernel: _lambda_.21
$region0: #{_lambda_.21}
  #allocation0 [shape = 'u32[]', space=smem, size = 0x4, offset = 0x4, fixed_abs, tag = 'smem constant byte address 0x4 - core index']
  #allocation1 [shape = 'u32[72,128]{1,0:T(1,128)}', space=vmem, size = 0x9000, scoped, tag = 'internal scratch']
  %s0 = inlined_call_operand.vmem [shape: f32[32,64], index: 0, kind: input, shape index: {}]
  %s1 = inlined_call_operand.vmem [shape: bf16[64,256], index: 1, kind: input, shape index: {}]
  %s2 = inlined_call_operand.vmem [shape: f32[1,256], index: 2, kind: input, shape index: {}]
  %s3 = inlined_call_operand.vmem [shape: f32[1,64], index: 3, kind: input, shape index: {}]
  %s4 = inlined_call_operand.vmem [shape: f32[1,64], index: 4, kind: input, shape index: {}]
  %s5 = inlined_call_operand.vmem [shape: f32[32,256], index: 5, kind: output, shape index: {}]
  %s6 = sld [smem:[#allocation0]]
  $region53: #{_lambda_.21} parent=0
    _
  %s8 = ssub.s32 1, %s6
  %s9 = scalar_select 0, %s8, %s6
  loop: start=0, step=1, limit=6
  $region2: #{_lambda_.21} parent=0 // loop_pre_header
    _
  $region3: #{_lambda_.21} parent=0 // loop_header
    %s11 = sphi 0, %s15
    %p12 = scmp.ge.s32.totalorder %s11, 6
    %s18 = sphi 0, %s30
    %s19 = sphi 0, %s26
    %s20 = sphi 0, %s18
    %s21 = sphi 0, %s19
    %s22 = sphi 0, %s20
    %s23 = sphi 0, %s21
    %s33 = sphi 0, %s35
    %s36 = sphi 0, %s33
    %s37 = sphi 0, %s36
    %s53 = sphi 0, %s37
    %s59 = sphi 0, %s61
    %s62 = sphi 0, %s59
    %s63 = sphi 0, %s62
    %s79 = sphi 0, %s63
    %s85 = sphi 0, %s87
    %s88 = sphi 0, %s85
    %s89 = sphi 0, %s88
    %s105 = sphi 0, %s89
    %s109 = sphi 0, %s109
    %s111 = sphi 0, %s109
    %s112 = sphi 0, %s111
    %s126 = sphi 0, %s112
    %s130 = sphi 0, %s130
    %s132 = sphi 0, %s130
    %s133 = sphi 0, %s132
    %s147 = sphi 0, %s133
    %s155 = sphi 0, %s157
    %s158 = sphi 0, %s155
    %s159 = sphi 0, %s158
    %s175 = sphi 0, %s159
  $region4: #{_lambda_.21} parent=0 // loop_header_branch
    %14 = sbr.rel (%p12) target = $region8
  $region5: #{_lambda_.21} parent=0 // loop_body
    %s16 = ssub.s32 %s11, 1
    %s17 = ssub.s32 %s11, 2
    %s24 = sadd.s32 1, %s19
    %p25 = scmp.ge.s32.totalorder %s24, 4
    %s26 = scalar_select %p25, 0, %s24
    %s27 = sadd.s32 1, %s18
    %s28 = scalar_select %p25, %s27, %s18
    %p29 = scmp.ge.s32.totalorder %s28, 1
    %s30 = scalar_select %p29, 0, %s28
    %s31 = ssub.s32 %s19, %s26
    %p32 = scmp.eq.s32.totalorder %s31, 0
    %s34 = sadd.s32 %s33, 1
    %s35 = scalar_select %p32, %s33, %s34
    %p38 = pneg %p32
    %p39 = scmp.eq.s32.totalorder %s11, 3
    %p40 = por %p38, %p39
    %p41 = scmp.ne.s32.totalorder %s33, %s36
    %p42 = scmp.eq.s32.totalorder %s11, 0
    %p43 = por %p41, %p42
    %p44 = scmp.ne.s32.totalorder %s33, %s36
    %p45 = scmp.eq.s32.totalorder %s16, 3
    %p46 = por %p44, %p45
    %p47 = scmp.ne.s32.totalorder %s36, %s37
    %p48 = scmp.eq.s32.totalorder %s16, 0
    %p49 = por %p47, %p48
    %p50 = scmp.ne.s32.totalorder %s36, %s37
    %p51 = scmp.eq.s32.totalorder %s17, 3
    %p52 = por %p50, %p51
    %p54 = scmp.ne.s32.totalorder %s37, %s53
    %p55 = scmp.eq.s32.totalorder %s17, 0
    %p56 = por %p54, %p55
    %s57 = ssub.s32 %s18, %s30
    %p58 = scmp.eq.s32.totalorder %s57, 0
    %s60 = sadd.s32 %s59, 1
    %s61 = scalar_select %p58, %s59, %s60
    %p64 = pneg %p58
    %p65 = scmp.eq.s32.totalorder %s11, 3
    %p66 = por %p64, %p65
    %p67 = scmp.ne.s32.totalorder %s59, %s62
    %p68 = scmp.eq.s32.totalorder %s11, 0
    %p69 = por %p67, %p68
    %p70 = scmp.ne.s32.totalorder %s59, %s62
    %p71 = scmp.eq.s32.totalorder %s16, 3
    %p72 = por %p70, %p71
    %p73 = scmp.ne.s32.totalorder %s62, %s63
    %p74 = scmp.eq.s32.totalorder %s16, 0
    %p75 = por %p73, %p74
    %p76 = scmp.ne.s32.totalorder %s62, %s63
    %p77 = scmp.eq.s32.totalorder %s17, 3
    %p78 = por %p76, %p77
    %p80 = scmp.ne.s32.totalorder %s63, %s79
    %p81 = scmp.eq.s32.totalorder %s17, 0
    %p82 = por %p80, %p81
    %s83 = ssub.s32 %s18, %s30
    %p84 = scmp.eq.s32.totalorder %s83, 0
    %s86 = sadd.s32 %s85, 1
    %s87 = scalar_select %p84, %s85, %s86
    %p90 = pneg %p84
    %p91 = scmp.eq.s32.totalorder %s11, 3
    %p92 = por %p90, %p91
    %p93 = scmp.ne.s32.totalorder %s85, %s88
    %p94 = scmp.eq.s32.totalorder %s11, 0
    %p95 = por %p93, %p94
    %p96 = scmp.ne.s32.totalorder %s85, %s88
    %p97 = scmp.eq.s32.totalorder %s16, 3
    %p98 = por %p96, %p97
    %p99 = scmp.ne.s32.totalorder %s88, %s89
    %p100 = scmp.eq.s32.totalorder %s16, 0
    %p101 = por %p99, %p100
    %p102 = scmp.ne.s32.totalorder %s88, %s89
    %p103 = scmp.eq.s32.totalorder %s17, 3
    %p104 = por %p102, %p103
    %p106 = scmp.ne.s32.totalorder %s89, %s105
    %p107 = scmp.eq.s32.totalorder %s17, 0
    %p108 = por %p106, %p107
    %s110 = sadd.s32 %s109, 1
    %p113 = scmp.eq.s32.totalorder %s11, 3
    %p114 = scmp.ne.s32.totalorder %s109, %s111
    %p115 = scmp.eq.s32.totalorder %s11, 0
    %p116 = por %p114, %p115
    %p117 = scmp.ne.s32.totalorder %s109, %s111
    %p118 = scmp.eq.s32.totalorder %s16, 3
    %p119 = por %p117, %p118
    %p120 = scmp.ne.s32.totalorder %s111, %s112
    %p121 = scmp.eq.s32.totalorder %s16, 0
    %p122 = por %p120, %p121
    %p123 = scmp.ne.s32.totalorder %s111, %s112
    %p124 = scmp.eq.s32.totalorder %s17, 3
    %p125 = por %p123, %p124
    %p127 = scmp.ne.s32.totalorder %s112, %s126
    %p128 = scmp.eq.s32.totalorder %s17, 0
    %p129 = por %p127, %p128
    %s131 = sadd.s32 %s130, 1
    %p134 = scmp.eq.s32.totalorder %s11, 3
    %p135 = scmp.ne.s32.totalorder %s130, %s132
    %p136 = scmp.eq.s32.totalorder %s11, 0
    %p137 = por %p135, %p136
    %p138 = scmp.ne.s32.totalorder %s130, %s132
    %p139 = scmp.eq.s32.totalorder %s16, 3
    %p140 = por %p138, %p139
    %p141 = scmp.ne.s32.totalorder %s132, %s133
    %p142 = scmp.eq.s32.totalorder %s16, 0
    %p143 = por %p141, %p142
    %p144 = scmp.ne.s32.totalorder %s132, %s133
    %p145 = scmp.eq.s32.totalorder %s17, 3
    %p146 = por %p144, %p145
    %p148 = scmp.ne.s32.totalorder %s133, %s147
    %p149 = scmp.eq.s32.totalorder %s17, 0
    %p150 = por %p148, %p149
    %s151 = ssub.s32 %s19, %s26
    %s152 = ssub.s32 %s18, %s30
    %s153 = sor.u32 %s151, %s152
    %p154 = scmp.eq.s32.totalorder %s153, 0
    %s156 = sadd.s32 %s155, 1
    %s157 = scalar_select %p154, %s155, %s156
    %p160 = pneg %p154
    %p161 = scmp.eq.s32.totalorder %s11, 3
    %p162 = por %p160, %p161
    %p163 = scmp.ne.s32.totalorder %s155, %s158
    %p164 = scmp.eq.s32.totalorder %s11, 0
    %p165 = por %p163, %p164
    %p166 = scmp.ne.s32.totalorder %s155, %s158
    %p167 = scmp.eq.s32.totalorder %s16, 3
    %p168 = por %p166, %p167
    %p169 = scmp.ne.s32.totalorder %s158, %s159
    %p170 = scmp.eq.s32.totalorder %s16, 0
    %p171 = por %p169, %p170
    %p172 = scmp.ne.s32.totalorder %s158, %s159
    %p173 = scmp.eq.s32.totalorder %s17, 3
    %p174 = por %p172, %p173
    %p176 = scmp.ne.s32.totalorder %s159, %s175
    %p177 = scmp.eq.s32.totalorder %s17, 0
    %p178 = por %p176, %p177
    %p179 = scmp.le.s32.totalorder 1, %s11
    %p180 = scmp.lt.s32.totalorder %s11, 5
    %p181 = pnand %p179, %p180
    %p182 = pneg %p181
    // Predicated region
    $region9: #{_lambda_.21} parent=5 // pred_check
      _
    $region10: #{_lambda_.21} parent=5 // pred_check_branch
      %184 = sbr.rel (%p181) target = $region12
    $region11: #{_lambda_.21} parent=5 // pred_region
      %s185 = ssub.s32 %s11, 1
      // Predicated region
      $region13: #{_lambda_.21} parent=11 // pred_check
        %p186 = pneg %p75
      $region14: #{_lambda_.21} parent=11 // pred_check_branch
        %188 = sbr.rel (%p186) target = $region16
      $region15: #{_lambda_.21} parent=11 // pred_region
        %s189 = smul.u32 2, %s20
        %p190 = scmp.lt.s32.totalorder %s189, 1
        %s191 = scalar_select %p190, %s189, 1
        %s192 = smul.addr %s191, 4
        %s193 = scalar_lea.vmem %s1, %s192
        %s194 = smul.u32 2, %s20
      $region16: #{_lambda_.21} parent=11 // pred_fallthru
        _
      // Predicated region
      $region17: #{_lambda_.21} parent=11 // pred_check
        %p195 = pneg %p101
      $region18: #{_lambda_.21} parent=11 // pred_check_branch
        %197 = sbr.rel (%p195) target = $region20
      $region19: #{_lambda_.21} parent=11 // pred_region
        %s198 = smul.u32 2, %s20
        %p199 = scmp.lt.s32.totalorder %s198, 1
        %s200 = scalar_select %p199, %s198, 1
        %s201 = scalar_lea.vmem %s2, %s200
        %s202 = smul.u32 2, %s20
      $region20: #{_lambda_.21} parent=11 // pred_fallthru
        _
      // Predicated region
      $region21: #{_lambda_.21} parent=11 // pred_check
        %p203 = pneg %p122
      $region22: #{_lambda_.21} parent=11 // pred_check_branch
        %205 = sbr.rel (%p203) target = $region24
      $region23: #{_lambda_.21} parent=11 // pred_region
        _
      $region24: #{_lambda_.21} parent=11 // pred_fallthru
        _
      // Predicated region
      $region25: #{_lambda_.21} parent=11 // pred_check
        %p206 = pneg %p143
      $region26: #{_lambda_.21} parent=11 // pred_check_branch
        %208 = sbr.rel (%p206) target = $region28
      $region27: #{_lambda_.21} parent=11 // pred_region
        _
      $region28: #{_lambda_.21} parent=11 // pred_fallthru
        _
    $region12: #{_lambda_.21} parent=5 // pred_fallthru
      _
    %p209 = scmp.lt.s32.totalorder %s11, 4
    // Predicated region
    $region29: #{_lambda_.21} parent=5 // pred_check
      %p210 = pneg %p209
    $region30: #{_lambda_.21} parent=5 // pred_check_branch
      %212 = sbr.rel (%p210) target = $region32
    $region31: #{_lambda_.21} parent=5 // pred_region
      // Predicated region
      $region33: #{_lambda_.21} parent=31 // pred_check
        %p213 = pneg %p43
      $region34: #{_lambda_.21} parent=31 // pred_check_branch
        %215 = sbr.rel (%p213) target = $region36
      $region35: #{_lambda_.21} parent=31 // pred_region
        %p216 = scmp.lt.s32.totalorder %s19, 3
        %s217 = scalar_select %p216, %s19, 3
        %s218 = smul.addr %s217, 8
        %s219 = scalar_lea.vmem %s0, %s218
      $region36: #{_lambda_.21} parent=31 // pred_fallthru
        _
    $region32: #{_lambda_.21} parent=5 // pred_fallthru
      _
    %p220 = scmp.le.s32.totalorder 1, %s11
    %p221 = scmp.lt.s32.totalorder %s11, 5
    %p222 = pnand %p220, %p221
    %p223 = pneg %p222
    // Predicated region
    $region37: #{_lambda_.21} parent=5 // pred_check
      _
    $region38: #{_lambda_.21} parent=5 // pred_check_branch
      %225 = sbr.rel (%p222) target = $region40
    $region39: #{_lambda_.21} parent=5 // pred_region
      %s226 = ssub.s32 %s11, 1
      %p227 = scmp.lt.s32.totalorder %s21, 3
      %s228 = scalar_select %p227, %s21, 3
      %s229 = smul.addr %s228, 8
      %s230 = scalar_lea.vmem %s0, %s229
      %p231 = pneg %p49
      %p232 = pneg %p46
      %s233 = smul.u32 2, %s20
      %p234 = scmp.lt.s32.totalorder %s233, 1
      %s235 = scalar_select %p234, %s233, 1
      %s236 = smul.addr %s235, 4
      %s237 = scalar_lea.vmem %s1, %s236
      %p238 = pneg %p75
      %p239 = pneg %p72
      %s240 = smul.u32 2, %s20
      %p241 = scmp.lt.s32.totalorder %s240, 1
      %s242 = scalar_select %p241, %s240, 1
      %s243 = scalar_lea.vmem %s2, %s242
      %p244 = pneg %p101
      %p245 = pneg %p98
      %p246 = pneg %p122
      %p247 = pneg %p119
      %p248 = pneg %p143
      %p249 = pneg %p140
      %p250 = pneg %p171
      %p251 = pneg %p168
      %s252 = smul.u32 2, %s20
      %p253 = scmp.lt.s32.totalorder %s21, 3
      %s254 = scalar_select %p253, %s21, 3
      %p255 = scmp.lt.s32.totalorder %s252, 1
      %s256 = scalar_select %p255, %s252, 1
      %s257 = smul.addr %s254, 2
      %s258 = sadd.s32 %s256, %s257
      %s259 = smul.addr %s258, 8
      %s260 = scalar_lea.vmem %s5, %s259
      %p261 = scmp.lt.s32.totalorder %s21, 3
      %s262 = scalar_select %p261, %s21, 3
      %s263 = smul.addr %s262, 8
      %s264 = scalar_lea.vmem %s0, %s263
      %s265 = smul.u32 2, %s20
      %p266 = scmp.lt.s32.totalorder %s265, 1
      %s267 = scalar_select %p266, %s265, 1
      %s268 = smul.addr %s267, 4
      %s269 = scalar_lea.vmem %s1, %s268
      %s270 = smul.u32 2, %s20
      %s271 = smul.u32 2, %s20
      %p272 = scmp.lt.s32.totalorder %s271, 1
      %s273 = scalar_select %p272, %s271, 1
      %s274 = scalar_lea.vmem %s2, %s273
      %s275 = smul.u32 2, %s20
      %s276 = smul.u32 2, %s20
      %p277 = scmp.lt.s32.totalorder %s21, 3
      %s278 = scalar_select %p277, %s21, 3
      %p279 = scmp.lt.s32.totalorder %s276, 1
      %s280 = scalar_select %p279, %s276, 1
      %s281 = smul.addr %s278, 2
      %s282 = sadd.s32 %s280, %s281
      %s283 = smul.addr %s282, 8
      %s284 = scalar_lea.vmem %s5, %s283
      %s285 = smul.u32 2, %s20
      %v287 = vld [vmem:[%s264] sm:$0xff]
      %v288 = vld [vmem:[%s3] sm:$0x1]
      %v289 = vld [vmem:[%s4] sm:$0x1]
      %vm290 = vcmask 523264
      %v291 = vsel %vm290, %v287, 0.0
      %292 = vadd.xlane.f32.xlu0 %v291
      %v293 = vpop.xlane.xlu0 %292
      %v294 = vrcp.pop 64.0
      %v295 = vmul.f32 64.0, %v294
      %v296 = vsub.f32 1.0, %v295
      %v297 = vmul.f32 %v294, %v296
      %v298 = vadd.f32 %v294, %v297
      %vm299 = vweird.f32 %v294
      %v300 = vsel %vm299, %v294, %v298
      %v301 = vmul.f32 %v293, %v300
      %v302 = vsub.f32 %v287, %v301
      %v303 = vmul.f32 %v302, %v302
      %v304 = vsel %vm290, %v303, 0.0
      %305 = vadd.xlane.f32.xlu0 %v304
      %v306 = vpop.xlane.xlu0 %305
      %v307 = vmul.f32 %v306, %v300
      %v308 = vadd.f32 %v307, 1e-06
      %v309 = vrsqrt.pop %v308
      %v310 = vmul.f32 %v309, %v308
      %v311 = vmul.f32 %v310, %v309
      %v312 = vmul.f32 0.5, %v311
      %v313 = vsub.f32 1.5, %v312
      %v314 = vmul.f32 %v309, %v313
      %vm315 = vweird.f32 %v308
      %vm316 = vweird.f32 %v309
      %vm317 = vmor %vm315, %vm316
      %v318 = vsel %vm317, %v309, %v314
      %v319 = vmul.f32 %v302, %v318
      %v321 = vperm.slane %v288, 0
      %v323 = vmul.f32 %v319, %v321
      %v325 = vperm.slane %v289, 0
      %v327 = vadd.f32 %v323, %v325
      %v328 = vpack.c.bf16 %v327, %v327
      %v329 = vld [vmem:[%s269] sm:$0xff]
      %v330 = vld [vmem:[%s269 + $0x8] sm:$0xff]
      %v331 = vld [vmem:[%s269 + $0x10] sm:$0xff]
      %v332 = vld [vmem:[%s269 + $0x18] sm:$0xff]
      %v333 = vld [vmem:[%s269 + $0x20] sm:$0xff]
      %v334 = vld [vmem:[%s269 + $0x28] sm:$0xff]
      %v335 = vld [vmem:[%s269 + $0x30] sm:$0xff]
      %v336 = vld [vmem:[%s269 + $0x38] sm:$0xff]
      %v337 = vld [vmem:[%s274] sm:$0x3]
      %v339 = vperm.slane %v337, 0
      %v340 = vperm.slane %v337, 1
      %v351 = vunpack.c.l.b16 %v329
      %v352 = vunpack.c.h.b16 %v329
      %v353 = vunpack.c.l.b16 %v330
      %v354 = vunpack.c.h.b16 %v330
      %v355 = vunpack.c.l.b16 %v331
      %v356 = vunpack.c.h.b16 %v331
      %v357 = vunpack.c.l.b16 %v332
      %v358 = vunpack.c.h.b16 %v332
      %v359 = vunpack.c.l.b16 %v333
      %v360 = vunpack.c.h.b16 %v333
      %v361 = vunpack.c.l.b16 %v334
      %v362 = vunpack.c.h.b16 %v334
      %v363 = vunpack.c.l.b16 %v335
      %v364 = vunpack.c.h.b16 %v335
      %v365 = vunpack.c.l.b16 %v336
      %v366 = vunpack.c.h.b16 %v336
      %v367 = vpack.c.b16 %v353, %v351
      %v368 = vpack.c.b16 %v354, %v352
      %v369 = vpack.c.b16 %v357, %v355
      %v370 = vpack.c.b16 %v358, %v356
      %v371 = vpack.c.b16 %v361, %v359
      %v372 = vpack.c.b16 %v362, %v360
      %v373 = vpack.c.b16 %v365, %v363
      %v374 = vpack.c.b16 %v366, %v364
      %v384 = vsel %vm290, %v328, 0
      %386 = vmatpush.bf16.msra.mxu0 0
      %387 = vmatpush.bf16.msra.mxu0 0
      %388 = vmatpush.bf16.msra.mxu0 0
      %389 = vmatpush.bf16.msra.mxu0 0
      %390 = vmatpush.bf16.msra.mxu0 %v373
      %391 = vmatpush.bf16.msra.mxu0 %v371
      %392 = vmatpush.bf16.msra.mxu0 %v369
      %393 = vmatpush.bf16.msra.mxu0 %v367
      %394 = vmatmul.bf16.gmra.mxu0 %v384
      %v395 = vpop.f32.mrf.mxu0
      %v396 = vadd.f32 %v339, %v395
      %v397 = vpop.f32.mrf.mxu0
      %398 = vdwg.mxu0
      %399 = vmatpush.bf16.msra.mxu0 0
      %400 = vmatpush.bf16.msra.mxu0 0
      %401 = vmatpush.bf16.msra.mxu0 0
      %402 = vmatpush.bf16.msra.mxu0 0
      %403 = vmatpush.bf16.msra.mxu0 %v374
      %404 = vmatpush.bf16.msra.mxu0 %v372
      %405 = vmatpush.bf16.msra.mxu0 %v370
      %406 = vmatpush.bf16.msra.mxu0 %v368
      %407 = vmatmul.bf16.gmra.mxu0 %v384
      %v408 = vpop.f32.mrf.mxu0
      %v409 = vadd.f32 %v340, %v408
      %v410 = vpop.f32.mrf.mxu0
      %411 = vdwg.mxu0
      %v412 = vmul.f32 %v396, 0.5
      %v413 = vmul.f32 %v409, 0.5
      %v414 = vmul.f32 %v396, 0.70710677
      %v415 = vmul.f32 %v409, 0.70710677
      %vm416 = vcmp.ge.f32.partialorder %v414, 0.0
      %vm417 = vcmp.ge.f32.partialorder %v415, 0.0
      %v418 = vsel %vm416, 1.0, -1.0
      %v419 = vsel %vm417, 1.0, -1.0
      %v420 = vand.u32 2147483647, %v414
      %v421 = vand.u32 2147483647, %v415
      %v422 = vmul.f32 %v420, 0.3275911
      %v423 = vmul.f32 %v421, 0.3275911
      %v424 = vadd.f32 %v422, 1.0
      %v425 = vadd.f32 %v423, 1.0
      %v426 = vrcp.pop %v424
      %v427 = vmul.f32 %v424, %v426
      %v428 = vsub.f32 1.0, %v427
      %v429 = vmul.f32 %v426, %v428
      %v430 = vadd.f32 %v426, %v429
      %vm431 = vweird.f32 %v424
      %vm432 = vweird.f32 %v426
      %vm433 = vmor %vm431, %vm432
      %v434 = vsel %vm433, %v426, %v430
      %v435 = vand.u32 2147483647, %v424
      %vm436 = vcmp.eq.f32.partialorder %v435, 8.507059e+37
      %v437 = vand.u32 %v424, 2147483648
      %v438 = vor.u32 1.1754944e-38, %v437
      %v439 = vsel %vm436, %v438, %v434
      %v440 = vmul.f32 1.0, %v439
      %v441 = vrcp.pop %v425
      %v442 = vmul.f32 %v425, %v441
      %v443 = vsub.f32 1.0, %v442
      %v444 = vmul.f32 %v441, %v443
      %v445 = vadd.f32 %v441, %v444
      %vm446 = vweird.f32 %v425
      %vm447 = vweird.f32 %v441
      %vm448 = vmor %vm446, %vm447
      %v449 = vsel %vm448, %v441, %v445
      %v450 = vand.u32 2147483647, %v425
      %vm451 = vcmp.eq.f32.partialorder %v450, 8.507059e+37
      %v452 = vand.u32 %v425, 2147483648
      %v453 = vor.u32 1.1754944e-38, %v452
      %v454 = vsel %vm451, %v453, %v449
      %v455 = vmul.f32 1.0, %v454
      %v456 = vmul.f32 %v440, 1.0614054
      %v457 = vmul.f32 %v455, 1.0614054
      %v458 = vadd.f32 %v456, -1.4531521
      %v459 = vadd.f32 %v457, -1.4531521
      %v460 = vmul.f32 %v458, %v440
      %v461 = vmul.f32 %v459, %v455
      %v462 = vadd.f32 %v460, 1.4214138
      %v463 = vadd.f32 %v461, 1.4214138
      %v464 = vmul.f32 %v462, %v440
      %v465 = vmul.f32 %v463, %v455
      %v466 = vadd.f32 %v464, -0.28449672
      %v467 = vadd.f32 %v465, -0.28449672
      %v468 = vmul.f32 %v466, %v440
      %v469 = vmul.f32 %v467, %v455
      %v470 = vadd.f32 %v468, 0.2548296
      %v471 = vadd.f32 %v469, 0.2548296
      %v472 = vmul.f32 %v470, %v440
      %v473 = vmul.f32 %v471, %v455
      %v474 = vsub.f32 0.0, %v420
      %v475 = vsub.f32 0.0, %v421
      %v476 = vmul.f32 %v474, %v420
      %v477 = vmul.f32 %v475, %v421
      %v478 = vmul.f32 %v476, 1.442695
      %v479 = vpow.pop %v478
      %v480 = vmul.f32 %v477, 1.442695
      %v481 = vpow.pop %v480
      %v482 = vmul.f32 %v472, %v479
      %v483 = vmul.f32 %v473, %v481
      %v484 = vsub.f32 1.0, %v482
      %v485 = vsub.f32 1.0, %v483
      %v486 = vmul.f32 %v418, %v484
      %v487 = vmul.f32 %v419, %v485
      %v488 = vadd.f32 %v486, 1.0
      %v489 = vadd.f32 %v487, 1.0
      %v490 = vmul.f32 %v412, %v488
      %v491 = vmul.f32 %v413, %v489
      %492 = vst [vmem:[%s284] sm:$0xff] %v490
      %493 = vst [vmem:[%s284 + $0x8] sm:$0xff] %v491
      %s494 = smul.u32 2, %s20
      %p495 = scmp.lt.s32.totalorder %s21, 3
      %s496 = scalar_select %p495, %s21, 3
      %p497 = scmp.lt.s32.totalorder %s494, 1
      %s498 = scalar_select %p497, %s494, 1
      %s499 = smul.addr %s496, 2
      %s500 = sadd.s32 %s498, %s499
      %s501 = smul.addr %s500, 8
      %s502 = scalar_lea.vmem %s5, %s501
      // Predicated region
      $region41: #{_lambda_.21} parent=39 // pred_check
        %p503 = pneg %p168
      $region42: #{_lambda_.21} parent=39 // pred_check_branch
        %505 = sbr.rel (%p503) target = $region44
      $region43: #{_lambda_.21} parent=39 // pred_region
        %s506 = smul.u32 2, %s20
      $region44: #{_lambda_.21} parent=39 // pred_fallthru
        _
    $region40: #{_lambda_.21} parent=5 // pred_fallthru
      _
    %p507 = scmp.le.s32.totalorder 2, %s11
    // Predicated region
    $region45: #{_lambda_.21} parent=5 // pred_check
      %p508 = pneg %p507
    $region46: #{_lambda_.21} parent=5 // pred_check_branch
      %510 = sbr.rel (%p508) target = $region48
    $region47: #{_lambda_.21} parent=5 // pred_region
      %s511 = ssub.s32 %s11, 2
      // Predicated region
      $region49: #{_lambda_.21} parent=47 // pred_check
        %p512 = pneg %p174
      $region50: #{_lambda_.21} parent=47 // pred_check_branch
        %514 = sbr.rel (%p512) target = $region52
      $region51: #{_lambda_.21} parent=47 // pred_region
        %s515 = smul.u32 2, %s22
        %p516 = scmp.lt.s32.totalorder %s23, 3
        %s517 = scalar_select %p516, %s23, 3
        %p518 = scmp.lt.s32.totalorder %s515, 1
        %s519 = scalar_select %p518, %s515, 1
        %s520 = smul.addr %s517, 2
        %s521 = sadd.s32 %s519, %s520
        %s522 = smul.addr %s521, 8
        %s523 = scalar_lea.vmem %s5, %s522
      $region52: #{_lambda_.21} parent=47 // pred_fallthru
        _
    $region48: #{_lambda_.21} parent=5 // pred_fallthru
      _
  $region6: #{_lambda_.21} parent=0 // loop_footer
    %s15 = sadd.s32 1, %s11
  $region7: #{_lambda_.21} parent=0 // loop_footer_branch
    %10 = sbr.rel target = $region3
  $region8: #{_lambda_.21} parent=0 // loop_exit
    _

// kernel: _lambda_.28
$region0: #{_lambda_.28}
  #allocation0 [shape = 'u32[]', space=smem, size = 0x4, offset = 0x4, fixed_abs, tag = 'smem constant byte address 0x4 - core index']
  #allocation1 [shape = 'u32[72,128]{1,0:T(1,128)}', space=vmem, size = 0x9000, scoped, tag = 'internal scratch']
  %s0 = inlined_call_operand.vmem [shape: f32[32,64], index: 0, kind: input, shape index: {}]
  %s1 = inlined_call_operand.vmem [shape: bf16[64,128], index: 1, kind: input, shape index: {}]
  %s2 = inlined_call_operand.vmem [shape: f32[1,128], index: 2, kind: input, shape index: {}]
  %s3 = inlined_call_operand.vmem [shape: f32[1,128], index: 3, kind: input, shape index: {}]
  %s4 = inlined_call_operand.vmem [shape: f32[1,128], index: 4, kind: input, shape index: {}]
  %s5 = inlined_call_operand.vmem [shape: f32[32,128], index: 5, kind: output, shape index: {}]
  %s6 = sld [smem:[#allocation0]]
  $region53: #{_lambda_.28} parent=0
    _
  %s8 = ssub.s32 1, %s6
  %s9 = scalar_select 0, %s8, %s6
  loop: start=0, step=1, limit=6
  $region2: #{_lambda_.28} parent=0 // loop_pre_header
    _
  $region3: #{_lambda_.28} parent=0 // loop_header
    %s11 = sphi 0, %s15
    %p12 = scmp.ge.s32.totalorder %s11, 6
    %s18 = sphi 0, %s30
    %s19 = sphi 0, %s26
    %s20 = sphi 0, %s18
    %s21 = sphi 0, %s19
    %s22 = sphi 0, %s20
    %s23 = sphi 0, %s21
    %s33 = sphi 0, %s35
    %s36 = sphi 0, %s33
    %s37 = sphi 0, %s36
    %s53 = sphi 0, %s37
    %s59 = sphi 0, %s61
    %s62 = sphi 0, %s59
    %s63 = sphi 0, %s62
    %s79 = sphi 0, %s63
    %s85 = sphi 0, %s87
    %s88 = sphi 0, %s85
    %s89 = sphi 0, %s88
    %s105 = sphi 0, %s89
    %s111 = sphi 0, %s113
    %s114 = sphi 0, %s111
    %s115 = sphi 0, %s114
    %s131 = sphi 0, %s115
    %s137 = sphi 0, %s139
    %s140 = sphi 0, %s137
    %s141 = sphi 0, %s140
    %s157 = sphi 0, %s141
    %s165 = sphi 0, %s167
    %s168 = sphi 0, %s165
    %s169 = sphi 0, %s168
    %s185 = sphi 0, %s169
  $region4: #{_lambda_.28} parent=0 // loop_header_branch
    %14 = sbr.rel (%p12) target = $region8
  $region5: #{_lambda_.28} parent=0 // loop_body
    %s16 = ssub.s32 %s11, 1
    %s17 = ssub.s32 %s11, 2
    %s24 = sadd.s32 1, %s19
    %p25 = scmp.ge.s32.totalorder %s24, 4
    %s26 = scalar_select %p25, 0, %s24
    %s27 = sadd.s32 1, %s18
    %s28 = scalar_select %p25, %s27, %s18
    %p29 = scmp.ge.s32.totalorder %s28, 1
    %s30 = scalar_select %p29, 0, %s28
    %s31 = ssub.s32 %s19, %s26
    %p32 = scmp.eq.s32.totalorder %s31, 0
    %s34 = sadd.s32 %s33, 1
    %s35 = scalar_select %p32, %s33, %s34
    %p38 = pneg %p32
    %p39 = scmp.eq.s32.totalorder %s11, 3
    %p40 = por %p38, %p39
    %p41 = scmp.ne.s32.totalorder %s33, %s36
    %p42 = scmp.eq.s32.totalorder %s11, 0
    %p43 = por %p41, %p42
    %p44 = scmp.ne.s32.totalorder %s33, %s36
    %p45 = scmp.eq.s32.totalorder %s16, 3
    %p46 = por %p44, %p45
    %p47 = scmp.ne.s32.totalorder %s36, %s37
    %p48 = scmp.eq.s32.totalorder %s16, 0
    %p49 = por %p47, %p48
    %p50 = scmp.ne.s32.totalorder %s36, %s37
    %p51 = scmp.eq.s32.totalorder %s17, 3
    %p52 = por %p50, %p51
    %p54 = scmp.ne.s32.totalorder %s37, %s53
    %p55 = scmp.eq.s32.totalorder %s17, 0
    %p56 = por %p54, %p55
    %s57 = ssub.s32 %s18, %s30
    %p58 = scmp.eq.s32.totalorder %s57, 0
    %s60 = sadd.s32 %s59, 1
    %s61 = scalar_select %p58, %s59, %s60
    %p64 = pneg %p58
    %p65 = scmp.eq.s32.totalorder %s11, 3
    %p66 = por %p64, %p65
    %p67 = scmp.ne.s32.totalorder %s59, %s62
    %p68 = scmp.eq.s32.totalorder %s11, 0
    %p69 = por %p67, %p68
    %p70 = scmp.ne.s32.totalorder %s59, %s62
    %p71 = scmp.eq.s32.totalorder %s16, 3
    %p72 = por %p70, %p71
    %p73 = scmp.ne.s32.totalorder %s62, %s63
    %p74 = scmp.eq.s32.totalorder %s16, 0
    %p75 = por %p73, %p74
    %p76 = scmp.ne.s32.totalorder %s62, %s63
    %p77 = scmp.eq.s32.totalorder %s17, 3
    %p78 = por %p76, %p77
    %p80 = scmp.ne.s32.totalorder %s63, %s79
    %p81 = scmp.eq.s32.totalorder %s17, 0
    %p82 = por %p80, %p81
    %s83 = ssub.s32 %s18, %s30
    %p84 = scmp.eq.s32.totalorder %s83, 0
    %s86 = sadd.s32 %s85, 1
    %s87 = scalar_select %p84, %s85, %s86
    %p90 = pneg %p84
    %p91 = scmp.eq.s32.totalorder %s11, 3
    %p92 = por %p90, %p91
    %p93 = scmp.ne.s32.totalorder %s85, %s88
    %p94 = scmp.eq.s32.totalorder %s11, 0
    %p95 = por %p93, %p94
    %p96 = scmp.ne.s32.totalorder %s85, %s88
    %p97 = scmp.eq.s32.totalorder %s16, 3
    %p98 = por %p96, %p97
    %p99 = scmp.ne.s32.totalorder %s88, %s89
    %p100 = scmp.eq.s32.totalorder %s16, 0
    %p101 = por %p99, %p100
    %p102 = scmp.ne.s32.totalorder %s88, %s89
    %p103 = scmp.eq.s32.totalorder %s17, 3
    %p104 = por %p102, %p103
    %p106 = scmp.ne.s32.totalorder %s89, %s105
    %p107 = scmp.eq.s32.totalorder %s17, 0
    %p108 = por %p106, %p107
    %s109 = ssub.s32 %s18, %s30
    %p110 = scmp.eq.s32.totalorder %s109, 0
    %s112 = sadd.s32 %s111, 1
    %s113 = scalar_select %p110, %s111, %s112
    %p116 = pneg %p110
    %p117 = scmp.eq.s32.totalorder %s11, 3
    %p118 = por %p116, %p117
    %p119 = scmp.ne.s32.totalorder %s111, %s114
    %p120 = scmp.eq.s32.totalorder %s11, 0
    %p121 = por %p119, %p120
    %p122 = scmp.ne.s32.totalorder %s111, %s114
    %p123 = scmp.eq.s32.totalorder %s16, 3
    %p124 = por %p122, %p123
    %p125 = scmp.ne.s32.totalorder %s114, %s115
    %p126 = scmp.eq.s32.totalorder %s16, 0
    %p127 = por %p125, %p126
    %p128 = scmp.ne.s32.totalorder %s114, %s115
    %p129 = scmp.eq.s32.totalorder %s17, 3
    %p130 = por %p128, %p129
    %p132 = scmp.ne.s32.totalorder %s115, %s131
    %p133 = scmp.eq.s32.totalorder %s17, 0
    %p134 = por %p132, %p133
    %s135 = ssub.s32 %s18, %s30
    %p136 = scmp.eq.s32.totalorder %s135, 0
    %s138 = sadd.s32 %s137, 1
    %s139 = scalar_select %p136, %s137, %s138
    %p142 = pneg %p136
    %p143 = scmp.eq.s32.totalorder %s11, 3
    %p144 = por %p142, %p143
    %p145 = scmp.ne.s32.totalorder %s137, %s140
    %p146 = scmp.eq.s32.totalorder %s11, 0
    %p147 = por %p145, %p146
    %p148 = scmp.ne.s32.totalorder %s137, %s140
    %p149 = scmp.eq.s32.totalorder %s16, 3
    %p150 = por %p148, %p149
    %p151 = scmp.ne.s32.totalorder %s140, %s141
    %p152 = scmp.eq.s32.totalorder %s16, 0
    %p153 = por %p151, %p152
    %p154 = scmp.ne.s32.totalorder %s140, %s141
    %p155 = scmp.eq.s32.totalorder %s17, 3
    %p156 = por %p154, %p155
    %p158 = scmp.ne.s32.totalorder %s141, %s157
    %p159 = scmp.eq.s32.totalorder %s17, 0
    %p160 = por %p158, %p159
    %s161 = ssub.s32 %s19, %s26
    %s162 = ssub.s32 %s18, %s30
    %s163 = sor.u32 %s161, %s162
    %p164 = scmp.eq.s32.totalorder %s163, 0
    %s166 = sadd.s32 %s165, 1
    %s167 = scalar_select %p164, %s165, %s166
    %p170 = pneg %p164
    %p171 = scmp.eq.s32.totalorder %s11, 3
    %p172 = por %p170, %p171
    %p173 = scmp.ne.s32.totalorder %s165, %s168
    %p174 = scmp.eq.s32.totalorder %s11, 0
    %p175 = por %p173, %p174
    %p176 = scmp.ne.s32.totalorder %s165, %s168
    %p177 = scmp.eq.s32.totalorder %s16, 3
    %p178 = por %p176, %p177
    %p179 = scmp.ne.s32.totalorder %s168, %s169
    %p180 = scmp.eq.s32.totalorder %s16, 0
    %p181 = por %p179, %p180
    %p182 = scmp.ne.s32.totalorder %s168, %s169
    %p183 = scmp.eq.s32.totalorder %s17, 3
    %p184 = por %p182, %p183
    %p186 = scmp.ne.s32.totalorder %s169, %s185
    %p187 = scmp.eq.s32.totalorder %s17, 0
    %p188 = por %p186, %p187
    %p189 = scmp.le.s32.totalorder 1, %s11
    %p190 = scmp.lt.s32.totalorder %s11, 5
    %p191 = pnand %p189, %p190
    %p192 = pneg %p191
    // Predicated region
    $region9: #{_lambda_.28} parent=5 // pred_check
      _
    $region10: #{_lambda_.28} parent=5 // pred_check_branch
      %194 = sbr.rel (%p191) target = $region12
    $region11: #{_lambda_.28} parent=5 // pred_region
      %s195 = ssub.s32 %s11, 1
      // Predicated region
      $region13: #{_lambda_.28} parent=11 // pred_check
        %p196 = pneg %p75
      $region14: #{_lambda_.28} parent=11 // pred_check_branch
        %198 = sbr.rel (%p196) target = $region16
      $region15: #{_lambda_.28} parent=11 // pred_region
        %p199 = scmp.lt.s32.totalorder %s20, 0
        %s200 = scalar_select %p199, %s20, 0
        %s201 = smul.addr %s200, 4
        %s202 = scalar_lea.vmem %s1, %s201
      $region16: #{_lambda_.28} parent=11 // pred_fallthru
        _
      // Predicated region
      $region17: #{_lambda_.28} parent=11 // pred_check
        %p203 = pneg %p101
      $region18: #{_lambda_.28} parent=11 // pred_check_branch
        %205 = sbr.rel (%p203) target = $region20
      $region19: #{_lambda_.28} parent=11 // pred_region
        %p206 = scmp.lt.s32.totalorder %s20, 0
        %s207 = scalar_select %p206, %s20, 0
        %s208 = scalar_lea.vmem %s2, %s207
      $region20: #{_lambda_.28} parent=11 // pred_fallthru
        _
      // Predicated region
      $region21: #{_lambda_.28} parent=11 // pred_check
        %p209 = pneg %p127
      $region22: #{_lambda_.28} parent=11 // pred_check_branch
        %211 = sbr.rel (%p209) target = $region24
      $region23: #{_lambda_.28} parent=11 // pred_region
        %p212 = scmp.lt.s32.totalorder %s20, 0
        %s213 = scalar_select %p212, %s20, 0
        %s214 = scalar_lea.vmem %s3, %s213
      $region24: #{_lambda_.28} parent=11 // pred_fallthru
        _
      // Predicated region
      $region25: #{_lambda_.28} parent=11 // pred_check
        %p215 = pneg %p153
      $region26: #{_lambda_.28} parent=11 // pred_check_branch
        %217 = sbr.rel (%p215) target = $region28
      $region27: #{_lambda_.28} parent=11 // pred_region
        %p218 = scmp.lt.s32.totalorder %s20, 0
        %s219 = scalar_select %p218, %s20, 0
        %s220 = scalar_lea.vmem %s4, %s219
      $region28: #{_lambda_.28} parent=11 // pred_fallthru
        _
    $region12: #{_lambda_.28} parent=5 // pred_fallthru
      _
    %p221 = scmp.lt.s32.totalorder %s11, 4
    // Predicated region
    $region29: #{_lambda_.28} parent=5 // pred_check
      %p222 = pneg %p221
    $region30: #{_lambda_.28} parent=5 // pred_check_branch
      %224 = sbr.rel (%p222) target = $region32
    $region31: #{_lambda_.28} parent=5 // pred_region
      // Predicated region
      $region33: #{_lambda_.28} parent=31 // pred_check
        %p225 = pneg %p43
      $region34: #{_lambda_.28} parent=31 // pred_check_branch
        %227 = sbr.rel (%p225) target = $region36
      $region35: #{_lambda_.28} parent=31 // pred_region
        %p228 = scmp.lt.s32.totalorder %s19, 3
        %s229 = scalar_select %p228, %s19, 3
        %s230 = smul.addr %s229, 8
        %s231 = scalar_lea.vmem %s0, %s230
      $region36: #{_lambda_.28} parent=31 // pred_fallthru
        _
    $region32: #{_lambda_.28} parent=5 // pred_fallthru
      _
    %p232 = scmp.le.s32.totalorder 1, %s11
    %p233 = scmp.lt.s32.totalorder %s11, 5
    %p234 = pnand %p232, %p233
    %p235 = pneg %p234
    // Predicated region
    $region37: #{_lambda_.28} parent=5 // pred_check
      _
    $region38: #{_lambda_.28} parent=5 // pred_check_branch
      %237 = sbr.rel (%p234) target = $region40
    $region39: #{_lambda_.28} parent=5 // pred_region
      %s238 = ssub.s32 %s11, 1
      %p239 = scmp.lt.s32.totalorder %s21, 3
      %s240 = scalar_select %p239, %s21, 3
      %s241 = smul.addr %s240, 8
      %s242 = scalar_lea.vmem %s0, %s241
      %p243 = pneg %p49
      %p244 = pneg %p46
      %p245 = scmp.lt.s32.totalorder %s20, 0
      %s246 = scalar_select %p245, %s20, 0
      %s247 = smul.addr %s246, 4
      %s248 = scalar_lea.vmem %s1, %s247
      %p249 = pneg %p75
      %p250 = pneg %p72
      %p251 = scmp.lt.s32.totalorder %s20, 0
      %s252 = scalar_select %p251, %s20, 0
      %s253 = scalar_lea.vmem %s2, %s252
      %p254 = pneg %p101
      %p255 = pneg %p98
      %p256 = scmp.lt.s32.totalorder %s20, 0
      %s257 = scalar_select %p256, %s20, 0
      %s258 = scalar_lea.vmem %s3, %s257
      %p259 = pneg %p127
      %p260 = pneg %p124
      %p261 = scmp.lt.s32.totalorder %s20, 0
      %s262 = scalar_select %p261, %s20, 0
      %s263 = scalar_lea.vmem %s4, %s262
      %p264 = pneg %p153
      %p265 = pneg %p150
      %p266 = pneg %p181
      %p267 = pneg %p178
      %p268 = scmp.lt.s32.totalorder %s21, 3
      %s269 = scalar_select %p268, %s21, 3
      %p270 = scmp.lt.s32.totalorder %s20, 0
      %s271 = scalar_select %p270, %s20, 0
      %s272 = sadd.s32 %s271, %s269
      %s273 = smul.addr %s272, 8
      %s274 = scalar_lea.vmem %s5, %s273
      %p275 = scmp.lt.s32.totalorder %s21, 3
      %s276 = scalar_select %p275, %s21, 3
      %s277 = smul.addr %s276, 8
      %s278 = scalar_lea.vmem %s0, %s277
      %p279 = scmp.lt.s32.totalorder %s20, 0
      %s280 = scalar_select %p279, %s20, 0
      %s281 = smul.addr %s280, 4
      %s282 = scalar_lea.vmem %s1, %s281
      %p283 = scmp.lt.s32.totalorder %s20, 0
      %s284 = scalar_select %p283, %s20, 0
      %s285 = scalar_lea.vmem %s2, %s284
      %p286 = scmp.lt.s32.totalorder %s20, 0
      %s287 = scalar_select %p286, %s20, 0
      %s288 = scalar_lea.vmem %s3, %s287
      %p289 = scmp.lt.s32.totalorder %s20, 0
      %s290 = scalar_select %p289, %s20, 0
      %s291 = scalar_lea.vmem %s4, %s290
      %p292 = scmp.lt.s32.totalorder %s21, 3
      %s293 = scalar_select %p292, %s21, 3
      %p294 = scmp.lt.s32.totalorder %s20, 0
      %s295 = scalar_select %p294, %s20, 0
      %s296 = sadd.s32 %s295, %s293
      %s297 = smul.addr %s296, 8
      %s298 = scalar_lea.vmem %s5, %s297
      %v300 = vld [vmem:[%s278] sm:$0xff]
      %v301 = vpack.c.bf16 %v300, %v300
      %v302 = vld [vmem:[%s282] sm:$0xf]
      %v303 = vld [vmem:[%s282 + $0x4] sm:$0xf]
      %v304 = vld [vmem:[%s282 + $0x8] sm:$0xf]
      %v305 = vld [vmem:[%s282 + $0xc] sm:$0xf]
      %v306 = vld [vmem:[%s282 + $0x10] sm:$0xf]
      %v307 = vld [vmem:[%s282 + $0x14] sm:$0xf]
      %v308 = vld [vmem:[%s282 + $0x18] sm:$0xf]
      %v309 = vld [vmem:[%s282 + $0x1c] sm:$0xf]
      %v310 = vld [vmem:[%s285] sm:$0x1]
      %v312 = vperm.slane %v310, 0
      %v322 = vunpack.c.l.b16 %v302
      %v323 = vunpack.c.l.b16 %v303
      %v324 = vunpack.c.l.b16 %v304
      %v325 = vunpack.c.l.b16 %v305
      %v326 = vunpack.c.l.b16 %v306
      %v327 = vunpack.c.l.b16 %v307
      %v328 = vunpack.c.l.b16 %v308
      %v329 = vunpack.c.l.b16 %v309
      %v330 = vpack.c.b16 %v323, %v322
      %v331 = vpack.c.b16 %v325, %v324
      %v332 = vpack.c.b16 %v327, %v326
      %v333 = vpack.c.b16 %v329, %v328
      %vm338 = vcmask 523264
      %v340 = vsel %vm338, %v301, 0
      %342 = vmatpush.bf16.msra.mxu0 0
      %343 = vmatpush.bf16.msra.mxu0 0
      %344 = vmatpush.bf16.msra.mxu0 0
      %345 = vmatpush.bf16.msra.mxu0 0
      %346 = vmatpush.bf16.msra.mxu0 %v333
      %347 = vmatpush.bf16.msra.mxu0 %v332
      %348 = vmatpush.bf16.msra.mxu0 %v331
      %349 = vmatpush.bf16.msra.mxu0 %v330
      %350 = vmatmul.bf16.gmra.mxu0 %v340
      %v351 = vpop.f32.mrf.mxu0
      %v352 = vadd.f32 %v312, %v351
      %v353 = vpop.f32.mrf.mxu0
      %354 = vdwg.mxu0
      %v355 = vld [vmem:[%s288] sm:$0x1]
      %v356 = vld [vmem:[%s291] sm:$0x1]
      %357 = vadd.xlane.f32.xlu0 %v352
      %v358 = vpop.xlane.xlu0 %357
      %v359 = vrcp.pop 128.0
      %v360 = vmul.f32 128.0, %v359
      %v361 = vsub.f32 1.0, %v360
      %v362 = vmul.f32 %v359, %v361
      %v363 = vadd.f32 %v359, %v362
      %vm364 = vweird.f32 %v359
      %v365 = vsel %vm364, %v359, %v363
      %v366 = vmul.f32 %v358, %v365
      %v367 = vsub.f32 %v352, %v366
      %v368 = vmul.f32 %v367, %v367
      %369 = vadd.xlane.f32.xlu0 %v368
      %v370 = vpop.xlane.xlu0 %369
      %v371 = vmul.f32 %v370, %v365
      %v372 = vadd.f32 %v371, 1e-06
      %v373 = vrsqrt.pop %v372
      %v374 = vmul.f32 %v373, %v372
      %v375 = vmul.f32 %v374, %v373
      %v376 = vmul.f32 0.5, %v375
      %v377 = vsub.f32 1.5, %v376
      %v378 = vmul.f32 %v373, %v377
      %vm379 = vweird.f32 %v372
      %vm380 = vweird.f32 %v373
      %vm381 = vmor %vm379, %vm380
      %v382 = vsel %vm381, %v373, %v378
      %v383 = vmul.f32 %v367, %v382
      %v385 = vperm.slane %v355, 0
      %v387 = vmul.f32 %v383, %v385
      %v389 = vperm.slane %v356, 0
      %v391 = vadd.f32 %v387, %v389
      %392 = vst [vmem:[%s298] sm:$0xff] %v391
      %p393 = scmp.lt.s32.totalorder %s21, 3
      %s394 = scalar_select %p393, %s21, 3
      %p395 = scmp.lt.s32.totalorder %s20, 0
      %s396 = scalar_select %p395, %s20, 0
      %s397 = sadd.s32 %s396, %s394
      %s398 = smul.addr %s397, 8
      %s399 = scalar_lea.vmem %s5, %s398
      // Predicated region
      $region41: #{_lambda_.28} parent=39 // pred_check
        %p400 = pneg %p178
      $region42: #{_lambda_.28} parent=39 // pred_check_branch
        %402 = sbr.rel (%p400) target = $region44
      $region43: #{_lambda_.28} parent=39 // pred_region
        _
      $region44: #{_lambda_.28} parent=39 // pred_fallthru
        _
    $region40: #{_lambda_.28} parent=5 // pred_fallthru
      _
    %p403 = scmp.le.s32.totalorder 2, %s11
    // Predicated region
    $region45: #{_lambda_.28} parent=5 // pred_check
      %p404 = pneg %p403
    $region46: #{_lambda_.28} parent=5 // pred_check_branch
      %406 = sbr.rel (%p404) target = $region48
    $region47: #{_lambda_.28} parent=5 // pred_region
      %s407 = ssub.s32 %s11, 2
      // Predicated region
      $region49: #{_lambda_.28} parent=47 // pred_check
        %p408 = pneg %p184
      $region50: #{_lambda_.28} parent=47 // pred_check_branch
        %410 = sbr.rel (%p408) target = $region52
      $region51: #{_lambda_.28} parent=47 // pred_region
        %p411 = scmp.lt.s32.totalorder %s23, 3
        %s412 = scalar_select %p411, %s23, 3
        %p413 = scmp.lt.s32.totalorder %s22, 0
        %s414 = scalar_select %p413, %s22, 0
        %s415 = sadd.s32 %s414, %s412
        %s416 = smul.addr %s415, 8
        %s417 = scalar_lea.vmem %s5, %s416
      $region52: #{_lambda_.28} parent=47 // pred_fallthru
        _
    $region48: #{_lambda_.28} parent=5 // pred_fallthru
      _
  $region6: #{_lambda_.28} parent=0 // loop_footer
    %s15 = sadd.s32 1, %s11
  $region7: #{_lambda_.28} parent=0 // loop_footer_branch
    %10 = sbr.rel target = $region3
  $region8: #{_lambda_.28} parent=0 // loop_exit
    _

// kernel: _lambda_.30
$region0: #{_lambda_.30}
  #allocation0 [shape = 'u32[]', space=smem, size = 0x4, offset = 0x4, fixed_abs, tag = 'smem constant byte address 0x4 - core index']
  #allocation1 [shape = 'u32[72,128]{1,0:T(1,128)}', space=vmem, size = 0x9000, scoped, tag = 'internal scratch']
  %s0 = inlined_call_operand.vmem [shape: f32[32,128], index: 0, kind: input, shape index: {}]
  %s1 = inlined_call_operand.vmem [shape: bf16[128,512], index: 1, kind: input, shape index: {}]
  %s2 = inlined_call_operand.vmem [shape: f32[1,512], index: 2, kind: input, shape index: {}]
  %s3 = inlined_call_operand.vmem [shape: f32[32,512], index: 3, kind: output, shape index: {}]
  %s4 = sld [smem:[#allocation0]]
  $region45: #{_lambda_.30} parent=0
    _
  %s6 = ssub.s32 1, %s4
  %s7 = scalar_select 0, %s6, %s4
  loop: start=0, step=1, limit=6
  $region2: #{_lambda_.30} parent=0 // loop_pre_header
    _
  $region3: #{_lambda_.30} parent=0 // loop_header
    %s9 = sphi 0, %s13
    %p10 = scmp.ge.s32.totalorder %s9, 6
    %s16 = sphi 0, %s28
    %s17 = sphi 0, %s24
    %s18 = sphi 0, %s16
    %s19 = sphi 0, %s17
    %s20 = sphi 0, %s18
    %s21 = sphi 0, %s19
    %s31 = sphi 0, %s33
    %s34 = sphi 0, %s31
    %s35 = sphi 0, %s34
    %s51 = sphi 0, %s35
    %s57 = sphi 0, %s59
    %s60 = sphi 0, %s57
    %s61 = sphi 0, %s60
    %s77 = sphi 0, %s61
    %s83 = sphi 0, %s85
    %s86 = sphi 0, %s83
    %s87 = sphi 0, %s86
    %s103 = sphi 0, %s87
    %s111 = sphi 0, %s113
    %s114 = sphi 0, %s111
    %s115 = sphi 0, %s114
    %s131 = sphi 0, %s115
  $region4: #{_lambda_.30} parent=0 // loop_header_branch
    %12 = sbr.rel (%p10) target = $region8
  $region5: #{_lambda_.30} parent=0 // loop_body
    %s14 = ssub.s32 %s9, 1
    %s15 = ssub.s32 %s9, 2
    %s22 = sadd.s32 1, %s17
    %p23 = scmp.ge.s32.totalorder %s22, 4
    %s24 = scalar_select %p23, 0, %s22
    %s25 = sadd.s32 1, %s16
    %s26 = scalar_select %p23, %s25, %s16
    %p27 = scmp.ge.s32.totalorder %s26, 1
    %s28 = scalar_select %p27, 0, %s26
    %s29 = ssub.s32 %s17, %s24
    %p30 = scmp.eq.s32.totalorder %s29, 0
    %s32 = sadd.s32 %s31, 1
    %s33 = scalar_select %p30, %s31, %s32
    %p36 = pneg %p30
    %p37 = scmp.eq.s32.totalorder %s9, 3
    %p38 = por %p36, %p37
    %p39 = scmp.ne.s32.totalorder %s31, %s34
    %p40 = scmp.eq.s32.totalorder %s9, 0
    %p41 = por %p39, %p40
    %p42 = scmp.ne.s32.totalorder %s31, %s34
    %p43 = scmp.eq.s32.totalorder %s14, 3
    %p44 = por %p42, %p43
    %p45 = scmp.ne.s32.totalorder %s34, %s35
    %p46 = scmp.eq.s32.totalorder %s14, 0
    %p47 = por %p45, %p46
    %p48 = scmp.ne.s32.totalorder %s34, %s35
    %p49 = scmp.eq.s32.totalorder %s15, 3
    %p50 = por %p48, %p49
    %p52 = scmp.ne.s32.totalorder %s35, %s51
    %p53 = scmp.eq.s32.totalorder %s15, 0
    %p54 = por %p52, %p53
    %s55 = ssub.s32 %s16, %s28
    %p56 = scmp.eq.s32.totalorder %s55, 0
    %s58 = sadd.s32 %s57, 1
    %s59 = scalar_select %p56, %s57, %s58
    %p62 = pneg %p56
    %p63 = scmp.eq.s32.totalorder %s9, 3
    %p64 = por %p62, %p63
    %p65 = scmp.ne.s32.totalorder %s57, %s60
    %p66 = scmp.eq.s32.totalorder %s9, 0
    %p67 = por %p65, %p66
    %p68 = scmp.ne.s32.totalorder %s57, %s60
    %p69 = scmp.eq.s32.totalorder %s14, 3
    %p70 = por %p68, %p69
    %p71 = scmp.ne.s32.totalorder %s60, %s61
    %p72 = scmp.eq.s32.totalorder %s14, 0
    %p73 = por %p71, %p72
    %p74 = scmp.ne.s32.totalorder %s60, %s61
    %p75 = scmp.eq.s32.totalorder %s15, 3
    %p76 = por %p74, %p75
    %p78 = scmp.ne.s32.totalorder %s61, %s77
    %p79 = scmp.eq.s32.totalorder %s15, 0
    %p80 = por %p78, %p79
    %s81 = ssub.s32 %s16, %s28
    %p82 = scmp.eq.s32.totalorder %s81, 0
    %s84 = sadd.s32 %s83, 1
    %s85 = scalar_select %p82, %s83, %s84
    %p88 = pneg %p82
    %p89 = scmp.eq.s32.totalorder %s9, 3
    %p90 = por %p88, %p89
    %p91 = scmp.ne.s32.totalorder %s83, %s86
    %p92 = scmp.eq.s32.totalorder %s9, 0
    %p93 = por %p91, %p92
    %p94 = scmp.ne.s32.totalorder %s83, %s86
    %p95 = scmp.eq.s32.totalorder %s14, 3
    %p96 = por %p94, %p95
    %p97 = scmp.ne.s32.totalorder %s86, %s87
    %p98 = scmp.eq.s32.totalorder %s14, 0
    %p99 = por %p97, %p98
    %p100 = scmp.ne.s32.totalorder %s86, %s87
    %p101 = scmp.eq.s32.totalorder %s15, 3
    %p102 = por %p100, %p101
    %p104 = scmp.ne.s32.totalorder %s87, %s103
    %p105 = scmp.eq.s32.totalorder %s15, 0
    %p106 = por %p104, %p105
    %s107 = ssub.s32 %s17, %s24
    %s108 = ssub.s32 %s16, %s28
    %s109 = sor.u32 %s107, %s108
    %p110 = scmp.eq.s32.totalorder %s109, 0
    %s112 = sadd.s32 %s111, 1
    %s113 = scalar_select %p110, %s111, %s112
    %p116 = pneg %p110
    %p117 = scmp.eq.s32.totalorder %s9, 3
    %p118 = por %p116, %p117
    %p119 = scmp.ne.s32.totalorder %s111, %s114
    %p120 = scmp.eq.s32.totalorder %s9, 0
    %p121 = por %p119, %p120
    %p122 = scmp.ne.s32.totalorder %s111, %s114
    %p123 = scmp.eq.s32.totalorder %s14, 3
    %p124 = por %p122, %p123
    %p125 = scmp.ne.s32.totalorder %s114, %s115
    %p126 = scmp.eq.s32.totalorder %s14, 0
    %p127 = por %p125, %p126
    %p128 = scmp.ne.s32.totalorder %s114, %s115
    %p129 = scmp.eq.s32.totalorder %s15, 3
    %p130 = por %p128, %p129
    %p132 = scmp.ne.s32.totalorder %s115, %s131
    %p133 = scmp.eq.s32.totalorder %s15, 0
    %p134 = por %p132, %p133
    %p135 = scmp.le.s32.totalorder 1, %s9
    %p136 = scmp.lt.s32.totalorder %s9, 5
    %p137 = pnand %p135, %p136
    %p138 = pneg %p137
    // Predicated region
    $region9: #{_lambda_.30} parent=5 // pred_check
      _
    $region10: #{_lambda_.30} parent=5 // pred_check_branch
      %140 = sbr.rel (%p137) target = $region12
    $region11: #{_lambda_.30} parent=5 // pred_region
      %s141 = ssub.s32 %s9, 1
      // Predicated region
      $region13: #{_lambda_.30} parent=11 // pred_check
        %p142 = pneg %p73
      $region14: #{_lambda_.30} parent=11 // pred_check_branch
        %144 = sbr.rel (%p142) target = $region16
      $region15: #{_lambda_.30} parent=11 // pred_region
        %s145 = smul.u32 4, %s18
        %p146 = scmp.lt.s32.totalorder %s145, 3
        %s147 = scalar_select %p146, %s145, 3
        %s148 = smul.addr %s147, 4
        %s149 = scalar_lea.vmem %s1, %s148
        %s150 = smul.u32 4, %s18
      $region16: #{_lambda_.30} parent=11 // pred_fallthru
        _
      // Predicated region
      $region17: #{_lambda_.30} parent=11 // pred_check
        %p151 = pneg %p99
      $region18: #{_lambda_.30} parent=11 // pred_check_branch
        %153 = sbr.rel (%p151) target = $region20
      $region19: #{_lambda_.30} parent=11 // pred_region
        %s154 = smul.u32 4, %s18
        %p155 = scmp.lt.s32.totalorder %s154, 3
        %s156 = scalar_select %p155, %s154, 3
        %s157 = scalar_lea.vmem %s2, %s156
        %s158 = smul.u32 4, %s18
      $region20: #{_lambda_.30} parent=11 // pred_fallthru
        _
    $region12: #{_lambda_.30} parent=5 // pred_fallthru
      _
    %p159 = scmp.lt.s32.totalorder %s9, 4
    // Predicated region
    $region21: #{_lambda_.30} parent=5 // pred_check
      %p160 = pneg %p159
    $region22: #{_lambda_.30} parent=5 // pred_check_branch
      %162 = sbr.rel (%p160) target = $region24
    $region23: #{_lambda_.30} parent=5 // pred_region
      // Predicated region
      $region25: #{_lambda_.30} parent=23 // pred_check
        %p163 = pneg %p41
      $region26: #{_lambda_.30} parent=23 // pred_check_branch
        %165 = sbr.rel (%p163) target = $region28
      $region27: #{_lambda_.30} parent=23 // pred_region
        %p166 = scmp.lt.s32.totalorder %s17, 3
        %s167 = scalar_select %p166, %s17, 3
        %s168 = smul.addr %s167, 8
        %s169 = scalar_lea.vmem %s0, %s168
      $region28: #{_lambda_.30} parent=23 // pred_fallthru
        _
    $region24: #{_lambda_.30} parent=5 // pred_fallthru
      _
    %p170 = scmp.le.s32.totalorder 1, %s9
    %p171 = scmp.lt.s32.totalorder %s9, 5
    %p172 = pnand %p170, %p171
    %p173 = pneg %p172
    // Predicated region
    $region29: #{_lambda_.30} parent=5 // pred_check
      _
    $region30: #{_lambda_.30} parent=5 // pred_check_branch
      %175 = sbr.rel (%p172) target = $region32
    $region31: #{_lambda_.30} parent=5 // pred_region
      %s176 = ssub.s32 %s9, 1
      %p177 = scmp.lt.s32.totalorder %s19, 3
      %s178 = scalar_select %p177, %s19, 3
      %s179 = smul.addr %s178, 8
      %s180 = scalar_lea.vmem %s0, %s179
      %p181 = pneg %p47
      %p182 = pneg %p44
      %s183 = smul.u32 4, %s18
      %p184 = scmp.lt.s32.totalorder %s183, 3
      %s185 = scalar_select %p184, %s183, 3
      %s186 = smul.addr %s185, 4
      %s187 = scalar_lea.vmem %s1, %s186
      %p188 = pneg %p73
      %p189 = pneg %p70
      %s190 = smul.u32 4, %s18
      %p191 = scmp.lt.s32.totalorder %s190, 3
      %s192 = scalar_select %p191, %s190, 3
      %s193 = scalar_lea.vmem %s2, %s192
      %p194 = pneg %p99
      %p195 = pneg %p96
      %p196 = pneg %p127
      %p197 = pneg %p124
      %s198 = smul.u32 4, %s18
      %p199 = scmp.lt.s32.totalorder %s19, 3
      %s200 = scalar_select %p199, %s19, 3
      %p201 = scmp.lt.s32.totalorder %s198, 3
      %s202 = scalar_select %p201, %s198, 3
      %s203 = smul.addr %s200, 4
      %s204 = sadd.s32 %s202, %s203
      %s205 = smul.addr %s204, 8
      %s206 = scalar_lea.vmem %s3, %s205
      %p207 = scmp.lt.s32.totalorder %s19, 3
      %s208 = scalar_select %p207, %s19, 3
      %s209 = smul.addr %s208, 8
      %s210 = scalar_lea.vmem %s0, %s209
      %s211 = smul.u32 4, %s18
      %p212 = scmp.lt.s32.totalorder %s211, 3
      %s213 = scalar_select %p212, %s211, 3
      %s214 = smul.addr %s213, 4
      %s215 = scalar_lea.vmem %s1, %s214
      %s216 = smul.u32 4, %s18
      %s217 = smul.u32 4, %s18
      %p218 = scmp.lt.s32.totalorder %s217, 3
      %s219 = scalar_select %p218, %s217, 3
      %s220 = scalar_lea.vmem %s2, %s219
      %s221 = smul.u32 4, %s18
      %s222 = smul.u32 4, %s18
      %p223 = scmp.lt.s32.totalorder %s19, 3
      %s224 = scalar_select %p223, %s19, 3
      %p225 = scmp.lt.s32.totalorder %s222, 3
      %s226 = scalar_select %p225, %s222, 3
      %s227 = smul.addr %s224, 4
      %s228 = sadd.s32 %s226, %s227
      %s229 = smul.addr %s228, 8
      %s230 = scalar_lea.vmem %s3, %s229
      %s231 = smul.u32 4, %s18
      %v232 = vld [vmem:[%s210] sm:$0xff]
      %v233 = vpack.c.bf16 %v232, %v232
      %v234 = vld [vmem:[%s215] sm:$0xff]
      %v235 = vld [vmem:[%s215 + $0x8] sm:$0xff]
      %v236 = vld [vmem:[%s215 + $0x10] sm:$0xff]
      %v237 = vld [vmem:[%s215 + $0x18] sm:$0xff]
      %v238 = vld [vmem:[%s215 + $0x20] sm:$0xff]
      %v239 = vld [vmem:[%s215 + $0x28] sm:$0xff]
      %v240 = vld [vmem:[%s215 + $0x30] sm:$0xff]
      %v241 = vld [vmem:[%s215 + $0x38] sm:$0xff]
      %v242 = vld [vmem:[%s215 + $0x40] sm:$0xff]
      %v243 = vld [vmem:[%s215 + $0x48] sm:$0xff]
      %v244 = vld [vmem:[%s215 + $0x50] sm:$0xff]
      %v245 = vld [vmem:[%s215 + $0x58] sm:$0xff]
      %v246 = vld [vmem:[%s215 + $0x60] sm:$0xff]
      %v247 = vld [vmem:[%s215 + $0x68] sm:$0xff]
      %v248 = vld [vmem:[%s215 + $0x70] sm:$0xff]
      %v249 = vld [vmem:[%s215 + $0x78] sm:$0xff]
      %v250 = vld [vmem:[%s215 + $0x80] sm:$0xff]
      %v251 = vld [vmem:[%s215 + $0x88] sm:$0xff]
      %v252 = vld [vmem:[%s215 + $0x90] sm:$0xff]
      %v253 = vld [vmem:[%s215 + $0x98] sm:$0xff]
      %v254 = vld [vmem:[%s215 + $0xa0] sm:$0xff]
      %v255 = vld [vmem:[%s215 + $0xa8] sm:$0xff]
      %v256 = vld [vmem:[%s215 + $0xb0] sm:$0xff]
      %v257 = vld [vmem:[%s215 + $0xb8] sm:$0xff]
      %v258 = vld [vmem:[%s215 + $0xc0] sm:$0xff]
      %v259 = vld [vmem:[%s215 + $0xc8] sm:$0xff]
      %v260 = vld [vmem:[%s215 + $0xd0] sm:$0xff]
      %v261 = vld [vmem:[%s215 + $0xd8] sm:$0xff]
      %v262 = vld [vmem:[%s215 + $0xe0] sm:$0xff]
      %v263 = vld [vmem:[%s215 + $0xe8] sm:$0xff]
      %v264 = vld [vmem:[%s215 + $0xf0] sm:$0xff]
      %v265 = vld [vmem:[%s215 + $0xf8] sm:$0xff]
      %v266 = vld [vmem:[%s220] sm:$0xf]
      %v268 = vperm.slane %v266, 0
      %v269 = vperm.slane %v266, 1
      %v270 = vperm.slane %v266, 2
      %v271 = vperm.slane %v266, 3
      %v308 = vunpack.c.l.b16 %v234
      %v309 = vunpack.c.h.b16 %v234
      %v310 = vunpack.c.l.b16 %v235
      %v311 = vunpack.c.h.b16 %v235
      %v312 = vunpack.c.l.b16 %v236
      %v313 = vunpack.c.h.b16 %v236
      %v314 = vunpack.c.l.b16 %v237
      %v315 = vunpack.c.h.b16 %v237
      %v316 = vunpack.c.l.b16 %v238
      %v317 = vunpack.c.h.b16 %v238
      %v318 = vunpack.c.l.b16 %v239
      %v319 = vunpack.c.h.b16 %v239
      %v320 = vunpack.c.l.b16 %v240
      %v321 = vunpack.c.h.b16 %v240
      %v322 = vunpack.c.l.b16 %v241
      %v323 = vunpack.c.h.b16 %v241
      %v324 = vunpack.c.l.b16 %v242
      %v325 = vunpack.c.h.b16 %v242
      %v326 = vunpack.c.l.b16 %v243
      %v327 = vunpack.c.h.b16 %v243
      %v328 = vunpack.c.l.b16 %v244
      %v329 = vunpack.c.h.b16 %v244
      %v330 = vunpack.c.l.b16 %v245
      %v331 = vunpack.c.h.b16 %v245
      %v332 = vunpack.c.l.b16 %v246
      %v333 = vunpack.c.h.b16 %v246
      %v334 = vunpack.c.l.b16 %v247
      %v335 = vunpack.c.h.b16 %v247
      %v336 = vunpack.c.l.b16 %v248
      %v337 = vunpack.c.h.b16 %v248
      %v338 = vunpack.c.l.b16 %v249
      %v339 = vunpack.c.h.b16 %v249
      %v340 = vunpack.c.l.b16 %v250
      %v341 = vunpack.c.h.b16 %v250
      %v342 = vunpack.c.l.b16 %v251
      %v343 = vunpack.c.h.b16 %v251
      %v344 = vunpack.c.l.b16 %v252
      %v345 = vunpack.c.h.b16 %v252
      %v346 = vunpack.c.l.b16 %v253
      %v347 = vunpack.c.h.b16 %v253
      %v348 = vunpack.c.l.b16 %v254
      %v349 = vunpack.c.h.b16 %v254
      %v350 = vunpack.c.l.b16 %v255
      %v351 = vunpack.c.h.b16 %v255
      %v352 = vunpack.c.l.b16 %v256
      %v353 = vunpack.c.h.b16 %v256
      %v354 = vunpack.c.l.b16 %v257
      %v355 = vunpack.c.h.b16 %v257
      %v356 = vunpack.c.l.b16 %v258
      %v357 = vunpack.c.h.b16 %v258
      %v358 = vunpack.c.l.b16 %v259
      %v359 = vunpack.c.h.b16 %v259
      %v360 = vunpack.c.l.b16 %v260
      %v361 = vunpack.c.h.b16 %v260
      %v362 = vunpack.c.l.b16 %v261
      %v363 = vunpack.c.h.b16 %v261
      %v364 = vunpack.c.l.b16 %v262
      %v365 = vunpack.c.h.b16 %v262
      %v366 = vunpack.c.l.b16 %v263
      %v367 = vunpack.c.h.b16 %v263
      %v368 = vunpack.c.l.b16 %v264
      %v369 = vunpack.c.h.b16 %v264
      %v370 = vunpack.c.l.b16 %v265
      %v371 = vunpack.c.h.b16 %v265
      %v372 = vpack.c.b16 %v312, %v308
      %v373 = vpack.c.b16 %v313, %v309
      %v374 = vpack.c.b16 %v314, %v310
      %v375 = vpack.c.b16 %v315, %v311
      %v376 = vpack.c.b16 %v320, %v316
      %v377 = vpack.c.b16 %v321, %v317
      %v378 = vpack.c.b16 %v322, %v318
      %v379 = vpack.c.b16 %v323, %v319
      %v380 = vpack.c.b16 %v328, %v324
      %v381 = vpack.c.b16 %v329, %v325
      %v382 = vpack.c.b16 %v330, %v326
      %v383 = vpack.c.b16 %v331, %v327
      %v384 = vpack.c.b16 %v336, %v332
      %v385 = vpack.c.b16 %v337, %v333
      %v386 = vpack.c.b16 %v338, %v334
      %v387 = vpack.c.b16 %v339, %v335
      %v388 = vpack.c.b16 %v344, %v340
      %v389 = vpack.c.b16 %v345, %v341
      %v390 = vpack.c.b16 %v346, %v342
      %v391 = vpack.c.b16 %v347, %v343
      %v392 = vpack.c.b16 %v352, %v348
      %v393 = vpack.c.b16 %v353, %v349
      %v394 = vpack.c.b16 %v354, %v350
      %v395 = vpack.c.b16 %v355, %v351
      %v396 = vpack.c.b16 %v360, %v356
      %v397 = vpack.c.b16 %v361, %v357
      %v398 = vpack.c.b16 %v362, %v358
      %v399 = vpack.c.b16 %v363, %v359
      %v400 = vpack.c.b16 %v368, %v364
      %v401 = vpack.c.b16 %v369, %v365
      %v402 = vpack.c.b16 %v370, %v366
      %v403 = vpack.c.b16 %v371, %v367
      %436 = vmatpush.bf16.msra.mxu0 %v400
      %437 = vmatpush.bf16.msra.mxu0 %v396
      %438 = vmatpush.bf16.msra.mxu0 %v392
      %439 = vmatpush.bf16.msra.mxu0 %v388
      %440 = vmatpush.bf16.msra.mxu0 %v384
      %441 = vmatpush.bf16.msra.mxu0 %v380
      %442 = vmatpush.bf16.msra.mxu0 %v376
      %443 = vmatpush.bf16.msra.mxu0 %v372
      %444 = vmatmul.bf16.gmra.mxu0 %v233
      %v445 = vpop.f32.mrf.mxu0
      %v446 = vadd.f32 %v268, %v445
      %v447 = vpop.f32.mrf.mxu0
      %448 = vdwg.mxu0
      %449 = vmatpush.bf16.msra.mxu0 %v401
      %450 = vmatpush.bf16.msra.mxu0 %v397
      %451 = vmatpush.bf16.msra.mxu0 %v393
      %452 = vmatpush.bf16.msra.mxu0 %v389
      %453 = vmatpush.bf16.msra.mxu0 %v385
      %454 = vmatpush.bf16.msra.mxu0 %v381
      %455 = vmatpush.bf16.msra.mxu0 %v377
      %456 = vmatpush.bf16.msra.mxu0 %v373
      %457 = vmatmul.bf16.gmra.mxu0 %v233
      %v458 = vpop.f32.mrf.mxu0
      %v459 = vadd.f32 %v269, %v458
      %v460 = vpop.f32.mrf.mxu0
      %461 = vdwg.mxu0
      %462 = vmatpush.bf16.msra.mxu0 %v402
      %463 = vmatpush.bf16.msra.mxu0 %v398
      %464 = vmatpush.bf16.msra.mxu0 %v394
      %465 = vmatpush.bf16.msra.mxu0 %v390
      %466 = vmatpush.bf16.msra.mxu0 %v386
      %467 = vmatpush.bf16.msra.mxu0 %v382
      %468 = vmatpush.bf16.msra.mxu0 %v378
      %469 = vmatpush.bf16.msra.mxu0 %v374
      %470 = vmatmul.bf16.gmra.mxu0 %v233
      %v471 = vpop.f32.mrf.mxu0
      %v472 = vadd.f32 %v270, %v471
      %v473 = vpop.f32.mrf.mxu0
      %474 = vdwg.mxu0
      %475 = vmatpush.bf16.msra.mxu0 %v403
      %476 = vmatpush.bf16.msra.mxu0 %v399
      %477 = vmatpush.bf16.msra.mxu0 %v395
      %478 = vmatpush.bf16.msra.mxu0 %v391
      %479 = vmatpush.bf16.msra.mxu0 %v387
      %480 = vmatpush.bf16.msra.mxu0 %v383
      %481 = vmatpush.bf16.msra.mxu0 %v379
      %482 = vmatpush.bf16.msra.mxu0 %v375
      %483 = vmatmul.bf16.gmra.mxu0 %v233
      %v484 = vpop.f32.mrf.mxu0
      %v485 = vadd.f32 %v271, %v484
      %v486 = vpop.f32.mrf.mxu0
      %487 = vdwg.mxu0
      %v488 = vmax.f32 %v446, 0.0
      %v489 = vmax.f32 %v459, 0.0
      %v490 = vmax.f32 %v472, 0.0
      %v491 = vmax.f32 %v485, 0.0
      %492 = vst [vmem:[%s230] sm:$0xff] %v488
      %493 = vst [vmem:[%s230 + $0x8] sm:$0xff] %v489
      %494 = vst [vmem:[%s230 + $0x10] sm:$0xff] %v490
      %495 = vst [vmem:[%s230 + $0x18] sm:$0xff] %v491
      %s496 = smul.u32 4, %s18
      %p497 = scmp.lt.s32.totalorder %s19, 3
      %s498 = scalar_select %p497, %s19, 3
      %p499 = scmp.lt.s32.totalorder %s496, 3
      %s500 = scalar_select %p499, %s496, 3
      %s501 = smul.addr %s498, 4
      %s502 = sadd.s32 %s500, %s501
      %s503 = smul.addr %s502, 8
      %s504 = scalar_lea.vmem %s3, %s503
      // Predicated region
      $region33: #{_lambda_.30} parent=31 // pred_check
        %p505 = pneg %p124
      $region34: #{_lambda_.30} parent=31 // pred_check_branch
        %507 = sbr.rel (%p505) target = $region36
      $region35: #{_lambda_.30} parent=31 // pred_region
        %s508 = smul.u32 4, %s18
      $region36: #{_lambda_.30} parent=31 // pred_fallthru
        _
    $region32: #{_lambda_.30} parent=5 // pred_fallthru
      _
    %p509 = scmp.le.s32.totalorder 2, %s9
    // Predicated region
    $region37: #{_lambda_.30} parent=5 // pred_check
      %p510 = pneg %p509
    $region38: #{_lambda_.30} parent=5 // pred_check_branch
      %512 = sbr.rel (%p510) target = $region40
    $region39: #{_lambda_.30} parent=5 // pred_region
      %s513 = ssub.s32 %s9, 2
      // Predicated region
      $region41: #{_lambda_.30} parent=39 // pred_check
        %p514 = pneg %p130
      $region42: #{_lambda_.30} parent=39 // pred_check_branch
        %516 = sbr.rel (%p514) target = $region44
      $region43: #{_lambda_.30} parent=39 // pred_region
        %s517 = smul.u32 4, %s20
        %p518 = scmp.lt.s32.totalorder %s21, 3
        %s519 = scalar_select %p518, %s21, 3
        %p520 = scmp.lt.s32.totalorder %s517, 3
        %s521 = scalar_select %p520, %s517, 3
        %s522 = smul.addr %s519, 4
        %s523 = sadd.s32 %s521, %s522
        %s524 = smul.addr %s523, 8
        %s525 = scalar_lea.vmem %s3, %s524
      $region44: #{_lambda_.30} parent=39 // pred_fallthru
        _
    $region40: #{_lambda_.30} parent=5 // pred_fallthru
      _
  $region6: #{_lambda_.30} parent=0 // loop_footer
    %s13 = sadd.s32 1, %s9
  $region7: #{_lambda_.30} parent=0 // loop_footer_branch
    %8 = sbr.rel target = $region3
  $region8: #{_lambda_.30} parent=0 // loop_exit
    _

// kernel: _lambda_.29
$region0: #{_lambda_.29}
  #allocation0 [shape = 'u32[]', space=smem, size = 0x4, offset = 0x4, fixed_abs, tag = 'smem constant byte address 0x4 - core index']
  #allocation1 [shape = 'u32[72,128]{1,0:T(1,128)}', space=vmem, size = 0x9000, scoped, tag = 'internal scratch']
  %s0 = inlined_call_operand.vmem [shape: f32[2,36,128], index: 0, kind: input, shape index: {}]
  %s1 = inlined_call_operand.vmem [shape: bf16[9,128,128], index: 1, kind: input, shape index: {}]
  %s2 = inlined_call_operand.vmem [shape: f32[1,128], index: 2, kind: input, shape index: {}]
  %s3 = inlined_call_operand.vmem [shape: f32[1,128], index: 3, kind: input, shape index: {}]
  %s4 = inlined_call_operand.vmem [shape: f32[2,4,4,128], index: 4, kind: output, shape index: {}]
  %s5 = sld [smem:[#allocation0]]
  $region49: #{_lambda_.29} parent=0
    _
  %s7 = ssub.s32 1, %s5
  %s8 = scalar_select 0, %s7, %s5
  loop: start=0, step=1, limit=4
  $region2: #{_lambda_.29} parent=0 // loop_pre_header
    _
  $region3: #{_lambda_.29} parent=0 // loop_header
    %s10 = sphi 0, %s14
    %p11 = scmp.ge.s32.totalorder %s10, 4
    %s20 = sphi 0, %s22
    %s23 = sphi 0, %s20
    %s24 = sphi 0, %s23
    %s40 = sphi 0, %s24
    %s44 = sphi 0, %s44
    %s46 = sphi 0, %s44
    %s47 = sphi 0, %s46
    %s61 = sphi 0, %s47
    %s65 = sphi 0, %s65
    %s67 = sphi 0, %s65
    %s68 = sphi 0, %s67
    %s82 = sphi 0, %s68
    %s86 = sphi 0, %s86
    %s88 = sphi 0, %s86
    %s89 = sphi 0, %s88
    %s103 = sphi 0, %s89
    %s109 = sphi 0, %s111
    %s112 = sphi 0, %s109
    %s113 = sphi 0, %s112
    %s129 = sphi 0, %s113
  $region4: #{_lambda_.29} parent=0 // loop_header_branch
    %13 = sbr.rel (%p11) target = $region8
  $region5: #{_lambda_.29} parent=0 // loop_body
    %s15 = ssub.s32 %s10, 1
    %s16 = ssub.s32 %s10, 2
    %s17 = sadd.s32 %s10, 1
    %s18 = ssub.s32 %s10, %s17
    %p19 = scmp.eq.s32.totalorder %s18, 0
    %s21 = sadd.s32 %s20, 1
    %s22 = scalar_select %p19, %s20, %s21
    %p25 = pneg %p19
    %p26 = scmp.eq.s32.totalorder %s10, 1
    %p27 = por %p25, %p26
    %p28 = scmp.ne.s32.totalorder %s20, %s23
    %p29 = scmp.eq.s32.totalorder %s10, 0
    %p30 = por %p28, %p29
    %p31 = scmp.ne.s32.totalorder %s20, %s23
    %p32 = scmp.eq.s32.totalorder %s15, 1
    %p33 = por %p31, %p32
    %p34 = scmp.ne.s32.totalorder %s23, %s24
    %p35 = scmp.eq.s32.totalorder %s15, 0
    %p36 = por %p34, %p35
    %p37 = scmp.ne.s32.totalorder %s23, %s24
    %p38 = scmp.eq.s32.totalorder %s16, 1
    %p39 = por %p37, %p38
    %p41 = scmp.ne.s32.totalorder %s24, %s40
    %p42 = scmp.eq.s32.totalorder %s16, 0
    %p43 = por %p41, %p42
    %s45 = sadd.s32 %s44, 1
    %p48 = scmp.eq.s32.totalorder %s10, 1
    %p49 = scmp.ne.s32.totalorder %s44, %s46
    %p50 = scmp.eq.s32.totalorder %s10, 0
    %p51 = por %p49, %p50
    %p52 = scmp.ne.s32.totalorder %s44, %s46
    %p53 = scmp.eq.s32.totalorder %s15, 1
    %p54 = por %p52, %p53
    %p55 = scmp.ne.s32.totalorder %s46, %s47
    %p56 = scmp.eq.s32.totalorder %s15, 0
    %p57 = por %p55, %p56
    %p58 = scmp.ne.s32.totalorder %s46, %s47
    %p59 = scmp.eq.s32.totalorder %s16, 1
    %p60 = por %p58, %p59
    %p62 = scmp.ne.s32.totalorder %s47, %s61
    %p63 = scmp.eq.s32.totalorder %s16, 0
    %p64 = por %p62, %p63
    %s66 = sadd.s32 %s65, 1
    %p69 = scmp.eq.s32.totalorder %s10, 1
    %p70 = scmp.ne.s32.totalorder %s65, %s67
    %p71 = scmp.eq.s32.totalorder %s10, 0
    %p72 = por %p70, %p71
    %p73 = scmp.ne.s32.totalorder %s65, %s67
    %p74 = scmp.eq.s32.totalorder %s15, 1
    %p75 = por %p73, %p74
    %p76 = scmp.ne.s32.totalorder %s67, %s68
    %p77 = scmp.eq.s32.totalorder %s15, 0
    %p78 = por %p76, %p77
    %p79 = scmp.ne.s32.totalorder %s67, %s68
    %p80 = scmp.eq.s32.totalorder %s16, 1
    %p81 = por %p79, %p80
    %p83 = scmp.ne.s32.totalorder %s68, %s82
    %p84 = scmp.eq.s32.totalorder %s16, 0
    %p85 = por %p83, %p84
    %s87 = sadd.s32 %s86, 1
    %p90 = scmp.eq.s32.totalorder %s10, 1
    %p91 = scmp.ne.s32.totalorder %s86, %s88
    %p92 = scmp.eq.s32.totalorder %s10, 0
    %p93 = por %p91, %p92
    %p94 = scmp.ne.s32.totalorder %s86, %s88
    %p95 = scmp.eq.s32.totalorder %s15, 1
    %p96 = por %p94, %p95
    %p97 = scmp.ne.s32.totalorder %s88, %s89
    %p98 = scmp.eq.s32.totalorder %s15, 0
    %p99 = por %p97, %p98
    %p100 = scmp.ne.s32.totalorder %s88, %s89
    %p101 = scmp.eq.s32.totalorder %s16, 1
    %p102 = por %p100, %p101
    %p104 = scmp.ne.s32.totalorder %s89, %s103
    %p105 = scmp.eq.s32.totalorder %s16, 0
    %p106 = por %p104, %p105
    %s107 = ssub.s32 %s10, %s17
    %p108 = scmp.eq.s32.totalorder %s107, 0
    %s110 = sadd.s32 %s109, 1
    %s111 = scalar_select %p108, %s109, %s110
    %p114 = pneg %p108
    %p115 = scmp.eq.s32.totalorder %s10, 1
    %p116 = por %p114, %p115
    %p117 = scmp.ne.s32.totalorder %s109, %s112
    %p118 = scmp.eq.s32.totalorder %s10, 0
    %p119 = por %p117, %p118
    %p120 = scmp.ne.s32.totalorder %s109, %s112
    %p121 = scmp.eq.s32.totalorder %s15, 1
    %p122 = por %p120, %p121
    %p123 = scmp.ne.s32.totalorder %s112, %s113
    %p124 = scmp.eq.s32.totalorder %s15, 0
    %p125 = por %p123, %p124
    %p126 = scmp.ne.s32.totalorder %s112, %s113
    %p127 = scmp.eq.s32.totalorder %s16, 1
    %p128 = por %p126, %p127
    %p130 = scmp.ne.s32.totalorder %s113, %s129
    %p131 = scmp.eq.s32.totalorder %s16, 0
    %p132 = por %p130, %p131
    %p133 = scmp.le.s32.totalorder 1, %s10
    %p134 = scmp.lt.s32.totalorder %s10, 3
    %p135 = pnand %p133, %p134
    %p136 = pneg %p135
    // Predicated region
    $region9: #{_lambda_.29} parent=5 // pred_check
      _
    $region10: #{_lambda_.29} parent=5 // pred_check_branch
      %138 = sbr.rel (%p135) target = $region12
    $region11: #{_lambda_.29} parent=5 // pred_region
      %s139 = ssub.s32 %s10, 1
      // Predicated region
      $region13: #{_lambda_.29} parent=11 // pred_check
        %p140 = pneg %p57
      $region14: #{_lambda_.29} parent=11 // pred_check_branch
        %142 = sbr.rel (%p140) target = $region16
      $region15: #{_lambda_.29} parent=11 // pred_region
        _
      $region16: #{_lambda_.29} parent=11 // pred_fallthru
        _
      // Predicated region
      $region17: #{_lambda_.29} parent=11 // pred_check
        %p143 = pneg %p78
      $region18: #{_lambda_.29} parent=11 // pred_check_branch
        %145 = sbr.rel (%p143) target = $region20
      $region19: #{_lambda_.29} parent=11 // pred_region
        _
      $region20: #{_lambda_.29} parent=11 // pred_fallthru
        _
      // Predicated region
      $region21: #{_lambda_.29} parent=11 // pred_check
        %p146 = pneg %p99
      $region22: #{_lambda_.29} parent=11 // pred_check_branch
        %148 = sbr.rel (%p146) target = $region24
      $region23: #{_lambda_.29} parent=11 // pred_region
        _
      $region24: #{_lambda_.29} parent=11 // pred_fallthru
        _
    $region12: #{_lambda_.29} parent=5 // pred_fallthru
      _
    %p149 = scmp.lt.s32.totalorder %s10, 2
    // Predicated region
    $region25: #{_lambda_.29} parent=5 // pred_check
      %p150 = pneg %p149
    $region26: #{_lambda_.29} parent=5 // pred_check_branch
      %152 = sbr.rel (%p150) target = $region28
    $region27: #{_lambda_.29} parent=5 // pred_region
      // Predicated region
      $region29: #{_lambda_.29} parent=27 // pred_check
        %p153 = pneg %p30
      $region30: #{_lambda_.29} parent=27 // pred_check_branch
        %155 = sbr.rel (%p153) target = $region32
      $region31: #{_lambda_.29} parent=27 // pred_region
        %p156 = scmp.lt.s32.totalorder %s10, 1
        %s157 = scalar_select %p156, %s10, 1
        %s158 = smul.addr %s157, 5
        %s159 = smul.addr %s158, 8
        %s160 = scalar_lea.vmem %s0, %s159
      $region32: #{_lambda_.29} parent=27 // pred_fallthru
        _
    $region28: #{_lambda_.29} parent=5 // pred_fallthru
      _
    %p161 = scmp.le.s32.totalorder 1, %s10
    %p162 = scmp.lt.s32.totalorder %s10, 3
    %p163 = pnand %p161, %p162
    %p164 = pneg %p163
    // Predicated region
    $region33: #{_lambda_.29} parent=5 // pred_check
      _
    $region34: #{_lambda_.29} parent=5 // pred_check_branch
      %166 = sbr.rel (%p163) target = $region36
    $region35: #{_lambda_.29} parent=5 // pred_region
      %s167 = ssub.s32 %s10, 1
      %p168 = scmp.lt.s32.totalorder %s15, 1
      %s169 = scalar_select %p168, %s15, 1
      %s170 = smul.addr %s169, 5
      %s171 = smul.addr %s170, 8
      %s172 = scalar_lea.vmem %s0, %s171
      %p173 = pneg %p36
      %p174 = pneg %p33
      %p175 = pneg %p57
      %p176 = pneg %p54
      %p177 = pneg %p78
      %p178 = pneg %p75
      %p179 = pneg %p99
      %p180 = pneg %p96
      %p181 = pneg %p125
      %p182 = pneg %p122
      %p183 = scmp.lt.s32.totalorder %s15, 1
      %s184 = scalar_select %p183, %s15, 1
      %s185 = smul.addr %s184, 4
      %s186 = smul.addr %s185, 4
      %s187 = scalar_lea.vmem %s4, %s186
      %p188 = scmp.lt.s32.totalorder %s15, 1
      %s189 = scalar_select %p188, %s15, 1
      %s190 = smul.addr %s189, 5
      %s191 = smul.addr %s190, 8
      %s192 = scalar_lea.vmem %s0, %s191
      %p193 = scmp.lt.s32.totalorder %s15, 1
      %s194 = scalar_select %p193, %s15, 1
      %s195 = smul.addr %s194, 4
      %s196 = smul.addr %s195, 4
      %s197 = scalar_lea.vmem %s4, %s196
      %v198 = vld [vmem:[%s192] sm:$0xff]
      %v199 = vld [vmem:[%s192 + $0x8] sm:$0xff]
      %v200 = vld [vmem:[%s192 + $0x10] sm:$0xff]
      %v201 = vld [vmem:[%s192 + $0x18] sm:$0xff]
      %v202 = vld [vmem:[%s192 + $0x20] sm:$0xf]
      %v203 = vpack.c.bf16 %v199, %v198
      %v204 = vpack.c.bf16 %v200, %v200
      %v205 = vld [vmem:[%s1] sm:$0xf]
      %v206 = vld [vmem:[%s1 + $0x4] sm:$0xf]
      %v207 = vld [vmem:[%s1 + $0x8] sm:$0xf]
      %v208 = vld [vmem:[%s1 + $0xc] sm:$0xf]
      %v209 = vld [vmem:[%s1 + $0x10] sm:$0xf]
      %v210 = vld [vmem:[%s1 + $0x14] sm:$0xf]
      %v211 = vld [vmem:[%s1 + $0x18] sm:$0xf]
      %v212 = vld [vmem:[%s1 + $0x1c] sm:$0xf]
      %v213 = vld [vmem:[%s1 + $0x20] sm:$0xf]
      %v214 = vld [vmem:[%s1 + $0x24] sm:$0xf]
      %v215 = vld [vmem:[%s1 + $0x28] sm:$0xf]
      %v216 = vld [vmem:[%s1 + $0x2c] sm:$0xf]
      %v217 = vld [vmem:[%s1 + $0x30] sm:$0xf]
      %v218 = vld [vmem:[%s1 + $0x34] sm:$0xf]
      %v219 = vld [vmem:[%s1 + $0x38] sm:$0xf]
      %v220 = vld [vmem:[%s1 + $0x3c] sm:$0xf]
      %s221 = scalar_lea.vmem %s1, 64
      %v222 = vld [vmem:[%s221] sm:$0xf]
      %v223 = vld [vmem:[%s221 + $0x4] sm:$0xf]
      %v224 = vld [vmem:[%s221 + $0x8] sm:$0xf]
      %v225 = vld [vmem:[%s221 + $0xc] sm:$0xf]
      %v226 = vld [vmem:[%s221 + $0x10] sm:$0xf]
      %v227 = vld [vmem:[%s221 + $0x14] sm:$0xf]
      %v228 = vld [vmem:[%s221 + $0x18] sm:$0xf]
      %v229 = vld [vmem:[%s221 + $0x1c] sm:$0xf]
      %v230 = vld [vmem:[%s221 + $0x20] sm:$0xf]
      %v231 = vld [vmem:[%s221 + $0x24] sm:$0xf]
      %v232 = vld [vmem:[%s221 + $0x28] sm:$0xf]
      %v233 = vld [vmem:[%s221 + $0x2c] sm:$0xf]
      %v234 = vld [vmem:[%s221 + $0x30] sm:$0xf]
      %v235 = vld [vmem:[%s221 + $0x34] sm:$0xf]
      %v236 = vld [vmem:[%s221 + $0x38] sm:$0xf]
      %v237 = vld [vmem:[%s221 + $0x3c] sm:$0xf]
      %vm238 = vsmask.f32 7424
      %v240 = vshrl.u32 %v203, 16
      %v242 = vshll.u32 %v203, 16
      %v244 = vrot.slane %v242, 1
      %v245 = vor.u32 %v240, %v244
      %v247 = vshll.u32 %v204, 16
      %v249 = vrot.slane %v247, 1
      %v250 = vsel %vm238, %v245, %v249
      %v251 = vshrl.u32 %v204, 16
      %v253 = vor.u32 %v251, %v249
      %v272 = vunpack.c.l.b16 %v222
      %v273 = vunpack.c.l.b16 %v223
      %v274 = vunpack.c.l.b16 %v224
      %v275 = vunpack.c.l.b16 %v225
      %v276 = vunpack.c.l.b16 %v226
      %v277 = vunpack.c.l.b16 %v227
      %v278 = vunpack.c.l.b16 %v228
      %v279 = vunpack.c.l.b16 %v229
      %v280 = vunpack.c.l.b16 %v230
      %v281 = vunpack.c.l.b16 %v231
      %v282 = vunpack.c.l.b16 %v232
      %v283 = vunpack.c.l.b16 %v233
      %v284 = vunpack.c.l.b16 %v234
      %v285 = vunpack.c.l.b16 %v235
      %v286 = vunpack.c.l.b16 %v236
      %v287 = vunpack.c.l.b16 %v237
      %v288 = vpack.c.b16 %v273, %v272
      %v289 = vpack.c.b16 %v275, %v274
      %v290 = vpack.c.b16 %v277, %v276
      %v291 = vpack.c.b16 %v279, %v278
      %v292 = vpack.c.b16 %v281, %v280
      %v293 = vpack.c.b16 %v283, %v282
      %v294 = vpack.c.b16 %v285, %v284
      %v295 = vpack.c.b16 %v287, %v286
      %304 = vmatpush.bf16.msra.mxu0 %v295
      %305 = vmatpush.bf16.msra.mxu0 %v294
      %306 = vmatpush.bf16.msra.mxu0 %v293
      %307 = vmatpush.bf16.msra.mxu0 %v292
      %308 = vmatpush.bf16.msra.mxu0 %v291
      %309 = vmatpush.bf16.msra.mxu0 %v290
      %310 = vmatpush.bf16.msra.mxu0 %v289
      %311 = vmatpush.bf16.msra.mxu0 %v288
      %312 = vmatmul.bf16.gmra.mxu0 %v250
      %v313 = vpop.f32.mrf.mxu0
      %v314 = vadd.f32 0.0, %v313
      %v315 = vpop.f32.mrf.mxu0
      %v316 = vadd.f32 0.0, %v315
      %317 = vmatmul.bf16.gmra.mxu0 %v253
      %v318 = vpop.f32.mrf.mxu0
      %v319 = vadd.f32 0.0, %v318
      %v320 = vpop.f32.mrf.mxu0
      %321 = vdwg.mxu0
      %v338 = vunpack.c.l.b16 %v205
      %v339 = vunpack.c.l.b16 %v206
      %v340 = vunpack.c.l.b16 %v207
      %v341 = vunpack.c.l.b16 %v208
      %v342 = vunpack.c.l.b16 %v209
      %v343 = vunpack.c.l.b16 %v210
      %v344 = vunpack.c.l.b16 %v211
      %v345 = vunpack.c.l.b16 %v212
      %v346 = vunpack.c.l.b16 %v213
      %v347 = vunpack.c.l.b16 %v214
      %v348 = vunpack.c.l.b16 %v215
      %v349 = vunpack.c.l.b16 %v216
      %v350 = vunpack.c.l.b16 %v217
      %v351 = vunpack.c.l.b16 %v218
      %v352 = vunpack.c.l.b16 %v219
      %v353 = vunpack.c.l.b16 %v220
      %v354 = vpack.c.b16 %v339, %v338
      %v355 = vpack.c.b16 %v341, %v340
      %v356 = vpack.c.b16 %v343, %v342
      %v357 = vpack.c.b16 %v345, %v344
      %v358 = vpack.c.b16 %v347, %v346
      %v359 = vpack.c.b16 %v349, %v348
      %v360 = vpack.c.b16 %v351, %v350
      %v361 = vpack.c.b16 %v353, %v352
      %370 = vmatpush.bf16.msra.mxu0 %v361
      %371 = vmatpush.bf16.msra.mxu0 %v360
      %372 = vmatpush.bf16.msra.mxu0 %v359
      %373 = vmatpush.bf16.msra.mxu0 %v358
      %374 = vmatpush.bf16.msra.mxu0 %v357
      %375 = vmatpush.bf16.msra.mxu0 %v356
      %376 = vmatpush.bf16.msra.mxu0 %v355
      %377 = vmatpush.bf16.msra.mxu0 %v354
      %378 = vmatmul.bf16.gmra.mxu0 %v203
      %v379 = vpop.f32.mrf.mxu0
      %v380 = vadd.f32 %v314, %v379
      %v381 = vpop.f32.mrf.mxu0
      %v382 = vadd.f32 %v316, %v381
      %383 = vmatmul.bf16.gmra.mxu0 %v204
      %v384 = vpop.f32.mrf.mxu0
      %v385 = vadd.f32 %v319, %v384
      %v386 = vpop.f32.mrf.mxu0
      %387 = vdwg.mxu0
      %s388 = scalar_lea.vmem %s1, 128
      %v389 = vld [vmem:[%s388] sm:$0xf]
      %v390 = vld [vmem:[%s388 + $0x4] sm:$0xf]
      %v391 = vld [vmem:[%s388 + $0x8] sm:$0xf]
      %v392 = vld [vmem:[%s388 + $0xc] sm:$0xf]
      %v393 = vld [vmem:[%s388 + $0x10] sm:$0xf]
      %v394 = vld [vmem:[%s388 + $0x14] sm:$0xf]
      %v395 = vld [vmem:[%s388 + $0x18] sm:$0xf]
      %v396 = vld [vmem:[%s388 + $0x1c] sm:$0xf]
      %v397 = vld [vmem:[%s388 + $0x20] sm:$0xf]
      %v398 = vld [vmem:[%s388 + $0x24] sm:$0xf]
      %v399 = vld [vmem:[%s388 + $0x28] sm:$0xf]
      %v400 = vld [vmem:[%s388 + $0x2c] sm:$0xf]
      %v401 = vld [vmem:[%s388 + $0x30] sm:$0xf]
      %v402 = vld [vmem:[%s388 + $0x34] sm:$0xf]
      %v403 = vld [vmem:[%s388 + $0x38] sm:$0xf]
      %v404 = vld [vmem:[%s388 + $0x3c] sm:$0xf]
      %vm407 = vcmask 1046528
      %v408 = vrot.slane %v203, 1
      %v409 = vrot.slane %v204, 1
      %v410 = vsel %vm407, %v408, %v409
      %v429 = vunpack.c.l.b16 %v389
      %v430 = vunpack.c.l.b16 %v390
      %v431 = vunpack.c.l.b16 %v391
      %v432 = vunpack.c.l.b16 %v392
      %v433 = vunpack.c.l.b16 %v393
      %v434 = vunpack.c.l.b16 %v394
      %v435 = vunpack.c.l.b16 %v395
      %v436 = vunpack.c.l.b16 %v396
      %v437 = vunpack.c.l.b16 %v397
      %v438 = vunpack.c.l.b16 %v398
      %v439 = vunpack.c.l.b16 %v399
      %v440 = vunpack.c.l.b16 %v400
      %v441 = vunpack.c.l.b16 %v401
      %v442 = vunpack.c.l.b16 %v402
      %v443 = vunpack.c.l.b16 %v403
      %v444 = vunpack.c.l.b16 %v404
      %v445 = vpack.c.b16 %v430, %v429
      %v446 = vpack.c.b16 %v432, %v431
      %v447 = vpack.c.b16 %v434, %v433
      %v448 = vpack.c.b16 %v436, %v435
      %v449 = vpack.c.b16 %v438, %v437
      %v450 = vpack.c.b16 %v440, %v439
      %v451 = vpack.c.b16 %v442, %v441
      %v452 = vpack.c.b16 %v444, %v443
      %461 = vmatpush.bf16.msra.mxu0 %v452
      %462 = vmatpush.bf16.msra.mxu0 %v451
      %463 = vmatpush.bf16.msra.mxu0 %v450
      %464 = vmatpush.bf16.msra.mxu0 %v449
      %465 = vmatpush.bf16.msra.mxu0 %v448
      %466 = vmatpush.bf16.msra.mxu0 %v447
      %467 = vmatpush.bf16.msra.mxu0 %v446
      %468 = vmatpush.bf16.msra.mxu0 %v445
      %469 = vmatmul.bf16.gmra.mxu0 %v410
      %v470 = vpop.f32.mrf.mxu0
      %v471 = vadd.f32 0.0, %v470
      %v472 = vpop.f32.mrf.mxu0
      %v473 = vadd.f32 0.0, %v472
      %474 = vmatmul.bf16.gmra.mxu0 %v409
      %v475 = vpop.f32.mrf.mxu0
      %v476 = vadd.f32 0.0, %v475
      %v477 = vpop.f32.mrf.mxu0
      %478 = vdwg.mxu0
      %v479 = vadd.f32 %v380, %v471
      %v480 = vadd.f32 %v382, %v473
      %v481 = vadd.f32 %v385, %v476
      %v482 = vpack.c.bf16 %v201, %v200
      %s483 = scalar_lea.vmem %s1, 192
      %v484 = vld [vmem:[%s483] sm:$0xf]
      %v485 = vld [vmem:[%s483 + $0x4] sm:$0xf]
      %v486 = vld [vmem:[%s483 + $0x8] sm:$0xf]
      %v487 = vld [vmem:[%s483 + $0xc] sm:$0xf]
      %v488 = vld [vmem:[%s483 + $0x10] sm:$0xf]
      %v489 = vld [vmem:[%s483 + $0x14] sm:$0xf]
      %v490 = vld [vmem:[%s483 + $0x18] sm:$0xf]
      %v491 = vld [vmem:[%s483 + $0x1c] sm:$0xf]
      %v492 = vld [vmem:[%s483 + $0x20] sm:$0xf]
      %v493 = vld [vmem:[%s483 + $0x24] sm:$0xf]
      %v494 = vld [vmem:[%s483 + $0x28] sm:$0xf]
      %v495 = vld [vmem:[%s483 + $0x2c] sm:$0xf]
      %v496 = vld [vmem:[%s483 + $0x30] sm:$0xf]
      %v497 = vld [vmem:[%s483 + $0x34] sm:$0xf]
      %v498 = vld [vmem:[%s483 + $0x38] sm:$0xf]
      %v499 = vld [vmem:[%s483 + $0x3c] sm:$0xf]
      %vm501 = vcmask 1044480
      %v502 = vrot.slane %v203, 3
      %v503 = vrot.slane %v482, 3
      %v504 = vsel %vm501, %v502, %v503
      %v523 = vunpack.c.l.b16 %v484
      %v524 = vunpack.c.l.b16 %v485
      %v525 = vunpack.c.l.b16 %v486
      %v526 = vunpack.c.l.b16 %v487
      %v527 = vunpack.c.l.b16 %v488
      %v528 = vunpack.c.l.b16 %v489
      %v529 = vunpack.c.l.b16 %v490
      %v530 = vunpack.c.l.b16 %v491
      %v531 = vunpack.c.l.b16 %v492
      %v532 = vunpack.c.l.b16 %v493
      %v533 = vunpack.c.l.b16 %v494
      %v534 = vunpack.c.l.b16 %v495
      %v535 = vunpack.c.l.b16 %v496
      %v536 = vunpack.c.l.b16 %v497
      %v537 = vunpack.c.l.b16 %v498
      %v538 = vunpack.c.l.b16 %v499
      %v539 = vpack.c.b16 %v524, %v523
      %v540 = vpack.c.b16 %v526, %v525
      %v541 = vpack.c.b16 %v528, %v527
      %v542 = vpack.c.b16 %v530, %v529
      %v543 = vpack.c.b16 %v532, %v531
      %v544 = vpack.c.b16 %v534, %v533
      %v545 = vpack.c.b16 %v536, %v535
      %v546 = vpack.c.b16 %v538, %v537
      %555 = vmatpush.bf16.msra.mxu0 %v546
      %556 = vmatpush.bf16.msra.mxu0 %v545
      %557 = vmatpush.bf16.msra.mxu0 %v544
      %558 = vmatpush.bf16.msra.mxu0 %v543
      %559 = vmatpush.bf16.msra.mxu0 %v542
      %560 = vmatpush.bf16.msra.mxu0 %v541
      %561 = vmatpush.bf16.msra.mxu0 %v540
      %562 = vmatpush.bf16.msra.mxu0 %v539
      %563 = vmatmul.bf16.gmra.mxu0 %v504
      %v564 = vpop.f32.mrf.mxu0
      %v565 = vadd.f32 0.0, %v564
      %v566 = vpop.f32.mrf.mxu0
      %v567 = vadd.f32 0.0, %v566
      %568 = vmatmul.bf16.gmra.mxu0 %v503
      %v569 = vpop.f32.mrf.mxu0
      %v570 = vadd.f32 0.0, %v569
      %v571 = vpop.f32.mrf.mxu0
      %572 = vdwg.mxu0
      %v573 = vadd.f32 %v479, %v565
      %v574 = vadd.f32 %v480, %v567
      %v575 = vadd.f32 %v481, %v570
      %s576 = scalar_lea.vmem %s1, 256
      %v577 = vld [vmem:[%s576] sm:$0xf]
      %v578 = vld [vmem:[%s576 + $0x4] sm:$0xf]
      %v579 = vld [vmem:[%s576 + $0x8] sm:$0xf]
      %v580 = vld [vmem:[%s576 + $0xc] sm:$0xf]
      %v581 = vld [vmem:[%s576 + $0x10] sm:$0xf]
      %v582 = vld [vmem:[%s576 + $0x14] sm:$0xf]
      %v583 = vld [vmem:[%s576 + $0x18] sm:$0xf]
      %v584 = vld [vmem:[%s576 + $0x1c] sm:$0xf]
      %v585 = vld [vmem:[%s576 + $0x20] sm:$0xf]
      %v586 = vld [vmem:[%s576 + $0x24] sm:$0xf]
      %v587 = vld [vmem:[%s576 + $0x28] sm:$0xf]
      %v588 = vld [vmem:[%s576 + $0x2c] sm:$0xf]
      %v589 = vld [vmem:[%s576 + $0x30] sm:$0xf]
      %v590 = vld [vmem:[%s576 + $0x34] sm:$0xf]
      %v591 = vld [vmem:[%s576 + $0x38] sm:$0xf]
      %v592 = vld [vmem:[%s576 + $0x3c] sm:$0xf]
      %vm593 = vsmask.f32 4352
      %v594 = vrot.slane %v240, 3
      %v595 = vrot.slane %v242, 4
      %v596 = vor.u32 %v594, %v595
      %v598 = vshrl.u32 %v482, 16
      %v600 = vrot.slane %v598, 3
      %v601 = vshll.u32 %v482, 16
      %v603 = vrot.slane %v601, 4
      %v604 = vor.u32 %v600, %v603
      %v605 = vsel %vm593, %v596, %v604
      %v624 = vunpack.c.l.b16 %v577
      %v625 = vunpack.c.l.b16 %v578
      %v626 = vunpack.c.l.b16 %v579
      %v627 = vunpack.c.l.b16 %v580
      %v628 = vunpack.c.l.b16 %v581
      %v629 = vunpack.c.l.b16 %v582
      %v630 = vunpack.c.l.b16 %v583
      %v631 = vunpack.c.l.b16 %v584
      %v632 = vunpack.c.l.b16 %v585
      %v633 = vunpack.c.l.b16 %v586
      %v634 = vunpack.c.l.b16 %v587
      %v635 = vunpack.c.l.b16 %v588
      %v636 = vunpack.c.l.b16 %v589
      %v637 = vunpack.c.l.b16 %v590
      %v638 = vunpack.c.l.b16 %v591
      %v639 = vunpack.c.l.b16 %v592
      %v640 = vpack.c.b16 %v625, %v624
      %v641 = vpack.c.b16 %v627, %v626
      %v642 = vpack.c.b16 %v629, %v628
      %v643 = vpack.c.b16 %v631, %v630
      %v644 = vpack.c.b16 %v633, %v632
      %v645 = vpack.c.b16 %v635, %v634
      %v646 = vpack.c.b16 %v637, %v636
      %v647 = vpack.c.b16 %v639, %v638
      %656 = vmatpush.bf16.msra.mxu0 %v647
      %657 = vmatpush.bf16.msra.mxu0 %v646
      %658 = vmatpush.bf16.msra.mxu0 %v645
      %659 = vmatpush.bf16.msra.mxu0 %v644
      %660 = vmatpush.bf16.msra.mxu0 %v643
      %661 = vmatpush.bf16.msra.mxu0 %v642
      %662 = vmatpush.bf16.msra.mxu0 %v641
      %663 = vmatpush.bf16.msra.mxu0 %v640
      %664 = vmatmul.bf16.gmra.mxu0 %v605
      %v665 = vpop.f32.mrf.mxu0
      %v666 = vadd.f32 0.0, %v665
      %v667 = vpop.f32.mrf.mxu0
      %v668 = vadd.f32 0.0, %v667
      %669 = vmatmul.bf16.gmra.mxu0 %v604
      %v670 = vpop.f32.mrf.mxu0
      %v671 = vadd.f32 0.0, %v670
      %v672 = vpop.f32.mrf.mxu0
      %673 = vdwg.mxu0
      %v674 = vadd.f32 %v573, %v666
      %v675 = vadd.f32 %v574, %v668
      %v676 = vadd.f32 %v575, %v671
      %v677 = vpack.c.bf16 %v200, %v199
      %v678 = vpack.c.bf16 %v201, %v201
      %s679 = scalar_lea.vmem %s1, 320
      %v680 = vld [vmem:[%s679] sm:$0xf]
      %v681 = vld [vmem:[%s679 + $0x4] sm:$0xf]
      %v682 = vld [vmem:[%s679 + $0x8] sm:$0xf]
      %v683 = vld [vmem:[%s679 + $0xc] sm:$0xf]
      %v684 = vld [vmem:[%s679 + $0x10] sm:$0xf]
      %v685 = vld [vmem:[%s679 + $0x14] sm:$0xf]
      %v686 = vld [vmem:[%s679 + $0x18] sm:$0xf]
      %v687 = vld [vmem:[%s679 + $0x1c] sm:$0xf]
      %v688 = vld [vmem:[%s679 + $0x20] sm:$0xf]
      %v689 = vld [vmem:[%s679 + $0x24] sm:$0xf]
      %v690 = vld [vmem:[%s679 + $0x28] sm:$0xf]
      %v691 = vld [vmem:[%s679 + $0x2c] sm:$0xf]
      %v692 = vld [vmem:[%s679 + $0x30] sm:$0xf]
      %v693 = vld [vmem:[%s679 + $0x34] sm:$0xf]
      %v694 = vld [vmem:[%s679 + $0x38] sm:$0xf]
      %v695 = vld [vmem:[%s679 + $0x3c] sm:$0xf]
      %v712 = vunpack.c.l.b16 %v680
      %v713 = vunpack.c.l.b16 %v681
      %v714 = vunpack.c.l.b16 %v682
      %v715 = vunpack.c.l.b16 %v683
      %v716 = vunpack.c.l.b16 %v684
      %v717 = vunpack.c.l.b16 %v685
      %v718 = vunpack.c.l.b16 %v686
      %v719 = vunpack.c.l.b16 %v687
      %v720 = vunpack.c.l.b16 %v688
      %v721 = vunpack.c.l.b16 %v689
      %v722 = vunpack.c.l.b16 %v690
      %v723 = vunpack.c.l.b16 %v691
      %v724 = vunpack.c.l.b16 %v692
      %v725 = vunpack.c.l.b16 %v693
      %v726 = vunpack.c.l.b16 %v694
      %v727 = vunpack.c.l.b16 %v695
      %v728 = vpack.c.b16 %v713, %v712
      %v729 = vpack.c.b16 %v715, %v714
      %v730 = vpack.c.b16 %v717, %v716
      %v731 = vpack.c.b16 %v719, %v718
      %v732 = vpack.c.b16 %v721, %v720
      %v733 = vpack.c.b16 %v723, %v722
      %v734 = vpack.c.b16 %v725, %v724
      %v735 = vpack.c.b16 %v727, %v726
      %744 = vmatpush.bf16.msra.mxu0 %v735
      %745 = vmatpush.bf16.msra.mxu0 %v734
      %746 = vmatpush.bf16.msra.mxu0 %v733
      %747 = vmatpush.bf16.msra.mxu0 %v732
      %748 = vmatpush.bf16.msra.mxu0 %v731
      %749 = vmatpush.bf16.msra.mxu0 %v730
      %750 = vmatpush.bf16.msra.mxu0 %v729
      %751 = vmatpush.bf16.msra.mxu0 %v728
      %752 = vmatmul.bf16.gmra.mxu0 %v677
      %v753 = vpop.f32.mrf.mxu0
      %v754 = vadd.f32 0.0, %v753
      %v755 = vpop.f32.mrf.mxu0
      %v756 = vadd.f32 0.0, %v755
      %757 = vmatmul.bf16.gmra.mxu0 %v678
      %v758 = vpop.f32.mrf.mxu0
      %v759 = vadd.f32 0.0, %v758
      %v760 = vpop.f32.mrf.mxu0
      %761 = vdwg.mxu0
      %v762 = vadd.f32 %v674, %v754
      %v763 = vadd.f32 %v675, %v756
      %v764 = vadd.f32 %v676, %v759
      %v765 = vpack.c.bf16 %v202, %v201
      %s766 = scalar_lea.vmem %s1, 384
      %v767 = vld [vmem:[%s766] sm:$0xf]
      %v768 = vld [vmem:[%s766 + $0x4] sm:$0xf]
      %v769 = vld [vmem:[%s766 + $0x8] sm:$0xf]
      %v770 = vld [vmem:[%s766 + $0xc] sm:$0xf]
      %v771 = vld [vmem:[%s766 + $0x10] sm:$0xf]
      %v772 = vld [vmem:[%s766 + $0x14] sm:$0xf]
      %v773 = vld [vmem:[%s766 + $0x18] sm:$0xf]
      %v774 = vld [vmem:[%s766 + $0x1c] sm:$0xf]
      %v775 = vld [vmem:[%s766 + $0x20] sm:$0xf]
      %v776 = vld [vmem:[%s766 + $0x24] sm:$0xf]
      %v777 = vld [vmem:[%s766 + $0x28] sm:$0xf]
      %v778 = vld [vmem:[%s766 + $0x2c] sm:$0xf]
      %v779 = vld [vmem:[%s766 + $0x30] sm:$0xf]
      %v780 = vld [vmem:[%s766 + $0x34] sm:$0xf]
      %v781 = vld [vmem:[%s766 + $0x38] sm:$0xf]
      %v782 = vld [vmem:[%s766 + $0x3c] sm:$0xf]
      %vm785 = vcmask 1045504
      %v786 = vrot.slane %v677, 2
      %v787 = vrot.slane %v765, 2
      %v788 = vsel %vm785, %v786, %v787
      %v807 = vunpack.c.l.b16 %v767
      %v808 = vunpack.c.l.b16 %v768
      %v809 = vunpack.c.l.b16 %v769
      %v810 = vunpack.c.l.b16 %v770
      %v811 = vunpack.c.l.b16 %v771
      %v812 = vunpack.c.l.b16 %v772
      %v813 = vunpack.c.l.b16 %v773
      %v814 = vunpack.c.l.b16 %v774
      %v815 = vunpack.c.l.b16 %v775
      %v816 = vunpack.c.l.b16 %v776
      %v817 = vunpack.c.l.b16 %v777
      %v818 = vunpack.c.l.b16 %v778
      %v819 = vunpack.c.l.b16 %v779
      %v820 = vunpack.c.l.b16 %v780
      %v821 = vunpack.c.l.b16 %v781
      %v822 = vunpack.c.l.b16 %v782
      %v823 = vpack.c.b16 %v808, %v807
      %v824 = vpack.c.b16 %v810, %v809
      %v825 = vpack.c.b16 %v812, %v811
      %v826 = vpack.c.b16 %v814, %v813
      %v827 = vpack.c.b16 %v816, %v815
      %v828 = vpack.c.b16 %v818, %v817
      %v829 = vpack.c.b16 %v820, %v819
      %v830 = vpack.c.b16 %v822, %v821
      %839 = vmatpush.bf16.msra.mxu0 %v830
      %840 = vmatpush.bf16.msra.mxu0 %v829
      %841 = vmatpush.bf16.msra.mxu0 %v828
      %842 = vmatpush.bf16.msra.mxu0 %v827
      %843 = vmatpush.bf16.msra.mxu0 %v826
      %844 = vmatpush.bf16.msra.mxu0 %v825
      %845 = vmatpush.bf16.msra.mxu0 %v824
      %846 = vmatpush.bf16.msra.mxu0 %v823
      %847 = vmatmul.bf16.gmra.mxu0 %v788
      %v848 = vpop.f32.mrf.mxu0
      %v849 = vadd.f32 0.0, %v848
      %v850 = vpop.f32.mrf.mxu0
      %v851 = vadd.f32 0.0, %v850
      %852 = vmatmul.bf16.gmra.mxu0 %v787
      %v853 = vpop.f32.mrf.mxu0
      %v854 = vadd.f32 0.0, %v853
      %v855 = vpop.f32.mrf.mxu0
      %856 = vdwg.mxu0
      %v857 = vadd.f32 %v762, %v849
      %v858 = vadd.f32 %v763, %v851
      %v859 = vadd.f32 %v764, %v854
      %s860 = scalar_lea.vmem %s1, 448
      %v861 = vld [vmem:[%s860] sm:$0xf]
      %v862 = vld [vmem:[%s860 + $0x4] sm:$0xf]
      %v863 = vld [vmem:[%s860 + $0x8] sm:$0xf]
      %v864 = vld [vmem:[%s860 + $0xc] sm:$0xf]
      %v865 = vld [vmem:[%s860 + $0x10] sm:$0xf]
      %v866 = vld [vmem:[%s860 + $0x14] sm:$0xf]
      %v867 = vld [vmem:[%s860 + $0x18] sm:$0xf]
      %v868 = vld [vmem:[%s860 + $0x1c] sm:$0xf]
      %v869 = vld [vmem:[%s860 + $0x20] sm:$0xf]
      %v870 = vld [vmem:[%s860 + $0x24] sm:$0xf]
      %v871 = vld [vmem:[%s860 + $0x28] sm:$0xf]
      %v872 = vld [vmem:[%s860 + $0x2c] sm:$0xf]
      %v873 = vld [vmem:[%s860 + $0x30] sm:$0xf]
      %v874 = vld [vmem:[%s860 + $0x34] sm:$0xf]
      %v875 = vld [vmem:[%s860 + $0x38] sm:$0xf]
      %v876 = vld [vmem:[%s860 + $0x3c] sm:$0xf]
      %vm877 = vsmask.f32 5376
      %v879 = vshrl.u32 %v677, 16
      %v881 = vrot.slane %v879, 2
      %v882 = vshll.u32 %v677, 16
      %v884 = vrot.slane %v882, 3
      %v885 = vor.u32 %v881, %v884
      %v887 = vshrl.u32 %v765, 16
      %v889 = vrot.slane %v887, 2
      %v890 = vshll.u32 %v765, 16
      %v892 = vrot.slane %v890, 3
      %v893 = vor.u32 %v889, %v892
      %v894 = vsel %vm877, %v885, %v893
      %v913 = vunpack.c.l.b16 %v861
      %v914 = vunpack.c.l.b16 %v862
      %v915 = vunpack.c.l.b16 %v863
      %v916 = vunpack.c.l.b16 %v864
      %v917 = vunpack.c.l.b16 %v865
      %v918 = vunpack.c.l.b16 %v866
      %v919 = vunpack.c.l.b16 %v867
      %v920 = vunpack.c.l.b16 %v868
      %v921 = vunpack.c.l.b16 %v869
      %v922 = vunpack.c.l.b16 %v870
      %v923 = vunpack.c.l.b16 %v871
      %v924 = vunpack.c.l.b16 %v872
      %v925 = vunpack.c.l.b16 %v873
      %v926 = vunpack.c.l.b16 %v874
      %v927 = vunpack.c.l.b16 %v875
      %v928 = vunpack.c.l.b16 %v876
      %v929 = vpack.c.b16 %v914, %v913
      %v930 = vpack.c.b16 %v916, %v915
      %v931 = vpack.c.b16 %v918, %v917
      %v932 = vpack.c.b16 %v920, %v919
      %v933 = vpack.c.b16 %v922, %v921
      %v934 = vpack.c.b16 %v924, %v923
      %v935 = vpack.c.b16 %v926, %v925
      %v936 = vpack.c.b16 %v928, %v927
      %945 = vmatpush.bf16.msra.mxu0 %v936
      %946 = vmatpush.bf16.msra.mxu0 %v935
      %947 = vmatpush.bf16.msra.mxu0 %v934
      %948 = vmatpush.bf16.msra.mxu0 %v933
      %949 = vmatpush.bf16.msra.mxu0 %v932
      %950 = vmatpush.bf16.msra.mxu0 %v931
      %951 = vmatpush.bf16.msra.mxu0 %v930
      %952 = vmatpush.bf16.msra.mxu0 %v929
      %953 = vmatmul.bf16.gmra.mxu0 %v894
      %v954 = vpop.f32.mrf.mxu0
      %v955 = vadd.f32 0.0, %v954
      %v956 = vpop.f32.mrf.mxu0
      %v957 = vadd.f32 0.0, %v956
      %958 = vmatmul.bf16.gmra.mxu0 %v893
      %v959 = vpop.f32.mrf.mxu0
      %v960 = vadd.f32 0.0, %v959
      %v961 = vpop.f32.mrf.mxu0
      %962 = vdwg.mxu0
      %v963 = vadd.f32 %v857, %v955
      %v964 = vadd.f32 %v858, %v957
      %v965 = vadd.f32 %v859, %v960
      %s966 = scalar_lea.vmem %s1, 512
      %v967 = vld [vmem:[%s966] sm:$0xf]
      %v968 = vld [vmem:[%s966 + $0x4] sm:$0xf]
      %v969 = vld [vmem:[%s966 + $0x8] sm:$0xf]
      %v970 = vld [vmem:[%s966 + $0xc] sm:$0xf]
      %v971 = vld [vmem:[%s966 + $0x10] sm:$0xf]
      %v972 = vld [vmem:[%s966 + $0x14] sm:$0xf]
      %v973 = vld [vmem:[%s966 + $0x18] sm:$0xf]
      %v974 = vld [vmem:[%s966 + $0x1c] sm:$0xf]
      %v975 = vld [vmem:[%s966 + $0x20] sm:$0xf]
      %v976 = vld [vmem:[%s966 + $0x24] sm:$0xf]
      %v977 = vld [vmem:[%s966 + $0x28] sm:$0xf]
      %v978 = vld [vmem:[%s966 + $0x2c] sm:$0xf]
      %v979 = vld [vmem:[%s966 + $0x30] sm:$0xf]
      %v980 = vld [vmem:[%s966 + $0x34] sm:$0xf]
      %v981 = vld [vmem:[%s966 + $0x38] sm:$0xf]
      %v982 = vld [vmem:[%s966 + $0x3c] sm:$0xf]
      %v983 = vrot.slane %v677, 3
      %v984 = vrot.slane %v765, 3
      %v985 = vsel %vm501, %v983, %v984
      %v1004 = vunpack.c.l.b16 %v967
      %v1005 = vunpack.c.l.b16 %v968
      %v1006 = vunpack.c.l.b16 %v969
      %v1007 = vunpack.c.l.b16 %v970
      %v1008 = vunpack.c.l.b16 %v971
      %v1009 = vunpack.c.l.b16 %v972
      %v1010 = vunpack.c.l.b16 %v973
      %v1011 = vunpack.c.l.b16 %v974
      %v1012 = vunpack.c.l.b16 %v975
      %v1013 = vunpack.c.l.b16 %v976
      %v1014 = vunpack.c.l.b16 %v977
      %v1015 = vunpack.c.l.b16 %v978
      %v1016 = vunpack.c.l.b16 %v979
      %v1017 = vunpack.c.l.b16 %v980
      %v1018 = vunpack.c.l.b16 %v981
      %v1019 = vunpack.c.l.b16 %v982
      %v1020 = vpack.c.b16 %v1005, %v1004
      %v1021 = vpack.c.b16 %v1007, %v1006
      %v1022 = vpack.c.b16 %v1009, %v1008
      %v1023 = vpack.c.b16 %v1011, %v1010
      %v1024 = vpack.c.b16 %v1013, %v1012
      %v1025 = vpack.c.b16 %v1015, %v1014
      %v1026 = vpack.c.b16 %v1017, %v1016
      %v1027 = vpack.c.b16 %v1019, %v1018
      %1036 = vmatpush.bf16.msra.mxu0 %v1027
      %1037 = vmatpush.bf16.msra.mxu0 %v1026
      %1038 = vmatpush.bf16.msra.mxu0 %v1025
      %1039 = vmatpush.bf16.msra.mxu0 %v1024
      %1040 = vmatpush.bf16.msra.mxu0 %v1023
      %1041 = vmatpush.bf16.msra.mxu0 %v1022
      %1042 = vmatpush.bf16.msra.mxu0 %v1021
      %1043 = vmatpush.bf16.msra.mxu0 %v1020
      %1044 = vmatmul.bf16.gmra.mxu0 %v985
      %v1045 = vpop.f32.mrf.mxu0
      %v1046 = vadd.f32 0.0, %v1045
      %v1047 = vpop.f32.mrf.mxu0
      %v1048 = vadd.f32 0.0, %v1047
      %1049 = vmatmul.bf16.gmra.mxu0 %v984
      %v1050 = vpop.f32.mrf.mxu0
      %v1051 = vadd.f32 0.0, %v1050
      %v1052 = vpop.f32.mrf.mxu0
      %1053 = vdwg.mxu0
      %v1054 = vadd.f32 %v963, %v1046
      %v1055 = vadd.f32 %v964, %v1048
      %v1056 = vadd.f32 %v965, %v1051
      %v1057 = vld [vmem:[%s2] sm:$0x1]
      %v1058 = vld [vmem:[%s3] sm:$0x1]
      %vm1059 = vcmask 1043456
      %v1060 = vsel %vm1059, %v1054, 0.0
      %1061 = vadd.xlane.f32.xlu0 %v1060
      %v1062 = vpop.xlane.xlu0 %1061
      %v1063 = vrcp.pop 128.0
      %v1064 = vmul.f32 128.0, %v1063
      %v1065 = vsub.f32 1.0, %v1064
      %v1066 = vmul.f32 %v1063, %v1065
      %v1067 = vadd.f32 %v1063, %v1066
      %vm1068 = vweird.f32 %v1063
      %v1069 = vsel %vm1068, %v1063, %v1067
      %v1070 = vmul.f32 %v1062, %v1069
      %v1071 = vsub.f32 %v1054, %v1070
      %v1072 = vmul.f32 %v1071, %v1071
      %v1073 = vsel %vm1059, %v1072, 0.0
      %1074 = vadd.xlane.f32.xlu0 %v1073
      %v1075 = vpop.xlane.xlu0 %1074
      %v1076 = vmul.f32 %v1075, %v1069
      %v1077 = vadd.f32 %v1076, 1e-06
      %v1078 = vrsqrt.pop %v1077
      %v1079 = vmul.f32 %v1078, %v1077
      %v1080 = vmul.f32 %v1079, %v1078
      %v1081 = vmul.f32 0.5, %v1080
      %v1082 = vsub.f32 1.5, %v1081
      %v1083 = vmul.f32 %v1078, %v1082
      %vm1084 = vweird.f32 %v1077
      %vm1085 = vweird.f32 %v1078
      %vm1086 = vmor %vm1084, %vm1085
      %v1087 = vsel %vm1086, %v1078, %v1083
      %v1088 = vmul.f32 %v1071, %v1087
      %v1090 = vperm.slane %v1057, 0
      %v1092 = vmul.f32 %v1088, %v1090
      %v1094 = vperm.slane %v1058, 0
      %v1096 = vadd.f32 %v1092, %v1094
      %1097 = vst [vmem:[%s197] sm:$0xf] %v1096
      %vm1098 = vcmask 1047558
      %v1099 = vsel %vm1098, %v1054, 0.0
      %1100 = vadd.xlane.f32.xlu0 %v1099
      %v1101 = vpop.xlane.xlu0 %1100
      %vm1102 = vcmask 1041408
      %v1103 = vsel %vm1102, %v1055, 0.0
      %1104 = vadd.xlane.f32.xlu0 %v1103
      %v1105 = vpop.xlane.xlu0 %1104
      %v1106 = vmul.f32 %v1101, %v1069
      %v1107 = vmul.f32 %v1105, %v1069
      %v1108 = vsub.f32 %v1054, %v1106
      %v1109 = vsub.f32 %v1055, %v1107
      %v1110 = vmul.f32 %v1108, %v1108
      %v1111 = vmul.f32 %v1109, %v1109
      %v1112 = vsel %vm1098, %v1110, 0.0
      %1113 = vadd.xlane.f32.xlu0 %v1112
      %v1114 = vpop.xlane.xlu0 %1113
      %v1115 = vsel %vm1102, %v1111, 0.0
      %1116 = vadd.xlane.f32.xlu0 %v1115
      %v1117 = vpop.xlane.xlu0 %1116
      %v1118 = vmul.f32 %v1114, %v1069
      %v1119 = vmul.f32 %v1117, %v1069
      %v1120 = vadd.f32 %v1118, 1e-06
      %v1121 = vadd.f32 %v1119, 1e-06
      %v1122 = vrsqrt.pop %v1120
      %v1123 = vmul.f32 %v1122, %v1120
      %v1124 = vmul.f32 %v1123, %v1122
      %v1125 = vmul.f32 0.5, %v1124
      %v1126 = vsub.f32 1.5, %v1125
      %v1127 = vmul.f32 %v1122, %v1126
      %vm1128 = vweird.f32 %v1120
      %vm1129 = vweird.f32 %v1122
      %vm1130 = vmor %vm1128, %vm1129
      %v1131 = vsel %vm1130, %v1122, %v1127
      %v1132 = vrsqrt.pop %v1121
      %v1133 = vmul.f32 %v1132, %v1121
      %v1134 = vmul.f32 %v1133, %v1132
      %v1135 = vmul.f32 0.5, %v1134
      %v1136 = vsub.f32 1.5, %v1135
      %v1137 = vmul.f32 %v1132, %v1136
      %vm1138 = vweird.f32 %v1121
      %vm1139 = vweird.f32 %v1132
      %vm1140 = vmor %vm1138, %vm1139
      %v1141 = vsel %vm1140, %v1132, %v1137
      %v1142 = vmul.f32 %v1108, %v1131
      %v1143 = vmul.f32 %v1109, %v1141
      %v1144 = vmul.f32 %v1142, %v1090
      %v1145 = vmul.f32 %v1143, %v1090
      %v1146 = vadd.f32 %v1144, %v1094
      %v1147 = vadd.f32 %v1145, %v1094
      %s1148 = scalar_lea.vmem %s197, 4
      %1149 = vst [vmem:[%s1148 - $0x6] sm:$0xc0] %v1146
      %1150 = vst [vmem:[%s1148 + $0x2] sm:$0x3] %v1147
      %vm1151 = vcmask 1047556
      %v1152 = vsel %vm1151, %v1055, 0.0
      %1153 = vadd.xlane.f32.xlu0 %v1152
      %v1154 = vpop.xlane.xlu0 %1153
      %v1155 = vmul.f32 %v1154, %v1069
      %v1156 = vsub.f32 %v1055, %v1155
      %v1157 = vmul.f32 %v1156, %v1156
      %v1158 = vsel %vm1151, %v1157, 0.0
      %1159 = vadd.xlane.f32.xlu0 %v1158
      %v1160 = vpop.xlane.xlu0 %1159
      %v1161 = vmul.f32 %v1160, %v1069
      %v1162 = vadd.f32 %v1161, 1e-06
      %v1163 = vrsqrt.pop %v1162
      %v1164 = vmul.f32 %v1163, %v1162
      %v1165 = vmul.f32 %v1164, %v1163
      %v1166 = vmul.f32 0.5, %v1165
      %v1167 = vsub.f32 1.5, %v1166
      %v1168 = vmul.f32 %v1163, %v1167
      %vm1169 = vweird.f32 %v1162
      %vm1170 = vweird.f32 %v1163
      %vm1171 = vmor %vm1169, %vm1170
      %v1172 = vsel %vm1171, %v1163, %v1168
      %v1173 = vmul.f32 %v1156, %v1172
      %v1174 = vmul.f32 %v1173, %v1090
      %v1175 = vadd.f32 %v1174, %v1094
      %s1176 = scalar_lea.vmem %s197, 8
      %1177 = vst [vmem:[%s1176 - $0x4] sm:$0xf0] %v1175
      %vm1178 = vcmask 1045506
      %v1179 = vsel %vm1178, %v1056, 0.0
      %1180 = vadd.xlane.f32.xlu0 %v1179
      %v1181 = vpop.xlane.xlu0 %1180
      %v1182 = vmul.f32 %v1181, %v1069
      %v1183 = vsub.f32 %v1056, %v1182
      %v1184 = vmul.f32 %v1183, %v1183
      %v1185 = vsel %vm1178, %v1184, 0.0
      %1186 = vadd.xlane.f32.xlu0 %v1185
      %v1187 = vpop.xlane.xlu0 %1186
      %v1188 = vmul.f32 %v1187, %v1069
      %v1189 = vadd.f32 %v1188, 1e-06
      %v1190 = vrsqrt.pop %v1189
      %v1191 = vmul.f32 %v1190, %v1189
      %v1192 = vmul.f32 %v1191, %v1190
      %v1193 = vmul.f32 0.5, %v1192
      %v1194 = vsub.f32 1.5, %v1193
      %v1195 = vmul.f32 %v1190, %v1194
      %vm1196 = vweird.f32 %v1189
      %vm1197 = vweird.f32 %v1190
      %vm1198 = vmor %vm1196, %vm1197
      %v1199 = vsel %vm1198, %v1190, %v1195
      %v1200 = vmul.f32 %v1183, %v1199
      %v1201 = vmul.f32 %v1200, %v1090
      %v1202 = vadd.f32 %v1201, %v1094
      %s1203 = scalar_lea.vmem %s197, 12
      %1204 = vst [vmem:[%s1203 - $0x2] sm:$0x3c] %v1202
      %p1205 = scmp.lt.s32.totalorder %s15, 1
      %s1206 = scalar_select %p1205, %s15, 1
      %s1207 = smul.addr %s1206, 4
      %s1208 = smul.addr %s1207, 4
      %s1209 = scalar_lea.vmem %s4, %s1208
      // Predicated region
      $region37: #{_lambda_.29} parent=35 // pred_check
        %p1210 = pneg %p122
      $region38: #{_lambda_.29} parent=35 // pred_check_branch
        %1212 = sbr.rel (%p1210) target = $region40
      $region39: #{_lambda_.29} parent=35 // pred_region
        _
      $region40: #{_lambda_.29} parent=35 // pred_fallthru
        _
    $region36: #{_lambda_.29} parent=5 // pred_fallthru
      _
    %p1213 = scmp.le.s32.totalorder 2, %s10
    // Predicated region
    $region41: #{_lambda_.29} parent=5 // pred_check
      %p1214 = pneg %p1213
    $region42: #{_lambda_.29} parent=5 // pred_check_branch
      %1216 = sbr.rel (%p1214) target = $region44
    $region43: #{_lambda_.29} parent=5 // pred_region
      %s1217 = ssub.s32 %s10, 2
      // Predicated region
      $region45: #{_lambda_.29} parent=43 // pred_check
        %p1218 = pneg %p128
      $region46: #{_lambda_.29} parent=43 // pred_check_branch
        %1220 = sbr.rel (%p1218) target = $region48
      $region47: #{_lambda_.29} parent=43 // pred_region
        %p1221 = scmp.lt.s32.totalorder %s16, 1
        %s1222 = scalar_select %p1221, %s16, 1
        %s1223 = smul.addr %s1222, 4
        %s1224 = smul.addr %s1223, 4
        %s1225 = scalar_lea.vmem %s4, %s1224
      $region48: #{_lambda_.29} parent=43 // pred_fallthru
        _
    $region44: #{_lambda_.29} parent=5 // pred_fallthru
      _
  $region6: #{_lambda_.29} parent=0 // loop_footer
    %s14 = sadd.s32 1, %s10
  $region7: #{_lambda_.29} parent=0 // loop_footer_branch
    %9 = sbr.rel target = $region3
  $region8: #{_lambda_.29} parent=0 // loop_exit
    _

// kernel: _lambda_.31
$region0: #{_lambda_.31}
  #allocation0 [shape = 'u32[]', space=smem, size = 0x4, offset = 0x4, fixed_abs, tag = 'smem constant byte address 0x4 - core index']
  #allocation1 [shape = 'u32[72,128]{1,0:T(1,128)}', space=vmem, size = 0x9000, scoped, tag = 'internal scratch']
  %s0 = inlined_call_operand.vmem [shape: f32[128,128], index: 0, kind: input, shape index: {}]
  %s1 = inlined_call_operand.vmem [shape: bf16[128,1024], index: 1, kind: input, shape index: {}]
  %s2 = inlined_call_operand.vmem [shape: f32[1,1024], index: 2, kind: input, shape index: {}]
  %s3 = inlined_call_operand.vmem [shape: f32[128,1024], index: 3, kind: output, shape index: {}]
  %s4 = sld [smem:[#allocation0]]
  $region45: #{_lambda_.31} parent=0
    _
  %s6 = ssub.s32 1, %s4
  %s7 = scalar_select 0, %s6, %s4
  loop: start=0, step=1, limit=6
  $region2: #{_lambda_.31} parent=0 // loop_pre_header
    _
  $region3: #{_lambda_.31} parent=0 // loop_header
    %s9 = sphi 0, %s13
    %p10 = scmp.ge.s32.totalorder %s9, 6
    %s16 = sphi 0, %s28
    %s17 = sphi 0, %s24
    %s18 = sphi 0, %s16
    %s19 = sphi 0, %s17
    %s20 = sphi 0, %s18
    %s21 = sphi 0, %s19
    %s31 = sphi 0, %s33
    %s34 = sphi 0, %s31
    %s35 = sphi 0, %s34
    %s51 = sphi 0, %s35
    %s57 = sphi 0, %s59
    %s60 = sphi 0, %s57
    %s61 = sphi 0, %s60
    %s77 = sphi 0, %s61
    %s83 = sphi 0, %s85
    %s86 = sphi 0, %s83
    %s87 = sphi 0, %s86
    %s103 = sphi 0, %s87
    %s111 = sphi 0, %s113
    %s114 = sphi 0, %s111
    %s115 = sphi 0, %s114
    %s131 = sphi 0, %s115
  $region4: #{_lambda_.31} parent=0 // loop_header_branch
    %12 = sbr.rel (%p10) target = $region8
  $region5: #{_lambda_.31} parent=0 // loop_body
    %s14 = ssub.s32 %s9, 1
    %s15 = ssub.s32 %s9, 2
    %s22 = sadd.s32 1, %s17
    %p23 = scmp.ge.s32.totalorder %s22, 4
    %s24 = scalar_select %p23, 0, %s22
    %s25 = sadd.s32 1, %s16
    %s26 = scalar_select %p23, %s25, %s16
    %p27 = scmp.ge.s32.totalorder %s26, 1
    %s28 = scalar_select %p27, 0, %s26
    %s29 = ssub.s32 %s17, %s24
    %p30 = scmp.eq.s32.totalorder %s29, 0
    %s32 = sadd.s32 %s31, 1
    %s33 = scalar_select %p30, %s31, %s32
    %p36 = pneg %p30
    %p37 = scmp.eq.s32.totalorder %s9, 3
    %p38 = por %p36, %p37
    %p39 = scmp.ne.s32.totalorder %s31, %s34
    %p40 = scmp.eq.s32.totalorder %s9, 0
    %p41 = por %p39, %p40
    %p42 = scmp.ne.s32.totalorder %s31, %s34
    %p43 = scmp.eq.s32.totalorder %s14, 3
    %p44 = por %p42, %p43
    %p45 = scmp.ne.s32.totalorder %s34, %s35
    %p46 = scmp.eq.s32.totalorder %s14, 0
    %p47 = por %p45, %p46
    %p48 = scmp.ne.s32.totalorder %s34, %s35
    %p49 = scmp.eq.s32.totalorder %s15, 3
    %p50 = por %p48, %p49
    %p52 = scmp.ne.s32.totalorder %s35, %s51
    %p53 = scmp.eq.s32.totalorder %s15, 0
    %p54 = por %p52, %p53
    %s55 = ssub.s32 %s16, %s28
    %p56 = scmp.eq.s32.totalorder %s55, 0
    %s58 = sadd.s32 %s57, 1
    %s59 = scalar_select %p56, %s57, %s58
    %p62 = pneg %p56
    %p63 = scmp.eq.s32.totalorder %s9, 3
    %p64 = por %p62, %p63
    %p65 = scmp.ne.s32.totalorder %s57, %s60
    %p66 = scmp.eq.s32.totalorder %s9, 0
    %p67 = por %p65, %p66
    %p68 = scmp.ne.s32.totalorder %s57, %s60
    %p69 = scmp.eq.s32.totalorder %s14, 3
    %p70 = por %p68, %p69
    %p71 = scmp.ne.s32.totalorder %s60, %s61
    %p72 = scmp.eq.s32.totalorder %s14, 0
    %p73 = por %p71, %p72
    %p74 = scmp.ne.s32.totalorder %s60, %s61
    %p75 = scmp.eq.s32.totalorder %s15, 3
    %p76 = por %p74, %p75
    %p78 = scmp.ne.s32.totalorder %s61, %s77
    %p79 = scmp.eq.s32.totalorder %s15, 0
    %p80 = por %p78, %p79
    %s81 = ssub.s32 %s16, %s28
    %p82 = scmp.eq.s32.totalorder %s81, 0
    %s84 = sadd.s32 %s83, 1
    %s85 = scalar_select %p82, %s83, %s84
    %p88 = pneg %p82
    %p89 = scmp.eq.s32.totalorder %s9, 3
    %p90 = por %p88, %p89
    %p91 = scmp.ne.s32.totalorder %s83, %s86
    %p92 = scmp.eq.s32.totalorder %s9, 0
    %p93 = por %p91, %p92
    %p94 = scmp.ne.s32.totalorder %s83, %s86
    %p95 = scmp.eq.s32.totalorder %s14, 3
    %p96 = por %p94, %p95
    %p97 = scmp.ne.s32.totalorder %s86, %s87
    %p98 = scmp.eq.s32.totalorder %s14, 0
    %p99 = por %p97, %p98
    %p100 = scmp.ne.s32.totalorder %s86, %s87
    %p101 = scmp.eq.s32.totalorder %s15, 3
    %p102 = por %p100, %p101
    %p104 = scmp.ne.s32.totalorder %s87, %s103
    %p105 = scmp.eq.s32.totalorder %s15, 0
    %p106 = por %p104, %p105
    %s107 = ssub.s32 %s17, %s24
    %s108 = ssub.s32 %s16, %s28
    %s109 = sor.u32 %s107, %s108
    %p110 = scmp.eq.s32.totalorder %s109, 0
    %s112 = sadd.s32 %s111, 1
    %s113 = scalar_select %p110, %s111, %s112
    %p116 = pneg %p110
    %p117 = scmp.eq.s32.totalorder %s9, 3
    %p118 = por %p116, %p117
    %p119 = scmp.ne.s32.totalorder %s111, %s114
    %p120 = scmp.eq.s32.totalorder %s9, 0
    %p121 = por %p119, %p120
    %p122 = scmp.ne.s32.totalorder %s111, %s114
    %p123 = scmp.eq.s32.totalorder %s14, 3
    %p124 = por %p122, %p123
    %p125 = scmp.ne.s32.totalorder %s114, %s115
    %p126 = scmp.eq.s32.totalorder %s14, 0
    %p127 = por %p125, %p126
    %p128 = scmp.ne.s32.totalorder %s114, %s115
    %p129 = scmp.eq.s32.totalorder %s15, 3
    %p130 = por %p128, %p129
    %p132 = scmp.ne.s32.totalorder %s115, %s131
    %p133 = scmp.eq.s32.totalorder %s15, 0
    %p134 = por %p132, %p133
    %p135 = scmp.le.s32.totalorder 1, %s9
    %p136 = scmp.lt.s32.totalorder %s9, 5
    %p137 = pnand %p135, %p136
    %p138 = pneg %p137
    // Predicated region
    $region9: #{_lambda_.31} parent=5 // pred_check
      _
    $region10: #{_lambda_.31} parent=5 // pred_check_branch
      %140 = sbr.rel (%p137) target = $region12
    $region11: #{_lambda_.31} parent=5 // pred_region
      %s141 = ssub.s32 %s9, 1
      // Predicated region
      $region13: #{_lambda_.31} parent=11 // pred_check
        %p142 = pneg %p73
      $region14: #{_lambda_.31} parent=11 // pred_check_branch
        %144 = sbr.rel (%p142) target = $region16
      $region15: #{_lambda_.31} parent=11 // pred_region
        %s145 = smul.u32 8, %s18
        %p146 = scmp.lt.s32.totalorder %s145, 7
        %s147 = scalar_select %p146, %s145, 7
        %s148 = smul.addr %s147, 4
        %s149 = scalar_lea.vmem %s1, %s148
        %s150 = smul.u32 8, %s18
      $region16: #{_lambda_.31} parent=11 // pred_fallthru
        _
      // Predicated region
      $region17: #{_lambda_.31} parent=11 // pred_check
        %p151 = pneg %p99
      $region18: #{_lambda_.31} parent=11 // pred_check_branch
        %153 = sbr.rel (%p151) target = $region20
      $region19: #{_lambda_.31} parent=11 // pred_region
        %s154 = smul.u32 8, %s18
        %p155 = scmp.lt.s32.totalorder %s154, 7
        %s156 = scalar_select %p155, %s154, 7
        %s157 = scalar_lea.vmem %s2, %s156
        %s158 = smul.u32 8, %s18
      $region20: #{_lambda_.31} parent=11 // pred_fallthru
        _
    $region12: #{_lambda_.31} parent=5 // pred_fallthru
      _
    %p159 = scmp.lt.s32.totalorder %s9, 4
    // Predicated region
    $region21: #{_lambda_.31} parent=5 // pred_check
      %p160 = pneg %p159
    $region22: #{_lambda_.31} parent=5 // pred_check_branch
      %162 = sbr.rel (%p160) target = $region24
    $region23: #{_lambda_.31} parent=5 // pred_region
      // Predicated region
      $region25: #{_lambda_.31} parent=23 // pred_check
        %p163 = pneg %p41
      $region26: #{_lambda_.31} parent=23 // pred_check_branch
        %165 = sbr.rel (%p163) target = $region28
      $region27: #{_lambda_.31} parent=23 // pred_region
        %s166 = smul.u32 4, %s17
        %p167 = scmp.lt.s32.totalorder %s166, 15
        %s168 = scalar_select %p167, %s166, 15
        %s169 = smul.addr %s168, 8
        %s170 = scalar_lea.vmem %s0, %s169
        %s171 = smul.u32 4, %s17
      $region28: #{_lambda_.31} parent=23 // pred_fallthru
        _
    $region24: #{_lambda_.31} parent=5 // pred_fallthru
      _
    %p172 = scmp.le.s32.totalorder 1, %s9
    %p173 = scmp.lt.s32.totalorder %s9, 5
    %p174 = pnand %p172, %p173
    %p175 = pneg %p174
    // Predicated region
    $region29: #{_lambda_.31} parent=5 // pred_check
      _
    $region30: #{_lambda_.31} parent=5 // pred_check_branch
      %177 = sbr.rel (%p174) target = $region32
    $region31: #{_lambda_.31} parent=5 // pred_region
      %s178 = ssub.s32 %s9, 1
      %s179 = smul.u32 4, %s19
      %p180 = scmp.lt.s32.totalorder %s179, 15
      %s181 = scalar_select %p180, %s179, 15
      %s182 = smul.addr %s181, 8
      %s183 = scalar_lea.vmem %s0, %s182
      %p184 = pneg %p47
      %p185 = pneg %p44
      %s186 = smul.u32 8, %s18
      %p187 = scmp.lt.s32.totalorder %s186, 7
      %s188 = scalar_select %p187, %s186, 7
      %s189 = smul.addr %s188, 4
      %s190 = scalar_lea.vmem %s1, %s189
      %p191 = pneg %p73
      %p192 = pneg %p70
      %s193 = smul.u32 8, %s18
      %p194 = scmp.lt.s32.totalorder %s193, 7
      %s195 = scalar_select %p194, %s193, 7
      %s196 = scalar_lea.vmem %s2, %s195
      %p197 = pneg %p99
      %p198 = pneg %p96
      %p199 = pneg %p127
      %p200 = pneg %p124
      %s201 = smul.u32 4, %s19
      %s202 = smul.u32 8, %s18
      %p203 = scmp.lt.s32.totalorder %s201, 15
      %s204 = scalar_select %p203, %s201, 15
      %p205 = scmp.lt.s32.totalorder %s202, 7
      %s206 = scalar_select %p205, %s202, 7
      %s207 = smul.addr %s204, 8
      %s208 = sadd.s32 %s206, %s207
      %s209 = smul.addr %s208, 8
      %s210 = scalar_lea.vmem %s3, %s209
      %s211 = smul.u32 4, %s19
      %p212 = scmp.lt.s32.totalorder %s211, 15
      %s213 = scalar_select %p212, %s211, 15
      %s214 = smul.addr %s213, 8
      %s215 = scalar_lea.vmem %s0, %s214
      %s216 = smul.u32 4, %s19
      %s217 = smul.u32 8, %s18
      %p218 = scmp.lt.s32.totalorder %s217, 7
      %s219 = scalar_select %p218, %s217, 7
      %s220 = smul.addr %s219, 4
      %s221 = scalar_lea.vmem %s1, %s220
      %s222 = smul.u32 8, %s18
      %s223 = smul.u32 8, %s18
      %p224 = scmp.lt.s32.totalorder %s223, 7
      %s225 = scalar_select %p224, %s223, 7
      %s226 = scalar_lea.vmem %s2, %s225
      %s227 = smul.u32 8, %s18
      %s228 = smul.u32 4, %s19
      %s229 = smul.u32 8, %s18
      %p230 = scmp.lt.s32.totalorder %s228, 15
      %s231 = scalar_select %p230, %s228, 15
      %p232 = scmp.lt.s32.totalorder %s229, 7
      %s233 = scalar_select %p232, %s229, 7
      %s234 = smul.addr %s231, 8
      %s235 = sadd.s32 %s233, %s234
      %s236 = smul.addr %s235, 8
      %s237 = scalar_lea.vmem %s3, %s236
      %s238 = smul.u32 4, %s19
      %s239 = smul.u32 8, %s18
      %v240 = vld [vmem:[%s215] sm:$0xff]
      %v241 = vld [vmem:[%s215 + $0x8] sm:$0xff]
      %v242 = vld [vmem:[%s215 + $0x10] sm:$0xff]
      %v243 = vld [vmem:[%s215 + $0x18] sm:$0xff]
      %v244 = vpack.c.bf16 %v241, %v240
      %v245 = vpack.c.bf16 %v243, %v242
      %v246 = vld [vmem:[%s221] sm:$0xff]
      %v247 = vld [vmem:[%s221 + $0x8] sm:$0xff]
      %v248 = vld [vmem:[%s221 + $0x10] sm:$0xff]
      %v249 = vld [vmem:[%s221 + $0x18] sm:$0xff]
      %v250 = vld [vmem:[%s221 + $0x20] sm:$0xff]
      %v251 = vld [vmem:[%s221 + $0x28] sm:$0xff]
      %v252 = vld [vmem:[%s221 + $0x30] sm:$0xff]
      %v253 = vld [vmem:[%s221 + $0x38] sm:$0xff]
      %v254 = vld [vmem:[%s221 + $0x40] sm:$0xff]
      %v255 = vld [vmem:[%s221 + $0x48] sm:$0xff]
      %v256 = vld [vmem:[%s221 + $0x50] sm:$0xff]
      %v257 = vld [vmem:[%s221 + $0x58] sm:$0xff]
      %v258 = vld [vmem:[%s221 + $0x60] sm:$0xff]
      %v259 = vld [vmem:[%s221 + $0x68] sm:$0xff]
      %v260 = vld [vmem:[%s221 + $0x70] sm:$0xff]
      %v261 = vld [vmem:[%s221 + $0x78] sm:$0xff]
      %v262 = vld [vmem:[%s221 + $0x80] sm:$0xff]
      %v263 = vld [vmem:[%s221 + $0x88] sm:$0xff]
      %v264 = vld [vmem:[%s221 + $0x90] sm:$0xff]
      %v265 = vld [vmem:[%s221 + $0x98] sm:$0xff]
      %v266 = vld [vmem:[%s221 + $0xa0] sm:$0xff]
      %v267 = vld [vmem:[%s221 + $0xa8] sm:$0xff]
      %v268 = vld [vmem:[%s221 + $0xb0] sm:$0xff]
      %v269 = vld [vmem:[%s221 + $0xb8] sm:$0xff]
      %v270 = vld [vmem:[%s221 + $0xc0] sm:$0xff]
      %v271 = vld [vmem:[%s221 + $0xc8] sm:$0xff]
      %v272 = vld [vmem:[%s221 + $0xd0] sm:$0xff]
      %v273 = vld [vmem:[%s221 + $0xd8] sm:$0xff]
      %v274 = vld [vmem:[%s221 + $0xe0] sm:$0xff]
      %v275 = vld [vmem:[%s221 + $0xe8] sm:$0xff]
      %v276 = vld [vmem:[%s221 + $0xf0] sm:$0xff]
      %v277 = vld [vmem:[%s221 + $0xf8] sm:$0xff]
      %v278 = vld [vmem:[%s221 + $0x100] sm:$0xff]
      %v279 = vld [vmem:[%s221 + $0x108] sm:$0xff]
      %v280 = vld [vmem:[%s221 + $0x110] sm:$0xff]
      %v281 = vld [vmem:[%s221 + $0x118] sm:$0xff]
      %v282 = vld [vmem:[%s221 + $0x120] sm:$0xff]
      %v283 = vld [vmem:[%s221 + $0x128] sm:$0xff]
      %v284 = vld [vmem:[%s221 + $0x130] sm:$0xff]
      %v285 = vld [vmem:[%s221 + $0x138] sm:$0xff]
      %v286 = vld [vmem:[%s221 + $0x140] sm:$0xff]
      %v287 = vld [vmem:[%s221 + $0x148] sm:$0xff]
      %v288 = vld [vmem:[%s221 + $0x150] sm:$0xff]
      %v289 = vld [vmem:[%s221 + $0x158] sm:$0xff]
      %v290 = vld [vmem:[%s221 + $0x160] sm:$0xff]
      %v291 = vld [vmem:[%s221 + $0x168] sm:$0xff]
      %v292 = vld [vmem:[%s221 + $0x170] sm:$0xff]
      %v293 = vld [vmem:[%s221 + $0x178] sm:$0xff]
      %v294 = vld [vmem:[%s221 + $0x180] sm:$0xff]
      %v295 = vld [vmem:[%s221 + $0x188] sm:$0xff]
      %v296 = vld [vmem:[%s221 + $0x190] sm:$0xff]
      %v297 = vld [vmem:[%s221 + $0x198] sm:$0xff]
      %v298 = vld [vmem:[%s221 + $0x1a0] sm:$0xff]
      %v299 = vld [vmem:[%s221 + $0x1a8] sm:$0xff]
      %v300 = vld [vmem:[%s221 + $0x1b0] sm:$0xff]
      %v301 = vld [vmem:[%s221 + $0x1b8] sm:$0xff]
      %v302 = vld [vmem:[%s221 + $0x1c0] sm:$0xff]
      %v303 = vld [vmem:[%s221 + $0x1c8] sm:$0xff]
      %v304 = vld [vmem:[%s221 + $0x1d0] sm:$0xff]
      %v305 = vld [vmem:[%s221 + $0x1d8] sm:$0xff]
      %v306 = vld [vmem:[%s221 + $0x1e0] sm:$0xff]
      %v307 = vld [vmem:[%s221 + $0x1e8] sm:$0xff]
      %v308 = vld [vmem:[%s221 + $0x1f0] sm:$0xff]
      %v309 = vld [vmem:[%s221 + $0x1f8] sm:$0xff]
      %v310 = vld [vmem:[%s226] sm:$0xff]
      %v312 = vperm.slane %v310, 0
      %v313 = vperm.slane %v310, 1
      %v314 = vperm.slane %v310, 2
      %v315 = vperm.slane %v310, 3
      %v316 = vperm.slane %v310, 4
      %v317 = vperm.slane %v310, 5
      %v318 = vperm.slane %v310, 6
      %v319 = vperm.slane %v310, 7
      %v392 = vunpack.c.l.b16 %v246
      %v393 = vunpack.c.h.b16 %v246
      %v394 = vunpack.c.l.b16 %v247
      %v395 = vunpack.c.h.b16 %v247
      %v396 = vunpack.c.l.b16 %v248
      %v397 = vunpack.c.h.b16 %v248
      %v398 = vunpack.c.l.b16 %v249
      %v399 = vunpack.c.h.b16 %v249
      %v400 = vunpack.c.l.b16 %v250
      %v401 = vunpack.c.h.b16 %v250
      %v402 = vunpack.c.l.b16 %v251
      %v403 = vunpack.c.h.b16 %v251
      %v404 = vunpack.c.l.b16 %v252
      %v405 = vunpack.c.h.b16 %v252
      %v406 = vunpack.c.l.b16 %v253
      %v407 = vunpack.c.h.b16 %v253
      %v408 = vunpack.c.l.b16 %v254
      %v409 = vunpack.c.h.b16 %v254
      %v410 = vunpack.c.l.b16 %v255
      %v411 = vunpack.c.h.b16 %v255
      %v412 = vunpack.c.l.b16 %v256
      %v413 = vunpack.c.h.b16 %v256
      %v414 = vunpack.c.l.b16 %v257
      %v415 = vunpack.c.h.b16 %v257
      %v416 = vunpack.c.l.b16 %v258
      %v417 = vunpack.c.h.b16 %v258
      %v418 = vunpack.c.l.b16 %v259
      %v419 = vunpack.c.h.b16 %v259
      %v420 = vunpack.c.l.b16 %v260
      %v421 = vunpack.c.h.b16 %v260
      %v422 = vunpack.c.l.b16 %v261
      %v423 = vunpack.c.h.b16 %v261
      %v424 = vunpack.c.l.b16 %v262
      %v425 = vunpack.c.h.b16 %v262
      %v426 = vunpack.c.l.b16 %v263
      %v427 = vunpack.c.h.b16 %v263
      %v428 = vunpack.c.l.b16 %v264
      %v429 = vunpack.c.h.b16 %v264
      %v430 = vunpack.c.l.b16 %v265
      %v431 = vunpack.c.h.b16 %v265
      %v432 = vunpack.c.l.b16 %v266
      %v433 = vunpack.c.h.b16 %v266
      %v434 = vunpack.c.l.b16 %v267
      %v435 = vunpack.c.h.b16 %v267
      %v436 = vunpack.c.l.b16 %v268
      %v437 = vunpack.c.h.b16 %v268
      %v438 = vunpack.c.l.b16 %v269
      %v439 = vunpack.c.h.b16 %v269
      %v440 = vunpack.c.l.b16 %v270
      %v441 = vunpack.c.h.b16 %v270
      %v442 = vunpack.c.l.b16 %v271
      %v443 = vunpack.c.h.b16 %v271
      %v444 = vunpack.c.l.b16 %v272
      %v445 = vunpack.c.h.b16 %v272
      %v446 = vunpack.c.l.b16 %v273
      %v447 = vunpack.c.h.b16 %v273
      %v448 = vunpack.c.l.b16 %v274
      %v449 = vunpack.c.h.b16 %v274
      %v450 = vunpack.c.l.b16 %v275
      %v451 = vunpack.c.h.b16 %v275
      %v452 = vunpack.c.l.b16 %v276
      %v453 = vunpack.c.h.b16 %v276
      %v454 = vunpack.c.l.b16 %v277
      %v455 = vunpack.c.h.b16 %v277
      %v456 = vunpack.c.l.b16 %v278
      %v457 = vunpack.c.h.b16 %v278
      %v458 = vunpack.c.l.b16 %v279
      %v459 = vunpack.c.h.b16 %v279
      %v460 = vunpack.c.l.b16 %v280
      %v461 = vunpack.c.h.b16 %v280
      %v462 = vunpack.c.l.b16 %v281
      %v463 = vunpack.c.h.b16 %v281
      %v464 = vunpack.c.l.b16 %v282
      %v465 = vunpack.c.h.b16 %v282
      %v466 = vunpack.c.l.b16 %v283
      %v467 = vunpack.c.h.b16 %v283
      %v468 = vunpack.c.l.b16 %v284
      %v469 = vunpack.c.h.b16 %v284
      %v470 = vunpack.c.l.b16 %v285
      %v471 = vunpack.c.h.b16 %v285
      %v472 = vunpack.c.l.b16 %v286
      %v473 = vunpack.c.h.b16 %v286
      %v474 = vunpack.c.l.b16 %v287
      %v475 = vunpack.c.h.b16 %v287
      %v476 = vunpack.c.l.b16 %v288
      %v477 = vunpack.c.h.b16 %v288
      %v478 = vunpack.c.l.b16 %v289
      %v479 = vunpack.c.h.b16 %v289
      %v480 = vunpack.c.l.b16 %v290
      %v481 = vunpack.c.h.b16 %v290
      %v482 = vunpack.c.l.b16 %v291
      %v483 = vunpack.c.h.b16 %v291
      %v484 = vunpack.c.l.b16 %v292
      %v485 = vunpack.c.h.b16 %v292
      %v486 = vunpack.c.l.b16 %v293
      %v487 = vunpack.c.h.b16 %v293
      %v488 = vunpack.c.l.b16 %v294
      %v489 = vunpack.c.h.b16 %v294
      %v490 = vunpack.c.l.b16 %v295
      %v491 = vunpack.c.h.b16 %v295
      %v492 = vunpack.c.l.b16 %v296
      %v493 = vunpack.c.h.b16 %v296
      %v494 = vunpack.c.l.b16 %v297
      %v495 = vunpack.c.h.b16 %v297
      %v496 = vunpack.c.l.b16 %v298
      %v497 = vunpack.c.h.b16 %v298
      %v498 = vunpack.c.l.b16 %v299
      %v499 = vunpack.c.h.b16 %v299
      %v500 = vunpack.c.l.b16 %v300
      %v501 = vunpack.c.h.b16 %v300
      %v502 = vunpack.c.l.b16 %v301
      %v503 = vunpack.c.h.b16 %v301
      %v504 = vunpack.c.l.b16 %v302
      %v505 = vunpack.c.h.b16 %v302
      %v506 = vunpack.c.l.b16 %v303
      %v507 = vunpack.c.h.b16 %v303
      %v508 = vunpack.c.l.b16 %v304
      %v509 = vunpack.c.h.b16 %v304
      %v510 = vunpack.c.l.b16 %v305
      %v511 = vunpack.c.h.b16 %v305
      %v512 = vunpack.c.l.b16 %v306
      %v513 = vunpack.c.h.b16 %v306
      %v514 = vunpack.c.l.b16 %v307
      %v515 = vunpack.c.h.b16 %v307
      %v516 = vunpack.c.l.b16 %v308
      %v517 = vunpack.c.h.b16 %v308
      %v518 = vunpack.c.l.b16 %v309
      %v519 = vunpack.c.h.b16 %v309
      %v520 = vpack.c.b16 %v400, %v392
      %v521 = vpack.c.b16 %v401, %v393
      %v522 = vpack.c.b16 %v402, %v394
      %v523 = vpack.c.b16 %v403, %v395
      %v524 = vpack.c.b16 %v404, %v396
      %v525 = vpack.c.b16 %v405, %v397
      %v526 = vpack.c.b16 %v406, %v398
      %v527 = vpack.c.b16 %v407, %v399
      %v528 = vpack.c.b16 %v416, %v408
      %v529 = vpack.c.b16 %v417, %v409
      %v530 = vpack.c.b16 %v418, %v410
      %v531 = vpack.c.b16 %v419, %v411
      %v532 = vpack.c.b16 %v420, %v412
      %v533 = vpack.c.b16 %v421, %v413
      %v534 = vpack.c.b16 %v422, %v414
      %v535 = vpack.c.b16 %v423, %v415
      %v536 = vpack.c.b16 %v432, %v424
      %v537 = vpack.c.b16 %v433, %v425
      %v538 = vpack.c.b16 %v434, %v426
      %v539 = vpack.c.b16 %v435, %v427
      %v540 = vpack.c.b16 %v436, %v428
      %v541 = vpack.c.b16 %v437, %v429
      %v542 = vpack.c.b16 %v438, %v430
      %v543 = vpack.c.b16 %v439, %v431
      %v544 = vpack.c.b16 %v448, %v440
      %v545 = vpack.c.b16 %v449, %v441
      %v546 = vpack.c.b16 %v450, %v442
      %v547 = vpack.c.b16 %v451, %v443
      %v548 = vpack.c.b16 %v452, %v444
      %v549 = vpack.c.b16 %v453, %v445
      %v550 = vpack.c.b16 %v454, %v446
      %v551 = vpack.c.b16 %v455, %v447
      %v552 = vpack.c.b16 %v464, %v456
      %v553 = vpack.c.b16 %v465, %v457
      %v554 = vpack.c.b16 %v466, %v458
      %v555 = vpack.c.b16 %v467, %v459
      %v556 = vpack.c.b16 %v468, %v460
      %v557 = vpack.c.b16 %v469, %v461
      %v558 = vpack.c.b16 %v470, %v462
      %v559 = vpack.c.b16 %v471, %v463
      %v560 = vpack.c.b16 %v480, %v472
      %v561 = vpack.c.b16 %v481, %v473
      %v562 = vpack.c.b16 %v482, %v474
      %v563 = vpack.c.b16 %v483, %v475
      %v564 = vpack.c.b16 %v484, %v476
      %v565 = vpack.c.b16 %v485, %v477
      %v566 = vpack.c.b16 %v486, %v478
      %v567 = vpack.c.b16 %v487, %v479
      %v568 = vpack.c.b16 %v496, %v488
      %v569 = vpack.c.b16 %v497, %v489
      %v570 = vpack.c.b16 %v498, %v490
      %v571 = vpack.c.b16 %v499, %v491
      %v572 = vpack.c.b16 %v500, %v492
      %v573 = vpack.c.b16 %v501, %v493
      %v574 = vpack.c.b16 %v502, %v494
      %v575 = vpack.c.b16 %v503, %v495
      %v576 = vpack.c.b16 %v512, %v504
      %v577 = vpack.c.b16 %v513, %v505
      %v578 = vpack.c.b16 %v514, %v506
      %v579 = vpack.c.b16 %v515, %v507
      %v580 = vpack.c.b16 %v516, %v508
      %v581 = vpack.c.b16 %v517, %v509
      %v582 = vpack.c.b16 %v518, %v510
      %v583 = vpack.c.b16 %v519, %v511
      %648 = vmatpush.bf16.msra.mxu0 %v576
      %649 = vmatpush.bf16.msra.mxu0 %v568
      %650 = vmatpush.bf16.msra.mxu0 %v560
      %651 = vmatpush.bf16.msra.mxu0 %v552
      %652 = vmatpush.bf16.msra.mxu0 %v544
      %653 = vmatpush.bf16.msra.mxu0 %v536
      %654 = vmatpush.bf16.msra.mxu0 %v528
      %655 = vmatpush.bf16.msra.mxu0 %v520
      %656 = vmatmul.bf16.gmra.mxu0 %v244
      %v657 = vpop.f32.mrf.mxu0
      %v658 = vadd.f32 %v312, %v657
      %v659 = vpop.f32.mrf.mxu0
      %v660 = vadd.f32 %v312, %v659
      %661 = vmatmul.bf16.gmra.mxu0 %v245
      %v662 = vpop.f32.mrf.mxu0
      %v663 = vadd.f32 %v312, %v662
      %v664 = vpop.f32.mrf.mxu0
      %v665 = vadd.f32 %v312, %v664
      %666 = vdwg.mxu0
      %667 = vmatpush.bf16.msra.mxu0 %v577
      %668 = vmatpush.bf16.msra.mxu0 %v569
      %669 = vmatpush.bf16.msra.mxu0 %v561
      %670 = vmatpush.bf16.msra.mxu0 %v553
      %671 = vmatpush.bf16.msra.mxu0 %v545
      %672 = vmatpush.bf16.msra.mxu0 %v537
      %673 = vmatpush.bf16.msra.mxu0 %v529
      %674 = vmatpush.bf16.msra.mxu0 %v521
      %675 = vmatmul.bf16.gmra.mxu0 %v244
      %v676 = vpop.f32.mrf.mxu0
      %v677 = vadd.f32 %v313, %v676
      %v678 = vpop.f32.mrf.mxu0
      %v679 = vadd.f32 %v313, %v678
      %680 = vmatmul.bf16.gmra.mxu0 %v245
      %v681 = vpop.f32.mrf.mxu0
      %v682 = vadd.f32 %v313, %v681
      %v683 = vpop.f32.mrf.mxu0
      %v684 = vadd.f32 %v313, %v683
      %685 = vdwg.mxu0
      %686 = vmatpush.bf16.msra.mxu0 %v578
      %687 = vmatpush.bf16.msra.mxu0 %v570
      %688 = vmatpush.bf16.msra.mxu0 %v562
      %689 = vmatpush.bf16.msra.mxu0 %v554
      %690 = vmatpush.bf16.msra.mxu0 %v546
      %691 = vmatpush.bf16.msra.mxu0 %v538
      %692 = vmatpush.bf16.msra.mxu0 %v530
      %693 = vmatpush.bf16.msra.mxu0 %v522
      %694 = vmatmul.bf16.gmra.mxu0 %v244
      %v695 = vpop.f32.mrf.mxu0
      %v696 = vadd.f32 %v314, %v695
      %v697 = vpop.f32.mrf.mxu0
      %v698 = vadd.f32 %v314, %v697
      %699 = vmatmul.bf16.gmra.mxu0 %v245
      %v700 = vpop.f32.mrf.mxu0
      %v701 = vadd.f32 %v314, %v700
      %v702 = vpop.f32.mrf.mxu0
      %v703 = vadd.f32 %v314, %v702
      %704 = vdwg.mxu0
      %705 = vmatpush.bf16.msra.mxu0 %v579
      %706 = vmatpush.bf16.msra.mxu0 %v571
      %707 = vmatpush.bf16.msra.mxu0 %v563
      %708 = vmatpush.bf16.msra.mxu0 %v555
      %709 = vmatpush.bf16.msra.mxu0 %v547
      %710 = vmatpush.bf16.msra.mxu0 %v539
      %711 = vmatpush.bf16.msra.mxu0 %v531
      %712 = vmatpush.bf16.msra.mxu0 %v523
      %713 = vmatmul.bf16.gmra.mxu0 %v244
      %v714 = vpop.f32.mrf.mxu0
      %v715 = vadd.f32 %v315, %v714
      %v716 = vpop.f32.mrf.mxu0
      %v717 = vadd.f32 %v315, %v716
      %718 = vmatmul.bf16.gmra.mxu0 %v245
      %v719 = vpop.f32.mrf.mxu0
      %v720 = vadd.f32 %v315, %v719
      %v721 = vpop.f32.mrf.mxu0
      %v722 = vadd.f32 %v315, %v721
      %723 = vdwg.mxu0
      %724 = vmatpush.bf16.msra.mxu0 %v580
      %725 = vmatpush.bf16.msra.mxu0 %v572
      %726 = vmatpush.bf16.msra.mxu0 %v564
      %727 = vmatpush.bf16.msra.mxu0 %v556
      %728 = vmatpush.bf16.msra.mxu0 %v548
      %729 = vmatpush.bf16.msra.mxu0 %v540
      %730 = vmatpush.bf16.msra.mxu0 %v532
      %731 = vmatpush.bf16.msra.mxu0 %v524
      %732 = vmatmul.bf16.gmra.mxu0 %v244
      %v733 = vpop.f32.mrf.mxu0
      %v734 = vadd.f32 %v316, %v733
      %v735 = vpop.f32.mrf.mxu0
      %v736 = vadd.f32 %v316, %v735
      %737 = vmatmul.bf16.gmra.mxu0 %v245
      %v738 = vpop.f32.mrf.mxu0
      %v739 = vadd.f32 %v316, %v738
      %v740 = vpop.f32.mrf.mxu0
      %v741 = vadd.f32 %v316, %v740
      %742 = vdwg.mxu0
      %743 = vmatpush.bf16.msra.mxu0 %v581
      %744 = vmatpush.bf16.msra.mxu0 %v573
      %745 = vmatpush.bf16.msra.mxu0 %v565
      %746 = vmatpush.bf16.msra.mxu0 %v557
      %747 = vmatpush.bf16.msra.mxu0 %v549
      %748 = vmatpush.bf16.msra.mxu0 %v541
      %749 = vmatpush.bf16.msra.mxu0 %v533
      %750 = vmatpush.bf16.msra.mxu0 %v525
      %751 = vmatmul.bf16.gmra.mxu0 %v244
      %v752 = vpop.f32.mrf.mxu0
      %v753 = vadd.f32 %v317, %v752
      %v754 = vpop.f32.mrf.mxu0
      %v755 = vadd.f32 %v317, %v754
      %756 = vmatmul.bf16.gmra.mxu0 %v245
      %v757 = vpop.f32.mrf.mxu0
      %v758 = vadd.f32 %v317, %v757
      %v759 = vpop.f32.mrf.mxu0
      %v760 = vadd.f32 %v317, %v759
      %761 = vdwg.mxu0
      %762 = vmatpush.bf16.msra.mxu0 %v582
      %763 = vmatpush.bf16.msra.mxu0 %v574
      %764 = vmatpush.bf16.msra.mxu0 %v566
      %765 = vmatpush.bf16.msra.mxu0 %v558
      %766 = vmatpush.bf16.msra.mxu0 %v550
      %767 = vmatpush.bf16.msra.mxu0 %v542
      %768 = vmatpush.bf16.msra.mxu0 %v534
      %769 = vmatpush.bf16.msra.mxu0 %v526
      %770 = vmatmul.bf16.gmra.mxu0 %v244
      %v771 = vpop.f32.mrf.mxu0
      %v772 = vadd.f32 %v318, %v771
      %v773 = vpop.f32.mrf.mxu0
      %v774 = vadd.f32 %v318, %v773
      %775 = vmatmul.bf16.gmra.mxu0 %v245
      %v776 = vpop.f32.mrf.mxu0
      %v777 = vadd.f32 %v318, %v776
      %v778 = vpop.f32.mrf.mxu0
      %v779 = vadd.f32 %v318, %v778
      %780 = vdwg.mxu0
      %781 = vmatpush.bf16.msra.mxu0 %v583
      %782 = vmatpush.bf16.msra.mxu0 %v575
      %783 = vmatpush.bf16.msra.mxu0 %v567
      %784 = vmatpush.bf16.msra.mxu0 %v559
      %785 = vmatpush.bf16.msra.mxu0 %v551
      %786 = vmatpush.bf16.msra.mxu0 %v543
      %787 = vmatpush.bf16.msra.mxu0 %v535
      %788 = vmatpush.bf16.msra.mxu0 %v527
      %789 = vmatmul.bf16.gmra.mxu0 %v244
      %v790 = vpop.f32.mrf.mxu0
      %v791 = vadd.f32 %v319, %v790
      %v792 = vpop.f32.mrf.mxu0
      %v793 = vadd.f32 %v319, %v792
      %794 = vmatmul.bf16.gmra.mxu0 %v245
      %v795 = vpop.f32.mrf.mxu0
      %v796 = vadd.f32 %v319, %v795
      %v797 = vpop.f32.mrf.mxu0
      %v798 = vadd.f32 %v319, %v797
      %799 = vdwg.mxu0
      %v800 = vmax.f32 %v658, 0.0
      %v801 = vmax.f32 %v677, 0.0
      %v802 = vmax.f32 %v696, 0.0
      %v803 = vmax.f32 %v715, 0.0
      %v804 = vmax.f32 %v734, 0.0
      %v805 = vmax.f32 %v753, 0.0
      %v806 = vmax.f32 %v772, 0.0
      %v807 = vmax.f32 %v791, 0.0
      %v808 = vmax.f32 %v660, 0.0
      %v809 = vmax.f32 %v679, 0.0
      %v810 = vmax.f32 %v698, 0.0
      %v811 = vmax.f32 %v717, 0.0
      %v812 = vmax.f32 %v736, 0.0
      %v813 = vmax.f32 %v755, 0.0
      %v814 = vmax.f32 %v774, 0.0
      %v815 = vmax.f32 %v793, 0.0
      %v816 = vmax.f32 %v663, 0.0
      %v817 = vmax.f32 %v682, 0.0
      %v818 = vmax.f32 %v701, 0.0
      %v819 = vmax.f32 %v720, 0.0
      %v820 = vmax.f32 %v739, 0.0
      %v821 = vmax.f32 %v758, 0.0
      %v822 = vmax.f32 %v777, 0.0
      %v823 = vmax.f32 %v796, 0.0
      %v824 = vmax.f32 %v665, 0.0
      %v825 = vmax.f32 %v684, 0.0
      %v826 = vmax.f32 %v703, 0.0
      %v827 = vmax.f32 %v722, 0.0
      %v828 = vmax.f32 %v741, 0.0
      %v829 = vmax.f32 %v760, 0.0
      %v830 = vmax.f32 %v779, 0.0
      %v831 = vmax.f32 %v798, 0.0
      %832 = vst [vmem:[%s237] sm:$0xff] %v800
      %833 = vst [vmem:[%s237 + $0x8] sm:$0xff] %v801
      %834 = vst [vmem:[%s237 + $0x10] sm:$0xff] %v802
      %835 = vst [vmem:[%s237 + $0x18] sm:$0xff] %v803
      %836 = vst [vmem:[%s237 + $0x20] sm:$0xff] %v804
      %837 = vst [vmem:[%s237 + $0x28] sm:$0xff] %v805
      %838 = vst [vmem:[%s237 + $0x30] sm:$0xff] %v806
      %839 = vst [vmem:[%s237 + $0x38] sm:$0xff] %v807
      %840 = vst [vmem:[%s237 + $0x40] sm:$0xff] %v808
      %841 = vst [vmem:[%s237 + $0x48] sm:$0xff] %v809
      %842 = vst [vmem:[%s237 + $0x50] sm:$0xff] %v810
      %843 = vst [vmem:[%s237 + $0x58] sm:$0xff] %v811
      %844 = vst [vmem:[%s237 + $0x60] sm:$0xff] %v812
      %845 = vst [vmem:[%s237 + $0x68] sm:$0xff] %v813
      %846 = vst [vmem:[%s237 + $0x70] sm:$0xff] %v814
      %847 = vst [vmem:[%s237 + $0x78] sm:$0xff] %v815
      %848 = vst [vmem:[%s237 + $0x80] sm:$0xff] %v816
      %849 = vst [vmem:[%s237 + $0x88] sm:$0xff] %v817
      %850 = vst [vmem:[%s237 + $0x90] sm:$0xff] %v818
      %851 = vst [vmem:[%s237 + $0x98] sm:$0xff] %v819
      %852 = vst [vmem:[%s237 + $0xa0] sm:$0xff] %v820
      %853 = vst [vmem:[%s237 + $0xa8] sm:$0xff] %v821
      %854 = vst [vmem:[%s237 + $0xb0] sm:$0xff] %v822
      %855 = vst [vmem:[%s237 + $0xb8] sm:$0xff] %v823
      %856 = vst [vmem:[%s237 + $0xc0] sm:$0xff] %v824
      %857 = vst [vmem:[%s237 + $0xc8] sm:$0xff] %v825
      %858 = vst [vmem:[%s237 + $0xd0] sm:$0xff] %v826
      %859 = vst [vmem:[%s237 + $0xd8] sm:$0xff] %v827
      %860 = vst [vmem:[%s237 + $0xe0] sm:$0xff] %v828
      %861 = vst [vmem:[%s237 + $0xe8] sm:$0xff] %v829
      %862 = vst [vmem:[%s237 + $0xf0] sm:$0xff] %v830
      %863 = vst [vmem:[%s237 + $0xf8] sm:$0xff] %v831
      %s864 = smul.u32 4, %s19
      %s865 = smul.u32 8, %s18
      %p866 = scmp.lt.s32.totalorder %s864, 15
      %s867 = scalar_select %p866, %s864, 15
      %p868 = scmp.lt.s32.totalorder %s865, 7
      %s869 = scalar_select %p868, %s865, 7
      %s870 = smul.addr %s867, 8
      %s871 = sadd.s32 %s869, %s870
      %s872 = smul.addr %s871, 8
      %s873 = scalar_lea.vmem %s3, %s872
      // Predicated region
      $region33: #{_lambda_.31} parent=31 // pred_check
        %p874 = pneg %p124
      $region34: #{_lambda_.31} parent=31 // pred_check_branch
        %876 = sbr.rel (%p874) target = $region36
      $region35: #{_lambda_.31} parent=31 // pred_region
        %s877 = smul.u32 4, %s19
        %s878 = smul.u32 8, %s18
      $region36: #{_lambda_.31} parent=31 // pred_fallthru
        _
    $region32: #{_lambda_.31} parent=5 // pred_fallthru
      _
    %p879 = scmp.le.s32.totalorder 2, %s9
    // Predicated region
    $region37: #{_lambda_.31} parent=5 // pred_check
      %p880 = pneg %p879
    $region38: #{_lambda_.31} parent=5 // pred_check_branch
      %882 = sbr.rel (%p880) target = $region40
    $region39: #{_lambda_.31} parent=5 // pred_region
      %s883 = ssub.s32 %s9, 2
      // Predicated region
      $region41: #{_lambda_.31} parent=39 // pred_check
        %p884 = pneg %p130
      $region42: #{_lambda_.31} parent=39 // pred_check_branch
        %886 = sbr.rel (%p884) target = $region44
      $region43: #{_lambda_.31} parent=39 // pred_region
        %s887 = smul.u32 4, %s21
        %s888 = smul.u32 8, %s20
        %p889 = scmp.lt.s32.totalorder %s887, 15
        %s890 = scalar_select %p889, %s887, 15
        %p891 = scmp.lt.s32.totalorder %s888, 7
        %s892 = scalar_select %p891, %s888, 7
        %s893 = smul.addr %s890, 8
        %s894 = sadd.s32 %s892, %s893
        %s895 = smul.addr %s894, 8
        %s896 = scalar_lea.vmem %s3, %s895
      $region44: #{_lambda_.31} parent=39 // pred_fallthru
        _
    $region40: #{_lambda_.31} parent=5 // pred_fallthru
      _
  $region6: #{_lambda_.31} parent=0 // loop_footer
    %s13 = sadd.s32 1, %s9
  $region7: #{_lambda_.31} parent=0 // loop_footer_branch
    %8 = sbr.rel target = $region3
  $region8: #{_lambda_.31} parent=0 // loop_exit
    _

// kernel: _lambda_.32
$region0: #{_lambda_.32}
  #allocation0 [shape = 'u32[]', space=smem, size = 0x4, offset = 0x4, fixed_abs, tag = 'smem constant byte address 0x4 - core index']
  #allocation1 [shape = 'u32[72,128]{1,0:T(1,128)}', space=vmem, size = 0x9000, scoped, tag = 'internal scratch']
  %s0 = inlined_call_operand.vmem [shape: f32[512,256], index: 0, kind: input, shape index: {}]
  %s1 = inlined_call_operand.vmem [shape: bf16[256,512], index: 1, kind: input, shape index: {}]
  %s2 = inlined_call_operand.vmem [shape: f32[1,512], index: 2, kind: input, shape index: {}]
  %s3 = inlined_call_operand.vmem [shape: f32[512,512], index: 3, kind: output, shape index: {}]
  %s4 = sld [smem:[#allocation0]]
  $region45: #{_lambda_.32} parent=0
    _
  %s6 = ssub.s32 1, %s4
  %s7 = scalar_select 0, %s6, %s4
  loop: start=0, step=1, limit=6
  $region2: #{_lambda_.32} parent=0 // loop_pre_header
    _
  $region3: #{_lambda_.32} parent=0 // loop_header
    %s9 = sphi 0, %s13
    %p10 = scmp.ge.s32.totalorder %s9, 6
    %s16 = sphi 0, %s28
    %s17 = sphi 0, %s24
    %s18 = sphi 0, %s16
    %s19 = sphi 0, %s17
    %s20 = sphi 0, %s18
    %s21 = sphi 0, %s19
    %s31 = sphi 0, %s33
    %s34 = sphi 0, %s31
    %s35 = sphi 0, %s34
    %s51 = sphi 0, %s35
    %s57 = sphi 0, %s59
    %s60 = sphi 0, %s57
    %s61 = sphi 0, %s60
    %s77 = sphi 0, %s61
    %s83 = sphi 0, %s85
    %s86 = sphi 0, %s83
    %s87 = sphi 0, %s86
    %s103 = sphi 0, %s87
    %s111 = sphi 0, %s113
    %s114 = sphi 0, %s111
    %s115 = sphi 0, %s114
    %s131 = sphi 0, %s115
  $region4: #{_lambda_.32} parent=0 // loop_header_branch
    %12 = sbr.rel (%p10) target = $region8
  $region5: #{_lambda_.32} parent=0 // loop_body
    %s14 = ssub.s32 %s9, 1
    %s15 = ssub.s32 %s9, 2
    %s22 = sadd.s32 1, %s17
    %p23 = scmp.ge.s32.totalorder %s22, 4
    %s24 = scalar_select %p23, 0, %s22
    %s25 = sadd.s32 1, %s16
    %s26 = scalar_select %p23, %s25, %s16
    %p27 = scmp.ge.s32.totalorder %s26, 1
    %s28 = scalar_select %p27, 0, %s26
    %s29 = ssub.s32 %s17, %s24
    %p30 = scmp.eq.s32.totalorder %s29, 0
    %s32 = sadd.s32 %s31, 1
    %s33 = scalar_select %p30, %s31, %s32
    %p36 = pneg %p30
    %p37 = scmp.eq.s32.totalorder %s9, 3
    %p38 = por %p36, %p37
    %p39 = scmp.ne.s32.totalorder %s31, %s34
    %p40 = scmp.eq.s32.totalorder %s9, 0
    %p41 = por %p39, %p40
    %p42 = scmp.ne.s32.totalorder %s31, %s34
    %p43 = scmp.eq.s32.totalorder %s14, 3
    %p44 = por %p42, %p43
    %p45 = scmp.ne.s32.totalorder %s34, %s35
    %p46 = scmp.eq.s32.totalorder %s14, 0
    %p47 = por %p45, %p46
    %p48 = scmp.ne.s32.totalorder %s34, %s35
    %p49 = scmp.eq.s32.totalorder %s15, 3
    %p50 = por %p48, %p49
    %p52 = scmp.ne.s32.totalorder %s35, %s51
    %p53 = scmp.eq.s32.totalorder %s15, 0
    %p54 = por %p52, %p53
    %s55 = ssub.s32 %s16, %s28
    %p56 = scmp.eq.s32.totalorder %s55, 0
    %s58 = sadd.s32 %s57, 1
    %s59 = scalar_select %p56, %s57, %s58
    %p62 = pneg %p56
    %p63 = scmp.eq.s32.totalorder %s9, 3
    %p64 = por %p62, %p63
    %p65 = scmp.ne.s32.totalorder %s57, %s60
    %p66 = scmp.eq.s32.totalorder %s9, 0
    %p67 = por %p65, %p66
    %p68 = scmp.ne.s32.totalorder %s57, %s60
    %p69 = scmp.eq.s32.totalorder %s14, 3
    %p70 = por %p68, %p69
    %p71 = scmp.ne.s32.totalorder %s60, %s61
    %p72 = scmp.eq.s32.totalorder %s14, 0
    %p73 = por %p71, %p72
    %p74 = scmp.ne.s32.totalorder %s60, %s61
    %p75 = scmp.eq.s32.totalorder %s15, 3
    %p76 = por %p74, %p75
    %p78 = scmp.ne.s32.totalorder %s61, %s77
    %p79 = scmp.eq.s32.totalorder %s15, 0
    %p80 = por %p78, %p79
    %s81 = ssub.s32 %s16, %s28
    %p82 = scmp.eq.s32.totalorder %s81, 0
    %s84 = sadd.s32 %s83, 1
    %s85 = scalar_select %p82, %s83, %s84
    %p88 = pneg %p82
    %p89 = scmp.eq.s32.totalorder %s9, 3
    %p90 = por %p88, %p89
    %p91 = scmp.ne.s32.totalorder %s83, %s86
    %p92 = scmp.eq.s32.totalorder %s9, 0
    %p93 = por %p91, %p92
    %p94 = scmp.ne.s32.totalorder %s83, %s86
    %p95 = scmp.eq.s32.totalorder %s14, 3
    %p96 = por %p94, %p95
    %p97 = scmp.ne.s32.totalorder %s86, %s87
    %p98 = scmp.eq.s32.totalorder %s14, 0
    %p99 = por %p97, %p98
    %p100 = scmp.ne.s32.totalorder %s86, %s87
    %p101 = scmp.eq.s32.totalorder %s15, 3
    %p102 = por %p100, %p101
    %p104 = scmp.ne.s32.totalorder %s87, %s103
    %p105 = scmp.eq.s32.totalorder %s15, 0
    %p106 = por %p104, %p105
    %s107 = ssub.s32 %s17, %s24
    %s108 = ssub.s32 %s16, %s28
    %s109 = sor.u32 %s107, %s108
    %p110 = scmp.eq.s32.totalorder %s109, 0
    %s112 = sadd.s32 %s111, 1
    %s113 = scalar_select %p110, %s111, %s112
    %p116 = pneg %p110
    %p117 = scmp.eq.s32.totalorder %s9, 3
    %p118 = por %p116, %p117
    %p119 = scmp.ne.s32.totalorder %s111, %s114
    %p120 = scmp.eq.s32.totalorder %s9, 0
    %p121 = por %p119, %p120
    %p122 = scmp.ne.s32.totalorder %s111, %s114
    %p123 = scmp.eq.s32.totalorder %s14, 3
    %p124 = por %p122, %p123
    %p125 = scmp.ne.s32.totalorder %s114, %s115
    %p126 = scmp.eq.s32.totalorder %s14, 0
    %p127 = por %p125, %p126
    %p128 = scmp.ne.s32.totalorder %s114, %s115
    %p129 = scmp.eq.s32.totalorder %s15, 3
    %p130 = por %p128, %p129
    %p132 = scmp.ne.s32.totalorder %s115, %s131
    %p133 = scmp.eq.s32.totalorder %s15, 0
    %p134 = por %p132, %p133
    %p135 = scmp.le.s32.totalorder 1, %s9
    %p136 = scmp.lt.s32.totalorder %s9, 5
    %p137 = pnand %p135, %p136
    %p138 = pneg %p137
    // Predicated region
    $region9: #{_lambda_.32} parent=5 // pred_check
      _
    $region10: #{_lambda_.32} parent=5 // pred_check_branch
      %140 = sbr.rel (%p137) target = $region12
    $region11: #{_lambda_.32} parent=5 // pred_region
      %s141 = ssub.s32 %s9, 1
      // Predicated region
      $region13: #{_lambda_.32} parent=11 // pred_check
        %p142 = pneg %p73
      $region14: #{_lambda_.32} parent=11 // pred_check_branch
        %144 = sbr.rel (%p142) target = $region16
      $region15: #{_lambda_.32} parent=11 // pred_region
        %s145 = smul.u32 4, %s18
        %p146 = scmp.lt.s32.totalorder %s145, 3
        %s147 = scalar_select %p146, %s145, 3
        %s148 = smul.addr %s147, 4
        %s149 = scalar_lea.vmem %s1, %s148
        %s150 = smul.u32 4, %s18
      $region16: #{_lambda_.32} parent=11 // pred_fallthru
        _
      // Predicated region
      $region17: #{_lambda_.32} parent=11 // pred_check
        %p151 = pneg %p99
      $region18: #{_lambda_.32} parent=11 // pred_check_branch
        %153 = sbr.rel (%p151) target = $region20
      $region19: #{_lambda_.32} parent=11 // pred_region
        %s154 = smul.u32 4, %s18
        %p155 = scmp.lt.s32.totalorder %s154, 3
        %s156 = scalar_select %p155, %s154, 3
        %s157 = scalar_lea.vmem %s2, %s156
        %s158 = smul.u32 4, %s18
      $region20: #{_lambda_.32} parent=11 // pred_fallthru
        _
    $region12: #{_lambda_.32} parent=5 // pred_fallthru
      _
    %p159 = scmp.lt.s32.totalorder %s9, 4
    // Predicated region
    $region21: #{_lambda_.32} parent=5 // pred_check
      %p160 = pneg %p159
    $region22: #{_lambda_.32} parent=5 // pred_check_branch
      %162 = sbr.rel (%p160) target = $region24
    $region23: #{_lambda_.32} parent=5 // pred_region
      // Predicated region
      $region25: #{_lambda_.32} parent=23 // pred_check
        %p163 = pneg %p41
      $region26: #{_lambda_.32} parent=23 // pred_check_branch
        %165 = sbr.rel (%p163) target = $region28
      $region27: #{_lambda_.32} parent=23 // pred_region
        %s166 = smul.u32 16, %s17
        %p167 = scmp.lt.s32.totalorder %s166, 63
        %s168 = scalar_select %p167, %s166, 63
        %s169 = smul.addr %s168, 2
        %s170 = smul.addr %s169, 8
        %s171 = scalar_lea.vmem %s0, %s170
        %s172 = smul.u32 16, %s17
      $region28: #{_lambda_.32} parent=23 // pred_fallthru
        _
    $region24: #{_lambda_.32} parent=5 // pred_fallthru
      _
    %p173 = scmp.le.s32.totalorder 1, %s9
    %p174 = scmp.lt.s32.totalorder %s9, 5
    %p175 = pnand %p173, %p174
    %p176 = pneg %p175
    // Predicated region
    $region29: #{_lambda_.32} parent=5 // pred_check
      _
    $region30: #{_lambda_.32} parent=5 // pred_check_branch
      %178 = sbr.rel (%p175) target = $region32
    $region31: #{_lambda_.32} parent=5 // pred_region
      %s179 = ssub.s32 %s9, 1
      %s180 = smul.u32 16, %s19
      %p181 = scmp.lt.s32.totalorder %s180, 63
      %s182 = scalar_select %p181, %s180, 63
      %s183 = smul.addr %s182, 2
      %s184 = smul.addr %s183, 8
      %s185 = scalar_lea.vmem %s0, %s184
      %p186 = pneg %p47
      %p187 = pneg %p44
      %s188 = smul.u32 4, %s18
      %p189 = scmp.lt.s32.totalorder %s188, 3
      %s190 = scalar_select %p189, %s188, 3
      %s191 = smul.addr %s190, 4
      %s192 = scalar_lea.vmem %s1, %s191
      %p193 = pneg %p73
      %p194 = pneg %p70
      %s195 = smul.u32 4, %s18
      %p196 = scmp.lt.s32.totalorder %s195, 3
      %s197 = scalar_select %p196, %s195, 3
      %s198 = scalar_lea.vmem %s2, %s197
      %p199 = pneg %p99
      %p200 = pneg %p96
      %p201 = pneg %p127
      %p202 = pneg %p124
      %s203 = smul.u32 16, %s19
      %s204 = smul.u32 4, %s18
      %p205 = scmp.lt.s32.totalorder %s203, 63
      %s206 = scalar_select %p205, %s203, 63
      %p207 = scmp.lt.s32.totalorder %s204, 3
      %s208 = scalar_select %p207, %s204, 3
      %s209 = smul.addr %s206, 4
      %s210 = sadd.s32 %s208, %s209
      %s211 = smul.addr %s210, 8
      %s212 = scalar_lea.vmem %s3, %s211
      %s213 = smul.u32 16, %s19
      %p214 = scmp.lt.s32.totalorder %s213, 63
      %s215 = scalar_select %p214, %s213, 63
      %s216 = smul.addr %s215, 2
      %s217 = smul.addr %s216, 8
      %s218 = scalar_lea.vmem %s0, %s217
      %s219 = smul.u32 16, %s19
      %s220 = smul.u32 4, %s18
      %p221 = scmp.lt.s32.totalorder %s220, 3
      %s222 = scalar_select %p221, %s220, 3
      %s223 = smul.addr %s222, 4
      %s224 = scalar_lea.vmem %s1, %s223
      %s225 = smul.u32 4, %s18
      %s226 = smul.u32 4, %s18
      %p227 = scmp.lt.s32.totalorder %s226, 3
      %s228 = scalar_select %p227, %s226, 3
      %s229 = scalar_lea.vmem %s2, %s228
      %s230 = smul.u32 4, %s18
      %s231 = smul.u32 16, %s19
      %s232 = smul.u32 4, %s18
      %p233 = scmp.lt.s32.totalorder %s231, 63
      %s234 = scalar_select %p233, %s231, 63
      %p235 = scmp.lt.s32.totalorder %s232, 3
      %s236 = scalar_select %p235, %s232, 3
      %s237 = smul.addr %s234, 4
      %s238 = sadd.s32 %s236, %s237
      %s239 = smul.addr %s238, 8
      %s240 = scalar_lea.vmem %s3, %s239
      %s241 = smul.u32 16, %s19
      %s242 = smul.u32 4, %s18
      %v243 = vld [vmem:[%s218] sm:$0xff]
      %v244 = vld [vmem:[%s218 + $0x8] sm:$0xff]
      %v245 = vld [vmem:[%s218 + $0x10] sm:$0xff]
      %v246 = vld [vmem:[%s218 + $0x18] sm:$0xff]
      %v247 = vld [vmem:[%s218 + $0x20] sm:$0xff]
      %v248 = vld [vmem:[%s218 + $0x28] sm:$0xff]
      %v249 = vld [vmem:[%s218 + $0x30] sm:$0xff]
      %v250 = vld [vmem:[%s218 + $0x38] sm:$0xff]
      %v251 = vld [vmem:[%s218 + $0x40] sm:$0xff]
      %v252 = vld [vmem:[%s218 + $0x48] sm:$0xff]
      %v253 = vld [vmem:[%s218 + $0x50] sm:$0xff]
      %v254 = vld [vmem:[%s218 + $0x58] sm:$0xff]
      %v255 = vld [vmem:[%s218 + $0x60] sm:$0xff]
      %v256 = vld [vmem:[%s218 + $0x68] sm:$0xff]
      %v257 = vld [vmem:[%s218 + $0x70] sm:$0xff]
      %v258 = vld [vmem:[%s218 + $0x78] sm:$0xff]
      %v259 = vld [vmem:[%s218 + $0x80] sm:$0xff]
      %v260 = vld [vmem:[%s218 + $0x88] sm:$0xff]
      %v261 = vld [vmem:[%s218 + $0x90] sm:$0xff]
      %v262 = vld [vmem:[%s218 + $0x98] sm:$0xff]
      %v263 = vld [vmem:[%s218 + $0xa0] sm:$0xff]
      %v264 = vld [vmem:[%s218 + $0xa8] sm:$0xff]
      %v265 = vld [vmem:[%s218 + $0xb0] sm:$0xff]
      %v266 = vld [vmem:[%s218 + $0xb8] sm:$0xff]
      %v267 = vld [vmem:[%s218 + $0xc0] sm:$0xff]
      %v268 = vld [vmem:[%s218 + $0xc8] sm:$0xff]
      %v269 = vld [vmem:[%s218 + $0xd0] sm:$0xff]
      %v270 = vld [vmem:[%s218 + $0xd8] sm:$0xff]
      %v271 = vld [vmem:[%s218 + $0xe0] sm:$0xff]
      %v272 = vld [vmem:[%s218 + $0xe8] sm:$0xff]
      %v273 = vld [vmem:[%s218 + $0xf0] sm:$0xff]
      %v274 = vld [vmem:[%s218 + $0xf8] sm:$0xff]
      %v275 = vpack.c.bf16 %v245, %v243
      %v276 = vpack.c.bf16 %v246, %v244
      %v277 = vpack.c.bf16 %v249, %v247
      %v278 = vpack.c.bf16 %v250, %v248
      %v279 = vpack.c.bf16 %v253, %v251
      %v280 = vpack.c.bf16 %v254, %v252
      %v281 = vpack.c.bf16 %v257, %v255
      %v282 = vpack.c.bf16 %v258, %v256
      %v283 = vpack.c.bf16 %v261, %v259
      %v284 = vpack.c.bf16 %v262, %v260
      %v285 = vpack.c.bf16 %v265, %v263
      %v286 = vpack.c.bf16 %v266, %v264
      %v287 = vpack.c.bf16 %v269, %v267
      %v288 = vpack.c.bf16 %v270, %v268
      %v289 = vpack.c.bf16 %v273, %v271
      %v290 = vpack.c.bf16 %v274, %v272
      %v291 = vld [vmem:[%s224] sm:$0xff]
      %v292 = vld [vmem:[%s224 + $0x8] sm:$0xff]
      %v293 = vld [vmem:[%s224 + $0x10] sm:$0xff]
      %v294 = vld [vmem:[%s224 + $0x18] sm:$0xff]
      %v295 = vld [vmem:[%s224 + $0x20] sm:$0xff]
      %v296 = vld [vmem:[%s224 + $0x28] sm:$0xff]
      %v297 = vld [vmem:[%s224 + $0x30] sm:$0xff]
      %v298 = vld [vmem:[%s224 + $0x38] sm:$0xff]
      %v299 = vld [vmem:[%s224 + $0x40] sm:$0xff]
      %v300 = vld [vmem:[%s224 + $0x48] sm:$0xff]
      %v301 = vld [vmem:[%s224 + $0x50] sm:$0xff]
      %v302 = vld [vmem:[%s224 + $0x58] sm:$0xff]
      %v303 = vld [vmem:[%s224 + $0x60] sm:$0xff]
      %v304 = vld [vmem:[%s224 + $0x68] sm:$0xff]
      %v305 = vld [vmem:[%s224 + $0x70] sm:$0xff]
      %v306 = vld [vmem:[%s224 + $0x78] sm:$0xff]
      %v307 = vld [vmem:[%s224 + $0x80] sm:$0xff]
      %v308 = vld [vmem:[%s224 + $0x88] sm:$0xff]
      %v309 = vld [vmem:[%s224 + $0x90] sm:$0xff]
      %v310 = vld [vmem:[%s224 + $0x98] sm:$0xff]
      %v311 = vld [vmem:[%s224 + $0xa0] sm:$0xff]
      %v312 = vld [vmem:[%s224 + $0xa8] sm:$0xff]
      %v313 = vld [vmem:[%s224 + $0xb0] sm:$0xff]
      %v314 = vld [vmem:[%s224 + $0xb8] sm:$0xff]
      %v315 = vld [vmem:[%s224 + $0xc0] sm:$0xff]
      %v316 = vld [vmem:[%s224 + $0xc8] sm:$0xff]
      %v317 = vld [vmem:[%s224 + $0xd0] sm:$0xff]
      %v318 = vld [vmem:[%s224 + $0xd8] sm:$0xff]
      %v319 = vld [vmem:[%s224 + $0xe0] sm:$0xff]
      %v320 = vld [vmem:[%s224 + $0xe8] sm:$0xff]
      %v321 = vld [vmem:[%s224 + $0xf0] sm:$0xff]
      %v322 = vld [vmem:[%s224 + $0xf8] sm:$0xff]
      %v323 = vld [vmem:[%s224 + $0x100] sm:$0xff]
      %v324 = vld [vmem:[%s224 + $0x108] sm:$0xff]
      %v325 = vld [vmem:[%s224 + $0x110] sm:$0xff]
      %v326 = vld [vmem:[%s224 + $0x118] sm:$0xff]
      %v327 = vld [vmem:[%s224 + $0x120] sm:$0xff]
      %v328 = vld [vmem:[%s224 + $0x128] sm:$0xff]
      %v329 = vld [vmem:[%s224 + $0x130] sm:$0xff]
      %v330 = vld [vmem:[%s224 + $0x138] sm:$0xff]
      %v331 = vld [vmem:[%s224 + $0x140] sm:$0xff]
      %v332 = vld [vmem:[%s224 + $0x148] sm:$0xff]
      %v333 = vld [vmem:[%s224 + $0x150] sm:$0xff]
      %v334 = vld [vmem:[%s224 + $0x158] sm:$0xff]
      %v335 = vld [vmem:[%s224 + $0x160] sm:$0xff]
      %v336 = vld [vmem:[%s224 + $0x168] sm:$0xff]
      %v337 = vld [vmem:[%s224 + $0x170] sm:$0xff]
      %v338 = vld [vmem:[%s224 + $0x178] sm:$0xff]
      %v339 = vld [vmem:[%s224 + $0x180] sm:$0xff]
      %v340 = vld [vmem:[%s224 + $0x188] sm:$0xff]
      %v341 = vld [vmem:[%s224 + $0x190] sm:$0xff]
      %v342 = vld [vmem:[%s224 + $0x198] sm:$0xff]
      %v343 = vld [vmem:[%s224 + $0x1a0] sm:$0xff]
      %v344 = vld [vmem:[%s224 + $0x1a8] sm:$0xff]
      %v345 = vld [vmem:[%s224 + $0x1b0] sm:$0xff]
      %v346 = vld [vmem:[%s224 + $0x1b8] sm:$0xff]
      %v347 = vld [vmem:[%s224 + $0x1c0] sm:$0xff]
      %v348 = vld [vmem:[%s224 + $0x1c8] sm:$0xff]
      %v349 = vld [vmem:[%s224 + $0x1d0] sm:$0xff]
      %v350 = vld [vmem:[%s224 + $0x1d8] sm:$0xff]
      %v351 = vld [vmem:[%s224 + $0x1e0] sm:$0xff]
      %v352 = vld [vmem:[%s224 + $0x1e8] sm:$0xff]
      %v353 = vld [vmem:[%s224 + $0x1f0] sm:$0xff]
      %v354 = vld [vmem:[%s224 + $0x1f8] sm:$0xff]
      %v355 = vld [vmem:[%s229] sm:$0xf]
      %v357 = vperm.slane %v355, 0
      %v358 = vperm.slane %v355, 1
      %v359 = vperm.slane %v355, 2
      %v360 = vperm.slane %v355, 3
      %v429 = vunpack.c.l.b16 %v291
      %v430 = vunpack.c.h.b16 %v291
      %v431 = vunpack.c.l.b16 %v292
      %v432 = vunpack.c.h.b16 %v292
      %v433 = vunpack.c.l.b16 %v293
      %v434 = vunpack.c.h.b16 %v293
      %v435 = vunpack.c.l.b16 %v294
      %v436 = vunpack.c.h.b16 %v294
      %v437 = vunpack.c.l.b16 %v295
      %v438 = vunpack.c.h.b16 %v295
      %v439 = vunpack.c.l.b16 %v296
      %v440 = vunpack.c.h.b16 %v296
      %v441 = vunpack.c.l.b16 %v297
      %v442 = vunpack.c.h.b16 %v297
      %v443 = vunpack.c.l.b16 %v298
      %v444 = vunpack.c.h.b16 %v298
      %v445 = vunpack.c.l.b16 %v299
      %v446 = vunpack.c.h.b16 %v299
      %v447 = vunpack.c.l.b16 %v300
      %v448 = vunpack.c.h.b16 %v300
      %v449 = vunpack.c.l.b16 %v301
      %v450 = vunpack.c.h.b16 %v301
      %v451 = vunpack.c.l.b16 %v302
      %v452 = vunpack.c.h.b16 %v302
      %v453 = vunpack.c.l.b16 %v303
      %v454 = vunpack.c.h.b16 %v303
      %v455 = vunpack.c.l.b16 %v304
      %v456 = vunpack.c.h.b16 %v304
      %v457 = vunpack.c.l.b16 %v305
      %v458 = vunpack.c.h.b16 %v305
      %v459 = vunpack.c.l.b16 %v306
      %v460 = vunpack.c.h.b16 %v306
      %v461 = vunpack.c.l.b16 %v307
      %v462 = vunpack.c.h.b16 %v307
      %v463 = vunpack.c.l.b16 %v308
      %v464 = vunpack.c.h.b16 %v308
      %v465 = vunpack.c.l.b16 %v309
      %v466 = vunpack.c.h.b16 %v309
      %v467 = vunpack.c.l.b16 %v310
      %v468 = vunpack.c.h.b16 %v310
      %v469 = vunpack.c.l.b16 %v311
      %v470 = vunpack.c.h.b16 %v311
      %v471 = vunpack.c.l.b16 %v312
      %v472 = vunpack.c.h.b16 %v312
      %v473 = vunpack.c.l.b16 %v313
      %v474 = vunpack.c.h.b16 %v313
      %v475 = vunpack.c.l.b16 %v314
      %v476 = vunpack.c.h.b16 %v314
      %v477 = vunpack.c.l.b16 %v315
      %v478 = vunpack.c.h.b16 %v315
      %v479 = vunpack.c.l.b16 %v316
      %v480 = vunpack.c.h.b16 %v316
      %v481 = vunpack.c.l.b16 %v317
      %v482 = vunpack.c.h.b16 %v317
      %v483 = vunpack.c.l.b16 %v318
      %v484 = vunpack.c.h.b16 %v318
      %v485 = vunpack.c.l.b16 %v319
      %v486 = vunpack.c.h.b16 %v319
      %v487 = vunpack.c.l.b16 %v320
      %v488 = vunpack.c.h.b16 %v320
      %v489 = vunpack.c.l.b16 %v321
      %v490 = vunpack.c.h.b16 %v321
      %v491 = vunpack.c.l.b16 %v322
      %v492 = vunpack.c.h.b16 %v322
      %v493 = vunpack.c.l.b16 %v323
      %v494 = vunpack.c.h.b16 %v323
      %v495 = vunpack.c.l.b16 %v324
      %v496 = vunpack.c.h.b16 %v324
      %v497 = vunpack.c.l.b16 %v325
      %v498 = vunpack.c.h.b16 %v325
      %v499 = vunpack.c.l.b16 %v326
      %v500 = vunpack.c.h.b16 %v326
      %v501 = vunpack.c.l.b16 %v327
      %v502 = vunpack.c.h.b16 %v327
      %v503 = vunpack.c.l.b16 %v328
      %v504 = vunpack.c.h.b16 %v328
      %v505 = vunpack.c.l.b16 %v329
      %v506 = vunpack.c.h.b16 %v329
      %v507 = vunpack.c.l.b16 %v330
      %v508 = vunpack.c.h.b16 %v330
      %v509 = vunpack.c.l.b16 %v331
      %v510 = vunpack.c.h.b16 %v331
      %v511 = vunpack.c.l.b16 %v332
      %v512 = vunpack.c.h.b16 %v332
      %v513 = vunpack.c.l.b16 %v333
      %v514 = vunpack.c.h.b16 %v333
      %v515 = vunpack.c.l.b16 %v334
      %v516 = vunpack.c.h.b16 %v334
      %v517 = vunpack.c.l.b16 %v335
      %v518 = vunpack.c.h.b16 %v335
      %v519 = vunpack.c.l.b16 %v336
      %v520 = vunpack.c.h.b16 %v336
      %v521 = vunpack.c.l.b16 %v337
      %v522 = vunpack.c.h.b16 %v337
      %v523 = vunpack.c.l.b16 %v338
      %v524 = vunpack.c.h.b16 %v338
      %v525 = vunpack.c.l.b16 %v339
      %v526 = vunpack.c.h.b16 %v339
      %v527 = vunpack.c.l.b16 %v340
      %v528 = vunpack.c.h.b16 %v340
      %v529 = vunpack.c.l.b16 %v341
      %v530 = vunpack.c.h.b16 %v341
      %v531 = vunpack.c.l.b16 %v342
      %v532 = vunpack.c.h.b16 %v342
      %v533 = vunpack.c.l.b16 %v343
      %v534 = vunpack.c.h.b16 %v343
      %v535 = vunpack.c.l.b16 %v344
      %v536 = vunpack.c.h.b16 %v344
      %v537 = vunpack.c.l.b16 %v345
      %v538 = vunpack.c.h.b16 %v345
      %v539 = vunpack.c.l.b16 %v346
      %v540 = vunpack.c.h.b16 %v346
      %v541 = vunpack.c.l.b16 %v347
      %v542 = vunpack.c.h.b16 %v347
      %v543 = vunpack.c.l.b16 %v348
      %v544 = vunpack.c.h.b16 %v348
      %v545 = vunpack.c.l.b16 %v349
      %v546 = vunpack.c.h.b16 %v349
      %v547 = vunpack.c.l.b16 %v350
      %v548 = vunpack.c.h.b16 %v350
      %v549 = vunpack.c.l.b16 %v351
      %v550 = vunpack.c.h.b16 %v351
      %v551 = vunpack.c.l.b16 %v352
      %v552 = vunpack.c.h.b16 %v352
      %v553 = vunpack.c.l.b16 %v353
      %v554 = vunpack.c.h.b16 %v353
      %v555 = vunpack.c.l.b16 %v354
      %v556 = vunpack.c.h.b16 %v354
      %v557 = vpack.c.b16 %v433, %v429
      %v558 = vpack.c.b16 %v434, %v430
      %v559 = vpack.c.b16 %v435, %v431
      %v560 = vpack.c.b16 %v436, %v432
      %v561 = vpack.c.b16 %v441, %v437
      %v562 = vpack.c.b16 %v442, %v438
      %v563 = vpack.c.b16 %v443, %v439
      %v564 = vpack.c.b16 %v444, %v440
      %v565 = vpack.c.b16 %v449, %v445
      %v566 = vpack.c.b16 %v450, %v446
      %v567 = vpack.c.b16 %v451, %v447
      %v568 = vpack.c.b16 %v452, %v448
      %v569 = vpack.c.b16 %v457, %v453
      %v570 = vpack.c.b16 %v458, %v454
      %v571 = vpack.c.b16 %v459, %v455
      %v572 = vpack.c.b16 %v460, %v456
      %v573 = vpack.c.b16 %v465, %v461
      %v574 = vpack.c.b16 %v466, %v462
      %v575 = vpack.c.b16 %v467, %v463
      %v576 = vpack.c.b16 %v468, %v464
      %v577 = vpack.c.b16 %v473, %v469
      %v578 = vpack.c.b16 %v474, %v470
      %v579 = vpack.c.b16 %v475, %v471
      %v580 = vpack.c.b16 %v476, %v472
      %v581 = vpack.c.b16 %v481, %v477
      %v582 = vpack.c.b16 %v482, %v478
      %v583 = vpack.c.b16 %v483, %v479
      %v584 = vpack.c.b16 %v484, %v480
      %v585 = vpack.c.b16 %v489, %v485
      %v586 = vpack.c.b16 %v490, %v486
      %v587 = vpack.c.b16 %v491, %v487
      %v588 = vpack.c.b16 %v492, %v488
      %v589 = vpack.c.b16 %v497, %v493
      %v590 = vpack.c.b16 %v498, %v494
      %v591 = vpack.c.b16 %v499, %v495
      %v592 = vpack.c.b16 %v500, %v496
      %v593 = vpack.c.b16 %v505, %v501
      %v594 = vpack.c.b16 %v506, %v502
      %v595 = vpack.c.b16 %v507, %v503
      %v596 = vpack.c.b16 %v508, %v504
      %v597 = vpack.c.b16 %v513, %v509
      %v598 = vpack.c.b16 %v514, %v510
      %v599 = vpack.c.b16 %v515, %v511
      %v600 = vpack.c.b16 %v516, %v512
      %v601 = vpack.c.b16 %v521, %v517
      %v602 = vpack.c.b16 %v522, %v518
      %v603 = vpack.c.b16 %v523, %v519
      %v604 = vpack.c.b16 %v524, %v520
      %v605 = vpack.c.b16 %v529, %v525
      %v606 = vpack.c.b16 %v530, %v526
      %v607 = vpack.c.b16 %v531, %v527
      %v608 = vpack.c.b16 %v532, %v528
      %v609 = vpack.c.b16 %v537, %v533
      %v610 = vpack.c.b16 %v538, %v534
      %v611 = vpack.c.b16 %v539, %v535
      %v612 = vpack.c.b16 %v540, %v536
      %v613 = vpack.c.b16 %v545, %v541
      %v614 = vpack.c.b16 %v546, %v542
      %v615 = vpack.c.b16 %v547, %v543
      %v616 = vpack.c.b16 %v548, %v544
      %v617 = vpack.c.b16 %v553, %v549
      %v618 = vpack.c.b16 %v554, %v550
      %v619 = vpack.c.b16 %v555, %v551
      %v620 = vpack.c.b16 %v556, %v552
      %685 = vmatpush.bf16.msra.mxu0 %v585
      %686 = vmatpush.bf16.msra.mxu0 %v581
      %687 = vmatpush.bf16.msra.mxu0 %v577
      %688 = vmatpush.bf16.msra.mxu0 %v573
      %689 = vmatpush.bf16.msra.mxu0 %v569
      %690 = vmatpush.bf16.msra.mxu0 %v565
      %691 = vmatpush.bf16.msra.mxu0 %v561
      %692 = vmatpush.bf16.msra.mxu0 %v557
      %693 = vmatmul.bf16.gmra.mxu0 %v275
      %v694 = vpop.f32.mrf.mxu0
      %v695 = vadd.f32 %v357, %v694
      %v696 = vpop.f32.mrf.mxu0
      %v697 = vadd.f32 %v357, %v696
      %698 = vmatmul.bf16.gmra.mxu0 %v277
      %v699 = vpop.f32.mrf.mxu0
      %v700 = vadd.f32 %v357, %v699
      %v701 = vpop.f32.mrf.mxu0
      %v702 = vadd.f32 %v357, %v701
      %703 = vmatmul.bf16.gmra.mxu0 %v279
      %v704 = vpop.f32.mrf.mxu0
      %v705 = vadd.f32 %v357, %v704
      %v706 = vpop.f32.mrf.mxu0
      %v707 = vadd.f32 %v357, %v706
      %708 = vmatmul.bf16.gmra.mxu0 %v281
      %v709 = vpop.f32.mrf.mxu0
      %v710 = vadd.f32 %v357, %v709
      %v711 = vpop.f32.mrf.mxu0
      %v712 = vadd.f32 %v357, %v711
      %713 = vmatmul.bf16.gmra.mxu0 %v283
      %v714 = vpop.f32.mrf.mxu0
      %v715 = vadd.f32 %v357, %v714
      %v716 = vpop.f32.mrf.mxu0
      %v717 = vadd.f32 %v357, %v716
      %718 = vmatmul.bf16.gmra.mxu0 %v285
      %v719 = vpop.f32.mrf.mxu0
      %v720 = vadd.f32 %v357, %v719
      %v721 = vpop.f32.mrf.mxu0
      %v722 = vadd.f32 %v357, %v721
      %723 = vmatmul.bf16.gmra.mxu0 %v287
      %v724 = vpop.f32.mrf.mxu0
      %v725 = vadd.f32 %v357, %v724
      %v726 = vpop.f32.mrf.mxu0
      %v727 = vadd.f32 %v357, %v726
      %728 = vmatmul.bf16.gmra.mxu0 %v289
      %v729 = vpop.f32.mrf.mxu0
      %v730 = vadd.f32 %v357, %v729
      %v731 = vpop.f32.mrf.mxu0
      %v732 = vadd.f32 %v357, %v731
      %733 = vdwg.mxu0
      %734 = vmatpush.bf16.msra.mxu0 %v617
      %735 = vmatpush.bf16.msra.mxu0 %v613
      %736 = vmatpush.bf16.msra.mxu0 %v609
      %737 = vmatpush.bf16.msra.mxu0 %v605
      %738 = vmatpush.bf16.msra.mxu0 %v601
      %739 = vmatpush.bf16.msra.mxu0 %v597
      %740 = vmatpush.bf16.msra.mxu0 %v593
      %741 = vmatpush.bf16.msra.mxu0 %v589
      %742 = vmatmul.bf16.gmra.mxu0 %v276
      %v743 = vpop.f32.mrf.mxu0
      %v744 = vadd.f32 %v695, %v743
      %v745 = vpop.f32.mrf.mxu0
      %v746 = vadd.f32 %v697, %v745
      %747 = vmatmul.bf16.gmra.mxu0 %v278
      %v748 = vpop.f32.mrf.mxu0
      %v749 = vadd.f32 %v700, %v748
      %v750 = vpop.f32.mrf.mxu0
      %v751 = vadd.f32 %v702, %v750
      %752 = vmatmul.bf16.gmra.mxu0 %v280
      %v753 = vpop.f32.mrf.mxu0
      %v754 = vadd.f32 %v705, %v753
      %v755 = vpop.f32.mrf.mxu0
      %v756 = vadd.f32 %v707, %v755
      %757 = vmatmul.bf16.gmra.mxu0 %v282
      %v758 = vpop.f32.mrf.mxu0
      %v759 = vadd.f32 %v710, %v758
      %v760 = vpop.f32.mrf.mxu0
      %v761 = vadd.f32 %v712, %v760
      %762 = vmatmul.bf16.gmra.mxu0 %v284
      %v763 = vpop.f32.mrf.mxu0
      %v764 = vadd.f32 %v715, %v763
      %v765 = vpop.f32.mrf.mxu0
      %v766 = vadd.f32 %v717, %v765
      %767 = vmatmul.bf16.gmra.mxu0 %v286
      %v768 = vpop.f32.mrf.mxu0
      %v769 = vadd.f32 %v720, %v768
      %v770 = vpop.f32.mrf.mxu0
      %v771 = vadd.f32 %v722, %v770
      %772 = vmatmul.bf16.gmra.mxu0 %v288
      %v773 = vpop.f32.mrf.mxu0
      %v774 = vadd.f32 %v725, %v773
      %v775 = vpop.f32.mrf.mxu0
      %v776 = vadd.f32 %v727, %v775
      %777 = vmatmul.bf16.gmra.mxu0 %v290
      %v778 = vpop.f32.mrf.mxu0
      %v779 = vadd.f32 %v730, %v778
      %v780 = vpop.f32.mrf.mxu0
      %v781 = vadd.f32 %v732, %v780
      %782 = vdwg.mxu0
      %783 = vmatpush.bf16.msra.mxu0 %v586
      %784 = vmatpush.bf16.msra.mxu0 %v582
      %785 = vmatpush.bf16.msra.mxu0 %v578
      %786 = vmatpush.bf16.msra.mxu0 %v574
      %787 = vmatpush.bf16.msra.mxu0 %v570
      %788 = vmatpush.bf16.msra.mxu0 %v566
      %789 = vmatpush.bf16.msra.mxu0 %v562
      %790 = vmatpush.bf16.msra.mxu0 %v558
      %791 = vmatmul.bf16.gmra.mxu0 %v275
      %v792 = vpop.f32.mrf.mxu0
      %v793 = vadd.f32 %v358, %v792
      %v794 = vpop.f32.mrf.mxu0
      %v795 = vadd.f32 %v358, %v794
      %796 = vmatmul.bf16.gmra.mxu0 %v277
      %v797 = vpop.f32.mrf.mxu0
      %v798 = vadd.f32 %v358, %v797
      %v799 = vpop.f32.mrf.mxu0
      %v800 = vadd.f32 %v358, %v799
      %801 = vmatmul.bf16.gmra.mxu0 %v279
      %v802 = vpop.f32.mrf.mxu0
      %v803 = vadd.f32 %v358, %v802
      %v804 = vpop.f32.mrf.mxu0
      %v805 = vadd.f32 %v358, %v804
      %806 = vmatmul.bf16.gmra.mxu0 %v281
      %v807 = vpop.f32.mrf.mxu0
      %v808 = vadd.f32 %v358, %v807
      %v809 = vpop.f32.mrf.mxu0
      %v810 = vadd.f32 %v358, %v809
      %811 = vmatmul.bf16.gmra.mxu0 %v283
      %v812 = vpop.f32.mrf.mxu0
      %v813 = vadd.f32 %v358, %v812
      %v814 = vpop.f32.mrf.mxu0
      %v815 = vadd.f32 %v358, %v814
      %816 = vmatmul.bf16.gmra.mxu0 %v285
      %v817 = vpop.f32.mrf.mxu0
      %v818 = vadd.f32 %v358, %v817
      %v819 = vpop.f32.mrf.mxu0
      %v820 = vadd.f32 %v358, %v819
      %821 = vmatmul.bf16.gmra.mxu0 %v287
      %v822 = vpop.f32.mrf.mxu0
      %v823 = vadd.f32 %v358, %v822
      %v824 = vpop.f32.mrf.mxu0
      %v825 = vadd.f32 %v358, %v824
      %826 = vmatmul.bf16.gmra.mxu0 %v289
      %v827 = vpop.f32.mrf.mxu0
      %v828 = vadd.f32 %v358, %v827
      %v829 = vpop.f32.mrf.mxu0
      %v830 = vadd.f32 %v358, %v829
      %831 = vdwg.mxu0
      %832 = vmatpush.bf16.msra.mxu0 %v618
      %833 = vmatpush.bf16.msra.mxu0 %v614
      %834 = vmatpush.bf16.msra.mxu0 %v610
      %835 = vmatpush.bf16.msra.mxu0 %v606
      %836 = vmatpush.bf16.msra.mxu0 %v602
      %837 = vmatpush.bf16.msra.mxu0 %v598
      %838 = vmatpush.bf16.msra.mxu0 %v594
      %839 = vmatpush.bf16.msra.mxu0 %v590
      %840 = vmatmul.bf16.gmra.mxu0 %v276
      %v841 = vpop.f32.mrf.mxu0
      %v842 = vadd.f32 %v793, %v841
      %v843 = vpop.f32.mrf.mxu0
      %v844 = vadd.f32 %v795, %v843
      %845 = vmatmul.bf16.gmra.mxu0 %v278
      %v846 = vpop.f32.mrf.mxu0
      %v847 = vadd.f32 %v798, %v846
      %v848 = vpop.f32.mrf.mxu0
      %v849 = vadd.f32 %v800, %v848
      %850 = vmatmul.bf16.gmra.mxu0 %v280
      %v851 = vpop.f32.mrf.mxu0
      %v852 = vadd.f32 %v803, %v851
      %v853 = vpop.f32.mrf.mxu0
      %v854 = vadd.f32 %v805, %v853
      %855 = vmatmul.bf16.gmra.mxu0 %v282
      %v856 = vpop.f32.mrf.mxu0
      %v857 = vadd.f32 %v808, %v856
      %v858 = vpop.f32.mrf.mxu0
      %v859 = vadd.f32 %v810, %v858
      %860 = vmatmul.bf16.gmra.mxu0 %v284
      %v861 = vpop.f32.mrf.mxu0
      %v862 = vadd.f32 %v813, %v861
      %v863 = vpop.f32.mrf.mxu0
      %v864 = vadd.f32 %v815, %v863
      %865 = vmatmul.bf16.gmra.mxu0 %v286
      %v866 = vpop.f32.mrf.mxu0
      %v867 = vadd.f32 %v818, %v866
      %v868 = vpop.f32.mrf.mxu0
      %v869 = vadd.f32 %v820, %v868
      %870 = vmatmul.bf16.gmra.mxu0 %v288
      %v871 = vpop.f32.mrf.mxu0
      %v872 = vadd.f32 %v823, %v871
      %v873 = vpop.f32.mrf.mxu0
      %v874 = vadd.f32 %v825, %v873
      %875 = vmatmul.bf16.gmra.mxu0 %v290
      %v876 = vpop.f32.mrf.mxu0
      %v877 = vadd.f32 %v828, %v876
      %v878 = vpop.f32.mrf.mxu0
      %v879 = vadd.f32 %v830, %v878
      %880 = vdwg.mxu0
      %881 = vmatpush.bf16.msra.mxu0 %v587
      %882 = vmatpush.bf16.msra.mxu0 %v583
      %883 = vmatpush.bf16.msra.mxu0 %v579
      %884 = vmatpush.bf16.msra.mxu0 %v575
      %885 = vmatpush.bf16.msra.mxu0 %v571
      %886 = vmatpush.bf16.msra.mxu0 %v567
      %887 = vmatpush.bf16.msra.mxu0 %v563
      %888 = vmatpush.bf16.msra.mxu0 %v559
      %889 = vmatmul.bf16.gmra.mxu0 %v275
      %v890 = vpop.f32.mrf.mxu0
      %v891 = vadd.f32 %v359, %v890
      %v892 = vpop.f32.mrf.mxu0
      %v893 = vadd.f32 %v359, %v892
      %894 = vmatmul.bf16.gmra.mxu0 %v277
      %v895 = vpop.f32.mrf.mxu0
      %v896 = vadd.f32 %v359, %v895
      %v897 = vpop.f32.mrf.mxu0
      %v898 = vadd.f32 %v359, %v897
      %899 = vmatmul.bf16.gmra.mxu0 %v279
      %v900 = vpop.f32.mrf.mxu0
      %v901 = vadd.f32 %v359, %v900
      %v902 = vpop.f32.mrf.mxu0
      %v903 = vadd.f32 %v359, %v902
      %904 = vmatmul.bf16.gmra.mxu0 %v281
      %v905 = vpop.f32.mrf.mxu0
      %v906 = vadd.f32 %v359, %v905
      %v907 = vpop.f32.mrf.mxu0
      %v908 = vadd.f32 %v359, %v907
      %909 = vmatmul.bf16.gmra.mxu0 %v283
      %v910 = vpop.f32.mrf.mxu0
      %v911 = vadd.f32 %v359, %v910
      %v912 = vpop.f32.mrf.mxu0
      %v913 = vadd.f32 %v359, %v912
      %914 = vmatmul.bf16.gmra.mxu0 %v285
      %v915 = vpop.f32.mrf.mxu0
      %v916 = vadd.f32 %v359, %v915
      %v917 = vpop.f32.mrf.mxu0
      %v918 = vadd.f32 %v359, %v917
      %919 = vmatmul.bf16.gmra.mxu0 %v287
      %v920 = vpop.f32.mrf.mxu0
      %v921 = vadd.f32 %v359, %v920
      %v922 = vpop.f32.mrf.mxu0
      %v923 = vadd.f32 %v359, %v922
      %924 = vmatmul.bf16.gmra.mxu0 %v289
      %v925 = vpop.f32.mrf.mxu0
      %v926 = vadd.f32 %v359, %v925
      %v927 = vpop.f32.mrf.mxu0
      %v928 = vadd.f32 %v359, %v927
      %929 = vdwg.mxu0
      %930 = vmatpush.bf16.msra.mxu0 %v619
      %931 = vmatpush.bf16.msra.mxu0 %v615
      %932 = vmatpush.bf16.msra.mxu0 %v611
      %933 = vmatpush.bf16.msra.mxu0 %v607
      %934 = vmatpush.bf16.msra.mxu0 %v603
      %935 = vmatpush.bf16.msra.mxu0 %v599
      %936 = vmatpush.bf16.msra.mxu0 %v595
      %937 = vmatpush.bf16.msra.mxu0 %v591
      %938 = vmatmul.bf16.gmra.mxu0 %v276
      %v939 = vpop.f32.mrf.mxu0
      %v940 = vadd.f32 %v891, %v939
      %v941 = vpop.f32.mrf.mxu0
      %v942 = vadd.f32 %v893, %v941
      %943 = vmatmul.bf16.gmra.mxu0 %v278
      %v944 = vpop.f32.mrf.mxu0
      %v945 = vadd.f32 %v896, %v944
      %v946 = vpop.f32.mrf.mxu0
      %v947 = vadd.f32 %v898, %v946
      %948 = vmatmul.bf16.gmra.mxu0 %v280
      %v949 = vpop.f32.mrf.mxu0
      %v950 = vadd.f32 %v901, %v949
      %v951 = vpop.f32.mrf.mxu0
      %v952 = vadd.f32 %v903, %v951
      %953 = vmatmul.bf16.gmra.mxu0 %v282
      %v954 = vpop.f32.mrf.mxu0
      %v955 = vadd.f32 %v906, %v954
      %v956 = vpop.f32.mrf.mxu0
      %v957 = vadd.f32 %v908, %v956
      %958 = vmatmul.bf16.gmra.mxu0 %v284
      %v959 = vpop.f32.mrf.mxu0
      %v960 = vadd.f32 %v911, %v959
      %v961 = vpop.f32.mrf.mxu0
      %v962 = vadd.f32 %v913, %v961
      %963 = vmatmul.bf16.gmra.mxu0 %v286
      %v964 = vpop.f32.mrf.mxu0
      %v965 = vadd.f32 %v916, %v964
      %v966 = vpop.f32.mrf.mxu0
      %v967 = vadd.f32 %v918, %v966
      %968 = vmatmul.bf16.gmra.mxu0 %v288
      %v969 = vpop.f32.mrf.mxu0
      %v970 = vadd.f32 %v921, %v969
      %v971 = vpop.f32.mrf.mxu0
      %v972 = vadd.f32 %v923, %v971
      %973 = vmatmul.bf16.gmra.mxu0 %v290
      %v974 = vpop.f32.mrf.mxu0
      %v975 = vadd.f32 %v926, %v974
      %v976 = vpop.f32.mrf.mxu0
      %v977 = vadd.f32 %v928, %v976
      %978 = vdwg.mxu0
      %979 = vmatpush.bf16.msra.mxu0 %v588
      %980 = vmatpush.bf16.msra.mxu0 %v584
      %981 = vmatpush.bf16.msra.mxu0 %v580
      %982 = vmatpush.bf16.msra.mxu0 %v576
      %983 = vmatpush.bf16.msra.mxu0 %v572
      %984 = vmatpush.bf16.msra.mxu0 %v568
      %985 = vmatpush.bf16.msra.mxu0 %v564
      %986 = vmatpush.bf16.msra.mxu0 %v560
      %987 = vmatmul.bf16.gmra.mxu0 %v275
      %v988 = vpop.f32.mrf.mxu0
      %v989 = vadd.f32 %v360, %v988
      %v990 = vpop.f32.mrf.mxu0
      %v991 = vadd.f32 %v360, %v990
      %992 = vmatmul.bf16.gmra.mxu0 %v277
      %v993 = vpop.f32.mrf.mxu0
      %v994 = vadd.f32 %v360, %v993
      %v995 = vpop.f32.mrf.mxu0
      %v996 = vadd.f32 %v360, %v995
      %997 = vmatmul.bf16.gmra.mxu0 %v279
      %v998 = vpop.f32.mrf.mxu0
      %v999 = vadd.f32 %v360, %v998
      %v1000 = vpop.f32.mrf.mxu0
      %v1001 = vadd.f32 %v360, %v1000
      %1002 = vmatmul.bf16.gmra.mxu0 %v281
      %v1003 = vpop.f32.mrf.mxu0
      %v1004 = vadd.f32 %v360, %v1003
      %v1005 = vpop.f32.mrf.mxu0
      %v1006 = vadd.f32 %v360, %v1005
      %1007 = vmatmul.bf16.gmra.mxu0 %v283
      %v1008 = vpop.f32.mrf.mxu0
      %v1009 = vadd.f32 %v360, %v1008
      %v1010 = vpop.f32.mrf.mxu0
      %v1011 = vadd.f32 %v360, %v1010
      %1012 = vmatmul.bf16.gmra.mxu0 %v285
      %v1013 = vpop.f32.mrf.mxu0
      %v1014 = vadd.f32 %v360, %v1013
      %v1015 = vpop.f32.mrf.mxu0
      %v1016 = vadd.f32 %v360, %v1015
      %1017 = vmatmul.bf16.gmra.mxu0 %v287
      %v1018 = vpop.f32.mrf.mxu0
      %v1019 = vadd.f32 %v360, %v1018
      %v1020 = vpop.f32.mrf.mxu0
      %v1021 = vadd.f32 %v360, %v1020
      %1022 = vmatmul.bf16.gmra.mxu0 %v289
      %v1023 = vpop.f32.mrf.mxu0
      %v1024 = vadd.f32 %v360, %v1023
      %v1025 = vpop.f32.mrf.mxu0
      %v1026 = vadd.f32 %v360, %v1025
      %1027 = vdwg.mxu0
      %1028 = vmatpush.bf16.msra.mxu0 %v620
      %1029 = vmatpush.bf16.msra.mxu0 %v616
      %1030 = vmatpush.bf16.msra.mxu0 %v612
      %1031 = vmatpush.bf16.msra.mxu0 %v608
      %1032 = vmatpush.bf16.msra.mxu0 %v604
      %1033 = vmatpush.bf16.msra.mxu0 %v600
      %1034 = vmatpush.bf16.msra.mxu0 %v596
      %1035 = vmatpush.bf16.msra.mxu0 %v592
      %1036 = vmatmul.bf16.gmra.mxu0 %v276
      %v1037 = vpop.f32.mrf.mxu0
      %v1038 = vadd.f32 %v989, %v1037
      %v1039 = vpop.f32.mrf.mxu0
      %v1040 = vadd.f32 %v991, %v1039
      %1041 = vmatmul.bf16.gmra.mxu0 %v278
      %v1042 = vpop.f32.mrf.mxu0
      %v1043 = vadd.f32 %v994, %v1042
      %v1044 = vpop.f32.mrf.mxu0
      %v1045 = vadd.f32 %v996, %v1044
      %1046 = vmatmul.bf16.gmra.mxu0 %v280
      %v1047 = vpop.f32.mrf.mxu0
      %v1048 = vadd.f32 %v999, %v1047
      %v1049 = vpop.f32.mrf.mxu0
      %v1050 = vadd.f32 %v1001, %v1049
      %1051 = vmatmul.bf16.gmra.mxu0 %v282
      %v1052 = vpop.f32.mrf.mxu0
      %v1053 = vadd.f32 %v1004, %v1052
      %v1054 = vpop.f32.mrf.mxu0
      %v1055 = vadd.f32 %v1006, %v1054
      %1056 = vmatmul.bf16.gmra.mxu0 %v284
      %v1057 = vpop.f32.mrf.mxu0
      %v1058 = vadd.f32 %v1009, %v1057
      %v1059 = vpop.f32.mrf.mxu0
      %v1060 = vadd.f32 %v1011, %v1059
      %1061 = vmatmul.bf16.gmra.mxu0 %v286
      %v1062 = vpop.f32.mrf.mxu0
      %v1063 = vadd.f32 %v1014, %v1062
      %v1064 = vpop.f32.mrf.mxu0
      %v1065 = vadd.f32 %v1016, %v1064
      %1066 = vmatmul.bf16.gmra.mxu0 %v288
      %v1067 = vpop.f32.mrf.mxu0
      %v1068 = vadd.f32 %v1019, %v1067
      %v1069 = vpop.f32.mrf.mxu0
      %v1070 = vadd.f32 %v1021, %v1069
      %1071 = vmatmul.bf16.gmra.mxu0 %v290
      %v1072 = vpop.f32.mrf.mxu0
      %v1073 = vadd.f32 %v1024, %v1072
      %v1074 = vpop.f32.mrf.mxu0
      %v1075 = vadd.f32 %v1026, %v1074
      %1076 = vdwg.mxu0
      %v1077 = vmax.f32 %v744, 0.0
      %v1078 = vmax.f32 %v842, 0.0
      %v1079 = vmax.f32 %v940, 0.0
      %v1080 = vmax.f32 %v1038, 0.0
      %v1081 = vmax.f32 %v746, 0.0
      %v1082 = vmax.f32 %v844, 0.0
      %v1083 = vmax.f32 %v942, 0.0
      %v1084 = vmax.f32 %v1040, 0.0
      %v1085 = vmax.f32 %v749, 0.0
      %v1086 = vmax.f32 %v847, 0.0
      %v1087 = vmax.f32 %v945, 0.0
      %v1088 = vmax.f32 %v1043, 0.0
      %v1089 = vmax.f32 %v751, 0.0
      %v1090 = vmax.f32 %v849, 0.0
      %v1091 = vmax.f32 %v947, 0.0
      %v1092 = vmax.f32 %v1045, 0.0
      %v1093 = vmax.f32 %v754, 0.0
      %v1094 = vmax.f32 %v852, 0.0
      %v1095 = vmax.f32 %v950, 0.0
      %v1096 = vmax.f32 %v1048, 0.0
      %v1097 = vmax.f32 %v756, 0.0
      %v1098 = vmax.f32 %v854, 0.0
      %v1099 = vmax.f32 %v952, 0.0
      %v1100 = vmax.f32 %v1050, 0.0
      %v1101 = vmax.f32 %v759, 0.0
      %v1102 = vmax.f32 %v857, 0.0
      %v1103 = vmax.f32 %v955, 0.0
      %v1104 = vmax.f32 %v1053, 0.0
      %v1105 = vmax.f32 %v761, 0.0
      %v1106 = vmax.f32 %v859, 0.0
      %v1107 = vmax.f32 %v957, 0.0
      %v1108 = vmax.f32 %v1055, 0.0
      %v1109 = vmax.f32 %v764, 0.0
      %v1110 = vmax.f32 %v862, 0.0
      %v1111 = vmax.f32 %v960, 0.0
      %v1112 = vmax.f32 %v1058, 0.0
      %v1113 = vmax.f32 %v766, 0.0
      %v1114 = vmax.f32 %v864, 0.0
      %v1115 = vmax.f32 %v962, 0.0
      %v1116 = vmax.f32 %v1060, 0.0
      %v1117 = vmax.f32 %v769, 0.0
      %v1118 = vmax.f32 %v867, 0.0
      %v1119 = vmax.f32 %v965, 0.0
      %v1120 = vmax.f32 %v1063, 0.0
      %v1121 = vmax.f32 %v771, 0.0
      %v1122 = vmax.f32 %v869, 0.0
      %v1123 = vmax.f32 %v967, 0.0
      %v1124 = vmax.f32 %v1065, 0.0
      %v1125 = vmax.f32 %v774, 0.0
      %v1126 = vmax.f32 %v872, 0.0
      %v1127 = vmax.f32 %v970, 0.0
      %v1128 = vmax.f32 %v1068, 0.0
      %v1129 = vmax.f32 %v776, 0.0
      %v1130 = vmax.f32 %v874, 0.0
      %v1131 = vmax.f32 %v972, 0.0
      %v1132 = vmax.f32 %v1070, 0.0
      %v1133 = vmax.f32 %v779, 0.0
      %v1134 = vmax.f32 %v877, 0.0
      %v1135 = vmax.f32 %v975, 0.0
      %v1136 = vmax.f32 %v1073, 0.0
      %v1137 = vmax.f32 %v781, 0.0
      %v1138 = vmax.f32 %v879, 0.0
      %v1139 = vmax.f32 %v977, 0.0
      %v1140 = vmax.f32 %v1075, 0.0
      %1141 = vst [vmem:[%s240] sm:$0xff] %v1077
      %1142 = vst [vmem:[%s240 + $0x8] sm:$0xff] %v1078
      %1143 = vst [vmem:[%s240 + $0x10] sm:$0xff] %v1079
      %1144 = vst [vmem:[%s240 + $0x18] sm:$0xff] %v1080
      %1145 = vst [vmem:[%s240 + $0x20] sm:$0xff] %v1081
      %1146 = vst [vmem:[%s240 + $0x28] sm:$0xff] %v1082
      %1147 = vst [vmem:[%s240 + $0x30] sm:$0xff] %v1083
      %1148 = vst [vmem:[%s240 + $0x38] sm:$0xff] %v1084
      %1149 = vst [vmem:[%s240 + $0x40] sm:$0xff] %v1085
      %1150 = vst [vmem:[%s240 + $0x48] sm:$0xff] %v1086
      %1151 = vst [vmem:[%s240 + $0x50] sm:$0xff] %v1087
      %1152 = vst [vmem:[%s240 + $0x58] sm:$0xff] %v1088
      %1153 = vst [vmem:[%s240 + $0x60] sm:$0xff] %v1089
      %1154 = vst [vmem:[%s240 + $0x68] sm:$0xff] %v1090
      %1155 = vst [vmem:[%s240 + $0x70] sm:$0xff] %v1091
      %1156 = vst [vmem:[%s240 + $0x78] sm:$0xff] %v1092
      %1157 = vst [vmem:[%s240 + $0x80] sm:$0xff] %v1093
      %1158 = vst [vmem:[%s240 + $0x88] sm:$0xff] %v1094
      %1159 = vst [vmem:[%s240 + $0x90] sm:$0xff] %v1095
      %1160 = vst [vmem:[%s240 + $0x98] sm:$0xff] %v1096
      %1161 = vst [vmem:[%s240 + $0xa0] sm:$0xff] %v1097
      %1162 = vst [vmem:[%s240 + $0xa8] sm:$0xff] %v1098
      %1163 = vst [vmem:[%s240 + $0xb0] sm:$0xff] %v1099
      %1164 = vst [vmem:[%s240 + $0xb8] sm:$0xff] %v1100
      %1165 = vst [vmem:[%s240 + $0xc0] sm:$0xff] %v1101
      %1166 = vst [vmem:[%s240 + $0xc8] sm:$0xff] %v1102
      %1167 = vst [vmem:[%s240 + $0xd0] sm:$0xff] %v1103
      %1168 = vst [vmem:[%s240 + $0xd8] sm:$0xff] %v1104
      %1169 = vst [vmem:[%s240 + $0xe0] sm:$0xff] %v1105
      %1170 = vst [vmem:[%s240 + $0xe8] sm:$0xff] %v1106
      %1171 = vst [vmem:[%s240 + $0xf0] sm:$0xff] %v1107
      %1172 = vst [vmem:[%s240 + $0xf8] sm:$0xff] %v1108
      %1173 = vst [vmem:[%s240 + $0x100] sm:$0xff] %v1109
      %1174 = vst [vmem:[%s240 + $0x108] sm:$0xff] %v1110
      %1175 = vst [vmem:[%s240 + $0x110] sm:$0xff] %v1111
      %1176 = vst [vmem:[%s240 + $0x118] sm:$0xff] %v1112
      %1177 = vst [vmem:[%s240 + $0x120] sm:$0xff] %v1113
      %1178 = vst [vmem:[%s240 + $0x128] sm:$0xff] %v1114
      %1179 = vst [vmem:[%s240 + $0x130] sm:$0xff] %v1115
      %1180 = vst [vmem:[%s240 + $0x138] sm:$0xff] %v1116
      %1181 = vst [vmem:[%s240 + $0x140] sm:$0xff] %v1117
      %1182 = vst [vmem:[%s240 + $0x148] sm:$0xff] %v1118
      %1183 = vst [vmem:[%s240 + $0x150] sm:$0xff] %v1119
      %1184 = vst [vmem:[%s240 + $0x158] sm:$0xff] %v1120
      %1185 = vst [vmem:[%s240 + $0x160] sm:$0xff] %v1121
      %1186 = vst [vmem:[%s240 + $0x168] sm:$0xff] %v1122
      %1187 = vst [vmem:[%s240 + $0x170] sm:$0xff] %v1123
      %1188 = vst [vmem:[%s240 + $0x178] sm:$0xff] %v1124
      %1189 = vst [vmem:[%s240 + $0x180] sm:$0xff] %v1125
      %1190 = vst [vmem:[%s240 + $0x188] sm:$0xff] %v1126
      %1191 = vst [vmem:[%s240 + $0x190] sm:$0xff] %v1127
      %1192 = vst [vmem:[%s240 + $0x198] sm:$0xff] %v1128
      %1193 = vst [vmem:[%s240 + $0x1a0] sm:$0xff] %v1129
      %1194 = vst [vmem:[%s240 + $0x1a8] sm:$0xff] %v1130
      %1195 = vst [vmem:[%s240 + $0x1b0] sm:$0xff] %v1131
      %1196 = vst [vmem:[%s240 + $0x1b8] sm:$0xff] %v1132
      %1197 = vst [vmem:[%s240 + $0x1c0] sm:$0xff] %v1133
      %1198 = vst [vmem:[%s240 + $0x1c8] sm:$0xff] %v1134
      %1199 = vst [vmem:[%s240 + $0x1d0] sm:$0xff] %v1135
      %1200 = vst [vmem:[%s240 + $0x1d8] sm:$0xff] %v1136
      %1201 = vst [vmem:[%s240 + $0x1e0] sm:$0xff] %v1137
      %1202 = vst [vmem:[%s240 + $0x1e8] sm:$0xff] %v1138
      %1203 = vst [vmem:[%s240 + $0x1f0] sm:$0xff] %v1139
      %1204 = vst [vmem:[%s240 + $0x1f8] sm:$0xff] %v1140
      %s1205 = smul.u32 16, %s19
      %s1206 = smul.u32 4, %s18
      %p1207 = scmp.lt.s32.totalorder %s1205, 63
      %s1208 = scalar_select %p1207, %s1205, 63
      %p1209 = scmp.lt.s32.totalorder %s1206, 3
      %s1210 = scalar_select %p1209, %s1206, 3
      %s1211 = smul.addr %s1208, 4
      %s1212 = sadd.s32 %s1210, %s1211
      %s1213 = smul.addr %s1212, 8
      %s1214 = scalar_lea.vmem %s3, %s1213
      // Predicated region
      $region33: #{_lambda_.32} parent=31 // pred_check
        %p1215 = pneg %p124
      $region34: #{_lambda_.32} parent=31 // pred_check_branch
        %1217 = sbr.rel (%p1215) target = $region36
      $region35: #{_lambda_.32} parent=31 // pred_region
        %s1218 = smul.u32 16, %s19
        %s1219 = smul.u32 4, %s18
      $region36: #{_lambda_.32} parent=31 // pred_fallthru
        _
    $region32: #{_lambda_.32} parent=5 // pred_fallthru
      _
    %p1220 = scmp.le.s32.totalorder 2, %s9
    // Predicated region
    $region37: #{_lambda_.32} parent=5 // pred_check
      %p1221 = pneg %p1220
    $region38: #{_lambda_.32} parent=5 // pred_check_branch
      %1223 = sbr.rel (%p1221) target = $region40
    $region39: #{_lambda_.32} parent=5 // pred_region
      %s1224 = ssub.s32 %s9, 2
      // Predicated region
      $region41: #{_lambda_.32} parent=39 // pred_check
        %p1225 = pneg %p130
      $region42: #{_lambda_.32} parent=39 // pred_check_branch
        %1227 = sbr.rel (%p1225) target = $region44
      $region43: #{_lambda_.32} parent=39 // pred_region
        %s1228 = smul.u32 16, %s21
        %s1229 = smul.u32 4, %s20
        %p1230 = scmp.lt.s32.totalorder %s1228, 63
        %s1231 = scalar_select %p1230, %s1228, 63
        %p1232 = scmp.lt.s32.totalorder %s1229, 3
        %s1233 = scalar_select %p1232, %s1229, 3
        %s1234 = smul.addr %s1231, 4
        %s1235 = sadd.s32 %s1233, %s1234
        %s1236 = smul.addr %s1235, 8
        %s1237 = scalar_lea.vmem %s3, %s1236
      $region44: #{_lambda_.32} parent=39 // pred_fallthru
        _
    $region40: #{_lambda_.32} parent=5 // pred_fallthru
      _
  $region6: #{_lambda_.32} parent=0 // loop_footer
    %s13 = sadd.s32 1, %s9
  $region7: #{_lambda_.32} parent=0 // loop_footer_branch
    %8 = sbr.rel target = $region3
  $region8: #{_lambda_.32} parent=0 // loop_exit
    _

// kernel: _lambda_.33
$region0: #{_lambda_.33}
  #allocation0 [shape = 'u32[]', space=smem, size = 0x4, offset = 0x4, fixed_abs, tag = 'smem constant byte address 0x4 - core index']
  #allocation1 [shape = 'u32[72,128]{1,0:T(1,128)}', space=vmem, size = 0x9000, scoped, tag = 'internal scratch']
  %s0 = inlined_call_operand.vmem [shape: f32[2048,128], index: 0, kind: input, shape index: {}]
  %s1 = inlined_call_operand.vmem [shape: bf16[128,128], index: 1, kind: input, shape index: {}]
  %s2 = inlined_call_operand.vmem [shape: f32[1,128], index: 2, kind: input, shape index: {}]
  %s3 = inlined_call_operand.vmem [shape: f32[2048,128], index: 3, kind: output, shape index: {}]
  %s4 = sld [smem:[#allocation0]]
  $region45: #{_lambda_.33} parent=0
    _
  %s6 = ssub.s32 1, %s4
  %s7 = scalar_select 0, %s6, %s4
  loop: start=0, step=1, limit=6
  $region2: #{_lambda_.33} parent=0 // loop_pre_header
    _
  $region3: #{_lambda_.33} parent=0 // loop_header
    %s9 = sphi 0, %s13
    %p10 = scmp.ge.s32.totalorder %s9, 6
    %s16 = sphi 0, %s28
    %s17 = sphi 0, %s24
    %s18 = sphi 0, %s16
    %s19 = sphi 0, %s17
    %s20 = sphi 0, %s18
    %s21 = sphi 0, %s19
    %s31 = sphi 0, %s33
    %s34 = sphi 0, %s31
    %s35 = sphi 0, %s34
    %s51 = sphi 0, %s35
    %s57 = sphi 0, %s59
    %s60 = sphi 0, %s57
    %s61 = sphi 0, %s60
    %s77 = sphi 0, %s61
    %s83 = sphi 0, %s85
    %s86 = sphi 0, %s83
    %s87 = sphi 0, %s86
    %s103 = sphi 0, %s87
    %s111 = sphi 0, %s113
    %s114 = sphi 0, %s111
    %s115 = sphi 0, %s114
    %s131 = sphi 0, %s115
  $region4: #{_lambda_.33} parent=0 // loop_header_branch
    %12 = sbr.rel (%p10) target = $region8
  $region5: #{_lambda_.33} parent=0 // loop_body
    %s14 = ssub.s32 %s9, 1
    %s15 = ssub.s32 %s9, 2
    %s22 = sadd.s32 1, %s17
    %p23 = scmp.ge.s32.totalorder %s22, 1
    %s24 = scalar_select %p23, 0, %s22
    %s25 = sadd.s32 1, %s16
    %s26 = scalar_select %p23, %s25, %s16
    %p27 = scmp.ge.s32.totalorder %s26, 4
    %s28 = scalar_select %p27, 0, %s26
    %s29 = ssub.s32 %s16, %s28
    %p30 = scmp.eq.s32.totalorder %s29, 0
    %s32 = sadd.s32 %s31, 1
    %s33 = scalar_select %p30, %s31, %s32
    %p36 = pneg %p30
    %p37 = scmp.eq.s32.totalorder %s9, 3
    %p38 = por %p36, %p37
    %p39 = scmp.ne.s32.totalorder %s31, %s34
    %p40 = scmp.eq.s32.totalorder %s9, 0
    %p41 = por %p39, %p40
    %p42 = scmp.ne.s32.totalorder %s31, %s34
    %p43 = scmp.eq.s32.totalorder %s14, 3
    %p44 = por %p42, %p43
    %p45 = scmp.ne.s32.totalorder %s34, %s35
    %p46 = scmp.eq.s32.totalorder %s14, 0
    %p47 = por %p45, %p46
    %p48 = scmp.ne.s32.totalorder %s34, %s35
    %p49 = scmp.eq.s32.totalorder %s15, 3
    %p50 = por %p48, %p49
    %p52 = scmp.ne.s32.totalorder %s35, %s51
    %p53 = scmp.eq.s32.totalorder %s15, 0
    %p54 = por %p52, %p53
    %s55 = ssub.s32 %s17, %s24
    %p56 = scmp.eq.s32.totalorder %s55, 0
    %s58 = sadd.s32 %s57, 1
    %s59 = scalar_select %p56, %s57, %s58
    %p62 = pneg %p56
    %p63 = scmp.eq.s32.totalorder %s9, 3
    %p64 = por %p62, %p63
    %p65 = scmp.ne.s32.totalorder %s57, %s60
    %p66 = scmp.eq.s32.totalorder %s9, 0
    %p67 = por %p65, %p66
    %p68 = scmp.ne.s32.totalorder %s57, %s60
    %p69 = scmp.eq.s32.totalorder %s14, 3
    %p70 = por %p68, %p69
    %p71 = scmp.ne.s32.totalorder %s60, %s61
    %p72 = scmp.eq.s32.totalorder %s14, 0
    %p73 = por %p71, %p72
    %p74 = scmp.ne.s32.totalorder %s60, %s61
    %p75 = scmp.eq.s32.totalorder %s15, 3
    %p76 = por %p74, %p75
    %p78 = scmp.ne.s32.totalorder %s61, %s77
    %p79 = scmp.eq.s32.totalorder %s15, 0
    %p80 = por %p78, %p79
    %s81 = ssub.s32 %s17, %s24
    %p82 = scmp.eq.s32.totalorder %s81, 0
    %s84 = sadd.s32 %s83, 1
    %s85 = scalar_select %p82, %s83, %s84
    %p88 = pneg %p82
    %p89 = scmp.eq.s32.totalorder %s9, 3
    %p90 = por %p88, %p89
    %p91 = scmp.ne.s32.totalorder %s83, %s86
    %p92 = scmp.eq.s32.totalorder %s9, 0
    %p93 = por %p91, %p92
    %p94 = scmp.ne.s32.totalorder %s83, %s86
    %p95 = scmp.eq.s32.totalorder %s14, 3
    %p96 = por %p94, %p95
    %p97 = scmp.ne.s32.totalorder %s86, %s87
    %p98 = scmp.eq.s32.totalorder %s14, 0
    %p99 = por %p97, %p98
    %p100 = scmp.ne.s32.totalorder %s86, %s87
    %p101 = scmp.eq.s32.totalorder %s15, 3
    %p102 = por %p100, %p101
    %p104 = scmp.ne.s32.totalorder %s87, %s103
    %p105 = scmp.eq.s32.totalorder %s15, 0
    %p106 = por %p104, %p105
    %s107 = ssub.s32 %s16, %s28
    %s108 = ssub.s32 %s17, %s24
    %s109 = sor.u32 %s107, %s108
    %p110 = scmp.eq.s32.totalorder %s109, 0
    %s112 = sadd.s32 %s111, 1
    %s113 = scalar_select %p110, %s111, %s112
    %p116 = pneg %p110
    %p117 = scmp.eq.s32.totalorder %s9, 3
    %p118 = por %p116, %p117
    %p119 = scmp.ne.s32.totalorder %s111, %s114
    %p120 = scmp.eq.s32.totalorder %s9, 0
    %p121 = por %p119, %p120
    %p122 = scmp.ne.s32.totalorder %s111, %s114
    %p123 = scmp.eq.s32.totalorder %s14, 3
    %p124 = por %p122, %p123
    %p125 = scmp.ne.s32.totalorder %s114, %s115
    %p126 = scmp.eq.s32.totalorder %s14, 0
    %p127 = por %p125, %p126
    %p128 = scmp.ne.s32.totalorder %s114, %s115
    %p129 = scmp.eq.s32.totalorder %s15, 3
    %p130 = por %p128, %p129
    %p132 = scmp.ne.s32.totalorder %s115, %s131
    %p133 = scmp.eq.s32.totalorder %s15, 0
    %p134 = por %p132, %p133
    %p135 = scmp.le.s32.totalorder 1, %s9
    %p136 = scmp.lt.s32.totalorder %s9, 5
    %p137 = pnand %p135, %p136
    %p138 = pneg %p137
    // Predicated region
    $region9: #{_lambda_.33} parent=5 // pred_check
      _
    $region10: #{_lambda_.33} parent=5 // pred_check_branch
      %140 = sbr.rel (%p137) target = $region12
    $region11: #{_lambda_.33} parent=5 // pred_region
      %s141 = ssub.s32 %s9, 1
      // Predicated region
      $region13: #{_lambda_.33} parent=11 // pred_check
        %p142 = pneg %p73
      $region14: #{_lambda_.33} parent=11 // pred_check_branch
        %144 = sbr.rel (%p142) target = $region16
      $region15: #{_lambda_.33} parent=11 // pred_region
        %p145 = scmp.lt.s32.totalorder %s19, 0
        %s146 = scalar_select %p145, %s19, 0
        %s147 = smul.addr %s146, 4
        %s148 = scalar_lea.vmem %s1, %s147
      $region16: #{_lambda_.33} parent=11 // pred_fallthru
        _
      // Predicated region
      $region17: #{_lambda_.33} parent=11 // pred_check
        %p149 = pneg %p99
      $region18: #{_lambda_.33} parent=11 // pred_check_branch
        %151 = sbr.rel (%p149) target = $region20
      $region19: #{_lambda_.33} parent=11 // pred_region
        %p152 = scmp.lt.s32.totalorder %s19, 0
        %s153 = scalar_select %p152, %s19, 0
        %s154 = scalar_lea.vmem %s2, %s153
      $region20: #{_lambda_.33} parent=11 // pred_fallthru
        _
    $region12: #{_lambda_.33} parent=5 // pred_fallthru
      _
    %p155 = scmp.lt.s32.totalorder %s9, 4
    // Predicated region
    $region21: #{_lambda_.33} parent=5 // pred_check
      %p156 = pneg %p155
    $region22: #{_lambda_.33} parent=5 // pred_check_branch
      %158 = sbr.rel (%p156) target = $region24
    $region23: #{_lambda_.33} parent=5 // pred_region
      // Predicated region
      $region25: #{_lambda_.33} parent=23 // pred_check
        %p159 = pneg %p41
      $region26: #{_lambda_.33} parent=23 // pred_check_branch
        %161 = sbr.rel (%p159) target = $region28
      $region27: #{_lambda_.33} parent=23 // pred_region
        %s162 = smul.u32 64, %s16
        %p163 = scmp.lt.s32.totalorder %s162, 255
        %s164 = scalar_select %p163, %s162, 255
        %s165 = smul.addr %s164, 8
        %s166 = scalar_lea.vmem %s0, %s165
        %s167 = smul.u32 64, %s16
      $region28: #{_lambda_.33} parent=23 // pred_fallthru
        _
    $region24: #{_lambda_.33} parent=5 // pred_fallthru
      _
    %p168 = scmp.le.s32.totalorder 1, %s9
    %p169 = scmp.lt.s32.totalorder %s9, 5
    %p170 = pnand %p168, %p169
    %p171 = pneg %p170
    // Predicated region
    $region29: #{_lambda_.33} parent=5 // pred_check
      _
    $region30: #{_lambda_.33} parent=5 // pred_check_branch
      %173 = sbr.rel (%p170) target = $region32
    $region31: #{_lambda_.33} parent=5 // pred_region
      %s174 = ssub.s32 %s9, 1
      %s175 = smul.u32 64, %s18
      %p176 = scmp.lt.s32.totalorder %s175, 255
      %s177 = scalar_select %p176, %s175, 255
      %s178 = smul.addr %s177, 8
      %s179 = scalar_lea.vmem %s0, %s178
      %p180 = pneg %p47
      %p181 = pneg %p44
      %p182 = scmp.lt.s32.totalorder %s19, 0
      %s183 = scalar_select %p182, %s19, 0
      %s184 = smul.addr %s183, 4
      %s185 = scalar_lea.vmem %s1, %s184
      %p186 = pneg %p73
      %p187 = pneg %p70
      %p188 = scmp.lt.s32.totalorder %s19, 0
      %s189 = scalar_select %p188, %s19, 0
      %s190 = scalar_lea.vmem %s2, %s189
      %p191 = pneg %p99
      %p192 = pneg %p96
      %p193 = pneg %p127
      %p194 = pneg %p124
      %s195 = smul.u32 64, %s18
      %p196 = scmp.lt.s32.totalorder %s195, 255
      %s197 = scalar_select %p196, %s195, 255
      %p198 = scmp.lt.s32.totalorder %s19, 0
      %s199 = scalar_select %p198, %s19, 0
      %s200 = sadd.s32 %s199, %s197
      %s201 = smul.addr %s200, 8
      %s202 = scalar_lea.vmem %s3, %s201
      %s203 = smul.u32 64, %s18
      %p204 = scmp.lt.s32.totalorder %s203, 255
      %s205 = scalar_select %p204, %s203, 255
      %s206 = smul.addr %s205, 8
      %s207 = scalar_lea.vmem %s0, %s206
      %s208 = smul.u32 64, %s18
      %p209 = scmp.lt.s32.totalorder %s19, 0
      %s210 = scalar_select %p209, %s19, 0
      %s211 = smul.addr %s210, 4
      %s212 = scalar_lea.vmem %s1, %s211
      %p213 = scmp.lt.s32.totalorder %s19, 0
      %s214 = scalar_select %p213, %s19, 0
      %s215 = scalar_lea.vmem %s2, %s214
      %s216 = smul.u32 64, %s18
      %p217 = scmp.lt.s32.totalorder %s216, 255
      %s218 = scalar_select %p217, %s216, 255
      %p219 = scmp.lt.s32.totalorder %s19, 0
      %s220 = scalar_select %p219, %s19, 0
      %s221 = sadd.s32 %s220, %s218
      %s222 = smul.addr %s221, 8
      %s223 = scalar_lea.vmem %s3, %s222
      %s224 = smul.u32 64, %s18
      %v225 = vld [vmem:[%s207] sm:$0xff]
      %v226 = vld [vmem:[%s207 + $0x8] sm:$0xff]
      %v227 = vld [vmem:[%s207 + $0x10] sm:$0xff]
      %v228 = vld [vmem:[%s207 + $0x18] sm:$0xff]
      %v229 = vld [vmem:[%s207 + $0x20] sm:$0xff]
      %v230 = vld [vmem:[%s207 + $0x28] sm:$0xff]
      %v231 = vld [vmem:[%s207 + $0x30] sm:$0xff]
      %v232 = vld [vmem:[%s207 + $0x38] sm:$0xff]
      %v233 = vld [vmem:[%s207 + $0x40] sm:$0xff]
      %v234 = vld [vmem:[%s207 + $0x48] sm:$0xff]
      %v235 = vld [vmem:[%s207 + $0x50] sm:$0xff]
      %v236 = vld [vmem:[%s207 + $0x58] sm:$0xff]
      %v237 = vld [vmem:[%s207 + $0x60] sm:$0xff]
      %v238 = vld [vmem:[%s207 + $0x68] sm:$0xff]
      %v239 = vld [vmem:[%s207 + $0x70] sm:$0xff]
      %v240 = vld [vmem:[%s207 + $0x78] sm:$0xff]
      %v241 = vld [vmem:[%s207 + $0x80] sm:$0xff]
      %v242 = vld [vmem:[%s207 + $0x88] sm:$0xff]
      %v243 = vld [vmem:[%s207 + $0x90] sm:$0xff]
      %v244 = vld [vmem:[%s207 + $0x98] sm:$0xff]
      %v245 = vld [vmem:[%s207 + $0xa0] sm:$0xff]
      %v246 = vld [vmem:[%s207 + $0xa8] sm:$0xff]
      %v247 = vld [vmem:[%s207 + $0xb0] sm:$0xff]
      %v248 = vld [vmem:[%s207 + $0xb8] sm:$0xff]
      %v249 = vld [vmem:[%s207 + $0xc0] sm:$0xff]
      %v250 = vld [vmem:[%s207 + $0xc8] sm:$0xff]
      %v251 = vld [vmem:[%s207 + $0xd0] sm:$0xff]
      %v252 = vld [vmem:[%s207 + $0xd8] sm:$0xff]
      %v253 = vld [vmem:[%s207 + $0xe0] sm:$0xff]
      %v254 = vld [vmem:[%s207 + $0xe8] sm:$0xff]
      %v255 = vld [vmem:[%s207 + $0xf0] sm:$0xff]
      %v256 = vld [vmem:[%s207 + $0xf8] sm:$0xff]
      %v257 = vld [vmem:[%s207 + $0x100] sm:$0xff]
      %v258 = vld [vmem:[%s207 + $0x108] sm:$0xff]
      %v259 = vld [vmem:[%s207 + $0x110] sm:$0xff]
      %v260 = vld [vmem:[%s207 + $0x118] sm:$0xff]
      %v261 = vld [vmem:[%s207 + $0x120] sm:$0xff]
      %v262 = vld [vmem:[%s207 + $0x128] sm:$0xff]
      %v263 = vld [vmem:[%s207 + $0x130] sm:$0xff]
      %v264 = vld [vmem:[%s207 + $0x138] sm:$0xff]
      %v265 = vld [vmem:[%s207 + $0x140] sm:$0xff]
      %v266 = vld [vmem:[%s207 + $0x148] sm:$0xff]
      %v267 = vld [vmem:[%s207 + $0x150] sm:$0xff]
      %v268 = vld [vmem:[%s207 + $0x158] sm:$0xff]
      %v269 = vld [vmem:[%s207 + $0x160] sm:$0xff]
      %v270 = vld [vmem:[%s207 + $0x168] sm:$0xff]
      %v271 = vld [vmem:[%s207 + $0x170] sm:$0xff]
      %v272 = vld [vmem:[%s207 + $0x178] sm:$0xff]
      %v273 = vld [vmem:[%s207 + $0x180] sm:$0xff]
      %v274 = vld [vmem:[%s207 + $0x188] sm:$0xff]
      %v275 = vld [vmem:[%s207 + $0x190] sm:$0xff]
      %v276 = vld [vmem:[%s207 + $0x198] sm:$0xff]
      %v277 = vld [vmem:[%s207 + $0x1a0] sm:$0xff]
      %v278 = vld [vmem:[%s207 + $0x1a8] sm:$0xff]
      %v279 = vld [vmem:[%s207 + $0x1b0] sm:$0xff]
      %v280 = vld [vmem:[%s207 + $0x1b8] sm:$0xff]
      %v281 = vld [vmem:[%s207 + $0x1c0] sm:$0xff]
      %v282 = vld [vmem:[%s207 + $0x1c8] sm:$0xff]
      %v283 = vld [vmem:[%s207 + $0x1d0] sm:$0xff]
      %v284 = vld [vmem:[%s207 + $0x1d8] sm:$0xff]
      %v285 = vld [vmem:[%s207 + $0x1e0] sm:$0xff]
      %v286 = vld [vmem:[%s207 + $0x1e8] sm:$0xff]
      %v287 = vld [vmem:[%s207 + $0x1f0] sm:$0xff]
      %v288 = vld [vmem:[%s207 + $0x1f8] sm:$0xff]
      %v289 = vpack.c.bf16 %v226, %v225
      %v290 = vpack.c.bf16 %v228, %v227
      %v291 = vpack.c.bf16 %v230, %v229
      %v292 = vpack.c.bf16 %v232, %v231
      %v293 = vpack.c.bf16 %v234, %v233
      %v294 = vpack.c.bf16 %v236, %v235
      %v295 = vpack.c.bf16 %v238, %v237
      %v296 = vpack.c.bf16 %v240, %v239
      %v297 = vpack.c.bf16 %v242, %v241
      %v298 = vpack.c.bf16 %v244, %v243
      %v299 = vpack.c.bf16 %v246, %v245
      %v300 = vpack.c.bf16 %v248, %v247
      %v301 = vpack.c.bf16 %v250, %v249
      %v302 = vpack.c.bf16 %v252, %v251
      %v303 = vpack.c.bf16 %v254, %v253
      %v304 = vpack.c.bf16 %v256, %v255
      %v305 = vpack.c.bf16 %v258, %v257
      %v306 = vpack.c.bf16 %v260, %v259
      %v307 = vpack.c.bf16 %v262, %v261
      %v308 = vpack.c.bf16 %v264, %v263
      %v309 = vpack.c.bf16 %v266, %v265
      %v310 = vpack.c.bf16 %v268, %v267
      %v311 = vpack.c.bf16 %v270, %v269
      %v312 = vpack.c.bf16 %v272, %v271
      %v313 = vpack.c.bf16 %v274, %v273
      %v314 = vpack.c.bf16 %v276, %v275
      %v315 = vpack.c.bf16 %v278, %v277
      %v316 = vpack.c.bf16 %v280, %v279
      %v317 = vpack.c.bf16 %v282, %v281
      %v318 = vpack.c.bf16 %v284, %v283
      %v319 = vpack.c.bf16 %v286, %v285
      %v320 = vpack.c.bf16 %v288, %v287
      %v321 = vld [vmem:[%s212] sm:$0xf]
      %v322 = vld [vmem:[%s212 + $0x4] sm:$0xf]
      %v323 = vld [vmem:[%s212 + $0x8] sm:$0xf]
      %v324 = vld [vmem:[%s212 + $0xc] sm:$0xf]
      %v325 = vld [vmem:[%s212 + $0x10] sm:$0xf]
      %v326 = vld [vmem:[%s212 + $0x14] sm:$0xf]
      %v327 = vld [vmem:[%s212 + $0x18] sm:$0xf]
      %v328 = vld [vmem:[%s212 + $0x1c] sm:$0xf]
      %v329 = vld [vmem:[%s212 + $0x20] sm:$0xf]
      %v330 = vld [vmem:[%s212 + $0x24] sm:$0xf]
      %v331 = vld [vmem:[%s212 + $0x28] sm:$0xf]
      %v332 = vld [vmem:[%s212 + $0x2c] sm:$0xf]
      %v333 = vld [vmem:[%s212 + $0x30] sm:$0xf]
      %v334 = vld [vmem:[%s212 + $0x34] sm:$0xf]
      %v335 = vld [vmem:[%s212 + $0x38] sm:$0xf]
      %v336 = vld [vmem:[%s212 + $0x3c] sm:$0xf]
      %v337 = vld [vmem:[%s215] sm:$0x1]
      %v339 = vperm.slane %v337, 0
      %v357 = vunpack.c.l.b16 %v321
      %v358 = vunpack.c.l.b16 %v322
      %v359 = vunpack.c.l.b16 %v323
      %v360 = vunpack.c.l.b16 %v324
      %v361 = vunpack.c.l.b16 %v325
      %v362 = vunpack.c.l.b16 %v326
      %v363 = vunpack.c.l.b16 %v327
      %v364 = vunpack.c.l.b16 %v328
      %v365 = vunpack.c.l.b16 %v329
      %v366 = vunpack.c.l.b16 %v330
      %v367 = vunpack.c.l.b16 %v331
      %v368 = vunpack.c.l.b16 %v332
      %v369 = vunpack.c.l.b16 %v333
      %v370 = vunpack.c.l.b16 %v334
      %v371 = vunpack.c.l.b16 %v335
      %v372 = vunpack.c.l.b16 %v336
      %v373 = vpack.c.b16 %v358, %v357
      %v374 = vpack.c.b16 %v360, %v359
      %v375 = vpack.c.b16 %v362, %v361
      %v376 = vpack.c.b16 %v364, %v363
      %v377 = vpack.c.b16 %v366, %v365
      %v378 = vpack.c.b16 %v368, %v367
      %v379 = vpack.c.b16 %v370, %v369
      %v380 = vpack.c.b16 %v372, %v371
      %389 = vmatpush.bf16.msra.mxu0 %v380
      %390 = vmatpush.bf16.msra.mxu0 %v379
      %391 = vmatpush.bf16.msra.mxu0 %v378
      %392 = vmatpush.bf16.msra.mxu0 %v377
      %393 = vmatpush.bf16.msra.mxu0 %v376
      %394 = vmatpush.bf16.msra.mxu0 %v375
      %395 = vmatpush.bf16.msra.mxu0 %v374
      %396 = vmatpush.bf16.msra.mxu0 %v373
      %397 = vmatmul.bf16.gmra.mxu0 %v289
      %v398 = vpop.f32.mrf.mxu0
      %v399 = vadd.f32 %v339, %v398
      %v400 = vpop.f32.mrf.mxu0
      %v401 = vadd.f32 %v339, %v400
      %402 = vmatmul.bf16.gmra.mxu0 %v290
      %v403 = vpop.f32.mrf.mxu0
      %v404 = vadd.f32 %v339, %v403
      %v405 = vpop.f32.mrf.mxu0
      %v406 = vadd.f32 %v339, %v405
      %407 = vmatmul.bf16.gmra.mxu0 %v291
      %v408 = vpop.f32.mrf.mxu0
      %v409 = vadd.f32 %v339, %v408
      %v410 = vpop.f32.mrf.mxu0
      %v411 = vadd.f32 %v339, %v410
      %412 = vmatmul.bf16.gmra.mxu0 %v292
      %v413 = vpop.f32.mrf.mxu0
      %v414 = vadd.f32 %v339, %v413
      %v415 = vpop.f32.mrf.mxu0
      %v416 = vadd.f32 %v339, %v415
      %417 = vmatmul.bf16.gmra.mxu0 %v293
      %v418 = vpop.f32.mrf.mxu0
      %v419 = vadd.f32 %v339, %v418
      %v420 = vpop.f32.mrf.mxu0
      %v421 = vadd.f32 %v339, %v420
      %422 = vmatmul.bf16.gmra.mxu0 %v294
      %v423 = vpop.f32.mrf.mxu0
      %v424 = vadd.f32 %v339, %v423
      %v425 = vpop.f32.mrf.mxu0
      %v426 = vadd.f32 %v339, %v425
      %427 = vmatmul.bf16.gmra.mxu0 %v295
      %v428 = vpop.f32.mrf.mxu0
      %v429 = vadd.f32 %v339, %v428
      %v430 = vpop.f32.mrf.mxu0
      %v431 = vadd.f32 %v339, %v430
      %432 = vmatmul.bf16.gmra.mxu0 %v296
      %v433 = vpop.f32.mrf.mxu0
      %v434 = vadd.f32 %v339, %v433
      %v435 = vpop.f32.mrf.mxu0
      %v436 = vadd.f32 %v339, %v435
      %437 = vmatmul.bf16.gmra.mxu0 %v297
      %v438 = vpop.f32.mrf.mxu0
      %v439 = vadd.f32 %v339, %v438
      %v440 = vpop.f32.mrf.mxu0
      %v441 = vadd.f32 %v339, %v440
      %442 = vmatmul.bf16.gmra.mxu0 %v298
      %v443 = vpop.f32.mrf.mxu0
      %v444 = vadd.f32 %v339, %v443
      %v445 = vpop.f32.mrf.mxu0
      %v446 = vadd.f32 %v339, %v445
      %447 = vmatmul.bf16.gmra.mxu0 %v299
      %v448 = vpop.f32.mrf.mxu0
      %v449 = vadd.f32 %v339, %v448
      %v450 = vpop.f32.mrf.mxu0
      %v451 = vadd.f32 %v339, %v450
      %452 = vmatmul.bf16.gmra.mxu0 %v300
      %v453 = vpop.f32.mrf.mxu0
      %v454 = vadd.f32 %v339, %v453
      %v455 = vpop.f32.mrf.mxu0
      %v456 = vadd.f32 %v339, %v455
      %457 = vmatmul.bf16.gmra.mxu0 %v301
      %v458 = vpop.f32.mrf.mxu0
      %v459 = vadd.f32 %v339, %v458
      %v460 = vpop.f32.mrf.mxu0
      %v461 = vadd.f32 %v339, %v460
      %462 = vmatmul.bf16.gmra.mxu0 %v302
      %v463 = vpop.f32.mrf.mxu0
      %v464 = vadd.f32 %v339, %v463
      %v465 = vpop.f32.mrf.mxu0
      %v466 = vadd.f32 %v339, %v465
      %467 = vmatmul.bf16.gmra.mxu0 %v303
      %v468 = vpop.f32.mrf.mxu0
      %v469 = vadd.f32 %v339, %v468
      %v470 = vpop.f32.mrf.mxu0
      %v471 = vadd.f32 %v339, %v470
      %472 = vmatmul.bf16.gmra.mxu0 %v304
      %v473 = vpop.f32.mrf.mxu0
      %v474 = vadd.f32 %v339, %v473
      %v475 = vpop.f32.mrf.mxu0
      %v476 = vadd.f32 %v339, %v475
      %477 = vmatmul.bf16.gmra.mxu0 %v305
      %v478 = vpop.f32.mrf.mxu0
      %v479 = vadd.f32 %v339, %v478
      %v480 = vpop.f32.mrf.mxu0
      %v481 = vadd.f32 %v339, %v480
      %482 = vmatmul.bf16.gmra.mxu0 %v306
      %v483 = vpop.f32.mrf.mxu0
      %v484 = vadd.f32 %v339, %v483
      %v485 = vpop.f32.mrf.mxu0
      %v486 = vadd.f32 %v339, %v485
      %487 = vmatmul.bf16.gmra.mxu0 %v307
      %v488 = vpop.f32.mrf.mxu0
      %v489 = vadd.f32 %v339, %v488
      %v490 = vpop.f32.mrf.mxu0
      %v491 = vadd.f32 %v339, %v490
      %492 = vmatmul.bf16.gmra.mxu0 %v308
      %v493 = vpop.f32.mrf.mxu0
      %v494 = vadd.f32 %v339, %v493
      %v495 = vpop.f32.mrf.mxu0
      %v496 = vadd.f32 %v339, %v495
      %497 = vmatmul.bf16.gmra.mxu0 %v309
      %v498 = vpop.f32.mrf.mxu0
      %v499 = vadd.f32 %v339, %v498
      %v500 = vpop.f32.mrf.mxu0
      %v501 = vadd.f32 %v339, %v500
      %502 = vmatmul.bf16.gmra.mxu0 %v310
      %v503 = vpop.f32.mrf.mxu0
      %v504 = vadd.f32 %v339, %v503
      %v505 = vpop.f32.mrf.mxu0
      %v506 = vadd.f32 %v339, %v505
      %507 = vmatmul.bf16.gmra.mxu0 %v311
      %v508 = vpop.f32.mrf.mxu0
      %v509 = vadd.f32 %v339, %v508
      %v510 = vpop.f32.mrf.mxu0
      %v511 = vadd.f32 %v339, %v510
      %512 = vmatmul.bf16.gmra.mxu0 %v312
      %v513 = vpop.f32.mrf.mxu0
      %v514 = vadd.f32 %v339, %v513
      %v515 = vpop.f32.mrf.mxu0
      %v516 = vadd.f32 %v339, %v515
      %517 = vmatmul.bf16.gmra.mxu0 %v313
      %v518 = vpop.f32.mrf.mxu0
      %v519 = vadd.f32 %v339, %v518
      %v520 = vpop.f32.mrf.mxu0
      %v521 = vadd.f32 %v339, %v520
      %522 = vmatmul.bf16.gmra.mxu0 %v314
      %v523 = vpop.f32.mrf.mxu0
      %v524 = vadd.f32 %v339, %v523
      %v525 = vpop.f32.mrf.mxu0
      %v526 = vadd.f32 %v339, %v525
      %527 = vmatmul.bf16.gmra.mxu0 %v315
      %v528 = vpop.f32.mrf.mxu0
      %v529 = vadd.f32 %v339, %v528
      %v530 = vpop.f32.mrf.mxu0
      %v531 = vadd.f32 %v339, %v530
      %532 = vmatmul.bf16.gmra.mxu0 %v316
      %v533 = vpop.f32.mrf.mxu0
      %v534 = vadd.f32 %v339, %v533
      %v535 = vpop.f32.mrf.mxu0
      %v536 = vadd.f32 %v339, %v535
      %537 = vmatmul.bf16.gmra.mxu0 %v317
      %v538 = vpop.f32.mrf.mxu0
      %v539 = vadd.f32 %v339, %v538
      %v540 = vpop.f32.mrf.mxu0
      %v541 = vadd.f32 %v339, %v540
      %542 = vmatmul.bf16.gmra.mxu0 %v318
      %v543 = vpop.f32.mrf.mxu0
      %v544 = vadd.f32 %v339, %v543
      %v545 = vpop.f32.mrf.mxu0
      %v546 = vadd.f32 %v339, %v545
      %547 = vmatmul.bf16.gmra.mxu0 %v319
      %v548 = vpop.f32.mrf.mxu0
      %v549 = vadd.f32 %v339, %v548
      %v550 = vpop.f32.mrf.mxu0
      %v551 = vadd.f32 %v339, %v550
      %552 = vmatmul.bf16.gmra.mxu0 %v320
      %v553 = vpop.f32.mrf.mxu0
      %v554 = vadd.f32 %v339, %v553
      %v555 = vpop.f32.mrf.mxu0
      %v556 = vadd.f32 %v339, %v555
      %557 = vdwg.mxu0
      %v558 = vmax.f32 %v399, 0.0
      %v559 = vmax.f32 %v401, 0.0
      %v560 = vmax.f32 %v404, 0.0
      %v561 = vmax.f32 %v406, 0.0
      %v562 = vmax.f32 %v409, 0.0
      %v563 = vmax.f32 %v411, 0.0
      %v564 = vmax.f32 %v414, 0.0
      %v565 = vmax.f32 %v416, 0.0
      %v566 = vmax.f32 %v419, 0.0
      %v567 = vmax.f32 %v421, 0.0
      %v568 = vmax.f32 %v424, 0.0
      %v569 = vmax.f32 %v426, 0.0
      %v570 = vmax.f32 %v429, 0.0
      %v571 = vmax.f32 %v431, 0.0
      %v572 = vmax.f32 %v434, 0.0
      %v573 = vmax.f32 %v436, 0.0
      %v574 = vmax.f32 %v439, 0.0
      %v575 = vmax.f32 %v441, 0.0
      %v576 = vmax.f32 %v444, 0.0
      %v577 = vmax.f32 %v446, 0.0
      %v578 = vmax.f32 %v449, 0.0
      %v579 = vmax.f32 %v451, 0.0
      %v580 = vmax.f32 %v454, 0.0
      %v581 = vmax.f32 %v456, 0.0
      %v582 = vmax.f32 %v459, 0.0
      %v583 = vmax.f32 %v461, 0.0
      %v584 = vmax.f32 %v464, 0.0
      %v585 = vmax.f32 %v466, 0.0
      %v586 = vmax.f32 %v469, 0.0
      %v587 = vmax.f32 %v471, 0.0
      %v588 = vmax.f32 %v474, 0.0
      %v589 = vmax.f32 %v476, 0.0
      %v590 = vmax.f32 %v479, 0.0
      %v591 = vmax.f32 %v481, 0.0
      %v592 = vmax.f32 %v484, 0.0
      %v593 = vmax.f32 %v486, 0.0
      %v594 = vmax.f32 %v489, 0.0
      %v595 = vmax.f32 %v491, 0.0
      %v596 = vmax.f32 %v494, 0.0
      %v597 = vmax.f32 %v496, 0.0
      %v598 = vmax.f32 %v499, 0.0
      %v599 = vmax.f32 %v501, 0.0
      %v600 = vmax.f32 %v504, 0.0
      %v601 = vmax.f32 %v506, 0.0
      %v602 = vmax.f32 %v509, 0.0
      %v603 = vmax.f32 %v511, 0.0
      %v604 = vmax.f32 %v514, 0.0
      %v605 = vmax.f32 %v516, 0.0
      %v606 = vmax.f32 %v519, 0.0
      %v607 = vmax.f32 %v521, 0.0
      %v608 = vmax.f32 %v524, 0.0
      %v609 = vmax.f32 %v526, 0.0
      %v610 = vmax.f32 %v529, 0.0
      %v611 = vmax.f32 %v531, 0.0
      %v612 = vmax.f32 %v534, 0.0
      %v613 = vmax.f32 %v536, 0.0
      %v614 = vmax.f32 %v539, 0.0
      %v615 = vmax.f32 %v541, 0.0
      %v616 = vmax.f32 %v544, 0.0
      %v617 = vmax.f32 %v546, 0.0
      %v618 = vmax.f32 %v549, 0.0
      %v619 = vmax.f32 %v551, 0.0
      %v620 = vmax.f32 %v554, 0.0
      %v621 = vmax.f32 %v556, 0.0
      %622 = vst [vmem:[%s223] sm:$0xff] %v558
      %623 = vst [vmem:[%s223 + $0x8] sm:$0xff] %v559
      %624 = vst [vmem:[%s223 + $0x10] sm:$0xff] %v560
      %625 = vst [vmem:[%s223 + $0x18] sm:$0xff] %v561
      %626 = vst [vmem:[%s223 + $0x20] sm:$0xff] %v562
      %627 = vst [vmem:[%s223 + $0x28] sm:$0xff] %v563
      %628 = vst [vmem:[%s223 + $0x30] sm:$0xff] %v564
      %629 = vst [vmem:[%s223 + $0x38] sm:$0xff] %v565
      %630 = vst [vmem:[%s223 + $0x40] sm:$0xff] %v566
      %631 = vst [vmem:[%s223 + $0x48] sm:$0xff] %v567
      %632 = vst [vmem:[%s223 + $0x50] sm:$0xff] %v568
      %633 = vst [vmem:[%s223 + $0x58] sm:$0xff] %v569
      %634 = vst [vmem:[%s223 + $0x60] sm:$0xff] %v570
      %635 = vst [vmem:[%s223 + $0x68] sm:$0xff] %v571
      %636 = vst [vmem:[%s223 + $0x70] sm:$0xff] %v572
      %637 = vst [vmem:[%s223 + $0x78] sm:$0xff] %v573
      %638 = vst [vmem:[%s223 + $0x80] sm:$0xff] %v574
      %639 = vst [vmem:[%s223 + $0x88] sm:$0xff] %v575
      %640 = vst [vmem:[%s223 + $0x90] sm:$0xff] %v576
      %641 = vst [vmem:[%s223 + $0x98] sm:$0xff] %v577
      %642 = vst [vmem:[%s223 + $0xa0] sm:$0xff] %v578
      %643 = vst [vmem:[%s223 + $0xa8] sm:$0xff] %v579
      %644 = vst [vmem:[%s223 + $0xb0] sm:$0xff] %v580
      %645 = vst [vmem:[%s223 + $0xb8] sm:$0xff] %v581
      %646 = vst [vmem:[%s223 + $0xc0] sm:$0xff] %v582
      %647 = vst [vmem:[%s223 + $0xc8] sm:$0xff] %v583
      %648 = vst [vmem:[%s223 + $0xd0] sm:$0xff] %v584
      %649 = vst [vmem:[%s223 + $0xd8] sm:$0xff] %v585
      %650 = vst [vmem:[%s223 + $0xe0] sm:$0xff] %v586
      %651 = vst [vmem:[%s223 + $0xe8] sm:$0xff] %v587
      %652 = vst [vmem:[%s223 + $0xf0] sm:$0xff] %v588
      %653 = vst [vmem:[%s223 + $0xf8] sm:$0xff] %v589
      %654 = vst [vmem:[%s223 + $0x100] sm:$0xff] %v590
      %655 = vst [vmem:[%s223 + $0x108] sm:$0xff] %v591
      %656 = vst [vmem:[%s223 + $0x110] sm:$0xff] %v592
      %657 = vst [vmem:[%s223 + $0x118] sm:$0xff] %v593
      %658 = vst [vmem:[%s223 + $0x120] sm:$0xff] %v594
      %659 = vst [vmem:[%s223 + $0x128] sm:$0xff] %v595
      %660 = vst [vmem:[%s223 + $0x130] sm:$0xff] %v596
      %661 = vst [vmem:[%s223 + $0x138] sm:$0xff] %v597
      %662 = vst [vmem:[%s223 + $0x140] sm:$0xff] %v598
      %663 = vst [vmem:[%s223 + $0x148] sm:$0xff] %v599
      %664 = vst [vmem:[%s223 + $0x150] sm:$0xff] %v600
      %665 = vst [vmem:[%s223 + $0x158] sm:$0xff] %v601
      %666 = vst [vmem:[%s223 + $0x160] sm:$0xff] %v602
      %667 = vst [vmem:[%s223 + $0x168] sm:$0xff] %v603
      %668 = vst [vmem:[%s223 + $0x170] sm:$0xff] %v604
      %669 = vst [vmem:[%s223 + $0x178] sm:$0xff] %v605
      %670 = vst [vmem:[%s223 + $0x180] sm:$0xff] %v606
      %671 = vst [vmem:[%s223 + $0x188] sm:$0xff] %v607
      %672 = vst [vmem:[%s223 + $0x190] sm:$0xff] %v608
      %673 = vst [vmem:[%s223 + $0x198] sm:$0xff] %v609
      %674 = vst [vmem:[%s223 + $0x1a0] sm:$0xff] %v610
      %675 = vst [vmem:[%s223 + $0x1a8] sm:$0xff] %v611
      %676 = vst [vmem:[%s223 + $0x1b0] sm:$0xff] %v612
      %677 = vst [vmem:[%s223 + $0x1b8] sm:$0xff] %v613
      %678 = vst [vmem:[%s223 + $0x1c0] sm:$0xff] %v614
      %679 = vst [vmem:[%s223 + $0x1c8] sm:$0xff] %v615
      %680 = vst [vmem:[%s223 + $0x1d0] sm:$0xff] %v616
      %681 = vst [vmem:[%s223 + $0x1d8] sm:$0xff] %v617
      %682 = vst [vmem:[%s223 + $0x1e0] sm:$0xff] %v618
      %683 = vst [vmem:[%s223 + $0x1e8] sm:$0xff] %v619
      %684 = vst [vmem:[%s223 + $0x1f0] sm:$0xff] %v620
      %685 = vst [vmem:[%s223 + $0x1f8] sm:$0xff] %v621
      %s686 = smul.u32 64, %s18
      %p687 = scmp.lt.s32.totalorder %s686, 255
      %s688 = scalar_select %p687, %s686, 255
      %p689 = scmp.lt.s32.totalorder %s19, 0
      %s690 = scalar_select %p689, %s19, 0
      %s691 = sadd.s32 %s690, %s688
      %s692 = smul.addr %s691, 8
      %s693 = scalar_lea.vmem %s3, %s692
      // Predicated region
      $region33: #{_lambda_.33} parent=31 // pred_check
        %p694 = pneg %p124
      $region34: #{_lambda_.33} parent=31 // pred_check_branch
        %696 = sbr.rel (%p694) target = $region36
      $region35: #{_lambda_.33} parent=31 // pred_region
        %s697 = smul.u32 64, %s18
      $region36: #{_lambda_.33} parent=31 // pred_fallthru
        _
    $region32: #{_lambda_.33} parent=5 // pred_fallthru
      _
    %p698 = scmp.le.s32.totalorder 2, %s9
    // Predicated region
    $region37: #{_lambda_.33} parent=5 // pred_check
      %p699 = pneg %p698
    $region38: #{_lambda_.33} parent=5 // pred_check_branch
      %701 = sbr.rel (%p699) target = $region40
    $region39: #{_lambda_.33} parent=5 // pred_region
      %s702 = ssub.s32 %s9, 2
      // Predicated region
      $region41: #{_lambda_.33} parent=39 // pred_check
        %p703 = pneg %p130
      $region42: #{_lambda_.33} parent=39 // pred_check_branch
        %705 = sbr.rel (%p703) target = $region44
      $region43: #{_lambda_.33} parent=39 // pred_region
        %s706 = smul.u32 64, %s20
        %p707 = scmp.lt.s32.totalorder %s706, 255
        %s708 = scalar_select %p707, %s706, 255
        %p709 = scmp.lt.s32.totalorder %s21, 0
        %s710 = scalar_select %p709, %s21, 0
        %s711 = sadd.s32 %s710, %s708
        %s712 = smul.addr %s711, 8
        %s713 = scalar_lea.vmem %s3, %s712
      $region44: #{_lambda_.33} parent=39 // pred_fallthru
        _
    $region40: #{_lambda_.33} parent=5 // pred_fallthru
      _
  $region6: #{_lambda_.33} parent=0 // loop_footer
    %s13 = sadd.s32 1, %s9
  $region7: #{_lambda_.33} parent=0 // loop_footer_branch
    %8 = sbr.rel target = $region3
  $region8: #{_lambda_.33} parent=0 // loop_exit
    _

</llo_original>
